<compile_context>
chip_gen: v7x
topology: tpu7x:2x2x1
jax: 0.10.0
libtpu: 0.0.40
codegen_flags: <defaults>
</compile_context>

<pallas_src>
import functools

import jax
import jax.numpy as jnp
from jax.experimental import pallas as pl
from jax.experimental.pallas import tpu as pltpu


# ---------------------------------------------------------------------------
# Pallas kernel: BW attention windows per grid step
# ---------------------------------------------------------------------------
def _ocab_attn_kernel(
    xw_ref,      # (BW, nq, c)   RAW tokens of the q/k/v windows (compute dtype)
    xow_ref,     # (BW, n,  c)   RAW tokens of the overlapping windows
    mask_ref,    # (BW, n,  1)   1 inside the image, 0 in the zero-padded border
    ln_g_ref,    # (1, c)  f32   LayerNorm gamma
    ln_b_ref,    # (1, c)  f32   LayerNorm beta
    wqkv_ref,    # (c, 3c)       qkv Linear (q third pre-scaled by `scale`)
    bqkv_ref,    # (1, 3c) f32
    wa_ref,      # (c, c)        anchor Linear
    ba_ref,      # (1, c)  f32
    wp_ref,      # (c, c)        output proj Linear
    bp_ref,      # (1, c)  f32
    bias_ref,    # (nh, nq, n)   relative position bias (compute dtype)
    out_ref,     # (BW, nq, c)   compute dtype
    qkv_s,       # VMEM (BW*nq, 3c) scratch (compute dtype)
    anc_s,       # VMEM (BW*n,  c)  scratch (compute dtype)
    o_s,         # VMEM (BW*nq, c)  scratch (compute dtype) - head-concat staging
    *,
    num_heads,
    head_dim,
    bw,
    nq,
    n,
    compute_dtype,
    ln_eps,
    approx_recip,
):
    c = num_heads * head_dim
    f32 = jnp.float32

    gamma = ln_g_ref[...]
    beta = ln_b_ref[...]

    def layer_norm(t):  # (rows, c) compute dtype -> (rows, c) f32
        tf = t.astype(f32)
        mu = jnp.mean(tf, axis=-1, keepdims=True)
        var = jnp.mean(jnp.square(tf - mu), axis=-1, keepdims=True)
        return (tf - mu) * jax.lax.rsqrt(var + ln_eps) * gamma + beta

    # Flatten the window batch so the Linears run as single large matmuls.
    # (Leading-dim merges only -> layout no-ops.)
    xw = xw_ref[...].reshape(bw * nq, c)
    xow = xow_ref[...].reshape(bw * n, c)
    mask = mask_ref[...].reshape(bw * n, 1).astype(f32)

    # Fused LayerNorm + qkv projection (q-scale already folded into wqkv/bqkv).
    xn_w = layer_norm(xw).astype(compute_dtype)
    qkv = jnp.dot(xn_w, wqkv_ref[...], preferred_element_type=f32) + bqkv_ref[...]
    qkv_s[...] = qkv.astype(compute_dtype)

    # Fused LayerNorm + anchor projection on the overlapping windows; the mask
    # reproduces nn.Unfold's zero padding, which is applied AFTER the anchor Linear.
    xn_o = layer_norm(xow).astype(compute_dtype)
    anc = jnp.dot(xn_o, wa_ref[...], preferred_element_type=f32) + ba_ref[...]
    anc_s[...] = (anc * mask).astype(compute_dtype)

    # Per-head two-stage attention; head outputs are staged into o_s so the output
    # projection becomes a single full-width matmul instead of nh tiny-K matmuls.
    # TODO(synk): switch the static head unroll to lax.fori_loop with dynamic lane
    # slices for configs with many heads, to bound vreg live ranges further.
    for h in range(num_heads):
        q_sl = slice(h * head_dim, (h + 1) * head_dim)
        k_sl = slice(c + h * head_dim, c + (h + 1) * head_dim)
        v_sl = slice(2 * c + h * head_dim, 2 * c + (h + 1) * head_dim)

        qh = qkv_s[:, q_sl].reshape(bw, nq, head_dim)
        kh = qkv_s[:, k_sl].reshape(bw, nq, head_dim)
        vh = qkv_s[:, v_sl].reshape(bw, nq, head_dim)
        ah = anc_s[:, q_sl].reshape(bw, n, head_dim)

        # (BW, nq, n): (scale*q) @ anchor^T + relative position bias
        attn_qa = jnp.einsum('bqd,bnd->bqn', qh, ah,
                             preferred_element_type=f32)
        attn_qa = attn_qa + bias_ref[h][None].astype(f32)
        # (BW, n, nq): anchor @ k^T
        attn_ak = jnp.einsum('bnd,bkd->bnk', ah, kh,
                             preferred_element_type=f32)
        # (BW, nq, nq): fused logits; single softmax over last dim (as in OCAB).
        s = jnp.einsum('bqn,bnk->bqk',
                       attn_qa.astype(compute_dtype),
                       attn_ak.astype(compute_dtype),
                       preferred_element_type=f32)
        s = s - jnp.max(s, axis=-1, keepdims=True)
        p = jnp.exp(s)
        denom = jnp.sum(p, axis=-1, keepdims=True)
        p = p * pl.reciprocal(denom, approx=approx_recip)
        # (BW, nq, d)
        o_h = jnp.einsum('bqk,bkd->bqd', p.astype(compute_dtype), vh,
                         preferred_element_type=f32)
        o_s[:, q_sl] = o_h.reshape(bw * nq, head_dim).astype(compute_dtype)

    # Single full-width output projection over the lane-concatenated head outputs.
    y = jnp.dot(o_s[...], wp_ref[...], preferred_element_type=f32) + bp_ref[...]
    out_ref[...] = y.reshape(bw, nq, c).astype(out_ref.dtype)


# ---------------------------------------------------------------------------
# VMEM / grid heuristics (generation gated)
# ---------------------------------------------------------------------------
def _device_vmem_and_multicore():
    """Physical VMEM bytes per core and whether the chip has >1 TensorCore."""
    vmem_cap = 64 * 1024 * 1024     # conservative fallback (v7x-class)
    multi_tc = False
    try:
        info = pltpu.get_tpu_info()
        cap = int(getattr(info, "vmem_capacity_bytes", 0) or 0)
        if cap:
            vmem_cap = cap
    except Exception:
        pass
    vmem_cap = max(32 * 1024 * 1024, min(vmem_cap, 256 * 1024 * 1024))
    try:
        kind = jax.devices()[0].device_kind.lower()
        multi_tc = any(tag in kind for tag in ("v4", "v5p", "v7", "7x"))
    except Exception:
        pass
    return vmem_cap, multi_tc


def _vmem_budget_and_limit(vmem_cap):
    if vmem_cap <= 64 * 1024 * 1024:      # v7x-class: 64 MiB per TensorCore
        budget = 44 * 1024 * 1024
    else:                                 # v5e / v6e: 128 MiB physical
        budget = 64 * 1024 * 1024
    limit = min(budget + 12 * 1024 * 1024, int(vmem_cap * 0.85))
    limit = max(limit, 32 * 1024 * 1024)
    return budget, int(limit)


def _per_step_vmem_bytes(bw, nq, n_pad, c, num_heads, in_bytes, out_bytes):
    """Conservative estimate of VMEM used by one grid step."""
    head_dim = c // num_heads
    f32b = 4
    # double-buffered input blocks (xw, xow, mask)
    blk_in = bw * (nq * c + n_pad * c + n_pad) * in_bytes
    # double-buffered output block
    blk_out = bw * nq * c * out_bytes
    # weights / biases / rpb (resident but counted x2 for Pallas double-buffering)
    fixed = ((3 * c * c + 2 * c * c + num_heads * nq * n_pad) * in_bytes
             + (3 * c + 4 * c) * f32b)
    # single-buffered VMEM scratch (qkv, anc, head-output staging)
    scratch = bw * (3 * nq * c + n_pad * c + nq * c) * in_bytes
    # f32 intermediates kept live (LN temps, attention matrices, softmax)
    interm = bw * (2 * nq * n_pad + 2 * nq * nq + max(nq, n_pad) * c
                   + nq * c + nq * head_dim) * f32b
    return 2 * (blk_in + blk_out + fixed) + scratch + interm


def _choose_windows_per_step(num_windows, bytes_fn, budget, multi_tc):
    """Window batch BW and step count; steps*BW may exceed num_windows (padding)."""
    fit = 1
    for cand in range(num_windows, 0, -1):    # bytes_fn is monotonic in bw
        if bytes_fn(cand) <= budget:
            fit = cand
            break
    steps = -(-num_windows // fit)
    if multi_tc and num_windows > 1:
        # >= 2 steps and an even step count so both TensorCores get equal work.
        steps = max(steps, 2)
        if steps % 2:
            steps += 1
    bw = -(-num_windows // steps)             # balanced batch; bw <= fit
    return bw, steps


# ---------------------------------------------------------------------------
# Pallas wrapper: fused LN + OCAB attention over all windows
# ---------------------------------------------------------------------------
def ocab_attention_windows(xw, xow, mask, ln_g, ln_b, wqkv, bqkv, wa, ba, wp, bp,
                           rpb, *, num_heads, scale, compute_dtype=jnp.bfloat16):
    bwin, nq, c = xw.shape
    n = xow.shape[1]
    head_dim = c // num_heads
    f32 = jnp.float32
    cd = compute_dtype

    # Pad the overlap-token dim to a sublane multiple of 8; the zero mask keeps the
    # padded anchor rows at exactly 0 so they contribute nothing.
    n_pad = -(-n // 8) * 8
    if n_pad != n:
        xow = jnp.pad(xow, ((0, 0), (0, n_pad - n), (0, 0)))
        mask = jnp.pad(mask, ((0, 0), (0, n_pad - n), (0, 0)))
        rpb = jnp.pad(rpb, ((0, 0), (0, 0), (0, n_pad - n)))

    # Fold the q scale into the q third of the qkv weights/bias.
    col_scale = jnp.concatenate(
        [jnp.full((c,), scale, wqkv.dtype), jnp.ones((2 * c,), wqkv.dtype)])
    wqkv = wqkv * col_scale
    bqkv = bqkv.reshape(1, 3 * c) * col_scale

    # dtype prep: MXU operands / rpb / mask in compute dtype; biases + LN params f32.
    xw = xw.astype(cd)
    xow = xow.astype(cd)
    mask = mask.astype(cd)
    rpb = rpb.astype(cd)
    wqkv_c = wqkv.astype(cd)
    wa_c = wa.astype(cd)
    wp_c = wp.astype(cd)
    bqkv = bqkv.astype(f32)
    ba = ba.reshape(1, c).astype(f32)
    bp = bp.reshape(1, c).astype(f32)
    ln_g = ln_g.reshape(1, c).astype(f32)
    ln_b = ln_b.reshape(1, c).astype(f32)

    out_dtype = cd
    in_b = jnp.dtype(cd).itemsize
    out_b = jnp.dtype(out_dtype).itemsize

    vmem_cap, multi_tc = _device_vmem_and_multicore()
    budget, vmem_limit = _vmem_budget_and_limit(vmem_cap)
    bytes_fn = functools.partial(_per_step_vmem_bytes, nq=nq, n_pad=n_pad, c=c,
                                 num_heads=num_heads, in_bytes=in_b, out_bytes=out_b)
    bw, steps = _choose_windows_per_step(bwin, lambda w_: bytes_fn(w_), budget,
                                         multi_tc)

    # Window-dim padding so BW need not divide the window count (balanced steps).
    bwin_pad = bw * steps
    if bwin_pad != bwin:
        padw = bwin_pad - bwin
        xw = jnp.pad(xw, ((0, padw), (0, 0), (0, 0)))
        xow = jnp.pad(xow, ((0, padw), (0, 0), (0, 0)))
        mask = jnp.pad(mask, ((0, padw), (0, 0), (0, 0)))

    kernel = functools.partial(
        _ocab_attn_kernel, num_heads=num_heads, head_dim=head_dim,
        bw=bw, nq=nq, n=n_pad, compute_dtype=cd, ln_eps=1e-5,
        approx_recip=(jnp.dtype(cd) != jnp.dtype(jnp.float32)))

    grid_spec = pltpu.PrefetchScalarGridSpec(
        num_scalar_prefetch=0,
        grid=(steps,),
        in_specs=[
            pl.BlockSpec((bw, nq, c), lambda i: (i, 0, 0)),             # xw
            pl.BlockSpec((bw, n_pad, c), lambda i: (i, 0, 0)),          # xow
            pl.BlockSpec((bw, n_pad, 1), lambda i: (i, 0, 0)),          # mask
            pl.BlockSpec((1, c), lambda i: (0, 0)),                     # ln gamma
            pl.BlockSpec((1, c), lambda i: (0, 0)),                     # ln beta
            pl.BlockSpec((c, 3 * c), lambda i: (0, 0)),                 # wqkv
            pl.BlockSpec((1, 3 * c), lambda i: (0, 0)),                 # bqkv
            pl.BlockSpec((c, c), lambda i: (0, 0)),                     # wa
            pl.BlockSpec((1, c), lambda i: (0, 0)),                     # ba
            pl.BlockSpec((c, c), lambda i: (0, 0)),                     # wp
            pl.BlockSpec((1, c), lambda i: (0, 0)),                     # bp
            pl.BlockSpec((num_heads, nq, n_pad), lambda i: (0, 0, 0)),  # rel-pos bias
        ],
        out_specs=pl.BlockSpec((bw, nq, c), lambda i: (i, 0, 0)),
        scratch_shapes=[
            pltpu.VMEM((bw * nq, 3 * c), cd),     # qkv staging
            pltpu.VMEM((bw * n_pad, c), cd),      # anchor staging
            pltpu.VMEM((bw * nq, c), cd),         # head-output staging
        ],
    )

    out = pl.pallas_call(
        kernel,
        grid_spec=grid_spec,
        out_shape=jax.ShapeDtypeStruct((bwin_pad, nq, c), out_dtype),
        compiler_params=pltpu.CompilerParams(
            dimension_semantics=("parallel",),
            vmem_limit_bytes=vmem_limit),
    )(xw, xow, mask, ln_g, ln_b, wqkv_c, bqkv, wa_c, ba, wp_c, bp, rpb)

    return out[:bwin] if bwin_pad != bwin else out


# ---------------------------------------------------------------------------
# Plain-JAX glue (window partition/reverse, unfold gather, rpi)
# ---------------------------------------------------------------------------
def window_partition(x, ws):
    b, h, w, c = x.shape
    x = x.reshape(b, h // ws, ws, w // ws, ws, c)
    return x.transpose(0, 1, 3, 2, 4, 5).reshape(-1, ws, ws, c)


def window_reverse(windows, ws, h, w):
    b = windows.shape[0] // (h * w // ws // ws)
    x = windows.reshape(b, h // ws, w // ws, ws, ws, -1)
    return x.transpose(0, 1, 3, 2, 4, 5).reshape(b, h, w, -1)


def calculate_rpi_oca(ws, owin):
    """Relative position index (ws*ws, owin*owin), values in [0, (ws+owin-1)^2)."""
    ch = jnp.arange(ws)
    coords_ori = jnp.stack(jnp.meshgrid(ch, ch, indexing="ij")).reshape(2, -1)
    ce = jnp.arange(owin)
    coords_ext = jnp.stack(jnp.meshgrid(ce, ce, indexing="ij")).reshape(2, -1)
    rel = coords_ori[:, :, None] - coords_ext[:, None, :]      # (2, ws*ws, owin*owin)
    rel = rel.transpose(1, 2, 0) + (owin - 1)
    return rel[..., 0] * (ws + owin - 1) + rel[..., 1]


def ocab_forward(x, x_size, rpi, params, *, window_size, overlap_win_size,
                 num_heads, compute_dtype=jnp.bfloat16):
    h, w = x_size
    b, _, c = x.shape
    ws, owin = window_size, overlap_win_size
    shortcut = x

    # Raw (un-normalized) tokens go to the kernel; LayerNorm is fused inside.
    x4 = x.reshape(b, h, w, c).astype(compute_dtype)

    # non-overlapping windows -> q/k/v source
    xw = window_partition(x4, ws).reshape(-1, ws * ws, c)       # (b*nw, nq, c)

    # overlapping windows (== nn.Unfold with zero pad); anchor Linear runs inside
    # the kernel, then zero-padded positions are masked out via `mask`.
    pad = (owin - ws) // 2
    xpad = jnp.pad(x4, ((0, 0), (pad, pad), (pad, pad), (0, 0)))
    nwh, nww = h // ws, w // ws
    rows = (jnp.arange(nwh) * ws)[:, None] + jnp.arange(owin)[None, :]   # (nwh, owin)
    cols = (jnp.arange(nww) * ws)[:, None] + jnp.arange(owin)[None, :]   # (nww, owin)
    xow = xpad[:, rows]                 # (b, nwh, owin, wp, c)
    xow = xow[:, :, :, cols]            # (b, nwh, owin, nww, owin, c)
    xow = xow.transpose(0, 1, 3, 2, 4, 5).reshape(-1, owin * owin, c)    # (b*nw, n, c)

    valid_h = ((rows >= pad) & (rows < h + pad)).astype(compute_dtype)
    valid_w = ((cols >= pad) & (cols < w + pad)).astype(compute_dtype)
    mask = valid_h[:, None, :, None] * valid_w[None, :, None, :]         # (nwh,nww,ow,ow)
    mask = mask.reshape(nwh * nww, owin * owin)
    mask = jnp.tile(mask, (b, 1))[:, :, None]                            # (b*nw, n, 1)

    # relative position bias gather: (nh, nq, n)
    rpb = params["rpb_table"][rpi.reshape(-1)]
    rpb = rpb.reshape(ws * ws, owin * owin, num_heads).transpose(2, 0, 1)

    scale = (c // num_heads) ** (-0.5)
    out_w = ocab_attention_windows(
        xw, xow, mask,
        params["ln_g"], params["ln_b"],
        params["wqkv"], params["bqkv"],
        params["wa"], params["ba"],
        params["wp"], params["bp"],
        rpb,
        num_heads=num_heads, scale=scale, compute_dtype=compute_dtype,
    )                                                                    # (b*nw, nq, c)

    x_attn = window_reverse(out_w.reshape(-1, ws, ws, c), ws, h, w).reshape(b, h * w, c)
    return x_attn.astype(shortcut.dtype) + shortcut


# ---------------------------------------------------------------------------
# Main
# ---------------------------------------------------------------------------
if __name__ == "__main__":
    dim = 32
    num_heads = 2
    window_size = 4
    overlap_ratio = 0.5
    overlap_win_size = int(window_size * overlap_ratio) + window_size    # 6
    h = w = 8
    b = 2

    key = jax.random.PRNGKey(0)
    keys = jax.random.split(key, 9)

    params = {
        "ln_g": jnp.ones((dim,), jnp.float32),
        "ln_b": jnp.zeros((dim,), jnp.float32),
        "wqkv": jax.random.normal(keys[0], (dim, 3 * dim), jnp.float32) * 0.05,
        "bqkv": jax.random.normal(keys[1], (1, 3 * dim), jnp.float32) * 0.02,
        "wa":   jax.random.normal(keys[2], (dim, dim), jnp.float32) * 0.05,
        "ba":   jax.random.normal(keys[3], (1, dim), jnp.float32) * 0.02,
        "wp":   jax.random.normal(keys[4], (dim, dim), jnp.float32) * 0.05,
        "bp":   jax.random.normal(keys[5], (1, dim), jnp.float32) * 0.02,
        "rpb_table": jax.random.truncated_normal(
            keys[6], -2.0, 2.0,
            ((window_size + overlap_win_size - 1) ** 2, num_heads), jnp.float32) * 0.02,
        # TODO(synk): norm2 / Mlp params exist in OCAB.__init__ but are never used
        # in OCAB.forward, so they are omitted here.
    }

    x = jax.random.normal(keys[7], (b, h * w, dim), jnp.float32)
    rpi = calculate_rpi_oca(window_size, overlap_win_size)               # (16, 36)

    out = ocab_forward(
        x, (h, w), rpi, params,
        window_size=window_size,
        overlap_win_size=overlap_win_size,
        num_heads=num_heads,
        compute_dtype=jnp.bfloat16,   # bf16 MXU inputs, f32 accumulation/softmax
    )
    jax.block_until_ready(out)
    assert out.shape == (b, h * w, dim)
    assert bool(jnp.all(jnp.isfinite(out)))
    print("KERNEL_OK")
</pallas_src>

<mosaic_0001>
module attributes {stable_mosaic.version = 11 : i64} {
  func.func @_ocab_attn_kernel(%arg0: i32, %arg1: memref<8x16x32xbf16, #tpu.memory_space<vmem>>, %arg2: memref<8x40x32xbf16, #tpu.memory_space<vmem>>, %arg3: memref<8x40x1xbf16, #tpu.memory_space<vmem>>, %arg4: memref<1x32xf32, #tpu.memory_space<vmem>>, %arg5: memref<1x32xf32, #tpu.memory_space<vmem>>, %arg6: memref<32x96xbf16, #tpu.memory_space<vmem>>, %arg7: memref<1x96xf32, #tpu.memory_space<vmem>>, %arg8: memref<32x32xbf16, #tpu.memory_space<vmem>>, %arg9: memref<1x32xf32, #tpu.memory_space<vmem>>, %arg10: memref<32x32xbf16, #tpu.memory_space<vmem>>, %arg11: memref<1x32xf32, #tpu.memory_space<vmem>>, %arg12: memref<2x16x40xbf16, #tpu.memory_space<vmem>>, %arg13: memref<8x16x32xbf16, #tpu.memory_space<vmem>>, %arg14: memref<128x96xbf16, #tpu.memory_space<vmem>>, %arg15: memref<320x32xbf16, #tpu.memory_space<vmem>>, %arg16: memref<128x32xbf16, #tpu.memory_space<vmem>>) attributes {dimension_semantics = [#tpu.dimension_semantics<parallel>], iteration_bounds = array<i64: 1>, scalar_prefetch = 0 : i64, scratch_operands = 3 : i64, tpu.core_type = #tpu.core_type<tc>, window_params = [{transform_indices = @transform_0, window_bounds = array<i64: 8, 16, 32>}, {transform_indices = @transform_1, window_bounds = array<i64: 8, 40, 32>}, {transform_indices = @transform_2, window_bounds = array<i64: 8, 40, 1>}, {pipeline_mode = #tpu.pipeline_mode<synchronous>, transform_indices = @transform_3, window_bounds = array<i64: 1, 32>}, {pipeline_mode = #tpu.pipeline_mode<synchronous>, transform_indices = @transform_4, window_bounds = array<i64: 1, 32>}, {pipeline_mode = #tpu.pipeline_mode<synchronous>, transform_indices = @transform_5, window_bounds = array<i64: 32, 96>}, {pipeline_mode = #tpu.pipeline_mode<synchronous>, transform_indices = @transform_6, window_bounds = array<i64: 1, 96>}, {pipeline_mode = #tpu.pipeline_mode<synchronous>, transform_indices = @transform_7, window_bounds = array<i64: 32, 32>}, {pipeline_mode = #tpu.pipeline_mode<synchronous>, transform_indices = @transform_8, window_bounds = array<i64: 1, 32>}, {pipeline_mode = #tpu.pipeline_mode<synchronous>, transform_indices = @transform_9, window_bounds = array<i64: 32, 32>}, {pipeline_mode = #tpu.pipeline_mode<synchronous>, transform_indices = @transform_10, window_bounds = array<i64: 1, 32>}, {pipeline_mode = #tpu.pipeline_mode<synchronous>, transform_indices = @transform_11, window_bounds = array<i64: 2, 16, 40>}, {transform_indices = @transform_12, window_bounds = array<i64: 8, 16, 32>}]} {
    %c0 = arith.constant 0 : index
    %c0_0 = arith.constant 0 : index
    %0 = vector.load %arg4[%c0, %c0_0] : memref<1x32xf32, #tpu.memory_space<vmem>>, vector<1x32xf32>
    %c0_1 = arith.constant 0 : index
    %c0_2 = arith.constant 0 : index
    %1 = vector.load %arg5[%c0_1, %c0_2] : memref<1x32xf32, #tpu.memory_space<vmem>>, vector<1x32xf32>
    %c0_3 = arith.constant 0 : index
    %c0_4 = arith.constant 0 : index
    %c0_5 = arith.constant 0 : index
    %2 = vector.load %arg1[%c0_3, %c0_4, %c0_5] : memref<8x16x32xbf16, #tpu.memory_space<vmem>>, vector<8x16x32xbf16>
    %3 = vector.shape_cast %2 : vector<8x16x32xbf16> to vector<128x32xbf16>
    %c0_6 = arith.constant 0 : index
    %c0_7 = arith.constant 0 : index
    %c0_8 = arith.constant 0 : index
    %4 = vector.load %arg2[%c0_6, %c0_7, %c0_8] : memref<8x40x32xbf16, #tpu.memory_space<vmem>>, vector<8x40x32xbf16>
    %5 = vector.shape_cast %4 : vector<8x40x32xbf16> to vector<320x32xbf16>
    %c0_9 = arith.constant 0 : index
    %c0_10 = arith.constant 0 : index
    %c0_11 = arith.constant 0 : index
    %6 = vector.load %arg3[%c0_9, %c0_10, %c0_11] : memref<8x40x1xbf16, #tpu.memory_space<vmem>>, vector<8x40x1xbf16>
    %7 = vector.shape_cast %6 : vector<8x40x1xbf16> to vector<320x1xbf16>
    %8 = arith.extf %7 : vector<320x1xbf16> to vector<320x1xf32>
    %9 = arith.extf %3 : vector<128x32xbf16> to vector<128x32xf32>
    %cst = arith.constant dense<0.000000e+00> : vector<128xf32>
    %10 = vector.multi_reduction <add>, %9, %cst [1] : vector<128x32xf32> to vector<128xf32>
    %11 = vector.shape_cast %10 : vector<128xf32> to vector<128x1xf32>
    %cst_12 = arith.constant 3.200000e+01 : f32
    %12 = vector.broadcast %cst_12 : f32 to vector<128x1xf32>
    %13 = arith.divf %11, %12 : vector<128x1xf32>
    %14 = vector.broadcast %13 : vector<128x1xf32> to vector<128x32xf32>
    %15 = arith.subf %9, %14 : vector<128x32xf32>
    %16 = arith.mulf %15, %15 : vector<128x32xf32>
    %cst_13 = arith.constant dense<0.000000e+00> : vector<128xf32>
    %17 = vector.multi_reduction <add>, %16, %cst_13 [1] : vector<128x32xf32> to vector<128xf32>
    %18 = vector.shape_cast %17 : vector<128xf32> to vector<128x1xf32>
    %cst_14 = arith.constant 3.200000e+01 : f32
    %19 = vector.broadcast %cst_14 : f32 to vector<128x1xf32>
    %20 = arith.divf %18, %19 : vector<128x1xf32>
    %21 = vector.broadcast %13 : vector<128x1xf32> to vector<128x32xf32>
    %22 = arith.subf %9, %21 : vector<128x32xf32>
    %cst_15 = arith.constant 9.99999974E-6 : f32
    %23 = vector.broadcast %cst_15 : f32 to vector<128x1xf32>
    %24 = arith.addf %20, %23 : vector<128x1xf32>
    %25 = math.rsqrt %24 : vector<128x1xf32>
    %26 = vector.broadcast %25 : vector<128x1xf32> to vector<128x32xf32>
    %27 = arith.mulf %22, %26 : vector<128x32xf32>
    %28 = vector.broadcast %0 : vector<1x32xf32> to vector<128x32xf32>
    %29 = arith.mulf %27, %28 : vector<128x32xf32>
    %30 = vector.broadcast %1 : vector<1x32xf32> to vector<128x32xf32>
    %31 = arith.addf %29, %30 : vector<128x32xf32>
    %32 = arith.truncf %31 : vector<128x32xf32> to vector<128x32xbf16>
    %c0_16 = arith.constant 0 : index
    %c0_17 = arith.constant 0 : index
    %33 = vector.load %arg6[%c0_16, %c0_17] : memref<32x96xbf16, #tpu.memory_space<vmem>>, vector<32x96xbf16>
    %cst_18 = arith.constant dense<0.000000e+00> : vector<128x96xf32>
    %34 = tpu.matmul %32, %33, %cst_18 {dimension_numbers = #tpu.dot_dimension_numbers<[1], [0], [0], [1], [0, 0, 1, 1], [], []>} : vector<128x32xbf16>, vector<32x96xbf16>, vector<128x96xf32> -> vector<128x96xf32>
    %c0_19 = arith.constant 0 : index
    %c0_20 = arith.constant 0 : index
    %35 = vector.load %arg7[%c0_19, %c0_20] : memref<1x96xf32, #tpu.memory_space<vmem>>, vector<1x96xf32>
    %36 = vector.broadcast %35 : vector<1x96xf32> to vector<128x96xf32>
    %37 = arith.addf %34, %36 : vector<128x96xf32>
    %38 = arith.truncf %37 : vector<128x96xf32> to vector<128x96xbf16>
    %c0_21 = arith.constant 0 : index
    %c0_22 = arith.constant 0 : index
    %39 = vector.load %arg14[%c0_21, %c0_22] : memref<128x96xbf16, #tpu.memory_space<vmem>>, vector<128x96xbf16>
    tpu.vector_store %arg14[%c0_21, %c0_22], %38 {strides = array<i32>} : memref<128x96xbf16, #tpu.memory_space<vmem>>, vector<128x96xbf16>,
    %40 = arith.extf %5 : vector<320x32xbf16> to vector<320x32xf32>
    %cst_23 = arith.constant dense<0.000000e+00> : vector<320xf32>
    %41 = vector.multi_reduction <add>, %40, %cst_23 [1] : vector<320x32xf32> to vector<320xf32>
    %42 = vector.shape_cast %41 : vector<320xf32> to vector<320x1xf32>
    %cst_24 = arith.constant 3.200000e+01 : f32
    %43 = vector.broadcast %cst_24 : f32 to vector<320x1xf32>
    %44 = arith.divf %42, %43 : vector<320x1xf32>
    %45 = vector.broadcast %44 : vector<320x1xf32> to vector<320x32xf32>
    %46 = arith.subf %40, %45 : vector<320x32xf32>
    %47 = arith.mulf %46, %46 : vector<320x32xf32>
    %cst_25 = arith.constant dense<0.000000e+00> : vector<320xf32>
    %48 = vector.multi_reduction <add>, %47, %cst_25 [1] : vector<320x32xf32> to vector<320xf32>
    %49 = vector.shape_cast %48 : vector<320xf32> to vector<320x1xf32>
    %cst_26 = arith.constant 3.200000e+01 : f32
    %50 = vector.broadcast %cst_26 : f32 to vector<320x1xf32>
    %51 = arith.divf %49, %50 : vector<320x1xf32>
    %52 = vector.broadcast %44 : vector<320x1xf32> to vector<320x32xf32>
    %53 = arith.subf %40, %52 : vector<320x32xf32>
    %cst_27 = arith.constant 9.99999974E-6 : f32
    %54 = vector.broadcast %cst_27 : f32 to vector<320x1xf32>
    %55 = arith.addf %51, %54 : vector<320x1xf32>
    %56 = math.rsqrt %55 : vector<320x1xf32>
    %57 = vector.broadcast %56 : vector<320x1xf32> to vector<320x32xf32>
    %58 = arith.mulf %53, %57 : vector<320x32xf32>
    %59 = vector.broadcast %0 : vector<1x32xf32> to vector<320x32xf32>
    %60 = arith.mulf %58, %59 : vector<320x32xf32>
    %61 = vector.broadcast %1 : vector<1x32xf32> to vector<320x32xf32>
    %62 = arith.addf %60, %61 : vector<320x32xf32>
    %63 = arith.truncf %62 : vector<320x32xf32> to vector<320x32xbf16>
    %c0_28 = arith.constant 0 : index
    %c0_29 = arith.constant 0 : index
    %64 = vector.load %arg8[%c0_28, %c0_29] : memref<32x32xbf16, #tpu.memory_space<vmem>>, vector<32x32xbf16>
    %cst_30 = arith.constant dense<0.000000e+00> : vector<320x32xf32>
    %65 = tpu.matmul %63, %64, %cst_30 {dimension_numbers = #tpu.dot_dimension_numbers<[1], [0], [0], [1], [0, 0, 1, 1], [], []>} : vector<320x32xbf16>, vector<32x32xbf16>, vector<320x32xf32> -> vector<320x32xf32>
    %c0_31 = arith.constant 0 : index
    %c0_32 = arith.constant 0 : index
    %66 = vector.load %arg9[%c0_31, %c0_32] : memref<1x32xf32, #tpu.memory_space<vmem>>, vector<1x32xf32>
    %67 = vector.broadcast %66 : vector<1x32xf32> to vector<320x32xf32>
    %68 = arith.addf %65, %67 : vector<320x32xf32>
    %69 = vector.broadcast %8 : vector<320x1xf32> to vector<320x32xf32>
    %70 = arith.mulf %68, %69 : vector<320x32xf32>
    %71 = arith.truncf %70 : vector<320x32xf32> to vector<320x32xbf16>
    %c0_33 = arith.constant 0 : index
    %c0_34 = arith.constant 0 : index
    %72 = vector.load %arg15[%c0_33, %c0_34] : memref<320x32xbf16, #tpu.memory_space<vmem>>, vector<320x32xbf16>
    tpu.vector_store %arg15[%c0_33, %c0_34], %71 {strides = array<i32>} : memref<320x32xbf16, #tpu.memory_space<vmem>>, vector<320x32xbf16>,
    %c0_35 = arith.constant 0 : index
    %c0_36 = arith.constant 0 : index
    %73 = vector.load %arg14[%c0_35, %c0_36] : memref<128x96xbf16, #tpu.memory_space<vmem>>, vector<128x16xbf16>
    %74 = vector.shape_cast %73 : vector<128x16xbf16> to vector<8x16x16xbf16>
    %c0_37 = arith.constant 0 : index
    %c32 = arith.constant 32 : index
    %75 = vector.load %arg14[%c0_37, %c32] : memref<128x96xbf16, #tpu.memory_space<vmem>>, vector<128x16xbf16>
    %76 = vector.shape_cast %75 : vector<128x16xbf16> to vector<8x16x16xbf16>
    %c0_38 = arith.constant 0 : index
    %c64 = arith.constant 64 : index
    %77 = vector.load %arg14[%c0_38, %c64] : memref<128x96xbf16, #tpu.memory_space<vmem>>, vector<128x16xbf16>
    %78 = vector.shape_cast %77 : vector<128x16xbf16> to vector<8x16x16xbf16>
    %c0_39 = arith.constant 0 : index
    %c0_40 = arith.constant 0 : index
    %79 = vector.load %arg15[%c0_39, %c0_40] : memref<320x32xbf16, #tpu.memory_space<vmem>>, vector<320x16xbf16>
    %80 = vector.shape_cast %79 : vector<320x16xbf16> to vector<8x40x16xbf16>
    "tpu.trace_start"() <{level = 10 : i32, message = "bqd,bnd->bqn"}> : () -> ()
    %cst_41 = arith.constant dense<0.000000e+00> : vector<8x16x40xf32>
    %81 = tpu.matmul %74, %80, %cst_41 {dimension_numbers = #tpu.dot_dimension_numbers<[2], [2], [1], [1], [0, 0, 0, 1, 1, 1], [0], [0]>} : vector<8x16x16xbf16>, vector<8x40x16xbf16>, vector<8x16x40xf32> -> vector<8x16x40xf32>
    "tpu.trace_stop"() : () -> ()
    %c0_42 = arith.constant 0 : index
    %c0_43 = arith.constant 0 : index
    %c0_44 = arith.constant 0 : index
    %82 = vector.load %arg12[%c0_42, %c0_43, %c0_44] : memref<2x16x40xbf16, #tpu.memory_space<vmem>>, vector<1x16x40xbf16>
    %83 = vector.shape_cast %82 : vector<1x16x40xbf16> to vector<16x40xbf16>
    %84 = vector.shape_cast %83 : vector<16x40xbf16> to vector<1x16x40xbf16>
    %85 = arith.extf %84 : vector<1x16x40xbf16> to vector<1x16x40xf32>
    %86 = vector.broadcast %85 : vector<1x16x40xf32> to vector<8x16x40xf32>
    %87 = arith.addf %81, %86 : vector<8x16x40xf32>
    "tpu.trace_start"() <{level = 10 : i32, message = "bnd,bkd->bnk"}> : () -> ()
    %cst_45 = arith.constant dense<0.000000e+00> : vector<8x40x16xf32>
    %88 = tpu.matmul %80, %76, %cst_45 {dimension_numbers = #tpu.dot_dimension_numbers<[2], [2], [1], [1], [0, 0, 0, 1, 1, 1], [0], [0]>} : vector<8x40x16xbf16>, vector<8x16x16xbf16>, vector<8x40x16xf32> -> vector<8x40x16xf32>
    "tpu.trace_stop"() : () -> ()
    %89 = arith.truncf %87 : vector<8x16x40xf32> to vector<8x16x40xbf16>
    %90 = arith.truncf %88 : vector<8x40x16xf32> to vector<8x40x16xbf16>
    "tpu.trace_start"() <{level = 10 : i32, message = "bqn,bnk->bqk"}> : () -> ()
    %cst_46 = arith.constant dense<0.000000e+00> : vector<8x16x16xf32>
    %91 = tpu.matmul %89, %90, %cst_46 {dimension_numbers = #tpu.dot_dimension_numbers<[2], [1], [1], [2], [0, 0, 0, 1, 1, 2], [0], [0]>} : vector<8x16x40xbf16>, vector<8x40x16xbf16>, vector<8x16x16xf32> -> vector<8x16x16xf32>
    "tpu.trace_stop"() : () -> ()
    %cst_47 = arith.constant dense<0xFF800000> : vector<8x16xf32>
    %92 = vector.multi_reduction <maximumf>, %91, %cst_47 [2] : vector<8x16x16xf32> to vector<8x16xf32>
    %93 = vector.shape_cast %92 : vector<8x16xf32> to vector<8x16x1xf32>
    %94 = vector.broadcast %93 : vector<8x16x1xf32> to vector<8x16x16xf32>
    %95 = arith.subf %91, %94 : vector<8x16x16xf32>
    %96 = math.exp %95 : vector<8x16x16xf32>
    %cst_48 = arith.constant dense<0.000000e+00> : vector<8x16xf32>
    %97 = vector.multi_reduction <add>, %96, %cst_48 [2] : vector<8x16x16xf32> to vector<8x16xf32>
    %98 = vector.shape_cast %97 : vector<8x16xf32> to vector<8x16x1xf32>
    %99 = tpu.reciprocal %98 {approx = true} : vector<8x16x1xf32> -> vector<8x16x1xf32>
    %100 = vector.broadcast %99 : vector<8x16x1xf32> to vector<8x16x16xf32>
    %101 = arith.mulf %96, %100 : vector<8x16x16xf32>
    %102 = arith.truncf %101 : vector<8x16x16xf32> to vector<8x16x16xbf16>
    "tpu.trace_start"() <{level = 10 : i32, message = "bqk,bkd->bqd"}> : () -> ()
    %cst_49 = arith.constant dense<0.000000e+00> : vector<8x16x16xf32>
    %103 = tpu.matmul %102, %78, %cst_49 {dimension_numbers = #tpu.dot_dimension_numbers<[2], [1], [1], [2], [0, 0, 0, 1, 1, 2], [0], [0]>} : vector<8x16x16xbf16>, vector<8x16x16xbf16>, vector<8x16x16xf32> -> vector<8x16x16xf32>
    "tpu.trace_stop"() : () -> ()
    %104 = vector.shape_cast %103 : vector<8x16x16xf32> to vector<128x16xf32>
    %105 = arith.truncf %104 : vector<128x16xf32> to vector<128x16xbf16>
    %c0_50 = arith.constant 0 : index
    %c0_51 = arith.constant 0 : index
    %106 = vector.load %arg16[%c0_50, %c0_51] : memref<128x32xbf16, #tpu.memory_space<vmem>>, vector<128x16xbf16>
    tpu.vector_store %arg16[%c0_50, %c0_51], %105 {strides = array<i32>} : memref<128x32xbf16, #tpu.memory_space<vmem>>, vector<128x16xbf16>,
    %c0_52 = arith.constant 0 : index
    %c16 = arith.constant 16 : index
    %107 = vector.load %arg14[%c0_52, %c16] : memref<128x96xbf16, #tpu.memory_space<vmem>>, vector<128x16xbf16>
    %108 = vector.shape_cast %107 : vector<128x16xbf16> to vector<8x16x16xbf16>
    %c0_53 = arith.constant 0 : index
    %c48 = arith.constant 48 : index
    %109 = vector.load %arg14[%c0_53, %c48] : memref<128x96xbf16, #tpu.memory_space<vmem>>, vector<128x16xbf16>
    %110 = vector.shape_cast %109 : vector<128x16xbf16> to vector<8x16x16xbf16>
    %c0_54 = arith.constant 0 : index
    %c80 = arith.constant 80 : index
    %111 = vector.load %arg14[%c0_54, %c80] : memref<128x96xbf16, #tpu.memory_space<vmem>>, vector<128x16xbf16>
    %112 = vector.shape_cast %111 : vector<128x16xbf16> to vector<8x16x16xbf16>
    %c0_55 = arith.constant 0 : index
    %c16_56 = arith.constant 16 : index
    %113 = vector.load %arg15[%c0_55, %c16_56] : memref<320x32xbf16, #tpu.memory_space<vmem>>, vector<320x16xbf16>
    %114 = vector.shape_cast %113 : vector<320x16xbf16> to vector<8x40x16xbf16>
    "tpu.trace_start"() <{level = 10 : i32, message = "bqd,bnd->bqn"}> : () -> ()
    %cst_57 = arith.constant dense<0.000000e+00> : vector<8x16x40xf32>
    %115 = tpu.matmul %108, %114, %cst_57 {dimension_numbers = #tpu.dot_dimension_numbers<[2], [2], [1], [1], [0, 0, 0, 1, 1, 1], [0], [0]>} : vector<8x16x16xbf16>, vector<8x40x16xbf16>, vector<8x16x40xf32> -> vector<8x16x40xf32>
    "tpu.trace_stop"() : () -> ()
    %c1 = arith.constant 1 : index
    %c0_58 = arith.constant 0 : index
    %c0_59 = arith.constant 0 : index
    %116 = vector.load %arg12[%c1, %c0_58, %c0_59] : memref<2x16x40xbf16, #tpu.memory_space<vmem>>, vector<1x16x40xbf16>
    %117 = vector.shape_cast %116 : vector<1x16x40xbf16> to vector<16x40xbf16>
    %118 = vector.shape_cast %117 : vector<16x40xbf16> to vector<1x16x40xbf16>
    %119 = arith.extf %118 : vector<1x16x40xbf16> to vector<1x16x40xf32>
    %120 = vector.broadcast %119 : vector<1x16x40xf32> to vector<8x16x40xf32>
    %121 = arith.addf %115, %120 : vector<8x16x40xf32>
    "tpu.trace_start"() <{level = 10 : i32, message = "bnd,bkd->bnk"}> : () -> ()
    %cst_60 = arith.constant dense<0.000000e+00> : vector<8x40x16xf32>
    %122 = tpu.matmul %114, %110, %cst_60 {dimension_numbers = #tpu.dot_dimension_numbers<[2], [2], [1], [1], [0, 0, 0, 1, 1, 1], [0], [0]>} : vector<8x40x16xbf16>, vector<8x16x16xbf16>, vector<8x40x16xf32> -> vector<8x40x16xf32>
    "tpu.trace_stop"() : () -> ()
    %123 = arith.truncf %121 : vector<8x16x40xf32> to vector<8x16x40xbf16>
    %124 = arith.truncf %122 : vector<8x40x16xf32> to vector<8x40x16xbf16>
    "tpu.trace_start"() <{level = 10 : i32, message = "bqn,bnk->bqk"}> : () -> ()
    %cst_61 = arith.constant dense<0.000000e+00> : vector<8x16x16xf32>
    %125 = tpu.matmul %123, %124, %cst_61 {dimension_numbers = #tpu.dot_dimension_numbers<[2], [1], [1], [2], [0, 0, 0, 1, 1, 2], [0], [0]>} : vector<8x16x40xbf16>, vector<8x40x16xbf16>, vector<8x16x16xf32> -> vector<8x16x16xf32>
    "tpu.trace_stop"() : () -> ()
    %cst_62 = arith.constant dense<0xFF800000> : vector<8x16xf32>
    %126 = vector.multi_reduction <maximumf>, %125, %cst_62 [2] : vector<8x16x16xf32> to vector<8x16xf32>
    %127 = vector.shape_cast %126 : vector<8x16xf32> to vector<8x16x1xf32>
    %128 = vector.broadcast %127 : vector<8x16x1xf32> to vector<8x16x16xf32>
    %129 = arith.subf %125, %128 : vector<8x16x16xf32>
    %130 = math.exp %129 : vector<8x16x16xf32>
    %cst_63 = arith.constant dense<0.000000e+00> : vector<8x16xf32>
    %131 = vector.multi_reduction <add>, %130, %cst_63 [2] : vector<8x16x16xf32> to vector<8x16xf32>
    %132 = vector.shape_cast %131 : vector<8x16xf32> to vector<8x16x1xf32>
    %133 = tpu.reciprocal %132 {approx = true} : vector<8x16x1xf32> -> vector<8x16x1xf32>
    %134 = vector.broadcast %133 : vector<8x16x1xf32> to vector<8x16x16xf32>
    %135 = arith.mulf %130, %134 : vector<8x16x16xf32>
    %136 = arith.truncf %135 : vector<8x16x16xf32> to vector<8x16x16xbf16>
    "tpu.trace_start"() <{level = 10 : i32, message = "bqk,bkd->bqd"}> : () -> ()
    %cst_64 = arith.constant dense<0.000000e+00> : vector<8x16x16xf32>
    %137 = tpu.matmul %136, %112, %cst_64 {dimension_numbers = #tpu.dot_dimension_numbers<[2], [1], [1], [2], [0, 0, 0, 1, 1, 2], [0], [0]>} : vector<8x16x16xbf16>, vector<8x16x16xbf16>, vector<8x16x16xf32> -> vector<8x16x16xf32>
    "tpu.trace_stop"() : () -> ()
    %138 = vector.shape_cast %137 : vector<8x16x16xf32> to vector<128x16xf32>
    %139 = arith.truncf %138 : vector<128x16xf32> to vector<128x16xbf16>
    %c0_65 = arith.constant 0 : index
    %c16_66 = arith.constant 16 : index
    %140 = vector.load %arg16[%c0_65, %c16_66] : memref<128x32xbf16, #tpu.memory_space<vmem>>, vector<128x16xbf16>
    tpu.vector_store %arg16[%c0_65, %c16_66], %139 {strides = array<i32>} : memref<128x32xbf16, #tpu.memory_space<vmem>>, vector<128x16xbf16>,
    %c0_67 = arith.constant 0 : index
    %c0_68 = arith.constant 0 : index
    %141 = vector.load %arg16[%c0_67, %c0_68] : memref<128x32xbf16, #tpu.memory_space<vmem>>, vector<128x32xbf16>
    %c0_69 = arith.constant 0 : index
    %c0_70 = arith.constant 0 : index
    %142 = vector.load %arg10[%c0_69, %c0_70] : memref<32x32xbf16, #tpu.memory_space<vmem>>, vector<32x32xbf16>
    %cst_71 = arith.constant dense<0.000000e+00> : vector<128x32xf32>
    %143 = tpu.matmul %141, %142, %cst_71 {dimension_numbers = #tpu.dot_dimension_numbers<[1], [0], [0], [1], [0, 0, 1, 1], [], []>} : vector<128x32xbf16>, vector<32x32xbf16>, vector<128x32xf32> -> vector<128x32xf32>
    %c0_72 = arith.constant 0 : index
    %c0_73 = arith.constant 0 : index
    %144 = vector.load %arg11[%c0_72, %c0_73] : memref<1x32xf32, #tpu.memory_space<vmem>>, vector<1x32xf32>
    %145 = vector.broadcast %144 : vector<1x32xf32> to vector<128x32xf32>
    %146 = arith.addf %143, %145 : vector<128x32xf32>
    %147 = vector.shape_cast %146 : vector<128x32xf32> to vector<8x16x32xf32>
    %148 = arith.truncf %147 : vector<8x16x32xf32> to vector<8x16x32xbf16>
    %c0_74 = arith.constant 0 : index
    %c0_75 = arith.constant 0 : index
    %c0_76 = arith.constant 0 : index
    %149 = vector.load %arg13[%c0_74, %c0_75, %c0_76] : memref<8x16x32xbf16, #tpu.memory_space<vmem>>, vector<8x16x32xbf16>
    tpu.vector_store %arg13[%c0_74, %c0_75, %c0_76], %148 {strides = array<i32>} : memref<8x16x32xbf16, #tpu.memory_space<vmem>>, vector<8x16x32xbf16>,
    return
  }
  func.func @transform_0(%arg0: i32) -> (i32, i32, i32) {
    %c0_i32 = arith.constant 0 : i32
    %c0_i32_0 = arith.constant 0 : i32
    %c0_i32_1 = arith.constant 0 : i32
    return %arg0, %c0_i32, %c0_i32_0 : i32, i32, i32
  }
  func.func @transform_1(%arg0: i32) -> (i32, i32, i32) {
    %c0_i32 = arith.constant 0 : i32
    %c0_i32_0 = arith.constant 0 : i32
    %c0_i32_1 = arith.constant 0 : i32
    return %arg0, %c0_i32, %c0_i32_0 : i32, i32, i32
  }
  func.func @transform_2(%arg0: i32) -> (i32, i32, i32) {
    %c0_i32 = arith.constant 0 : i32
    %c0_i32_0 = arith.constant 0 : i32
    %c0_i32_1 = arith.constant 0 : i32
    return %arg0, %c0_i32, %c0_i32_0 : i32, i32, i32
  }
  func.func @transform_3(%arg0: i32) -> (i32, i32) {
    %c0_i32 = arith.constant 0 : i32
    %c0_i32_0 = arith.constant 0 : i32
    %c0_i32_1 = arith.constant 0 : i32
    return %c0_i32, %c0_i32_0 : i32, i32
  }
  func.func @transform_4(%arg0: i32) -> (i32, i32) {
    %c0_i32 = arith.constant 0 : i32
    %c0_i32_0 = arith.constant 0 : i32
    %c0_i32_1 = arith.constant 0 : i32
    return %c0_i32, %c0_i32_0 : i32, i32
  }
  func.func @transform_5(%arg0: i32) -> (i32, i32) {
    %c0_i32 = arith.constant 0 : i32
    %c0_i32_0 = arith.constant 0 : i32
    %c0_i32_1 = arith.constant 0 : i32
    return %c0_i32, %c0_i32_0 : i32, i32
  }
  func.func @transform_6(%arg0: i32) -> (i32, i32) {
    %c0_i32 = arith.constant 0 : i32
    %c0_i32_0 = arith.constant 0 : i32
    %c0_i32_1 = arith.constant 0 : i32
    return %c0_i32, %c0_i32_0 : i32, i32
  }
  func.func @transform_7(%arg0: i32) -> (i32, i32) {
    %c0_i32 = arith.constant 0 : i32
    %c0_i32_0 = arith.constant 0 : i32
    %c0_i32_1 = arith.constant 0 : i32
    return %c0_i32, %c0_i32_0 : i32, i32
  }
  func.func @transform_8(%arg0: i32) -> (i32, i32) {
    %c0_i32 = arith.constant 0 : i32
    %c0_i32_0 = arith.constant 0 : i32
    %c0_i32_1 = arith.constant 0 : i32
    return %c0_i32, %c0_i32_0 : i32, i32
  }
  func.func @transform_9(%arg0: i32) -> (i32, i32) {
    %c0_i32 = arith.constant 0 : i32
    %c0_i32_0 = arith.constant 0 : i32
    %c0_i32_1 = arith.constant 0 : i32
    return %c0_i32, %c0_i32_0 : i32, i32
  }
  func.func @transform_10(%arg0: i32) -> (i32, i32) {
    %c0_i32 = arith.constant 0 : i32
    %c0_i32_0 = arith.constant 0 : i32
    %c0_i32_1 = arith.constant 0 : i32
    return %c0_i32, %c0_i32_0 : i32, i32
  }
  func.func @transform_11(%arg0: i32) -> (i32, i32, i32) {
    %c0_i32 = arith.constant 0 : i32
    %c0_i32_0 = arith.constant 0 : i32
    %c0_i32_1 = arith.constant 0 : i32
    %c0_i32_2 = arith.constant 0 : i32
    return %c0_i32, %c0_i32_0, %c0_i32_1 : i32, i32, i32
  }
  func.func @transform_12(%arg0: i32) -> (i32, i32, i32) {
    %c0_i32 = arith.constant 0 : i32
    %c0_i32_0 = arith.constant 0 : i32
    %c0_i32_1 = arith.constant 0 : i32
    return %arg0, %c0_i32, %c0_i32_0 : i32, i32, i32
  }
}

</mosaic_0001>

<llo_original>
// kernel: tpu_custom_call.1
$region0: #{tpu_custom_call.1}
  #allocation0 [shape = 'u32[]', space=smem, size = 0x4, offset = 0x4, fixed_abs, tag = 'smem constant byte address 0x4 - core index']
  #allocation1 [shape = 'u32[144,128]{1,0:T(1,128)}', space=vmem, size = 0x12000, scoped, tag = 'internal scratch']
  #allocation2 [shape = 'bf16[128,96]{1,0:T(16,128)(2,1)}', space=vmem, size = 0x8000, scoped, tag = 'scratch operand']
  #allocation3 [shape = 'bf16[320,32]{1,0:T(16,128)(2,1)}', space=vmem, size = 0x14000, scoped, tag = 'scratch operand']
  #allocation4 [shape = 'bf16[128,32]{1,0:T(16,128)(2,1)}', space=vmem, size = 0x8000, scoped, tag = 'scratch operand']
  %s0 = inlined_call_operand.vmem [shape: bf16[8,16,32], index: 0, kind: input, shape index: {}]
  %s1 = inlined_call_operand.vmem [shape: bf16[8,40,32], index: 1, kind: input, shape index: {}]
  %s2 = inlined_call_operand.vmem [shape: bf16[8,40,1], index: 2, kind: input, shape index: {}]
  %s3 = inlined_call_operand.vmem [shape: f32[1,32], index: 3, kind: input, shape index: {}]
  %s4 = inlined_call_operand.vmem [shape: f32[1,32], index: 4, kind: input, shape index: {}]
  %s5 = inlined_call_operand.vmem [shape: bf16[32,96], index: 5, kind: input, shape index: {}]
  %s6 = inlined_call_operand.vmem [shape: f32[1,96], index: 6, kind: input, shape index: {}]
  %s7 = inlined_call_operand.vmem [shape: bf16[32,32], index: 7, kind: input, shape index: {}]
  %s8 = inlined_call_operand.vmem [shape: f32[1,32], index: 8, kind: input, shape index: {}]
  %s9 = inlined_call_operand.vmem [shape: bf16[32,32], index: 9, kind: input, shape index: {}]
  %s10 = inlined_call_operand.vmem [shape: f32[1,32], index: 10, kind: input, shape index: {}]
  %s11 = inlined_call_operand.vmem [shape: bf16[2,16,40], index: 11, kind: input, shape index: {}]
  %s12 = inlined_call_operand.hbm [shape: bf16[8,16,32], index: 12, kind: output, shape index: {}]
  %s13 = sld [smem:[#allocation0]]
  $region58: #{tpu_custom_call.1} parent=0
    _
  %s15 = ssub.s32 1, %s13
  %s16 = scalar_select 0, %s15, %s13
  $region1: #{tpu_custom_call.1} parent=0
    #allocation5 [shape = 'u8[32768]{0}', space=vmem, size = 0x8000, scoped, tag = 'output window, operand 0, single buffered']
    #allocation6 [shape = 's32[1]{0}', space=sflag, size = 0x4, scoped, tag = 'scoped memory for tpu_custom_call.1']
    %17 = vsyncpa [#allocation6], 0
    // Predicated region
    $region2: #{tpu_custom_call.1} parent=1 // pred_check
      _
    $region3: #{tpu_custom_call.1} parent=1 // pred_check_branch
      %19 = sbr.rel (0) target = $region5
    $region4: #{tpu_custom_call.1} parent=1 // pred_region
      _
    $region5: #{tpu_custom_call.1} parent=1 // pred_fallthru
      _
    // Predicated region
    $region6: #{tpu_custom_call.1} parent=1 // pred_check
      _
    $region7: #{tpu_custom_call.1} parent=1 // pred_check_branch
      %21 = sbr.rel (0) target = $region9
    $region8: #{tpu_custom_call.1} parent=1 // pred_region
      _
    $region9: #{tpu_custom_call.1} parent=1 // pred_fallthru
      _
    // Predicated region
    $region10: #{tpu_custom_call.1} parent=1 // pred_check
      _
    $region11: #{tpu_custom_call.1} parent=1 // pred_check_branch
      %23 = sbr.rel (0) target = $region13
    $region12: #{tpu_custom_call.1} parent=1 // pred_region
      _
    $region13: #{tpu_custom_call.1} parent=1 // pred_fallthru
      _
    // Predicated region
    $region14: #{tpu_custom_call.1} parent=1 // pred_check
      _
    $region15: #{tpu_custom_call.1} parent=1 // pred_check_branch
      %25 = sbr.rel (0) target = $region17
    $region16: #{tpu_custom_call.1} parent=1 // pred_region
      _
    $region17: #{tpu_custom_call.1} parent=1 // pred_fallthru
      _
    // Predicated region
    $region18: #{tpu_custom_call.1} parent=1 // pred_check
      _
    $region19: #{tpu_custom_call.1} parent=1 // pred_check_branch
      %27 = sbr.rel (0) target = $region21
    $region20: #{tpu_custom_call.1} parent=1 // pred_region
      _
    $region21: #{tpu_custom_call.1} parent=1 // pred_fallthru
      _
    // Predicated region
    $region22: #{tpu_custom_call.1} parent=1 // pred_check
      _
    $region23: #{tpu_custom_call.1} parent=1 // pred_check_branch
      %29 = sbr.rel (0) target = $region25
    $region24: #{tpu_custom_call.1} parent=1 // pred_region
      _
    $region25: #{tpu_custom_call.1} parent=1 // pred_fallthru
      _
    // Predicated region
    $region26: #{tpu_custom_call.1} parent=1 // pred_check
      _
    $region27: #{tpu_custom_call.1} parent=1 // pred_check_branch
      %31 = sbr.rel (0) target = $region29
    $region28: #{tpu_custom_call.1} parent=1 // pred_region
      _
    $region29: #{tpu_custom_call.1} parent=1 // pred_fallthru
      _
    // Predicated region
    $region30: #{tpu_custom_call.1} parent=1 // pred_check
      _
    $region31: #{tpu_custom_call.1} parent=1 // pred_check_branch
      %33 = sbr.rel (0) target = $region33
    $region32: #{tpu_custom_call.1} parent=1 // pred_region
      _
    $region33: #{tpu_custom_call.1} parent=1 // pred_fallthru
      _
    // Predicated region
    $region34: #{tpu_custom_call.1} parent=1 // pred_check
      _
    $region35: #{tpu_custom_call.1} parent=1 // pred_check_branch
      %35 = sbr.rel (0) target = $region37
    $region36: #{tpu_custom_call.1} parent=1 // pred_region
      _
    $region37: #{tpu_custom_call.1} parent=1 // pred_fallthru
      _
    // Predicated region
    $region38: #{tpu_custom_call.1} parent=1 // pred_check
      _
    $region39: #{tpu_custom_call.1} parent=1 // pred_check_branch
      %37 = sbr.rel (0) target = $region41
    $region40: #{tpu_custom_call.1} parent=1 // pred_region
      _
    $region41: #{tpu_custom_call.1} parent=1 // pred_fallthru
      _
    // Predicated region
    $region42: #{tpu_custom_call.1} parent=1 // pred_check
      _
    $region43: #{tpu_custom_call.1} parent=1 // pred_check_branch
      %39 = sbr.rel (0) target = $region45
    $region44: #{tpu_custom_call.1} parent=1 // pred_region
      _
    $region45: #{tpu_custom_call.1} parent=1 // pred_fallthru
      _
    // Predicated region
    $region46: #{tpu_custom_call.1} parent=1 // pred_check
      _
    $region47: #{tpu_custom_call.1} parent=1 // pred_check_branch
      %41 = sbr.rel (0) target = $region49
    $region48: #{tpu_custom_call.1} parent=1 // pred_region
      _
    $region49: #{tpu_custom_call.1} parent=1 // pred_fallthru
      _
    %v43 = vld [vmem:[%s3] sm:$0x1]
    %v44 = vld [vmem:[%s4] sm:$0x1]
    %v45 = vld [vmem:[%s0] sm:$0xf]
    %v46 = vld [vmem:[%s0 + $0x4] sm:$0xf]
    %v47 = vld [vmem:[%s0 + $0x8] sm:$0xf]
    %v48 = vld [vmem:[%s0 + $0xc] sm:$0xf]
    %v49 = vld [vmem:[%s0 + $0x10] sm:$0xf]
    %v50 = vld [vmem:[%s0 + $0x14] sm:$0xf]
    %v51 = vld [vmem:[%s0 + $0x18] sm:$0xf]
    %v52 = vld [vmem:[%s0 + $0x1c] sm:$0xf]
    %v53 = vld [vmem:[%s0 + $0x20] sm:$0xf]
    %v54 = vld [vmem:[%s0 + $0x24] sm:$0xf]
    %v55 = vld [vmem:[%s0 + $0x28] sm:$0xf]
    %v56 = vld [vmem:[%s0 + $0x2c] sm:$0xf]
    %v57 = vld [vmem:[%s0 + $0x30] sm:$0xf]
    %v58 = vld [vmem:[%s0 + $0x34] sm:$0xf]
    %v59 = vld [vmem:[%s0 + $0x38] sm:$0xf]
    %v60 = vld [vmem:[%s0 + $0x3c] sm:$0xf]
    %v61 = vld [vmem:[%s1] sm:$0xf]
    %v62 = vld [vmem:[%s1 + $0x4] sm:$0xf]
    %v63 = vld [vmem:[%s1 + $0x8] sm:$0xf]
    %v64 = vld [vmem:[%s1 + $0xc] sm:$0xf]
    %v65 = vld [vmem:[%s1 + $0x10] sm:$0xf]
    %v66 = vld [vmem:[%s1 + $0x14] sm:$0xf]
    %v67 = vld [vmem:[%s1 + $0x18] sm:$0xf]
    %v68 = vld [vmem:[%s1 + $0x1c] sm:$0xf]
    %v69 = vld [vmem:[%s1 + $0x20] sm:$0xf]
    %v70 = vld [vmem:[%s1 + $0x24] sm:$0xf]
    %v71 = vld [vmem:[%s1 + $0x28] sm:$0xf]
    %v72 = vld [vmem:[%s1 + $0x2c] sm:$0xf]
    %v73 = vld [vmem:[%s1 + $0x30] sm:$0xf]
    %v74 = vld [vmem:[%s1 + $0x34] sm:$0xf]
    %v75 = vld [vmem:[%s1 + $0x38] sm:$0xf]
    %v76 = vld [vmem:[%s1 + $0x3c] sm:$0xf]
    %v77 = vld [vmem:[%s1 + $0x40] sm:$0xf]
    %v78 = vld [vmem:[%s1 + $0x44] sm:$0xf]
    %v79 = vld [vmem:[%s1 + $0x48] sm:$0xf]
    %v80 = vld [vmem:[%s1 + $0x4c] sm:$0xf]
    %v81 = vld [vmem:[%s1 + $0x50] sm:$0xf]
    %v82 = vld [vmem:[%s1 + $0x54] sm:$0xf]
    %v83 = vld [vmem:[%s1 + $0x58] sm:$0xf]
    %v84 = vld [vmem:[%s1 + $0x5c] sm:$0xf]
    %v85 = vld [vmem:[%s1 + $0x60] sm:$0xf]
    %v86 = vld [vmem:[%s1 + $0x64] sm:$0xf]
    %v87 = vld [vmem:[%s1 + $0x68] sm:$0xf]
    %v88 = vld [vmem:[%s1 + $0x6c] sm:$0xf]
    %v89 = vld [vmem:[%s1 + $0x70] sm:$0xf]
    %v90 = vld [vmem:[%s1 + $0x74] sm:$0xf]
    %v91 = vld [vmem:[%s1 + $0x78] sm:$0xf]
    %v92 = vld [vmem:[%s1 + $0x7c] sm:$0xf]
    %v93 = vld [vmem:[%s1 + $0x80] sm:$0xf]
    %v94 = vld [vmem:[%s1 + $0x84] sm:$0xf]
    %v95 = vld [vmem:[%s1 + $0x88] sm:$0xf]
    %v96 = vld [vmem:[%s1 + $0x8c] sm:$0xf]
    %v97 = vld [vmem:[%s1 + $0x90] sm:$0xf]
    %v98 = vld [vmem:[%s1 + $0x94] sm:$0xf]
    %v99 = vld [vmem:[%s1 + $0x98] sm:$0xf]
    %v100 = vld [vmem:[%s1 + $0x9c] sm:$0xf]
    %v101 = vld [vmem:[%s2] sm:$0xf]
    %v102 = vld [vmem:[%s2 + $0x4] sm:$0xf]
    %v103 = vld [vmem:[%s2 + $0x8] sm:$0xf]
    %v104 = vld [vmem:[%s2 + $0xc] sm:$0xf]
    %v105 = vld [vmem:[%s2 + $0x10] sm:$0xf]
    %v106 = vld [vmem:[%s2 + $0x14] sm:$0xf]
    %v107 = vld [vmem:[%s2 + $0x18] sm:$0xf]
    %v108 = vld [vmem:[%s2 + $0x1c] sm:$0xf]
    %v109 = vld [vmem:[%s2 + $0x20] sm:$0xf]
    %v110 = vld [vmem:[%s2 + $0x24] sm:$0xf]
    %v111 = vld [vmem:[%s2 + $0x28] sm:$0xf]
    %v112 = vld [vmem:[%s2 + $0x2c] sm:$0xf]
    %v113 = vld [vmem:[%s2 + $0x30] sm:$0xf]
    %v114 = vld [vmem:[%s2 + $0x34] sm:$0xf]
    %v115 = vld [vmem:[%s2 + $0x38] sm:$0xf]
    %v116 = vld [vmem:[%s2 + $0x3c] sm:$0xf]
    %v117 = vld [vmem:[%s2 + $0x40] sm:$0xf]
    %v118 = vld [vmem:[%s2 + $0x44] sm:$0xf]
    %v119 = vld [vmem:[%s2 + $0x48] sm:$0xf]
    %v120 = vld [vmem:[%s2 + $0x4c] sm:$0xf]
    %v121 = vld [vmem:[%s2 + $0x50] sm:$0xf]
    %v122 = vld [vmem:[%s2 + $0x54] sm:$0xf]
    %v123 = vld [vmem:[%s2 + $0x58] sm:$0xf]
    %v124 = vld [vmem:[%s2 + $0x5c] sm:$0xf]
    %v125 = vld [vmem:[%s2 + $0x60] sm:$0xf]
    %v126 = vld [vmem:[%s2 + $0x64] sm:$0xf]
    %v127 = vld [vmem:[%s2 + $0x68] sm:$0xf]
    %v128 = vld [vmem:[%s2 + $0x6c] sm:$0xf]
    %v129 = vld [vmem:[%s2 + $0x70] sm:$0xf]
    %v130 = vld [vmem:[%s2 + $0x74] sm:$0xf]
    %v131 = vld [vmem:[%s2 + $0x78] sm:$0xf]
    %v132 = vld [vmem:[%s2 + $0x7c] sm:$0xf]
    %v133 = vld [vmem:[%s2 + $0x80] sm:$0xf]
    %v134 = vld [vmem:[%s2 + $0x84] sm:$0xf]
    %v135 = vld [vmem:[%s2 + $0x88] sm:$0xf]
    %v136 = vld [vmem:[%s2 + $0x8c] sm:$0xf]
    %v137 = vld [vmem:[%s2 + $0x90] sm:$0xf]
    %v138 = vld [vmem:[%s2 + $0x94] sm:$0xf]
    %v139 = vld [vmem:[%s2 + $0x98] sm:$0xf]
    %v140 = vld [vmem:[%s2 + $0x9c] sm:$0xf]
    %v141 = vunpack.c.l.bf16 %v101
    %v142 = vunpack.c.l.bf16 %v102
    %v143 = vunpack.c.l.bf16 %v103
    %v144 = vunpack.c.l.bf16 %v104
    %v145 = vunpack.c.l.bf16 %v105
    %v146 = vunpack.c.l.bf16 %v106
    %v147 = vunpack.c.l.bf16 %v107
    %v148 = vunpack.c.l.bf16 %v108
    %v149 = vunpack.c.l.bf16 %v109
    %v150 = vunpack.c.l.bf16 %v110
    %v151 = vunpack.c.l.bf16 %v111
    %v152 = vunpack.c.l.bf16 %v112
    %v153 = vunpack.c.l.bf16 %v113
    %v154 = vunpack.c.l.bf16 %v114
    %v155 = vunpack.c.l.bf16 %v115
    %v156 = vunpack.c.l.bf16 %v116
    %v157 = vunpack.c.l.bf16 %v117
    %v158 = vunpack.c.l.bf16 %v118
    %v159 = vunpack.c.l.bf16 %v119
    %v160 = vunpack.c.l.bf16 %v120
    %v161 = vunpack.c.l.bf16 %v121
    %v162 = vunpack.c.l.bf16 %v122
    %v163 = vunpack.c.l.bf16 %v123
    %v164 = vunpack.c.l.bf16 %v124
    %v165 = vunpack.c.l.bf16 %v125
    %v166 = vunpack.c.l.bf16 %v126
    %v167 = vunpack.c.l.bf16 %v127
    %v168 = vunpack.c.l.bf16 %v128
    %v169 = vunpack.c.l.bf16 %v129
    %v170 = vunpack.c.l.bf16 %v130
    %v171 = vunpack.c.l.bf16 %v131
    %v172 = vunpack.c.l.bf16 %v132
    %v173 = vunpack.c.l.bf16 %v133
    %v174 = vunpack.c.l.bf16 %v134
    %v175 = vunpack.c.l.bf16 %v135
    %v176 = vunpack.c.l.bf16 %v136
    %v177 = vunpack.c.l.bf16 %v137
    %v178 = vunpack.c.l.bf16 %v138
    %v179 = vunpack.c.l.bf16 %v139
    %v180 = vunpack.c.l.bf16 %v140
    %v181 = vunpack.c.l.bf16 %v45
    %v182 = vunpack.c.l.bf16 %v46
    %v183 = vunpack.c.l.bf16 %v47
    %v184 = vunpack.c.l.bf16 %v48
    %v185 = vunpack.c.l.bf16 %v49
    %v186 = vunpack.c.l.bf16 %v50
    %v187 = vunpack.c.l.bf16 %v51
    %v188 = vunpack.c.l.bf16 %v52
    %v189 = vunpack.c.l.bf16 %v53
    %v190 = vunpack.c.l.bf16 %v54
    %v191 = vunpack.c.l.bf16 %v55
    %v192 = vunpack.c.l.bf16 %v56
    %v193 = vunpack.c.l.bf16 %v57
    %v194 = vunpack.c.l.bf16 %v58
    %v195 = vunpack.c.l.bf16 %v59
    %v196 = vunpack.c.l.bf16 %v60
    %vm197 = vcmask 261120
    %v198 = vsel %vm197, %v181, 0.0
    %199 = vadd.xlane.f32.xlu0 %v198
    %v200 = vpop.xlane.xlu0 %199
    %v201 = vsel %vm197, %v182, 0.0
    %202 = vadd.xlane.f32.xlu0 %v201
    %v203 = vpop.xlane.xlu0 %202
    %v204 = vsel %vm197, %v183, 0.0
    %205 = vadd.xlane.f32.xlu0 %v204
    %v206 = vpop.xlane.xlu0 %205
    %v207 = vsel %vm197, %v184, 0.0
    %208 = vadd.xlane.f32.xlu0 %v207
    %v209 = vpop.xlane.xlu0 %208
    %v210 = vsel %vm197, %v185, 0.0
    %211 = vadd.xlane.f32.xlu0 %v210
    %v212 = vpop.xlane.xlu0 %211
    %v213 = vsel %vm197, %v186, 0.0
    %214 = vadd.xlane.f32.xlu0 %v213
    %v215 = vpop.xlane.xlu0 %214
    %v216 = vsel %vm197, %v187, 0.0
    %217 = vadd.xlane.f32.xlu0 %v216
    %v218 = vpop.xlane.xlu0 %217
    %v219 = vsel %vm197, %v188, 0.0
    %220 = vadd.xlane.f32.xlu0 %v219
    %v221 = vpop.xlane.xlu0 %220
    %v222 = vsel %vm197, %v189, 0.0
    %223 = vadd.xlane.f32.xlu0 %v222
    %v224 = vpop.xlane.xlu0 %223
    %v225 = vsel %vm197, %v190, 0.0
    %226 = vadd.xlane.f32.xlu0 %v225
    %v227 = vpop.xlane.xlu0 %226
    %v228 = vsel %vm197, %v191, 0.0
    %229 = vadd.xlane.f32.xlu0 %v228
    %v230 = vpop.xlane.xlu0 %229
    %v231 = vsel %vm197, %v192, 0.0
    %232 = vadd.xlane.f32.xlu0 %v231
    %v233 = vpop.xlane.xlu0 %232
    %v234 = vsel %vm197, %v193, 0.0
    %235 = vadd.xlane.f32.xlu0 %v234
    %v236 = vpop.xlane.xlu0 %235
    %v237 = vsel %vm197, %v194, 0.0
    %238 = vadd.xlane.f32.xlu0 %v237
    %v239 = vpop.xlane.xlu0 %238
    %v240 = vsel %vm197, %v195, 0.0
    %241 = vadd.xlane.f32.xlu0 %v240
    %v242 = vpop.xlane.xlu0 %241
    %v243 = vsel %vm197, %v196, 0.0
    %244 = vadd.xlane.f32.xlu0 %v243
    %v245 = vpop.xlane.xlu0 %244
    %v246 = vrcp.pop 32.0
    %v247 = vmul.f32 %v200, %v246
    %v248 = vmul.f32 %v203, %v246
    %v249 = vmul.f32 %v206, %v246
    %v250 = vmul.f32 %v209, %v246
    %v251 = vmul.f32 %v212, %v246
    %v252 = vmul.f32 %v215, %v246
    %v253 = vmul.f32 %v218, %v246
    %v254 = vmul.f32 %v221, %v246
    %v255 = vmul.f32 %v224, %v246
    %v256 = vmul.f32 %v227, %v246
    %v257 = vmul.f32 %v230, %v246
    %v258 = vmul.f32 %v233, %v246
    %v259 = vmul.f32 %v236, %v246
    %v260 = vmul.f32 %v239, %v246
    %v261 = vmul.f32 %v242, %v246
    %v262 = vmul.f32 %v245, %v246
    %v263 = vsub.f32 %v181, %v247
    %v264 = vsub.f32 %v182, %v248
    %v265 = vsub.f32 %v183, %v249
    %v266 = vsub.f32 %v184, %v250
    %v267 = vsub.f32 %v185, %v251
    %v268 = vsub.f32 %v186, %v252
    %v269 = vsub.f32 %v187, %v253
    %v270 = vsub.f32 %v188, %v254
    %v271 = vsub.f32 %v189, %v255
    %v272 = vsub.f32 %v190, %v256
    %v273 = vsub.f32 %v191, %v257
    %v274 = vsub.f32 %v192, %v258
    %v275 = vsub.f32 %v193, %v259
    %v276 = vsub.f32 %v194, %v260
    %v277 = vsub.f32 %v195, %v261
    %v278 = vsub.f32 %v196, %v262
    %v279 = vmul.f32 %v263, %v263
    %v280 = vmul.f32 %v264, %v264
    %v281 = vmul.f32 %v265, %v265
    %v282 = vmul.f32 %v266, %v266
    %v283 = vmul.f32 %v267, %v267
    %v284 = vmul.f32 %v268, %v268
    %v285 = vmul.f32 %v269, %v269
    %v286 = vmul.f32 %v270, %v270
    %v287 = vmul.f32 %v271, %v271
    %v288 = vmul.f32 %v272, %v272
    %v289 = vmul.f32 %v273, %v273
    %v290 = vmul.f32 %v274, %v274
    %v291 = vmul.f32 %v275, %v275
    %v292 = vmul.f32 %v276, %v276
    %v293 = vmul.f32 %v277, %v277
    %v294 = vmul.f32 %v278, %v278
    %v295 = vsel %vm197, %v279, 0.0
    %296 = vadd.xlane.f32.xlu0 %v295
    %v297 = vpop.xlane.xlu0 %296
    %v298 = vsel %vm197, %v280, 0.0
    %299 = vadd.xlane.f32.xlu0 %v298
    %v300 = vpop.xlane.xlu0 %299
    %v301 = vsel %vm197, %v281, 0.0
    %302 = vadd.xlane.f32.xlu0 %v301
    %v303 = vpop.xlane.xlu0 %302
    %v304 = vsel %vm197, %v282, 0.0
    %305 = vadd.xlane.f32.xlu0 %v304
    %v306 = vpop.xlane.xlu0 %305
    %v307 = vsel %vm197, %v283, 0.0
    %308 = vadd.xlane.f32.xlu0 %v307
    %v309 = vpop.xlane.xlu0 %308
    %v310 = vsel %vm197, %v284, 0.0
    %311 = vadd.xlane.f32.xlu0 %v310
    %v312 = vpop.xlane.xlu0 %311
    %v313 = vsel %vm197, %v285, 0.0
    %314 = vadd.xlane.f32.xlu0 %v313
    %v315 = vpop.xlane.xlu0 %314
    %v316 = vsel %vm197, %v286, 0.0
    %317 = vadd.xlane.f32.xlu0 %v316
    %v318 = vpop.xlane.xlu0 %317
    %v319 = vsel %vm197, %v287, 0.0
    %320 = vadd.xlane.f32.xlu0 %v319
    %v321 = vpop.xlane.xlu0 %320
    %v322 = vsel %vm197, %v288, 0.0
    %323 = vadd.xlane.f32.xlu0 %v322
    %v324 = vpop.xlane.xlu0 %323
    %v325 = vsel %vm197, %v289, 0.0
    %326 = vadd.xlane.f32.xlu0 %v325
    %v327 = vpop.xlane.xlu0 %326
    %v328 = vsel %vm197, %v290, 0.0
    %329 = vadd.xlane.f32.xlu0 %v328
    %v330 = vpop.xlane.xlu0 %329
    %v331 = vsel %vm197, %v291, 0.0
    %332 = vadd.xlane.f32.xlu0 %v331
    %v333 = vpop.xlane.xlu0 %332
    %v334 = vsel %vm197, %v292, 0.0
    %335 = vadd.xlane.f32.xlu0 %v334
    %v336 = vpop.xlane.xlu0 %335
    %v337 = vsel %vm197, %v293, 0.0
    %338 = vadd.xlane.f32.xlu0 %v337
    %v339 = vpop.xlane.xlu0 %338
    %v340 = vsel %vm197, %v294, 0.0
    %341 = vadd.xlane.f32.xlu0 %v340
    %v342 = vpop.xlane.xlu0 %341
    %v343 = vmul.f32 %v297, %v246
    %v344 = vmul.f32 %v300, %v246
    %v345 = vmul.f32 %v303, %v246
    %v346 = vmul.f32 %v306, %v246
    %v347 = vmul.f32 %v309, %v246
    %v348 = vmul.f32 %v312, %v246
    %v349 = vmul.f32 %v315, %v246
    %v350 = vmul.f32 %v318, %v246
    %v351 = vmul.f32 %v321, %v246
    %v352 = vmul.f32 %v324, %v246
    %v353 = vmul.f32 %v327, %v246
    %v354 = vmul.f32 %v330, %v246
    %v355 = vmul.f32 %v333, %v246
    %v356 = vmul.f32 %v336, %v246
    %v357 = vmul.f32 %v339, %v246
    %v358 = vmul.f32 %v342, %v246
    %v359 = vadd.f32 %v343, 1e-05
    %v360 = vadd.f32 %v344, 1e-05
    %v361 = vadd.f32 %v345, 1e-05
    %v362 = vadd.f32 %v346, 1e-05
    %v363 = vadd.f32 %v347, 1e-05
    %v364 = vadd.f32 %v348, 1e-05
    %v365 = vadd.f32 %v349, 1e-05
    %v366 = vadd.f32 %v350, 1e-05
    %v367 = vadd.f32 %v351, 1e-05
    %v368 = vadd.f32 %v352, 1e-05
    %v369 = vadd.f32 %v353, 1e-05
    %v370 = vadd.f32 %v354, 1e-05
    %v371 = vadd.f32 %v355, 1e-05
    %v372 = vadd.f32 %v356, 1e-05
    %v373 = vadd.f32 %v357, 1e-05
    %v374 = vadd.f32 %v358, 1e-05
    %v375 = vrsqrt.pop %v359
    %v376 = vrsqrt.pop %v360
    %v377 = vrsqrt.pop %v361
    %v378 = vrsqrt.pop %v362
    %v379 = vrsqrt.pop %v363
    %v380 = vrsqrt.pop %v364
    %v381 = vrsqrt.pop %v365
    %v382 = vrsqrt.pop %v366
    %v383 = vrsqrt.pop %v367
    %v384 = vrsqrt.pop %v368
    %v385 = vrsqrt.pop %v369
    %v386 = vrsqrt.pop %v370
    %v387 = vrsqrt.pop %v371
    %v388 = vrsqrt.pop %v372
    %v389 = vrsqrt.pop %v373
    %v390 = vrsqrt.pop %v374
    %v391 = vmul.f32 %v263, %v375
    %v392 = vmul.f32 %v264, %v376
    %v393 = vmul.f32 %v265, %v377
    %v394 = vmul.f32 %v266, %v378
    %v395 = vmul.f32 %v267, %v379
    %v396 = vmul.f32 %v268, %v380
    %v397 = vmul.f32 %v269, %v381
    %v398 = vmul.f32 %v270, %v382
    %v399 = vmul.f32 %v271, %v383
    %v400 = vmul.f32 %v272, %v384
    %v401 = vmul.f32 %v273, %v385
    %v402 = vmul.f32 %v274, %v386
    %v403 = vmul.f32 %v275, %v387
    %v404 = vmul.f32 %v276, %v388
    %v405 = vmul.f32 %v277, %v389
    %v406 = vmul.f32 %v278, %v390
    %v408 = vlaneseq
    %v409 = vshrl.u32 %v408, 7
    %v410 = vsub.s32 0, %v409
    %v411 = vrot.slane %v43, %v410
    %v413 = vmul.f32 %v391, %v411
    %v414 = vmul.f32 %v392, %v411
    %v415 = vmul.f32 %v393, %v411
    %v416 = vmul.f32 %v394, %v411
    %v417 = vmul.f32 %v395, %v411
    %v418 = vmul.f32 %v396, %v411
    %v419 = vmul.f32 %v397, %v411
    %v420 = vmul.f32 %v398, %v411
    %v421 = vmul.f32 %v399, %v411
    %v422 = vmul.f32 %v400, %v411
    %v423 = vmul.f32 %v401, %v411
    %v424 = vmul.f32 %v402, %v411
    %v425 = vmul.f32 %v403, %v411
    %v426 = vmul.f32 %v404, %v411
    %v427 = vmul.f32 %v405, %v411
    %v428 = vmul.f32 %v406, %v411
    %v430 = vlaneseq
    %v431 = vshrl.u32 %v430, 7
    %v432 = vsub.s32 0, %v431
    %v433 = vrot.slane %v44, %v432
    %v435 = vadd.f32 %v413, %v433
    %v436 = vadd.f32 %v414, %v433
    %v437 = vadd.f32 %v415, %v433
    %v438 = vadd.f32 %v416, %v433
    %v439 = vadd.f32 %v417, %v433
    %v440 = vadd.f32 %v418, %v433
    %v441 = vadd.f32 %v419, %v433
    %v442 = vadd.f32 %v420, %v433
    %v443 = vadd.f32 %v421, %v433
    %v444 = vadd.f32 %v422, %v433
    %v445 = vadd.f32 %v423, %v433
    %v446 = vadd.f32 %v424, %v433
    %v447 = vadd.f32 %v425, %v433
    %v448 = vadd.f32 %v426, %v433
    %v449 = vadd.f32 %v427, %v433
    %v450 = vadd.f32 %v428, %v433
    %v451 = vpack.c.bf16 %v436, %v435
    %v452 = vpack.c.bf16 %v438, %v437
    %v453 = vpack.c.bf16 %v440, %v439
    %v454 = vpack.c.bf16 %v442, %v441
    %v455 = vpack.c.bf16 %v444, %v443
    %v456 = vpack.c.bf16 %v446, %v445
    %v457 = vpack.c.bf16 %v448, %v447
    %v458 = vpack.c.bf16 %v450, %v449
    %v459 = vld [vmem:[%s5] sm:$0xf]
    %v460 = vld [vmem:[%s5 + $0x4] sm:$0xf]
    %v461 = vld [vmem:[%s5 + $0x8] sm:$0xf]
    %v462 = vld [vmem:[%s5 + $0xc] sm:$0xf]
    %v463 = vld [vmem:[%s6] sm:$0x1]
    %v465 = vlaneseq
    %v466 = vshrl.u32 %v465, 7
    %v467 = vsub.s32 0, %v466
    %v468 = vrot.slane %v463, %v467
    %v474 = vunpack.c.l.b16 %v459
    %v475 = vunpack.c.l.b16 %v460
    %v476 = vunpack.c.l.b16 %v461
    %v477 = vunpack.c.l.b16 %v462
    %v478 = vpack.c.b16 %v475, %v474
    %v479 = vpack.c.b16 %v477, %v476
    %v483 = vsel %vm197, %v451, 0
    %v486 = vsel %vm197, %v452, 0
    %v489 = vsel %vm197, %v453, 0
    %v492 = vsel %vm197, %v454, 0
    %v495 = vsel %vm197, %v455, 0
    %v498 = vsel %vm197, %v456, 0
    %v501 = vsel %vm197, %v457, 0
    %v504 = vsel %vm197, %v458, 0
    %506 = vmatprep.subr.bf16.mxu0 0
    %507 = vmatpush1.bf16.msra.mxu0 %v478
    %508 = vmatprep.subr.bf16.mxu0 0
    %509 = vmatpush1.bf16.msra.mxu0 %v479
    %510 = vmatprep.subr.bf16.mxu0 0
    %511 = vmatpush1.bf16.msra.mxu0 0
    %512 = vmatprep.subr.bf16.mxu0 0
    %513 = vmatpush1.bf16.msra.mxu0 0
    %514 = vmatprep.subr.bf16.mxu0 0
    %515 = vmatpush1.bf16.msra.mxu0 0
    %516 = vmatprep.subr.bf16.mxu0 0
    %517 = vmatpush1.bf16.msra.mxu0 0
    %518 = vmatprep.subr.bf16.mxu0 0
    %519 = vmatpush1.bf16.msra.mxu0 0
    %520 = vmatprep.subr.bf16.mxu0 0
    %521 = vmatpush1.bf16.msra.mxu0 0
    %522 = vmatprep.subr.bf16.mxu0 0
    %523 = vmatpush1.bf16.msra.mxu0 0
    %524 = vmatprep.subr.bf16.mxu0 0
    %525 = vmatpush1.bf16.msra.mxu0 0
    %526 = vmatprep.subr.bf16.mxu0 0
    %527 = vmatpush1.bf16.msra.mxu0 0
    %528 = vmatprep.subr.bf16.mxu0 0
    %529 = vmatpush1.bf16.msra.mxu0 0
    %530 = vmatprep.subr.bf16.mxu0 0
    %531 = vmatpush1.bf16.msra.mxu0 0
    %532 = vmatprep.subr.bf16.mxu0 0
    %533 = vmatpush1.bf16.msra.mxu0 0
    %534 = vmatprep.subr.bf16.mxu0 0
    %535 = vmatpush1.bf16.msra.mxu0 0
    %536 = vmatprep.subr.bf16.mxu0 0
    %537 = vmatpush1.bf16.msra.mxu0 0
    %538 = vmatprep.mubr.bf16.mxu0 0
    %539 = vmatmul.mubr.bf16.gmra.mrb[0].mxu0 %v483
    %v540 = vpop.f32.mrb[0].mxu0
    %v541 = vadd.f32 %v468, %v540
    %v542 = vpop.f32.mrb[0].mxu0
    %v543 = vpop.f32.mrb[0].mxu0
    %v544 = vadd.f32 %v468, %v543
    %v545 = vpop.f32.mrb[0].mxu0
    %546 = vmatprep.mubr.bf16.mxu0 0
    %547 = vmatmul.mubr.bf16.gmra.mrb[0].mxu0 %v486
    %v548 = vpop.f32.mrb[0].mxu0
    %v549 = vadd.f32 %v468, %v548
    %v550 = vpop.f32.mrb[0].mxu0
    %v551 = vpop.f32.mrb[0].mxu0
    %v552 = vadd.f32 %v468, %v551
    %v553 = vpop.f32.mrb[0].mxu0
    %554 = vmatprep.mubr.bf16.mxu0 0
    %555 = vmatmul.mubr.bf16.gmra.mrb[0].mxu0 %v489
    %v556 = vpop.f32.mrb[0].mxu0
    %v557 = vadd.f32 %v468, %v556
    %v558 = vpop.f32.mrb[0].mxu0
    %v559 = vpop.f32.mrb[0].mxu0
    %v560 = vadd.f32 %v468, %v559
    %v561 = vpop.f32.mrb[0].mxu0
    %562 = vmatprep.mubr.bf16.mxu0 0
    %563 = vmatmul.mubr.bf16.gmra.mrb[0].mxu0 %v492
    %v564 = vpop.f32.mrb[0].mxu0
    %v565 = vadd.f32 %v468, %v564
    %v566 = vpop.f32.mrb[0].mxu0
    %v567 = vpop.f32.mrb[0].mxu0
    %v568 = vadd.f32 %v468, %v567
    %v569 = vpop.f32.mrb[0].mxu0
    %570 = vmatprep.mubr.bf16.mxu0 0
    %571 = vmatmul.mubr.bf16.gmra.mrb[0].mxu0 %v495
    %v572 = vpop.f32.mrb[0].mxu0
    %v573 = vadd.f32 %v468, %v572
    %v574 = vpop.f32.mrb[0].mxu0
    %v575 = vpop.f32.mrb[0].mxu0
    %v576 = vadd.f32 %v468, %v575
    %v577 = vpop.f32.mrb[0].mxu0
    %578 = vmatprep.mubr.bf16.mxu0 0
    %579 = vmatmul.mubr.bf16.gmra.mrb[0].mxu0 %v498
    %v580 = vpop.f32.mrb[0].mxu0
    %v581 = vadd.f32 %v468, %v580
    %v582 = vpop.f32.mrb[0].mxu0
    %v583 = vpop.f32.mrb[0].mxu0
    %v584 = vadd.f32 %v468, %v583
    %v585 = vpop.f32.mrb[0].mxu0
    %586 = vmatprep.mubr.bf16.mxu0 0
    %587 = vmatmul.mubr.bf16.gmra.mrb[0].mxu0 %v501
    %v588 = vpop.f32.mrb[0].mxu0
    %v589 = vadd.f32 %v468, %v588
    %v590 = vpop.f32.mrb[0].mxu0
    %v591 = vpop.f32.mrb[0].mxu0
    %v592 = vadd.f32 %v468, %v591
    %v593 = vpop.f32.mrb[0].mxu0
    %594 = vmatprep.mubr.bf16.mxu0 0
    %595 = vmatmul.mubr.bf16.gmra.mrb[0].mxu0 %v504
    %v596 = vpop.f32.mrb[0].mxu0
    %v597 = vadd.f32 %v468, %v596
    %v598 = vpop.f32.mrb[0].mxu0
    %v599 = vpop.f32.mrb[0].mxu0
    %v600 = vadd.f32 %v468, %v599
    %v601 = vpop.f32.mrb[0].mxu0
    %602 = vdwg.mxu0
    %v603 = vpack.c.bf16 %v544, %v541
    %v604 = vpack.c.bf16 %v552, %v549
    %v605 = vpack.c.bf16 %v560, %v557
    %v606 = vpack.c.bf16 %v568, %v565
    %v607 = vpack.c.bf16 %v576, %v573
    %v608 = vpack.c.bf16 %v584, %v581
    %v609 = vpack.c.bf16 %v592, %v589
    %v610 = vpack.c.bf16 %v600, %v597
    %vm611 = vcmask 785408
    %612 = vst.msk [vmem:[#allocation2] sm:$0xff] %vm611, %v603
    %613 = vst.msk [vmem:[#allocation2 + $0x8] sm:$0xff] %vm611, %v604
    %614 = vst.msk [vmem:[#allocation2 + $0x10] sm:$0xff] %vm611, %v605
    %615 = vst.msk [vmem:[#allocation2 + $0x18] sm:$0xff] %vm611, %v606
    %616 = vst.msk [vmem:[#allocation2 + $0x20] sm:$0xff] %vm611, %v607
    %617 = vst.msk [vmem:[#allocation2 + $0x28] sm:$0xff] %vm611, %v608
    %618 = vst.msk [vmem:[#allocation2 + $0x30] sm:$0xff] %vm611, %v609
    %619 = vst.msk [vmem:[#allocation2 + $0x38] sm:$0xff] %vm611, %v610
    %v620 = vunpack.c.l.bf16 %v61
    %v621 = vunpack.c.l.bf16 %v62
    %v622 = vunpack.c.l.bf16 %v63
    %v623 = vunpack.c.l.bf16 %v64
    %v624 = vunpack.c.l.bf16 %v65
    %v625 = vunpack.c.l.bf16 %v66
    %v626 = vunpack.c.l.bf16 %v67
    %v627 = vunpack.c.l.bf16 %v68
    %v628 = vunpack.c.l.bf16 %v69
    %v629 = vunpack.c.l.bf16 %v70
    %v630 = vunpack.c.l.bf16 %v71
    %v631 = vunpack.c.l.bf16 %v72
    %v632 = vunpack.c.l.bf16 %v73
    %v633 = vunpack.c.l.bf16 %v74
    %v634 = vunpack.c.l.bf16 %v75
    %v635 = vunpack.c.l.bf16 %v76
    %v636 = vunpack.c.l.bf16 %v77
    %v637 = vunpack.c.l.bf16 %v78
    %v638 = vunpack.c.l.bf16 %v79
    %v639 = vunpack.c.l.bf16 %v80
    %v640 = vunpack.c.l.bf16 %v81
    %v641 = vunpack.c.l.bf16 %v82
    %v642 = vunpack.c.l.bf16 %v83
    %v643 = vunpack.c.l.bf16 %v84
    %v644 = vunpack.c.l.bf16 %v85
    %v645 = vunpack.c.l.bf16 %v86
    %v646 = vunpack.c.l.bf16 %v87
    %v647 = vunpack.c.l.bf16 %v88
    %v648 = vunpack.c.l.bf16 %v89
    %v649 = vunpack.c.l.bf16 %v90
    %v650 = vunpack.c.l.bf16 %v91
    %v651 = vunpack.c.l.bf16 %v92
    %v652 = vunpack.c.l.bf16 %v93
    %v653 = vunpack.c.l.bf16 %v94
    %v654 = vunpack.c.l.bf16 %v95
    %v655 = vunpack.c.l.bf16 %v96
    %v656 = vunpack.c.l.bf16 %v97
    %v657 = vunpack.c.l.bf16 %v98
    %v658 = vunpack.c.l.bf16 %v99
    %v659 = vunpack.c.l.bf16 %v100
    %v660 = vsel %vm197, %v620, 0.0
    %661 = vadd.xlane.f32.xlu0 %v660
    %v662 = vpop.xlane.xlu0 %661
    %v663 = vsel %vm197, %v621, 0.0
    %664 = vadd.xlane.f32.xlu0 %v663
    %v665 = vpop.xlane.xlu0 %664
    %v666 = vsel %vm197, %v622, 0.0
    %667 = vadd.xlane.f32.xlu0 %v666
    %v668 = vpop.xlane.xlu0 %667
    %v669 = vsel %vm197, %v623, 0.0
    %670 = vadd.xlane.f32.xlu0 %v669
    %v671 = vpop.xlane.xlu0 %670
    %v672 = vsel %vm197, %v624, 0.0
    %673 = vadd.xlane.f32.xlu0 %v672
    %v674 = vpop.xlane.xlu0 %673
    %v675 = vsel %vm197, %v625, 0.0
    %676 = vadd.xlane.f32.xlu0 %v675
    %v677 = vpop.xlane.xlu0 %676
    %v678 = vsel %vm197, %v626, 0.0
    %679 = vadd.xlane.f32.xlu0 %v678
    %v680 = vpop.xlane.xlu0 %679
    %v681 = vsel %vm197, %v627, 0.0
    %682 = vadd.xlane.f32.xlu0 %v681
    %v683 = vpop.xlane.xlu0 %682
    %v684 = vsel %vm197, %v628, 0.0
    %685 = vadd.xlane.f32.xlu0 %v684
    %v686 = vpop.xlane.xlu0 %685
    %v687 = vsel %vm197, %v629, 0.0
    %688 = vadd.xlane.f32.xlu0 %v687
    %v689 = vpop.xlane.xlu0 %688
    %v690 = vsel %vm197, %v630, 0.0
    %691 = vadd.xlane.f32.xlu0 %v690
    %v692 = vpop.xlane.xlu0 %691
    %v693 = vsel %vm197, %v631, 0.0
    %694 = vadd.xlane.f32.xlu0 %v693
    %v695 = vpop.xlane.xlu0 %694
    %v696 = vsel %vm197, %v632, 0.0
    %697 = vadd.xlane.f32.xlu0 %v696
    %v698 = vpop.xlane.xlu0 %697
    %v699 = vsel %vm197, %v633, 0.0
    %700 = vadd.xlane.f32.xlu0 %v699
    %v701 = vpop.xlane.xlu0 %700
    %v702 = vsel %vm197, %v634, 0.0
    %703 = vadd.xlane.f32.xlu0 %v702
    %v704 = vpop.xlane.xlu0 %703
    %v705 = vsel %vm197, %v635, 0.0
    %706 = vadd.xlane.f32.xlu0 %v705
    %v707 = vpop.xlane.xlu0 %706
    %v708 = vsel %vm197, %v636, 0.0
    %709 = vadd.xlane.f32.xlu0 %v708
    %v710 = vpop.xlane.xlu0 %709
    %v711 = vsel %vm197, %v637, 0.0
    %712 = vadd.xlane.f32.xlu0 %v711
    %v713 = vpop.xlane.xlu0 %712
    %v714 = vsel %vm197, %v638, 0.0
    %715 = vadd.xlane.f32.xlu0 %v714
    %v716 = vpop.xlane.xlu0 %715
    %v717 = vsel %vm197, %v639, 0.0
    %718 = vadd.xlane.f32.xlu0 %v717
    %v719 = vpop.xlane.xlu0 %718
    %v720 = vsel %vm197, %v640, 0.0
    %721 = vadd.xlane.f32.xlu0 %v720
    %v722 = vpop.xlane.xlu0 %721
    %v723 = vsel %vm197, %v641, 0.0
    %724 = vadd.xlane.f32.xlu0 %v723
    %v725 = vpop.xlane.xlu0 %724
    %v726 = vsel %vm197, %v642, 0.0
    %727 = vadd.xlane.f32.xlu0 %v726
    %v728 = vpop.xlane.xlu0 %727
    %v729 = vsel %vm197, %v643, 0.0
    %730 = vadd.xlane.f32.xlu0 %v729
    %v731 = vpop.xlane.xlu0 %730
    %v732 = vsel %vm197, %v644, 0.0
    %733 = vadd.xlane.f32.xlu0 %v732
    %v734 = vpop.xlane.xlu0 %733
    %v735 = vsel %vm197, %v645, 0.0
    %736 = vadd.xlane.f32.xlu0 %v735
    %v737 = vpop.xlane.xlu0 %736
    %v738 = vsel %vm197, %v646, 0.0
    %739 = vadd.xlane.f32.xlu0 %v738
    %v740 = vpop.xlane.xlu0 %739
    %v741 = vsel %vm197, %v647, 0.0
    %742 = vadd.xlane.f32.xlu0 %v741
    %v743 = vpop.xlane.xlu0 %742
    %v744 = vsel %vm197, %v648, 0.0
    %745 = vadd.xlane.f32.xlu0 %v744
    %v746 = vpop.xlane.xlu0 %745
    %v747 = vsel %vm197, %v649, 0.0
    %748 = vadd.xlane.f32.xlu0 %v747
    %v749 = vpop.xlane.xlu0 %748
    %v750 = vsel %vm197, %v650, 0.0
    %751 = vadd.xlane.f32.xlu0 %v750
    %v752 = vpop.xlane.xlu0 %751
    %v753 = vsel %vm197, %v651, 0.0
    %754 = vadd.xlane.f32.xlu0 %v753
    %v755 = vpop.xlane.xlu0 %754
    %v756 = vsel %vm197, %v652, 0.0
    %757 = vadd.xlane.f32.xlu0 %v756
    %v758 = vpop.xlane.xlu0 %757
    %v759 = vsel %vm197, %v653, 0.0
    %760 = vadd.xlane.f32.xlu0 %v759
    %v761 = vpop.xlane.xlu0 %760
    %v762 = vsel %vm197, %v654, 0.0
    %763 = vadd.xlane.f32.xlu0 %v762
    %v764 = vpop.xlane.xlu0 %763
    %v765 = vsel %vm197, %v655, 0.0
    %766 = vadd.xlane.f32.xlu0 %v765
    %v767 = vpop.xlane.xlu0 %766
    %v768 = vsel %vm197, %v656, 0.0
    %769 = vadd.xlane.f32.xlu0 %v768
    %v770 = vpop.xlane.xlu0 %769
    %v771 = vsel %vm197, %v657, 0.0
    %772 = vadd.xlane.f32.xlu0 %v771
    %v773 = vpop.xlane.xlu0 %772
    %v774 = vsel %vm197, %v658, 0.0
    %775 = vadd.xlane.f32.xlu0 %v774
    %v776 = vpop.xlane.xlu0 %775
    %v777 = vsel %vm197, %v659, 0.0
    %778 = vadd.xlane.f32.xlu0 %v777
    %v779 = vpop.xlane.xlu0 %778
    %v780 = vmul.f32 %v662, %v246
    %v781 = vmul.f32 %v665, %v246
    %v782 = vmul.f32 %v668, %v246
    %v783 = vmul.f32 %v671, %v246
    %v784 = vmul.f32 %v674, %v246
    %v785 = vmul.f32 %v677, %v246
    %v786 = vmul.f32 %v680, %v246
    %v787 = vmul.f32 %v683, %v246
    %v788 = vmul.f32 %v686, %v246
    %v789 = vmul.f32 %v689, %v246
    %v790 = vmul.f32 %v692, %v246
    %v791 = vmul.f32 %v695, %v246
    %v792 = vmul.f32 %v698, %v246
    %v793 = vmul.f32 %v701, %v246
    %v794 = vmul.f32 %v704, %v246
    %v795 = vmul.f32 %v707, %v246
    %v796 = vmul.f32 %v710, %v246
    %v797 = vmul.f32 %v713, %v246
    %v798 = vmul.f32 %v716, %v246
    %v799 = vmul.f32 %v719, %v246
    %v800 = vmul.f32 %v722, %v246
    %v801 = vmul.f32 %v725, %v246
    %v802 = vmul.f32 %v728, %v246
    %v803 = vmul.f32 %v731, %v246
    %v804 = vmul.f32 %v734, %v246
    %v805 = vmul.f32 %v737, %v246
    %v806 = vmul.f32 %v740, %v246
    %v807 = vmul.f32 %v743, %v246
    %v808 = vmul.f32 %v746, %v246
    %v809 = vmul.f32 %v749, %v246
    %v810 = vmul.f32 %v752, %v246
    %v811 = vmul.f32 %v755, %v246
    %v812 = vmul.f32 %v758, %v246
    %v813 = vmul.f32 %v761, %v246
    %v814 = vmul.f32 %v764, %v246
    %v815 = vmul.f32 %v767, %v246
    %v816 = vmul.f32 %v770, %v246
    %v817 = vmul.f32 %v773, %v246
    %v818 = vmul.f32 %v776, %v246
    %v819 = vmul.f32 %v779, %v246
    %v820 = vsub.f32 %v620, %v780
    %v821 = vsub.f32 %v621, %v781
    %v822 = vsub.f32 %v622, %v782
    %v823 = vsub.f32 %v623, %v783
    %v824 = vsub.f32 %v624, %v784
    %v825 = vsub.f32 %v625, %v785
    %v826 = vsub.f32 %v626, %v786
    %v827 = vsub.f32 %v627, %v787
    %v828 = vsub.f32 %v628, %v788
    %v829 = vsub.f32 %v629, %v789
    %v830 = vsub.f32 %v630, %v790
    %v831 = vsub.f32 %v631, %v791
    %v832 = vsub.f32 %v632, %v792
    %v833 = vsub.f32 %v633, %v793
    %v834 = vsub.f32 %v634, %v794
    %v835 = vsub.f32 %v635, %v795
    %v836 = vsub.f32 %v636, %v796
    %v837 = vsub.f32 %v637, %v797
    %v838 = vsub.f32 %v638, %v798
    %v839 = vsub.f32 %v639, %v799
    %v840 = vsub.f32 %v640, %v800
    %v841 = vsub.f32 %v641, %v801
    %v842 = vsub.f32 %v642, %v802
    %v843 = vsub.f32 %v643, %v803
    %v844 = vsub.f32 %v644, %v804
    %v845 = vsub.f32 %v645, %v805
    %v846 = vsub.f32 %v646, %v806
    %v847 = vsub.f32 %v647, %v807
    %v848 = vsub.f32 %v648, %v808
    %v849 = vsub.f32 %v649, %v809
    %v850 = vsub.f32 %v650, %v810
    %v851 = vsub.f32 %v651, %v811
    %v852 = vsub.f32 %v652, %v812
    %v853 = vsub.f32 %v653, %v813
    %v854 = vsub.f32 %v654, %v814
    %v855 = vsub.f32 %v655, %v815
    %v856 = vsub.f32 %v656, %v816
    %v857 = vsub.f32 %v657, %v817
    %v858 = vsub.f32 %v658, %v818
    %v859 = vsub.f32 %v659, %v819
    %v860 = vmul.f32 %v820, %v820
    %v861 = vmul.f32 %v821, %v821
    %v862 = vmul.f32 %v822, %v822
    %v863 = vmul.f32 %v823, %v823
    %v864 = vmul.f32 %v824, %v824
    %v865 = vmul.f32 %v825, %v825
    %v866 = vmul.f32 %v826, %v826
    %v867 = vmul.f32 %v827, %v827
    %v868 = vmul.f32 %v828, %v828
    %v869 = vmul.f32 %v829, %v829
    %v870 = vmul.f32 %v830, %v830
    %v871 = vmul.f32 %v831, %v831
    %v872 = vmul.f32 %v832, %v832
    %v873 = vmul.f32 %v833, %v833
    %v874 = vmul.f32 %v834, %v834
    %v875 = vmul.f32 %v835, %v835
    %v876 = vmul.f32 %v836, %v836
    %v877 = vmul.f32 %v837, %v837
    %v878 = vmul.f32 %v838, %v838
    %v879 = vmul.f32 %v839, %v839
    %v880 = vmul.f32 %v840, %v840
    %v881 = vmul.f32 %v841, %v841
    %v882 = vmul.f32 %v842, %v842
    %v883 = vmul.f32 %v843, %v843
    %v884 = vmul.f32 %v844, %v844
    %v885 = vmul.f32 %v845, %v845
    %v886 = vmul.f32 %v846, %v846
    %v887 = vmul.f32 %v847, %v847
    %v888 = vmul.f32 %v848, %v848
    %v889 = vmul.f32 %v849, %v849
    %v890 = vmul.f32 %v850, %v850
    %v891 = vmul.f32 %v851, %v851
    %v892 = vmul.f32 %v852, %v852
    %v893 = vmul.f32 %v853, %v853
    %v894 = vmul.f32 %v854, %v854
    %v895 = vmul.f32 %v855, %v855
    %v896 = vmul.f32 %v856, %v856
    %v897 = vmul.f32 %v857, %v857
    %v898 = vmul.f32 %v858, %v858
    %v899 = vmul.f32 %v859, %v859
    %v900 = vsel %vm197, %v860, 0.0
    %901 = vadd.xlane.f32.xlu0 %v900
    %v902 = vpop.xlane.xlu0 %901
    %v903 = vsel %vm197, %v861, 0.0
    %904 = vadd.xlane.f32.xlu0 %v903
    %v905 = vpop.xlane.xlu0 %904
    %v906 = vsel %vm197, %v862, 0.0
    %907 = vadd.xlane.f32.xlu0 %v906
    %v908 = vpop.xlane.xlu0 %907
    %v909 = vsel %vm197, %v863, 0.0
    %910 = vadd.xlane.f32.xlu0 %v909
    %v911 = vpop.xlane.xlu0 %910
    %v912 = vsel %vm197, %v864, 0.0
    %913 = vadd.xlane.f32.xlu0 %v912
    %v914 = vpop.xlane.xlu0 %913
    %v915 = vsel %vm197, %v865, 0.0
    %916 = vadd.xlane.f32.xlu0 %v915
    %v917 = vpop.xlane.xlu0 %916
    %v918 = vsel %vm197, %v866, 0.0
    %919 = vadd.xlane.f32.xlu0 %v918
    %v920 = vpop.xlane.xlu0 %919
    %v921 = vsel %vm197, %v867, 0.0
    %922 = vadd.xlane.f32.xlu0 %v921
    %v923 = vpop.xlane.xlu0 %922
    %v924 = vsel %vm197, %v868, 0.0
    %925 = vadd.xlane.f32.xlu0 %v924
    %v926 = vpop.xlane.xlu0 %925
    %v927 = vsel %vm197, %v869, 0.0
    %928 = vadd.xlane.f32.xlu0 %v927
    %v929 = vpop.xlane.xlu0 %928
    %v930 = vsel %vm197, %v870, 0.0
    %931 = vadd.xlane.f32.xlu0 %v930
    %v932 = vpop.xlane.xlu0 %931
    %v933 = vsel %vm197, %v871, 0.0
    %934 = vadd.xlane.f32.xlu0 %v933
    %v935 = vpop.xlane.xlu0 %934
    %v936 = vsel %vm197, %v872, 0.0
    %937 = vadd.xlane.f32.xlu0 %v936
    %v938 = vpop.xlane.xlu0 %937
    %v939 = vsel %vm197, %v873, 0.0
    %940 = vadd.xlane.f32.xlu0 %v939
    %v941 = vpop.xlane.xlu0 %940
    %v942 = vsel %vm197, %v874, 0.0
    %943 = vadd.xlane.f32.xlu0 %v942
    %v944 = vpop.xlane.xlu0 %943
    %v945 = vsel %vm197, %v875, 0.0
    %946 = vadd.xlane.f32.xlu0 %v945
    %v947 = vpop.xlane.xlu0 %946
    %v948 = vsel %vm197, %v876, 0.0
    %949 = vadd.xlane.f32.xlu0 %v948
    %v950 = vpop.xlane.xlu0 %949
    %v951 = vsel %vm197, %v877, 0.0
    %952 = vadd.xlane.f32.xlu0 %v951
    %v953 = vpop.xlane.xlu0 %952
    %v954 = vsel %vm197, %v878, 0.0
    %955 = vadd.xlane.f32.xlu0 %v954
    %v956 = vpop.xlane.xlu0 %955
    %v957 = vsel %vm197, %v879, 0.0
    %958 = vadd.xlane.f32.xlu0 %v957
    %v959 = vpop.xlane.xlu0 %958
    %v960 = vsel %vm197, %v880, 0.0
    %961 = vadd.xlane.f32.xlu0 %v960
    %v962 = vpop.xlane.xlu0 %961
    %v963 = vsel %vm197, %v881, 0.0
    %964 = vadd.xlane.f32.xlu0 %v963
    %v965 = vpop.xlane.xlu0 %964
    %v966 = vsel %vm197, %v882, 0.0
    %967 = vadd.xlane.f32.xlu0 %v966
    %v968 = vpop.xlane.xlu0 %967
    %v969 = vsel %vm197, %v883, 0.0
    %970 = vadd.xlane.f32.xlu0 %v969
    %v971 = vpop.xlane.xlu0 %970
    %v972 = vsel %vm197, %v884, 0.0
    %973 = vadd.xlane.f32.xlu0 %v972
    %v974 = vpop.xlane.xlu0 %973
    %v975 = vsel %vm197, %v885, 0.0
    %976 = vadd.xlane.f32.xlu0 %v975
    %v977 = vpop.xlane.xlu0 %976
    %v978 = vsel %vm197, %v886, 0.0
    %979 = vadd.xlane.f32.xlu0 %v978
    %v980 = vpop.xlane.xlu0 %979
    %v981 = vsel %vm197, %v887, 0.0
    %982 = vadd.xlane.f32.xlu0 %v981
    %v983 = vpop.xlane.xlu0 %982
    %v984 = vsel %vm197, %v888, 0.0
    %985 = vadd.xlane.f32.xlu0 %v984
    %v986 = vpop.xlane.xlu0 %985
    %v987 = vsel %vm197, %v889, 0.0
    %988 = vadd.xlane.f32.xlu0 %v987
    %v989 = vpop.xlane.xlu0 %988
    %v990 = vsel %vm197, %v890, 0.0
    %991 = vadd.xlane.f32.xlu0 %v990
    %v992 = vpop.xlane.xlu0 %991
    %v993 = vsel %vm197, %v891, 0.0
    %994 = vadd.xlane.f32.xlu0 %v993
    %v995 = vpop.xlane.xlu0 %994
    %v996 = vsel %vm197, %v892, 0.0
    %997 = vadd.xlane.f32.xlu0 %v996
    %v998 = vpop.xlane.xlu0 %997
    %v999 = vsel %vm197, %v893, 0.0
    %1000 = vadd.xlane.f32.xlu0 %v999
    %v1001 = vpop.xlane.xlu0 %1000
    %v1002 = vsel %vm197, %v894, 0.0
    %1003 = vadd.xlane.f32.xlu0 %v1002
    %v1004 = vpop.xlane.xlu0 %1003
    %v1005 = vsel %vm197, %v895, 0.0
    %1006 = vadd.xlane.f32.xlu0 %v1005
    %v1007 = vpop.xlane.xlu0 %1006
    %v1008 = vsel %vm197, %v896, 0.0
    %1009 = vadd.xlane.f32.xlu0 %v1008
    %v1010 = vpop.xlane.xlu0 %1009
    %v1011 = vsel %vm197, %v897, 0.0
    %1012 = vadd.xlane.f32.xlu0 %v1011
    %v1013 = vpop.xlane.xlu0 %1012
    %v1014 = vsel %vm197, %v898, 0.0
    %1015 = vadd.xlane.f32.xlu0 %v1014
    %v1016 = vpop.xlane.xlu0 %1015
    %v1017 = vsel %vm197, %v899, 0.0
    %1018 = vadd.xlane.f32.xlu0 %v1017
    %v1019 = vpop.xlane.xlu0 %1018
    %v1020 = vmul.f32 %v902, %v246
    %v1021 = vmul.f32 %v905, %v246
    %v1022 = vmul.f32 %v908, %v246
    %v1023 = vmul.f32 %v911, %v246
    %v1024 = vmul.f32 %v914, %v246
    %v1025 = vmul.f32 %v917, %v246
    %v1026 = vmul.f32 %v920, %v246
    %v1027 = vmul.f32 %v923, %v246
    %v1028 = vmul.f32 %v926, %v246
    %v1029 = vmul.f32 %v929, %v246
    %v1030 = vmul.f32 %v932, %v246
    %v1031 = vmul.f32 %v935, %v246
    %v1032 = vmul.f32 %v938, %v246
    %v1033 = vmul.f32 %v941, %v246
    %v1034 = vmul.f32 %v944, %v246
    %v1035 = vmul.f32 %v947, %v246
    %v1036 = vmul.f32 %v950, %v246
    %v1037 = vmul.f32 %v953, %v246
    %v1038 = vmul.f32 %v956, %v246
    %v1039 = vmul.f32 %v959, %v246
    %v1040 = vmul.f32 %v962, %v246
    %v1041 = vmul.f32 %v965, %v246
    %v1042 = vmul.f32 %v968, %v246
    %v1043 = vmul.f32 %v971, %v246
    %v1044 = vmul.f32 %v974, %v246
    %v1045 = vmul.f32 %v977, %v246
    %v1046 = vmul.f32 %v980, %v246
    %v1047 = vmul.f32 %v983, %v246
    %v1048 = vmul.f32 %v986, %v246
    %v1049 = vmul.f32 %v989, %v246
    %v1050 = vmul.f32 %v992, %v246
    %v1051 = vmul.f32 %v995, %v246
    %v1052 = vmul.f32 %v998, %v246
    %v1053 = vmul.f32 %v1001, %v246
    %v1054 = vmul.f32 %v1004, %v246
    %v1055 = vmul.f32 %v1007, %v246
    %v1056 = vmul.f32 %v1010, %v246
    %v1057 = vmul.f32 %v1013, %v246
    %v1058 = vmul.f32 %v1016, %v246
    %v1059 = vmul.f32 %v1019, %v246
    %v1060 = vadd.f32 %v1020, 1e-05
    %v1061 = vadd.f32 %v1021, 1e-05
    %v1062 = vadd.f32 %v1022, 1e-05
    %v1063 = vadd.f32 %v1023, 1e-05
    %v1064 = vadd.f32 %v1024, 1e-05
    %v1065 = vadd.f32 %v1025, 1e-05
    %v1066 = vadd.f32 %v1026, 1e-05
    %v1067 = vadd.f32 %v1027, 1e-05
    %v1068 = vadd.f32 %v1028, 1e-05
    %v1069 = vadd.f32 %v1029, 1e-05
    %v1070 = vadd.f32 %v1030, 1e-05
    %v1071 = vadd.f32 %v1031, 1e-05
    %v1072 = vadd.f32 %v1032, 1e-05
    %v1073 = vadd.f32 %v1033, 1e-05
    %v1074 = vadd.f32 %v1034, 1e-05
    %v1075 = vadd.f32 %v1035, 1e-05
    %v1076 = vadd.f32 %v1036, 1e-05
    %v1077 = vadd.f32 %v1037, 1e-05
    %v1078 = vadd.f32 %v1038, 1e-05
    %v1079 = vadd.f32 %v1039, 1e-05
    %v1080 = vadd.f32 %v1040, 1e-05
    %v1081 = vadd.f32 %v1041, 1e-05
    %v1082 = vadd.f32 %v1042, 1e-05
    %v1083 = vadd.f32 %v1043, 1e-05
    %v1084 = vadd.f32 %v1044, 1e-05
    %v1085 = vadd.f32 %v1045, 1e-05
    %v1086 = vadd.f32 %v1046, 1e-05
    %v1087 = vadd.f32 %v1047, 1e-05
    %v1088 = vadd.f32 %v1048, 1e-05
    %v1089 = vadd.f32 %v1049, 1e-05
    %v1090 = vadd.f32 %v1050, 1e-05
    %v1091 = vadd.f32 %v1051, 1e-05
    %v1092 = vadd.f32 %v1052, 1e-05
    %v1093 = vadd.f32 %v1053, 1e-05
    %v1094 = vadd.f32 %v1054, 1e-05
    %v1095 = vadd.f32 %v1055, 1e-05
    %v1096 = vadd.f32 %v1056, 1e-05
    %v1097 = vadd.f32 %v1057, 1e-05
    %v1098 = vadd.f32 %v1058, 1e-05
    %v1099 = vadd.f32 %v1059, 1e-05
    %v1100 = vrsqrt.pop %v1060
    %v1101 = vrsqrt.pop %v1061
    %v1102 = vrsqrt.pop %v1062
    %v1103 = vrsqrt.pop %v1063
    %v1104 = vrsqrt.pop %v1064
    %v1105 = vrsqrt.pop %v1065
    %v1106 = vrsqrt.pop %v1066
    %v1107 = vrsqrt.pop %v1067
    %v1108 = vrsqrt.pop %v1068
    %v1109 = vrsqrt.pop %v1069
    %v1110 = vrsqrt.pop %v1070
    %v1111 = vrsqrt.pop %v1071
    %v1112 = vrsqrt.pop %v1072
    %v1113 = vrsqrt.pop %v1073
    %v1114 = vrsqrt.pop %v1074
    %v1115 = vrsqrt.pop %v1075
    %v1116 = vrsqrt.pop %v1076
    %v1117 = vrsqrt.pop %v1077
    %v1118 = vrsqrt.pop %v1078
    %v1119 = vrsqrt.pop %v1079
    %v1120 = vrsqrt.pop %v1080
    %v1121 = vrsqrt.pop %v1081
    %v1122 = vrsqrt.pop %v1082
    %v1123 = vrsqrt.pop %v1083
    %v1124 = vrsqrt.pop %v1084
    %v1125 = vrsqrt.pop %v1085
    %v1126 = vrsqrt.pop %v1086
    %v1127 = vrsqrt.pop %v1087
    %v1128 = vrsqrt.pop %v1088
    %v1129 = vrsqrt.pop %v1089
    %v1130 = vrsqrt.pop %v1090
    %v1131 = vrsqrt.pop %v1091
    %v1132 = vrsqrt.pop %v1092
    %v1133 = vrsqrt.pop %v1093
    %v1134 = vrsqrt.pop %v1094
    %v1135 = vrsqrt.pop %v1095
    %v1136 = vrsqrt.pop %v1096
    %v1137 = vrsqrt.pop %v1097
    %v1138 = vrsqrt.pop %v1098
    %v1139 = vrsqrt.pop %v1099
    %v1140 = vmul.f32 %v820, %v1100
    %v1141 = vmul.f32 %v821, %v1101
    %v1142 = vmul.f32 %v822, %v1102
    %v1143 = vmul.f32 %v823, %v1103
    %v1144 = vmul.f32 %v824, %v1104
    %v1145 = vmul.f32 %v825, %v1105
    %v1146 = vmul.f32 %v826, %v1106
    %v1147 = vmul.f32 %v827, %v1107
    %v1148 = vmul.f32 %v828, %v1108
    %v1149 = vmul.f32 %v829, %v1109
    %v1150 = vmul.f32 %v830, %v1110
    %v1151 = vmul.f32 %v831, %v1111
    %v1152 = vmul.f32 %v832, %v1112
    %v1153 = vmul.f32 %v833, %v1113
    %v1154 = vmul.f32 %v834, %v1114
    %v1155 = vmul.f32 %v835, %v1115
    %v1156 = vmul.f32 %v836, %v1116
    %v1157 = vmul.f32 %v837, %v1117
    %v1158 = vmul.f32 %v838, %v1118
    %v1159 = vmul.f32 %v839, %v1119
    %v1160 = vmul.f32 %v840, %v1120
    %v1161 = vmul.f32 %v841, %v1121
    %v1162 = vmul.f32 %v842, %v1122
    %v1163 = vmul.f32 %v843, %v1123
    %v1164 = vmul.f32 %v844, %v1124
    %v1165 = vmul.f32 %v845, %v1125
    %v1166 = vmul.f32 %v846, %v1126
    %v1167 = vmul.f32 %v847, %v1127
    %v1168 = vmul.f32 %v848, %v1128
    %v1169 = vmul.f32 %v849, %v1129
    %v1170 = vmul.f32 %v850, %v1130
    %v1171 = vmul.f32 %v851, %v1131
    %v1172 = vmul.f32 %v852, %v1132
    %v1173 = vmul.f32 %v853, %v1133
    %v1174 = vmul.f32 %v854, %v1134
    %v1175 = vmul.f32 %v855, %v1135
    %v1176 = vmul.f32 %v856, %v1136
    %v1177 = vmul.f32 %v857, %v1137
    %v1178 = vmul.f32 %v858, %v1138
    %v1179 = vmul.f32 %v859, %v1139
    %v1180 = vmul.f32 %v1140, %v411
    %v1181 = vmul.f32 %v1141, %v411
    %v1182 = vmul.f32 %v1142, %v411
    %v1183 = vmul.f32 %v1143, %v411
    %v1184 = vmul.f32 %v1144, %v411
    %v1185 = vmul.f32 %v1145, %v411
    %v1186 = vmul.f32 %v1146, %v411
    %v1187 = vmul.f32 %v1147, %v411
    %v1188 = vmul.f32 %v1148, %v411
    %v1189 = vmul.f32 %v1149, %v411
    %v1190 = vmul.f32 %v1150, %v411
    %v1191 = vmul.f32 %v1151, %v411
    %v1192 = vmul.f32 %v1152, %v411
    %v1193 = vmul.f32 %v1153, %v411
    %v1194 = vmul.f32 %v1154, %v411
    %v1195 = vmul.f32 %v1155, %v411
    %v1196 = vmul.f32 %v1156, %v411
    %v1197 = vmul.f32 %v1157, %v411
    %v1198 = vmul.f32 %v1158, %v411
    %v1199 = vmul.f32 %v1159, %v411
    %v1200 = vmul.f32 %v1160, %v411
    %v1201 = vmul.f32 %v1161, %v411
    %v1202 = vmul.f32 %v1162, %v411
    %v1203 = vmul.f32 %v1163, %v411
    %v1204 = vmul.f32 %v1164, %v411
    %v1205 = vmul.f32 %v1165, %v411
    %v1206 = vmul.f32 %v1166, %v411
    %v1207 = vmul.f32 %v1167, %v411
    %v1208 = vmul.f32 %v1168, %v411
    %v1209 = vmul.f32 %v1169, %v411
    %v1210 = vmul.f32 %v1170, %v411
    %v1211 = vmul.f32 %v1171, %v411
    %v1212 = vmul.f32 %v1172, %v411
    %v1213 = vmul.f32 %v1173, %v411
    %v1214 = vmul.f32 %v1174, %v411
    %v1215 = vmul.f32 %v1175, %v411
    %v1216 = vmul.f32 %v1176, %v411
    %v1217 = vmul.f32 %v1177, %v411
    %v1218 = vmul.f32 %v1178, %v411
    %v1219 = vmul.f32 %v1179, %v411
    %v1220 = vadd.f32 %v1180, %v433
    %v1221 = vadd.f32 %v1181, %v433
    %v1222 = vadd.f32 %v1182, %v433
    %v1223 = vadd.f32 %v1183, %v433
    %v1224 = vadd.f32 %v1184, %v433
    %v1225 = vadd.f32 %v1185, %v433
    %v1226 = vadd.f32 %v1186, %v433
    %v1227 = vadd.f32 %v1187, %v433
    %v1228 = vadd.f32 %v1188, %v433
    %v1229 = vadd.f32 %v1189, %v433
    %v1230 = vadd.f32 %v1190, %v433
    %v1231 = vadd.f32 %v1191, %v433
    %v1232 = vadd.f32 %v1192, %v433
    %v1233 = vadd.f32 %v1193, %v433
    %v1234 = vadd.f32 %v1194, %v433
    %v1235 = vadd.f32 %v1195, %v433
    %v1236 = vadd.f32 %v1196, %v433
    %v1237 = vadd.f32 %v1197, %v433
    %v1238 = vadd.f32 %v1198, %v433
    %v1239 = vadd.f32 %v1199, %v433
    %v1240 = vadd.f32 %v1200, %v433
    %v1241 = vadd.f32 %v1201, %v433
    %v1242 = vadd.f32 %v1202, %v433
    %v1243 = vadd.f32 %v1203, %v433
    %v1244 = vadd.f32 %v1204, %v433
    %v1245 = vadd.f32 %v1205, %v433
    %v1246 = vadd.f32 %v1206, %v433
    %v1247 = vadd.f32 %v1207, %v433
    %v1248 = vadd.f32 %v1208, %v433
    %v1249 = vadd.f32 %v1209, %v433
    %v1250 = vadd.f32 %v1210, %v433
    %v1251 = vadd.f32 %v1211, %v433
    %v1252 = vadd.f32 %v1212, %v433
    %v1253 = vadd.f32 %v1213, %v433
    %v1254 = vadd.f32 %v1214, %v433
    %v1255 = vadd.f32 %v1215, %v433
    %v1256 = vadd.f32 %v1216, %v433
    %v1257 = vadd.f32 %v1217, %v433
    %v1258 = vadd.f32 %v1218, %v433
    %v1259 = vadd.f32 %v1219, %v433
    %v1260 = vpack.c.bf16 %v1221, %v1220
    %v1261 = vpack.c.bf16 %v1223, %v1222
    %v1262 = vpack.c.bf16 %v1225, %v1224
    %v1263 = vpack.c.bf16 %v1227, %v1226
    %v1264 = vpack.c.bf16 %v1229, %v1228
    %v1265 = vpack.c.bf16 %v1231, %v1230
    %v1266 = vpack.c.bf16 %v1233, %v1232
    %v1267 = vpack.c.bf16 %v1235, %v1234
    %v1268 = vpack.c.bf16 %v1237, %v1236
    %v1269 = vpack.c.bf16 %v1239, %v1238
    %v1270 = vpack.c.bf16 %v1241, %v1240
    %v1271 = vpack.c.bf16 %v1243, %v1242
    %v1272 = vpack.c.bf16 %v1245, %v1244
    %v1273 = vpack.c.bf16 %v1247, %v1246
    %v1274 = vpack.c.bf16 %v1249, %v1248
    %v1275 = vpack.c.bf16 %v1251, %v1250
    %v1276 = vpack.c.bf16 %v1253, %v1252
    %v1277 = vpack.c.bf16 %v1255, %v1254
    %v1278 = vpack.c.bf16 %v1257, %v1256
    %v1279 = vpack.c.bf16 %v1259, %v1258
    %v1280 = vld [vmem:[%s7] sm:$0xf]
    %v1281 = vld [vmem:[%s7 + $0x4] sm:$0xf]
    %v1282 = vld [vmem:[%s7 + $0x8] sm:$0xf]
    %v1283 = vld [vmem:[%s7 + $0xc] sm:$0xf]
    %v1284 = vld [vmem:[%s8] sm:$0x1]
    %v1286 = vlaneseq
    %v1287 = vshrl.u32 %v1286, 7
    %v1288 = vsub.s32 0, %v1287
    %v1289 = vrot.slane %v1284, %v1288
    %v1295 = vunpack.c.l.b16 %v1280
    %v1296 = vunpack.c.l.b16 %v1281
    %v1297 = vunpack.c.l.b16 %v1282
    %v1298 = vunpack.c.l.b16 %v1283
    %v1299 = vpack.c.b16 %v1296, %v1295
    %v1300 = vpack.c.b16 %v1298, %v1297
    %v1304 = vsel %vm197, %v1260, 0
    %v1307 = vsel %vm197, %v1261, 0
    %v1310 = vsel %vm197, %v1262, 0
    %v1313 = vsel %vm197, %v1263, 0
    %v1316 = vsel %vm197, %v1264, 0
    %v1319 = vsel %vm197, %v1265, 0
    %v1322 = vsel %vm197, %v1266, 0
    %v1325 = vsel %vm197, %v1267, 0
    %v1328 = vsel %vm197, %v1268, 0
    %v1331 = vsel %vm197, %v1269, 0
    %v1334 = vsel %vm197, %v1270, 0
    %v1337 = vsel %vm197, %v1271, 0
    %v1340 = vsel %vm197, %v1272, 0
    %v1343 = vsel %vm197, %v1273, 0
    %v1346 = vsel %vm197, %v1274, 0
    %v1349 = vsel %vm197, %v1275, 0
    %v1352 = vsel %vm197, %v1276, 0
    %v1355 = vsel %vm197, %v1277, 0
    %v1358 = vsel %vm197, %v1278, 0
    %v1361 = vsel %vm197, %v1279, 0
    %1363 = vmatprep.subr.bf16.mxu0 0
    %1364 = vmatpush1.bf16.msra.mxu0 %v1299
    %1365 = vmatprep.subr.bf16.mxu0 0
    %1366 = vmatpush1.bf16.msra.mxu0 %v1300
    %1367 = vmatprep.subr.bf16.mxu0 0
    %1368 = vmatpush1.bf16.msra.mxu0 0
    %1369 = vmatprep.subr.bf16.mxu0 0
    %1370 = vmatpush1.bf16.msra.mxu0 0
    %1371 = vmatprep.subr.bf16.mxu0 0
    %1372 = vmatpush1.bf16.msra.mxu0 0
    %1373 = vmatprep.subr.bf16.mxu0 0
    %1374 = vmatpush1.bf16.msra.mxu0 0
    %1375 = vmatprep.subr.bf16.mxu0 0
    %1376 = vmatpush1.bf16.msra.mxu0 0
    %1377 = vmatprep.subr.bf16.mxu0 0
    %1378 = vmatpush1.bf16.msra.mxu0 0
    %1379 = vmatprep.subr.bf16.mxu0 0
    %1380 = vmatpush1.bf16.msra.mxu0 0
    %1381 = vmatprep.subr.bf16.mxu0 0
    %1382 = vmatpush1.bf16.msra.mxu0 0
    %1383 = vmatprep.subr.bf16.mxu0 0
    %1384 = vmatpush1.bf16.msra.mxu0 0
    %1385 = vmatprep.subr.bf16.mxu0 0
    %1386 = vmatpush1.bf16.msra.mxu0 0
    %1387 = vmatprep.subr.bf16.mxu0 0
    %1388 = vmatpush1.bf16.msra.mxu0 0
    %1389 = vmatprep.subr.bf16.mxu0 0
    %1390 = vmatpush1.bf16.msra.mxu0 0
    %1391 = vmatprep.subr.bf16.mxu0 0
    %1392 = vmatpush1.bf16.msra.mxu0 0
    %1393 = vmatprep.subr.bf16.mxu0 0
    %1394 = vmatpush1.bf16.msra.mxu0 0
    %1395 = vmatprep.mubr.bf16.mxu0 0
    %1396 = vmatmul.mubr.bf16.gmra.mrb[0].mxu0 %v1304
    %v1397 = vpop.f32.mrb[0].mxu0
    %v1398 = vadd.f32 %v1289, %v1397
    %v1399 = vpop.f32.mrb[0].mxu0
    %v1400 = vpop.f32.mrb[0].mxu0
    %v1401 = vadd.f32 %v1289, %v1400
    %v1402 = vpop.f32.mrb[0].mxu0
    %1403 = vmatprep.mubr.bf16.mxu0 0
    %1404 = vmatmul.mubr.bf16.gmra.mrb[0].mxu0 %v1307
    %v1405 = vpop.f32.mrb[0].mxu0
    %v1406 = vadd.f32 %v1289, %v1405
    %v1407 = vpop.f32.mrb[0].mxu0
    %v1408 = vpop.f32.mrb[0].mxu0
    %v1409 = vadd.f32 %v1289, %v1408
    %v1410 = vpop.f32.mrb[0].mxu0
    %1411 = vmatprep.mubr.bf16.mxu0 0
    %1412 = vmatmul.mubr.bf16.gmra.mrb[0].mxu0 %v1310
    %v1413 = vpop.f32.mrb[0].mxu0
    %v1414 = vadd.f32 %v1289, %v1413
    %v1415 = vpop.f32.mrb[0].mxu0
    %v1416 = vpop.f32.mrb[0].mxu0
    %v1417 = vadd.f32 %v1289, %v1416
    %v1418 = vpop.f32.mrb[0].mxu0
    %1419 = vmatprep.mubr.bf16.mxu0 0
    %1420 = vmatmul.mubr.bf16.gmra.mrb[0].mxu0 %v1313
    %v1421 = vpop.f32.mrb[0].mxu0
    %v1422 = vadd.f32 %v1289, %v1421
    %v1423 = vpop.f32.mrb[0].mxu0
    %v1424 = vpop.f32.mrb[0].mxu0
    %v1425 = vadd.f32 %v1289, %v1424
    %v1426 = vpop.f32.mrb[0].mxu0
    %1427 = vmatprep.mubr.bf16.mxu0 0
    %1428 = vmatmul.mubr.bf16.gmra.mrb[0].mxu0 %v1316
    %v1429 = vpop.f32.mrb[0].mxu0
    %v1430 = vadd.f32 %v1289, %v1429
    %v1431 = vpop.f32.mrb[0].mxu0
    %v1432 = vpop.f32.mrb[0].mxu0
    %v1433 = vadd.f32 %v1289, %v1432
    %v1434 = vpop.f32.mrb[0].mxu0
    %1435 = vmatprep.mubr.bf16.mxu0 0
    %1436 = vmatmul.mubr.bf16.gmra.mrb[0].mxu0 %v1319
    %v1437 = vpop.f32.mrb[0].mxu0
    %v1438 = vadd.f32 %v1289, %v1437
    %v1439 = vpop.f32.mrb[0].mxu0
    %v1440 = vpop.f32.mrb[0].mxu0
    %v1441 = vadd.f32 %v1289, %v1440
    %v1442 = vpop.f32.mrb[0].mxu0
    %1443 = vmatprep.mubr.bf16.mxu0 0
    %1444 = vmatmul.mubr.bf16.gmra.mrb[0].mxu0 %v1322
    %v1445 = vpop.f32.mrb[0].mxu0
    %v1446 = vadd.f32 %v1289, %v1445
    %v1447 = vpop.f32.mrb[0].mxu0
    %v1448 = vpop.f32.mrb[0].mxu0
    %v1449 = vadd.f32 %v1289, %v1448
    %v1450 = vpop.f32.mrb[0].mxu0
    %1451 = vmatprep.mubr.bf16.mxu0 0
    %1452 = vmatmul.mubr.bf16.gmra.mrb[0].mxu0 %v1325
    %v1453 = vpop.f32.mrb[0].mxu0
    %v1454 = vadd.f32 %v1289, %v1453
    %v1455 = vpop.f32.mrb[0].mxu0
    %v1456 = vpop.f32.mrb[0].mxu0
    %v1457 = vadd.f32 %v1289, %v1456
    %v1458 = vpop.f32.mrb[0].mxu0
    %1459 = vmatprep.mubr.bf16.mxu0 0
    %1460 = vmatmul.mubr.bf16.gmra.mrb[0].mxu0 %v1328
    %v1461 = vpop.f32.mrb[0].mxu0
    %v1462 = vadd.f32 %v1289, %v1461
    %v1463 = vpop.f32.mrb[0].mxu0
    %v1464 = vpop.f32.mrb[0].mxu0
    %v1465 = vadd.f32 %v1289, %v1464
    %v1466 = vpop.f32.mrb[0].mxu0
    %1467 = vmatprep.mubr.bf16.mxu0 0
    %1468 = vmatmul.mubr.bf16.gmra.mrb[0].mxu0 %v1331
    %v1469 = vpop.f32.mrb[0].mxu0
    %v1470 = vadd.f32 %v1289, %v1469
    %v1471 = vpop.f32.mrb[0].mxu0
    %v1472 = vpop.f32.mrb[0].mxu0
    %v1473 = vadd.f32 %v1289, %v1472
    %v1474 = vpop.f32.mrb[0].mxu0
    %1475 = vmatprep.mubr.bf16.mxu0 0
    %1476 = vmatmul.mubr.bf16.gmra.mrb[0].mxu0 %v1334
    %v1477 = vpop.f32.mrb[0].mxu0
    %v1478 = vadd.f32 %v1289, %v1477
    %v1479 = vpop.f32.mrb[0].mxu0
    %v1480 = vpop.f32.mrb[0].mxu0
    %v1481 = vadd.f32 %v1289, %v1480
    %v1482 = vpop.f32.mrb[0].mxu0
    %1483 = vmatprep.mubr.bf16.mxu0 0
    %1484 = vmatmul.mubr.bf16.gmra.mrb[0].mxu0 %v1337
    %v1485 = vpop.f32.mrb[0].mxu0
    %v1486 = vadd.f32 %v1289, %v1485
    %v1487 = vpop.f32.mrb[0].mxu0
    %v1488 = vpop.f32.mrb[0].mxu0
    %v1489 = vadd.f32 %v1289, %v1488
    %v1490 = vpop.f32.mrb[0].mxu0
    %1491 = vmatprep.mubr.bf16.mxu0 0
    %1492 = vmatmul.mubr.bf16.gmra.mrb[0].mxu0 %v1340
    %v1493 = vpop.f32.mrb[0].mxu0
    %v1494 = vadd.f32 %v1289, %v1493
    %v1495 = vpop.f32.mrb[0].mxu0
    %v1496 = vpop.f32.mrb[0].mxu0
    %v1497 = vadd.f32 %v1289, %v1496
    %v1498 = vpop.f32.mrb[0].mxu0
    %1499 = vmatprep.mubr.bf16.mxu0 0
    %1500 = vmatmul.mubr.bf16.gmra.mrb[0].mxu0 %v1343
    %v1501 = vpop.f32.mrb[0].mxu0
    %v1502 = vadd.f32 %v1289, %v1501
    %v1503 = vpop.f32.mrb[0].mxu0
    %v1504 = vpop.f32.mrb[0].mxu0
    %v1505 = vadd.f32 %v1289, %v1504
    %v1506 = vpop.f32.mrb[0].mxu0
    %1507 = vmatprep.mubr.bf16.mxu0 0
    %1508 = vmatmul.mubr.bf16.gmra.mrb[0].mxu0 %v1346
    %v1509 = vpop.f32.mrb[0].mxu0
    %v1510 = vadd.f32 %v1289, %v1509
    %v1511 = vpop.f32.mrb[0].mxu0
    %v1512 = vpop.f32.mrb[0].mxu0
    %v1513 = vadd.f32 %v1289, %v1512
    %v1514 = vpop.f32.mrb[0].mxu0
    %1515 = vmatprep.mubr.bf16.mxu0 0
    %1516 = vmatmul.mubr.bf16.gmra.mrb[0].mxu0 %v1349
    %v1517 = vpop.f32.mrb[0].mxu0
    %v1518 = vadd.f32 %v1289, %v1517
    %v1519 = vpop.f32.mrb[0].mxu0
    %v1520 = vpop.f32.mrb[0].mxu0
    %v1521 = vadd.f32 %v1289, %v1520
    %v1522 = vpop.f32.mrb[0].mxu0
    %1523 = vmatprep.mubr.bf16.mxu0 0
    %1524 = vmatmul.mubr.bf16.gmra.mrb[0].mxu0 %v1352
    %v1525 = vpop.f32.mrb[0].mxu0
    %v1526 = vadd.f32 %v1289, %v1525
    %v1527 = vpop.f32.mrb[0].mxu0
    %v1528 = vpop.f32.mrb[0].mxu0
    %v1529 = vadd.f32 %v1289, %v1528
    %v1530 = vpop.f32.mrb[0].mxu0
    %1531 = vmatprep.mubr.bf16.mxu0 0
    %1532 = vmatmul.mubr.bf16.gmra.mrb[0].mxu0 %v1355
    %v1533 = vpop.f32.mrb[0].mxu0
    %v1534 = vadd.f32 %v1289, %v1533
    %v1535 = vpop.f32.mrb[0].mxu0
    %v1536 = vpop.f32.mrb[0].mxu0
    %v1537 = vadd.f32 %v1289, %v1536
    %v1538 = vpop.f32.mrb[0].mxu0
    %1539 = vmatprep.mubr.bf16.mxu0 0
    %1540 = vmatmul.mubr.bf16.gmra.mrb[0].mxu0 %v1358
    %v1541 = vpop.f32.mrb[0].mxu0
    %v1542 = vadd.f32 %v1289, %v1541
    %v1543 = vpop.f32.mrb[0].mxu0
    %v1544 = vpop.f32.mrb[0].mxu0
    %v1545 = vadd.f32 %v1289, %v1544
    %v1546 = vpop.f32.mrb[0].mxu0
    %1547 = vmatprep.mubr.bf16.mxu0 0
    %1548 = vmatmul.mubr.bf16.gmra.mrb[0].mxu0 %v1361
    %v1549 = vpop.f32.mrb[0].mxu0
    %v1550 = vadd.f32 %v1289, %v1549
    %v1551 = vpop.f32.mrb[0].mxu0
    %v1552 = vpop.f32.mrb[0].mxu0
    %v1553 = vadd.f32 %v1289, %v1552
    %v1554 = vpop.f32.mrb[0].mxu0
    %1555 = vdwg.mxu0
    %1557 = vset.pattern.permute.xlu0 0
    %1558 = vperm.xlu0 %1557, %v141
    %v1559 = vpop.permute.xlu0 %1558
    %1562 = vset.pattern.permute.xlu0 0
    %1563 = vperm.xlu0 %1562, %v142
    %v1564 = vpop.permute.xlu0 %1563
    %1567 = vset.pattern.permute.xlu0 0
    %1568 = vperm.xlu0 %1567, %v143
    %v1569 = vpop.permute.xlu0 %1568
    %1572 = vset.pattern.permute.xlu0 0
    %1573 = vperm.xlu0 %1572, %v144
    %v1574 = vpop.permute.xlu0 %1573
    %1577 = vset.pattern.permute.xlu0 0
    %1578 = vperm.xlu0 %1577, %v145
    %v1579 = vpop.permute.xlu0 %1578
    %1582 = vset.pattern.permute.xlu0 0
    %1583 = vperm.xlu0 %1582, %v146
    %v1584 = vpop.permute.xlu0 %1583
    %1587 = vset.pattern.permute.xlu0 0
    %1588 = vperm.xlu0 %1587, %v147
    %v1589 = vpop.permute.xlu0 %1588
    %1592 = vset.pattern.permute.xlu0 0
    %1593 = vperm.xlu0 %1592, %v148
    %v1594 = vpop.permute.xlu0 %1593
    %1597 = vset.pattern.permute.xlu0 0
    %1598 = vperm.xlu0 %1597, %v149
    %v1599 = vpop.permute.xlu0 %1598
    %1602 = vset.pattern.permute.xlu0 0
    %1603 = vperm.xlu0 %1602, %v150
    %v1604 = vpop.permute.xlu0 %1603
    %1607 = vset.pattern.permute.xlu0 0
    %1608 = vperm.xlu0 %1607, %v151
    %v1609 = vpop.permute.xlu0 %1608
    %1612 = vset.pattern.permute.xlu0 0
    %1613 = vperm.xlu0 %1612, %v152
    %v1614 = vpop.permute.xlu0 %1613
    %1617 = vset.pattern.permute.xlu0 0
    %1618 = vperm.xlu0 %1617, %v153
    %v1619 = vpop.permute.xlu0 %1618
    %1622 = vset.pattern.permute.xlu0 0
    %1623 = vperm.xlu0 %1622, %v154
    %v1624 = vpop.permute.xlu0 %1623
    %1627 = vset.pattern.permute.xlu0 0
    %1628 = vperm.xlu0 %1627, %v155
    %v1629 = vpop.permute.xlu0 %1628
    %1632 = vset.pattern.permute.xlu0 0
    %1633 = vperm.xlu0 %1632, %v156
    %v1634 = vpop.permute.xlu0 %1633
    %1637 = vset.pattern.permute.xlu0 0
    %1638 = vperm.xlu0 %1637, %v157
    %v1639 = vpop.permute.xlu0 %1638
    %1642 = vset.pattern.permute.xlu0 0
    %1643 = vperm.xlu0 %1642, %v158
    %v1644 = vpop.permute.xlu0 %1643
    %1647 = vset.pattern.permute.xlu0 0
    %1648 = vperm.xlu0 %1647, %v159
    %v1649 = vpop.permute.xlu0 %1648
    %1652 = vset.pattern.permute.xlu0 0
    %1653 = vperm.xlu0 %1652, %v160
    %v1654 = vpop.permute.xlu0 %1653
    %1657 = vset.pattern.permute.xlu0 0
    %1658 = vperm.xlu0 %1657, %v161
    %v1659 = vpop.permute.xlu0 %1658
    %1662 = vset.pattern.permute.xlu0 0
    %1663 = vperm.xlu0 %1662, %v162
    %v1664 = vpop.permute.xlu0 %1663
    %1667 = vset.pattern.permute.xlu0 0
    %1668 = vperm.xlu0 %1667, %v163
    %v1669 = vpop.permute.xlu0 %1668
    %1672 = vset.pattern.permute.xlu0 0
    %1673 = vperm.xlu0 %1672, %v164
    %v1674 = vpop.permute.xlu0 %1673
    %1677 = vset.pattern.permute.xlu0 0
    %1678 = vperm.xlu0 %1677, %v165
    %v1679 = vpop.permute.xlu0 %1678
    %1682 = vset.pattern.permute.xlu0 0
    %1683 = vperm.xlu0 %1682, %v166
    %v1684 = vpop.permute.xlu0 %1683
    %1687 = vset.pattern.permute.xlu0 0
    %1688 = vperm.xlu0 %1687, %v167
    %v1689 = vpop.permute.xlu0 %1688
    %1692 = vset.pattern.permute.xlu0 0
    %1693 = vperm.xlu0 %1692, %v168
    %v1694 = vpop.permute.xlu0 %1693
    %1697 = vset.pattern.permute.xlu0 0
    %1698 = vperm.xlu0 %1697, %v169
    %v1699 = vpop.permute.xlu0 %1698
    %1702 = vset.pattern.permute.xlu0 0
    %1703 = vperm.xlu0 %1702, %v170
    %v1704 = vpop.permute.xlu0 %1703
    %1707 = vset.pattern.permute.xlu0 0
    %1708 = vperm.xlu0 %1707, %v171
    %v1709 = vpop.permute.xlu0 %1708
    %1712 = vset.pattern.permute.xlu0 0
    %1713 = vperm.xlu0 %1712, %v172
    %v1714 = vpop.permute.xlu0 %1713
    %1717 = vset.pattern.permute.xlu0 0
    %1718 = vperm.xlu0 %1717, %v173
    %v1719 = vpop.permute.xlu0 %1718
    %1722 = vset.pattern.permute.xlu0 0
    %1723 = vperm.xlu0 %1722, %v174
    %v1724 = vpop.permute.xlu0 %1723
    %1727 = vset.pattern.permute.xlu0 0
    %1728 = vperm.xlu0 %1727, %v175
    %v1729 = vpop.permute.xlu0 %1728
    %1732 = vset.pattern.permute.xlu0 0
    %1733 = vperm.xlu0 %1732, %v176
    %v1734 = vpop.permute.xlu0 %1733
    %1737 = vset.pattern.permute.xlu0 0
    %1738 = vperm.xlu0 %1737, %v177
    %v1739 = vpop.permute.xlu0 %1738
    %1742 = vset.pattern.permute.xlu0 0
    %1743 = vperm.xlu0 %1742, %v178
    %v1744 = vpop.permute.xlu0 %1743
    %1747 = vset.pattern.permute.xlu0 0
    %1748 = vperm.xlu0 %1747, %v179
    %v1749 = vpop.permute.xlu0 %1748
    %1752 = vset.pattern.permute.xlu0 0
    %1753 = vperm.xlu0 %1752, %v180
    %v1754 = vpop.permute.xlu0 %1753
    %v1756 = vmul.f32 %v1398, %v1559
    %v1757 = vmul.f32 %v1401, %v1564
    %v1758 = vmul.f32 %v1406, %v1569
    %v1759 = vmul.f32 %v1409, %v1574
    %v1760 = vmul.f32 %v1414, %v1579
    %v1761 = vmul.f32 %v1417, %v1584
    %v1762 = vmul.f32 %v1422, %v1589
    %v1763 = vmul.f32 %v1425, %v1594
    %v1764 = vmul.f32 %v1430, %v1599
    %v1765 = vmul.f32 %v1433, %v1604
    %v1766 = vmul.f32 %v1438, %v1609
    %v1767 = vmul.f32 %v1441, %v1614
    %v1768 = vmul.f32 %v1446, %v1619
    %v1769 = vmul.f32 %v1449, %v1624
    %v1770 = vmul.f32 %v1454, %v1629
    %v1771 = vmul.f32 %v1457, %v1634
    %v1772 = vmul.f32 %v1462, %v1639
    %v1773 = vmul.f32 %v1465, %v1644
    %v1774 = vmul.f32 %v1470, %v1649
    %v1775 = vmul.f32 %v1473, %v1654
    %v1776 = vmul.f32 %v1478, %v1659
    %v1777 = vmul.f32 %v1481, %v1664
    %v1778 = vmul.f32 %v1486, %v1669
    %v1779 = vmul.f32 %v1489, %v1674
    %v1780 = vmul.f32 %v1494, %v1679
    %v1781 = vmul.f32 %v1497, %v1684
    %v1782 = vmul.f32 %v1502, %v1689
    %v1783 = vmul.f32 %v1505, %v1694
    %v1784 = vmul.f32 %v1510, %v1699
    %v1785 = vmul.f32 %v1513, %v1704
    %v1786 = vmul.f32 %v1518, %v1709
    %v1787 = vmul.f32 %v1521, %v1714
    %v1788 = vmul.f32 %v1526, %v1719
    %v1789 = vmul.f32 %v1529, %v1724
    %v1790 = vmul.f32 %v1534, %v1729
    %v1791 = vmul.f32 %v1537, %v1734
    %v1792 = vmul.f32 %v1542, %v1739
    %v1793 = vmul.f32 %v1545, %v1744
    %v1794 = vmul.f32 %v1550, %v1749
    %v1795 = vmul.f32 %v1553, %v1754
    %v1796 = vpack.c.bf16 %v1757, %v1756
    %v1797 = vpack.c.bf16 %v1759, %v1758
    %v1798 = vpack.c.bf16 %v1761, %v1760
    %v1799 = vpack.c.bf16 %v1763, %v1762
    %v1800 = vpack.c.bf16 %v1765, %v1764
    %v1801 = vpack.c.bf16 %v1767, %v1766
    %v1802 = vpack.c.bf16 %v1769, %v1768
    %v1803 = vpack.c.bf16 %v1771, %v1770
    %v1804 = vpack.c.bf16 %v1773, %v1772
    %v1805 = vpack.c.bf16 %v1775, %v1774
    %v1806 = vpack.c.bf16 %v1777, %v1776
    %v1807 = vpack.c.bf16 %v1779, %v1778
    %v1808 = vpack.c.bf16 %v1781, %v1780
    %v1809 = vpack.c.bf16 %v1783, %v1782
    %v1810 = vpack.c.bf16 %v1785, %v1784
    %v1811 = vpack.c.bf16 %v1787, %v1786
    %v1812 = vpack.c.bf16 %v1789, %v1788
    %v1813 = vpack.c.bf16 %v1791, %v1790
    %v1814 = vpack.c.bf16 %v1793, %v1792
    %v1815 = vpack.c.bf16 %v1795, %v1794
    %1816 = vst.msk [vmem:[#allocation3] sm:$0xff] %vm197, %v1796
    %1817 = vst.msk [vmem:[#allocation3 + $0x8] sm:$0xff] %vm197, %v1797
    %1818 = vst.msk [vmem:[#allocation3 + $0x10] sm:$0xff] %vm197, %v1798
    %1819 = vst.msk [vmem:[#allocation3 + $0x18] sm:$0xff] %vm197, %v1799
    %1820 = vst.msk [vmem:[#allocation3 + $0x20] sm:$0xff] %vm197, %v1800
    %1821 = vst.msk [vmem:[#allocation3 + $0x28] sm:$0xff] %vm197, %v1801
    %1822 = vst.msk [vmem:[#allocation3 + $0x30] sm:$0xff] %vm197, %v1802
    %1823 = vst.msk [vmem:[#allocation3 + $0x38] sm:$0xff] %vm197, %v1803
    %1824 = vst.msk [vmem:[#allocation3 + $0x40] sm:$0xff] %vm197, %v1804
    %1825 = vst.msk [vmem:[#allocation3 + $0x48] sm:$0xff] %vm197, %v1805
    %1826 = vst.msk [vmem:[#allocation3 + $0x50] sm:$0xff] %vm197, %v1806
    %1827 = vst.msk [vmem:[#allocation3 + $0x58] sm:$0xff] %vm197, %v1807
    %1828 = vst.msk [vmem:[#allocation3 + $0x60] sm:$0xff] %vm197, %v1808
    %1829 = vst.msk [vmem:[#allocation3 + $0x68] sm:$0xff] %vm197, %v1809
    %1830 = vst.msk [vmem:[#allocation3 + $0x70] sm:$0xff] %vm197, %v1810
    %1831 = vst.msk [vmem:[#allocation3 + $0x78] sm:$0xff] %vm197, %v1811
    %1832 = vst.msk [vmem:[#allocation3 + $0x80] sm:$0xff] %vm197, %v1812
    %1833 = vst.msk [vmem:[#allocation3 + $0x88] sm:$0xff] %vm197, %v1813
    %1834 = vst.msk [vmem:[#allocation3 + $0x90] sm:$0xff] %vm197, %v1814
    %1835 = vst.msk [vmem:[#allocation3 + $0x98] sm:$0xff] %vm197, %v1815
    %v1836 = vld [vmem:[#allocation2] sm:$0xff]
    %v1837 = vld [vmem:[#allocation2 + $0x8] sm:$0xff]
    %v1838 = vld [vmem:[#allocation2 + $0x10] sm:$0xff]
    %v1839 = vld [vmem:[#allocation2 + $0x18] sm:$0xff]
    %v1840 = vld [vmem:[#allocation2 + $0x20] sm:$0xff]
    %v1841 = vld [vmem:[#allocation2 + $0x28] sm:$0xff]
    %v1842 = vld [vmem:[#allocation2 + $0x30] sm:$0xff]
    %v1843 = vld [vmem:[#allocation2 + $0x38] sm:$0xff]
    %v1844 = vld [vmem:[#allocation3] sm:$0xff]
    %v1845 = vld [vmem:[#allocation3 + $0x8] sm:$0xff]
    %v1846 = vld [vmem:[#allocation3 + $0x10] sm:$0xff]
    %v1847 = vld [vmem:[#allocation3 + $0x18] sm:$0xff]
    %v1848 = vld [vmem:[#allocation3 + $0x20] sm:$0xff]
    %v1849 = vld [vmem:[#allocation3 + $0x28] sm:$0xff]
    %v1850 = vld [vmem:[#allocation3 + $0x30] sm:$0xff]
    %v1851 = vld [vmem:[#allocation3 + $0x38] sm:$0xff]
    %v1852 = vld [vmem:[#allocation3 + $0x40] sm:$0xff]
    %v1853 = vld [vmem:[#allocation3 + $0x48] sm:$0xff]
    %v1854 = vld [vmem:[#allocation3 + $0x50] sm:$0xff]
    %v1855 = vld [vmem:[#allocation3 + $0x58] sm:$0xff]
    %v1856 = vld [vmem:[#allocation3 + $0x60] sm:$0xff]
    %v1857 = vld [vmem:[#allocation3 + $0x68] sm:$0xff]
    %v1858 = vld [vmem:[#allocation3 + $0x70] sm:$0xff]
    %v1859 = vld [vmem:[#allocation3 + $0x78] sm:$0xff]
    %v1860 = vld [vmem:[#allocation3 + $0x80] sm:$0xff]
    %v1861 = vld [vmem:[#allocation3 + $0x88] sm:$0xff]
    %v1862 = vld [vmem:[#allocation3 + $0x90] sm:$0xff]
    %v1863 = vld [vmem:[#allocation3 + $0x98] sm:$0xff]
    %v1884 = vunpack.c.l.b16 %v1844
    %v1885 = vunpack.c.h.b16 %v1844
    %v1886 = vunpack.c.l.b16 %v1845
    %v1887 = vunpack.c.h.b16 %v1845
    %v1888 = vunpack.c.l.b16 %v1846
    %v1889 = vunpack.c.h.b16 %v1846
    %v1890 = vunpack.c.l.b16 %v1847
    %v1891 = vunpack.c.h.b16 %v1847
    %v1892 = vunpack.c.l.b16 %v1848
    %v1893 = vunpack.c.h.b16 %v1848
    %v1894 = vunpack.c.l.b16 %v1849
    %v1895 = vunpack.c.h.b16 %v1849
    %v1896 = vunpack.c.l.b16 %v1850
    %v1897 = vunpack.c.h.b16 %v1850
    %v1898 = vunpack.c.l.b16 %v1851
    %v1899 = vunpack.c.h.b16 %v1851
    %v1900 = vunpack.c.l.b16 %v1852
    %v1901 = vunpack.c.h.b16 %v1852
    %v1902 = vunpack.c.l.b16 %v1853
    %v1903 = vunpack.c.h.b16 %v1853
    %v1904 = vunpack.c.l.b16 %v1854
    %v1905 = vunpack.c.h.b16 %v1854
    %v1906 = vunpack.c.l.b16 %v1855
    %v1907 = vunpack.c.h.b16 %v1855
    %v1908 = vunpack.c.l.b16 %v1856
    %v1909 = vunpack.c.h.b16 %v1856
    %v1910 = vunpack.c.l.b16 %v1857
    %v1911 = vunpack.c.h.b16 %v1857
    %v1912 = vunpack.c.l.b16 %v1858
    %v1913 = vunpack.c.h.b16 %v1858
    %v1914 = vunpack.c.l.b16 %v1859
    %v1915 = vunpack.c.h.b16 %v1859
    %v1916 = vunpack.c.l.b16 %v1860
    %v1917 = vunpack.c.h.b16 %v1860
    %v1918 = vunpack.c.l.b16 %v1861
    %v1919 = vunpack.c.h.b16 %v1861
    %v1920 = vunpack.c.l.b16 %v1862
    %v1921 = vunpack.c.h.b16 %v1862
    %v1922 = vunpack.c.l.b16 %v1863
    %v1923 = vunpack.c.h.b16 %v1863
    %v1924 = vld [vmem:[%s11] sm:$0xf]
    %v1925 = vld [vmem:[%s11 + $0x4] sm:$0xf]
    %v1926 = vunpack.c.l.bf16 %v1924
    %v1927 = vunpack.c.l.bf16 %v1925
    %v1928 = vpack.c.b16 %v1885, %v1884
    %v1929 = vpack.c.b16 %v1887, %v1886
    %v1930 = vpack.c.b16 %v1888, %v1888
    %vm1931 = vcmask 130048
    %v1933 = vsel %vm1931, %v1836, 0
    %v1936 = vsel %vm1931, %v1928, 0
    %v1939 = vsel %vm1931, %v1929, 0
    %v1942 = vsel %vm1931, %v1930, 0
    %1944 = vmatprep.subr.bf16.mxu0 0
    %1945 = vmatpush1.bf16.xpose.msra.mxu0 %v1936
    %1946 = vmatprep.subr.bf16.mxu0 0
    %1947 = vmatpush1.bf16.xpose.msra.mxu0 %v1939
    %1948 = vmatprep.subr.bf16.mxu0 0
    %1949 = vmatpush1.bf16.xpose.msra.mxu0 %v1942
    %1950 = vmatprep.subr.bf16.mxu0 0
    %1951 = vmatpush1.bf16.xpose.msra.mxu0 0
    %1952 = vmatprep.subr.bf16.mxu0 0
    %1953 = vmatpush1.bf16.xpose.msra.mxu0 0
    %1954 = vmatprep.subr.bf16.mxu0 0
    %1955 = vmatpush1.bf16.xpose.msra.mxu0 0
    %1956 = vmatprep.subr.bf16.mxu0 0
    %1957 = vmatpush1.bf16.xpose.msra.mxu0 0
    %1958 = vmatprep.subr.bf16.mxu0 0
    %1959 = vmatpush1.bf16.xpose.msra.mxu0 0
    %1960 = vmatprep.subr.bf16.mxu0 0
    %1961 = vmatpush1.bf16.xpose.msra.mxu0 0
    %1962 = vmatprep.subr.bf16.mxu0 0
    %1963 = vmatpush1.bf16.xpose.msra.mxu0 0
    %1964 = vmatprep.subr.bf16.mxu0 0
    %1965 = vmatpush1.bf16.xpose.msra.mxu0 0
    %1966 = vmatprep.subr.bf16.mxu0 0
    %1967 = vmatpush1.bf16.xpose.msra.mxu0 0
    %1968 = vmatprep.subr.bf16.mxu0 0
    %1969 = vmatpush1.bf16.xpose.msra.mxu0 0
    %1970 = vmatprep.subr.bf16.mxu0 0
    %1971 = vmatpush1.bf16.xpose.msra.mxu0 0
    %1972 = vmatprep.subr.bf16.mxu0 0
    %1973 = vmatpush1.bf16.xpose.msra.mxu0 0
    %1974 = vmatprep.subr.bf16.mxu0 0
    %1975 = vmatpush1.bf16.xpose.msra.mxu0 0
    %1976 = vmatprep.mubr.bf16.mxu0 0
    %1977 = vmatmul.mubr.bf16.gmra.mrb[0].mxu0 %v1933
    %v1978 = vpop.f32.mrb[0].mxu0
    %v1979 = vadd.f32 %v1926, %v1978
    %v1980 = vpop.f32.mrb[0].mxu0
    %v1981 = vpop.f32.mrb[0].mxu0
    %v1982 = vadd.f32 %v1927, %v1981
    %v1983 = vpop.f32.mrb[0].mxu0
    %1984 = vdwg.mxu0
    %v1985 = vpack.c.b16 %v1890, %v1889
    %v1986 = vpack.c.b16 %v1892, %v1891
    %v1987 = vpack.c.b16 %v1893, %v1893
    %v1989 = vsel %vm1931, %v1837, 0
    %v1992 = vsel %vm1931, %v1985, 0
    %v1995 = vsel %vm1931, %v1986, 0
    %v1998 = vsel %vm1931, %v1987, 0
    %2000 = vmatprep.subr.bf16.mxu0 0
    %2001 = vmatpush1.bf16.xpose.msra.mxu0 %v1992
    %2002 = vmatprep.subr.bf16.mxu0 0
    %2003 = vmatpush1.bf16.xpose.msra.mxu0 %v1995
    %2004 = vmatprep.subr.bf16.mxu0 0
    %2005 = vmatpush1.bf16.xpose.msra.mxu0 %v1998
    %2006 = vmatprep.subr.bf16.mxu0 0
    %2007 = vmatpush1.bf16.xpose.msra.mxu0 0
    %2008 = vmatprep.subr.bf16.mxu0 0
    %2009 = vmatpush1.bf16.xpose.msra.mxu0 0
    %2010 = vmatprep.subr.bf16.mxu0 0
    %2011 = vmatpush1.bf16.xpose.msra.mxu0 0
    %2012 = vmatprep.subr.bf16.mxu0 0
    %2013 = vmatpush1.bf16.xpose.msra.mxu0 0
    %2014 = vmatprep.subr.bf16.mxu0 0
    %2015 = vmatpush1.bf16.xpose.msra.mxu0 0
    %2016 = vmatprep.subr.bf16.mxu0 0
    %2017 = vmatpush1.bf16.xpose.msra.mxu0 0
    %2018 = vmatprep.subr.bf16.mxu0 0
    %2019 = vmatpush1.bf16.xpose.msra.mxu0 0
    %2020 = vmatprep.subr.bf16.mxu0 0
    %2021 = vmatpush1.bf16.xpose.msra.mxu0 0
    %2022 = vmatprep.subr.bf16.mxu0 0
    %2023 = vmatpush1.bf16.xpose.msra.mxu0 0
    %2024 = vmatprep.subr.bf16.mxu0 0
    %2025 = vmatpush1.bf16.xpose.msra.mxu0 0
    %2026 = vmatprep.subr.bf16.mxu0 0
    %2027 = vmatpush1.bf16.xpose.msra.mxu0 0
    %2028 = vmatprep.subr.bf16.mxu0 0
    %2029 = vmatpush1.bf16.xpose.msra.mxu0 0
    %2030 = vmatprep.subr.bf16.mxu0 0
    %2031 = vmatpush1.bf16.xpose.msra.mxu0 0
    %2032 = vmatprep.mubr.bf16.mxu0 0
    %2033 = vmatmul.mubr.bf16.gmra.mrb[0].mxu0 %v1989
    %v2034 = vpop.f32.mrb[0].mxu0
    %v2035 = vadd.f32 %v1926, %v2034
    %v2036 = vpop.f32.mrb[0].mxu0
    %v2037 = vpop.f32.mrb[0].mxu0
    %v2038 = vadd.f32 %v1927, %v2037
    %v2039 = vpop.f32.mrb[0].mxu0
    %2040 = vdwg.mxu0
    %v2041 = vpack.c.b16 %v1895, %v1894
    %v2042 = vpack.c.b16 %v1897, %v1896
    %v2043 = vpack.c.b16 %v1898, %v1898
    %v2045 = vsel %vm1931, %v1838, 0
    %v2048 = vsel %vm1931, %v2041, 0
    %v2051 = vsel %vm1931, %v2042, 0
    %v2054 = vsel %vm1931, %v2043, 0
    %2056 = vmatprep.subr.bf16.mxu0 0
    %2057 = vmatpush1.bf16.xpose.msra.mxu0 %v2048
    %2058 = vmatprep.subr.bf16.mxu0 0
    %2059 = vmatpush1.bf16.xpose.msra.mxu0 %v2051
    %2060 = vmatprep.subr.bf16.mxu0 0
    %2061 = vmatpush1.bf16.xpose.msra.mxu0 %v2054
    %2062 = vmatprep.subr.bf16.mxu0 0
    %2063 = vmatpush1.bf16.xpose.msra.mxu0 0
    %2064 = vmatprep.subr.bf16.mxu0 0
    %2065 = vmatpush1.bf16.xpose.msra.mxu0 0
    %2066 = vmatprep.subr.bf16.mxu0 0
    %2067 = vmatpush1.bf16.xpose.msra.mxu0 0
    %2068 = vmatprep.subr.bf16.mxu0 0
    %2069 = vmatpush1.bf16.xpose.msra.mxu0 0
    %2070 = vmatprep.subr.bf16.mxu0 0
    %2071 = vmatpush1.bf16.xpose.msra.mxu0 0
    %2072 = vmatprep.subr.bf16.mxu0 0
    %2073 = vmatpush1.bf16.xpose.msra.mxu0 0
    %2074 = vmatprep.subr.bf16.mxu0 0
    %2075 = vmatpush1.bf16.xpose.msra.mxu0 0
    %2076 = vmatprep.subr.bf16.mxu0 0
    %2077 = vmatpush1.bf16.xpose.msra.mxu0 0
    %2078 = vmatprep.subr.bf16.mxu0 0
    %2079 = vmatpush1.bf16.xpose.msra.mxu0 0
    %2080 = vmatprep.subr.bf16.mxu0 0
    %2081 = vmatpush1.bf16.xpose.msra.mxu0 0
    %2082 = vmatprep.subr.bf16.mxu0 0
    %2083 = vmatpush1.bf16.xpose.msra.mxu0 0
    %2084 = vmatprep.subr.bf16.mxu0 0
    %2085 = vmatpush1.bf16.xpose.msra.mxu0 0
    %2086 = vmatprep.subr.bf16.mxu0 0
    %2087 = vmatpush1.bf16.xpose.msra.mxu0 0
    %2088 = vmatprep.mubr.bf16.mxu0 0
    %2089 = vmatmul.mubr.bf16.gmra.mrb[0].mxu0 %v2045
    %v2090 = vpop.f32.mrb[0].mxu0
    %v2091 = vadd.f32 %v1926, %v2090
    %v2092 = vpop.f32.mrb[0].mxu0
    %v2093 = vpop.f32.mrb[0].mxu0
    %v2094 = vadd.f32 %v1927, %v2093
    %v2095 = vpop.f32.mrb[0].mxu0
    %2096 = vdwg.mxu0
    %v2097 = vpack.c.b16 %v1900, %v1899
    %v2098 = vpack.c.b16 %v1902, %v1901
    %v2099 = vpack.c.b16 %v1903, %v1903
    %v2101 = vsel %vm1931, %v1839, 0
    %v2104 = vsel %vm1931, %v2097, 0
    %v2107 = vsel %vm1931, %v2098, 0
    %v2110 = vsel %vm1931, %v2099, 0
    %2112 = vmatprep.subr.bf16.mxu0 0
    %2113 = vmatpush1.bf16.xpose.msra.mxu0 %v2104
    %2114 = vmatprep.subr.bf16.mxu0 0
    %2115 = vmatpush1.bf16.xpose.msra.mxu0 %v2107
    %2116 = vmatprep.subr.bf16.mxu0 0
    %2117 = vmatpush1.bf16.xpose.msra.mxu0 %v2110
    %2118 = vmatprep.subr.bf16.mxu0 0
    %2119 = vmatpush1.bf16.xpose.msra.mxu0 0
    %2120 = vmatprep.subr.bf16.mxu0 0
    %2121 = vmatpush1.bf16.xpose.msra.mxu0 0
    %2122 = vmatprep.subr.bf16.mxu0 0
    %2123 = vmatpush1.bf16.xpose.msra.mxu0 0
    %2124 = vmatprep.subr.bf16.mxu0 0
    %2125 = vmatpush1.bf16.xpose.msra.mxu0 0
    %2126 = vmatprep.subr.bf16.mxu0 0
    %2127 = vmatpush1.bf16.xpose.msra.mxu0 0
    %2128 = vmatprep.subr.bf16.mxu0 0
    %2129 = vmatpush1.bf16.xpose.msra.mxu0 0
    %2130 = vmatprep.subr.bf16.mxu0 0
    %2131 = vmatpush1.bf16.xpose.msra.mxu0 0
    %2132 = vmatprep.subr.bf16.mxu0 0
    %2133 = vmatpush1.bf16.xpose.msra.mxu0 0
    %2134 = vmatprep.subr.bf16.mxu0 0
    %2135 = vmatpush1.bf16.xpose.msra.mxu0 0
    %2136 = vmatprep.subr.bf16.mxu0 0
    %2137 = vmatpush1.bf16.xpose.msra.mxu0 0
    %2138 = vmatprep.subr.bf16.mxu0 0
    %2139 = vmatpush1.bf16.xpose.msra.mxu0 0
    %2140 = vmatprep.subr.bf16.mxu0 0
    %2141 = vmatpush1.bf16.xpose.msra.mxu0 0
    %2142 = vmatprep.subr.bf16.mxu0 0
    %2143 = vmatpush1.bf16.xpose.msra.mxu0 0
    %2144 = vmatprep.mubr.bf16.mxu0 0
    %2145 = vmatmul.mubr.bf16.gmra.mrb[0].mxu0 %v2101
    %v2146 = vpop.f32.mrb[0].mxu0
    %v2147 = vadd.f32 %v1926, %v2146
    %v2148 = vpop.f32.mrb[0].mxu0
    %v2149 = vpop.f32.mrb[0].mxu0
    %v2150 = vadd.f32 %v1927, %v2149
    %v2151 = vpop.f32.mrb[0].mxu0
    %2152 = vdwg.mxu0
    %v2153 = vpack.c.b16 %v1905, %v1904
    %v2154 = vpack.c.b16 %v1907, %v1906
    %v2155 = vpack.c.b16 %v1908, %v1908
    %v2157 = vsel %vm1931, %v1840, 0
    %v2160 = vsel %vm1931, %v2153, 0
    %v2163 = vsel %vm1931, %v2154, 0
    %v2166 = vsel %vm1931, %v2155, 0
    %2168 = vmatprep.subr.bf16.mxu0 0
    %2169 = vmatpush1.bf16.xpose.msra.mxu0 %v2160
    %2170 = vmatprep.subr.bf16.mxu0 0
    %2171 = vmatpush1.bf16.xpose.msra.mxu0 %v2163
    %2172 = vmatprep.subr.bf16.mxu0 0
    %2173 = vmatpush1.bf16.xpose.msra.mxu0 %v2166
    %2174 = vmatprep.subr.bf16.mxu0 0
    %2175 = vmatpush1.bf16.xpose.msra.mxu0 0
    %2176 = vmatprep.subr.bf16.mxu0 0
    %2177 = vmatpush1.bf16.xpose.msra.mxu0 0
    %2178 = vmatprep.subr.bf16.mxu0 0
    %2179 = vmatpush1.bf16.xpose.msra.mxu0 0
    %2180 = vmatprep.subr.bf16.mxu0 0
    %2181 = vmatpush1.bf16.xpose.msra.mxu0 0
    %2182 = vmatprep.subr.bf16.mxu0 0
    %2183 = vmatpush1.bf16.xpose.msra.mxu0 0
    %2184 = vmatprep.subr.bf16.mxu0 0
    %2185 = vmatpush1.bf16.xpose.msra.mxu0 0
    %2186 = vmatprep.subr.bf16.mxu0 0
    %2187 = vmatpush1.bf16.xpose.msra.mxu0 0
    %2188 = vmatprep.subr.bf16.mxu0 0
    %2189 = vmatpush1.bf16.xpose.msra.mxu0 0
    %2190 = vmatprep.subr.bf16.mxu0 0
    %2191 = vmatpush1.bf16.xpose.msra.mxu0 0
    %2192 = vmatprep.subr.bf16.mxu0 0
    %2193 = vmatpush1.bf16.xpose.msra.mxu0 0
    %2194 = vmatprep.subr.bf16.mxu0 0
    %2195 = vmatpush1.bf16.xpose.msra.mxu0 0
    %2196 = vmatprep.subr.bf16.mxu0 0
    %2197 = vmatpush1.bf16.xpose.msra.mxu0 0
    %2198 = vmatprep.subr.bf16.mxu0 0
    %2199 = vmatpush1.bf16.xpose.msra.mxu0 0
    %2200 = vmatprep.mubr.bf16.mxu0 0
    %2201 = vmatmul.mubr.bf16.gmra.mrb[0].mxu0 %v2157
    %v2202 = vpop.f32.mrb[0].mxu0
    %v2203 = vadd.f32 %v1926, %v2202
    %v2204 = vpop.f32.mrb[0].mxu0
    %v2205 = vpop.f32.mrb[0].mxu0
    %v2206 = vadd.f32 %v1927, %v2205
    %v2207 = vpop.f32.mrb[0].mxu0
    %2208 = vdwg.mxu0
    %v2209 = vpack.c.b16 %v1910, %v1909
    %v2210 = vpack.c.b16 %v1912, %v1911
    %v2211 = vpack.c.b16 %v1913, %v1913
    %v2213 = vsel %vm1931, %v1841, 0
    %v2216 = vsel %vm1931, %v2209, 0
    %v2219 = vsel %vm1931, %v2210, 0
    %v2222 = vsel %vm1931, %v2211, 0
    %2224 = vmatprep.subr.bf16.mxu0 0
    %2225 = vmatpush1.bf16.xpose.msra.mxu0 %v2216
    %2226 = vmatprep.subr.bf16.mxu0 0
    %2227 = vmatpush1.bf16.xpose.msra.mxu0 %v2219
    %2228 = vmatprep.subr.bf16.mxu0 0
    %2229 = vmatpush1.bf16.xpose.msra.mxu0 %v2222
    %2230 = vmatprep.subr.bf16.mxu0 0
    %2231 = vmatpush1.bf16.xpose.msra.mxu0 0
    %2232 = vmatprep.subr.bf16.mxu0 0
    %2233 = vmatpush1.bf16.xpose.msra.mxu0 0
    %2234 = vmatprep.subr.bf16.mxu0 0
    %2235 = vmatpush1.bf16.xpose.msra.mxu0 0
    %2236 = vmatprep.subr.bf16.mxu0 0
    %2237 = vmatpush1.bf16.xpose.msra.mxu0 0
    %2238 = vmatprep.subr.bf16.mxu0 0
    %2239 = vmatpush1.bf16.xpose.msra.mxu0 0
    %2240 = vmatprep.subr.bf16.mxu0 0
    %2241 = vmatpush1.bf16.xpose.msra.mxu0 0
    %2242 = vmatprep.subr.bf16.mxu0 0
    %2243 = vmatpush1.bf16.xpose.msra.mxu0 0
    %2244 = vmatprep.subr.bf16.mxu0 0
    %2245 = vmatpush1.bf16.xpose.msra.mxu0 0
    %2246 = vmatprep.subr.bf16.mxu0 0
    %2247 = vmatpush1.bf16.xpose.msra.mxu0 0
    %2248 = vmatprep.subr.bf16.mxu0 0
    %2249 = vmatpush1.bf16.xpose.msra.mxu0 0
    %2250 = vmatprep.subr.bf16.mxu0 0
    %2251 = vmatpush1.bf16.xpose.msra.mxu0 0
    %2252 = vmatprep.subr.bf16.mxu0 0
    %2253 = vmatpush1.bf16.xpose.msra.mxu0 0
    %2254 = vmatprep.subr.bf16.mxu0 0
    %2255 = vmatpush1.bf16.xpose.msra.mxu0 0
    %2256 = vmatprep.mubr.bf16.mxu0 0
    %2257 = vmatmul.mubr.bf16.gmra.mrb[0].mxu0 %v2213
    %v2258 = vpop.f32.mrb[0].mxu0
    %v2259 = vadd.f32 %v1926, %v2258
    %v2260 = vpop.f32.mrb[0].mxu0
    %v2261 = vpop.f32.mrb[0].mxu0
    %v2262 = vadd.f32 %v1927, %v2261
    %v2263 = vpop.f32.mrb[0].mxu0
    %2264 = vdwg.mxu0
    %v2265 = vpack.c.b16 %v1915, %v1914
    %v2266 = vpack.c.b16 %v1917, %v1916
    %v2267 = vpack.c.b16 %v1918, %v1918
    %v2269 = vsel %vm1931, %v1842, 0
    %v2272 = vsel %vm1931, %v2265, 0
    %v2275 = vsel %vm1931, %v2266, 0
    %v2278 = vsel %vm1931, %v2267, 0
    %2280 = vmatprep.subr.bf16.mxu0 0
    %2281 = vmatpush1.bf16.xpose.msra.mxu0 %v2272
    %2282 = vmatprep.subr.bf16.mxu0 0
    %2283 = vmatpush1.bf16.xpose.msra.mxu0 %v2275
    %2284 = vmatprep.subr.bf16.mxu0 0
    %2285 = vmatpush1.bf16.xpose.msra.mxu0 %v2278
    %2286 = vmatprep.subr.bf16.mxu0 0
    %2287 = vmatpush1.bf16.xpose.msra.mxu0 0
    %2288 = vmatprep.subr.bf16.mxu0 0
    %2289 = vmatpush1.bf16.xpose.msra.mxu0 0
    %2290 = vmatprep.subr.bf16.mxu0 0
    %2291 = vmatpush1.bf16.xpose.msra.mxu0 0
    %2292 = vmatprep.subr.bf16.mxu0 0
    %2293 = vmatpush1.bf16.xpose.msra.mxu0 0
    %2294 = vmatprep.subr.bf16.mxu0 0
    %2295 = vmatpush1.bf16.xpose.msra.mxu0 0
    %2296 = vmatprep.subr.bf16.mxu0 0
    %2297 = vmatpush1.bf16.xpose.msra.mxu0 0
    %2298 = vmatprep.subr.bf16.mxu0 0
    %2299 = vmatpush1.bf16.xpose.msra.mxu0 0
    %2300 = vmatprep.subr.bf16.mxu0 0
    %2301 = vmatpush1.bf16.xpose.msra.mxu0 0
    %2302 = vmatprep.subr.bf16.mxu0 0
    %2303 = vmatpush1.bf16.xpose.msra.mxu0 0
    %2304 = vmatprep.subr.bf16.mxu0 0
    %2305 = vmatpush1.bf16.xpose.msra.mxu0 0
    %2306 = vmatprep.subr.bf16.mxu0 0
    %2307 = vmatpush1.bf16.xpose.msra.mxu0 0
    %2308 = vmatprep.subr.bf16.mxu0 0
    %2309 = vmatpush1.bf16.xpose.msra.mxu0 0
    %2310 = vmatprep.subr.bf16.mxu0 0
    %2311 = vmatpush1.bf16.xpose.msra.mxu0 0
    %2312 = vmatprep.mubr.bf16.mxu0 0
    %2313 = vmatmul.mubr.bf16.gmra.mrb[0].mxu0 %v2269
    %v2314 = vpop.f32.mrb[0].mxu0
    %v2315 = vadd.f32 %v1926, %v2314
    %v2316 = vpop.f32.mrb[0].mxu0
    %v2317 = vpop.f32.mrb[0].mxu0
    %v2318 = vadd.f32 %v1927, %v2317
    %v2319 = vpop.f32.mrb[0].mxu0
    %2320 = vdwg.mxu0
    %v2321 = vpack.c.b16 %v1920, %v1919
    %v2322 = vpack.c.b16 %v1922, %v1921
    %v2323 = vpack.c.b16 %v1923, %v1923
    %v2325 = vsel %vm1931, %v1843, 0
    %v2328 = vsel %vm1931, %v2321, 0
    %v2331 = vsel %vm1931, %v2322, 0
    %v2334 = vsel %vm1931, %v2323, 0
    %2336 = vmatprep.subr.bf16.mxu0 0
    %2337 = vmatpush1.bf16.xpose.msra.mxu0 %v2328
    %2338 = vmatprep.subr.bf16.mxu0 0
    %2339 = vmatpush1.bf16.xpose.msra.mxu0 %v2331
    %2340 = vmatprep.subr.bf16.mxu0 0
    %2341 = vmatpush1.bf16.xpose.msra.mxu0 %v2334
    %2342 = vmatprep.subr.bf16.mxu0 0
    %2343 = vmatpush1.bf16.xpose.msra.mxu0 0
    %2344 = vmatprep.subr.bf16.mxu0 0
    %2345 = vmatpush1.bf16.xpose.msra.mxu0 0
    %2346 = vmatprep.subr.bf16.mxu0 0
    %2347 = vmatpush1.bf16.xpose.msra.mxu0 0
    %2348 = vmatprep.subr.bf16.mxu0 0
    %2349 = vmatpush1.bf16.xpose.msra.mxu0 0
    %2350 = vmatprep.subr.bf16.mxu0 0
    %2351 = vmatpush1.bf16.xpose.msra.mxu0 0
    %2352 = vmatprep.subr.bf16.mxu0 0
    %2353 = vmatpush1.bf16.xpose.msra.mxu0 0
    %2354 = vmatprep.subr.bf16.mxu0 0
    %2355 = vmatpush1.bf16.xpose.msra.mxu0 0
    %2356 = vmatprep.subr.bf16.mxu0 0
    %2357 = vmatpush1.bf16.xpose.msra.mxu0 0
    %2358 = vmatprep.subr.bf16.mxu0 0
    %2359 = vmatpush1.bf16.xpose.msra.mxu0 0
    %2360 = vmatprep.subr.bf16.mxu0 0
    %2361 = vmatpush1.bf16.xpose.msra.mxu0 0
    %2362 = vmatprep.subr.bf16.mxu0 0
    %2363 = vmatpush1.bf16.xpose.msra.mxu0 0
    %2364 = vmatprep.subr.bf16.mxu0 0
    %2365 = vmatpush1.bf16.xpose.msra.mxu0 0
    %2366 = vmatprep.subr.bf16.mxu0 0
    %2367 = vmatpush1.bf16.xpose.msra.mxu0 0
    %2368 = vmatprep.mubr.bf16.mxu0 0
    %2369 = vmatmul.mubr.bf16.gmra.mrb[0].mxu0 %v2325
    %v2370 = vpop.f32.mrb[0].mxu0
    %v2371 = vadd.f32 %v1926, %v2370
    %v2372 = vpop.f32.mrb[0].mxu0
    %v2373 = vpop.f32.mrb[0].mxu0
    %v2374 = vadd.f32 %v1927, %v2373
    %v2375 = vpop.f32.mrb[0].mxu0
    %2376 = vdwg.mxu0
    %2378 = vrot.lane.b32.xlu0 %v1836, 96
    %v2379 = vpop.permute.xlu0 %2378
    %v2381 = vsel %vm1931, %v2379, 0
    %2383 = vmatprep.subr.bf16.mxu0 0
    %2384 = vmatpush1.bf16.xpose.msra.mxu0 %v2381
    %2385 = vmatprep.subr.bf16.mxu0 0
    %2386 = vmatpush1.bf16.xpose.msra.mxu0 0
    %2387 = vmatprep.subr.bf16.mxu0 0
    %2388 = vmatpush1.bf16.xpose.msra.mxu0 0
    %2389 = vmatprep.subr.bf16.mxu0 0
    %2390 = vmatpush1.bf16.xpose.msra.mxu0 0
    %2391 = vmatprep.subr.bf16.mxu0 0
    %2392 = vmatpush1.bf16.xpose.msra.mxu0 0
    %2393 = vmatprep.subr.bf16.mxu0 0
    %2394 = vmatpush1.bf16.xpose.msra.mxu0 0
    %2395 = vmatprep.subr.bf16.mxu0 0
    %2396 = vmatpush1.bf16.xpose.msra.mxu0 0
    %2397 = vmatprep.subr.bf16.mxu0 0
    %2398 = vmatpush1.bf16.xpose.msra.mxu0 0
    %2399 = vmatprep.subr.bf16.mxu0 0
    %2400 = vmatpush1.bf16.xpose.msra.mxu0 0
    %2401 = vmatprep.subr.bf16.mxu0 0
    %2402 = vmatpush1.bf16.xpose.msra.mxu0 0
    %2403 = vmatprep.subr.bf16.mxu0 0
    %2404 = vmatpush1.bf16.xpose.msra.mxu0 0
    %2405 = vmatprep.subr.bf16.mxu0 0
    %2406 = vmatpush1.bf16.xpose.msra.mxu0 0
    %2407 = vmatprep.subr.bf16.mxu0 0
    %2408 = vmatpush1.bf16.xpose.msra.mxu0 0
    %2409 = vmatprep.subr.bf16.mxu0 0
    %2410 = vmatpush1.bf16.xpose.msra.mxu0 0
    %2411 = vmatprep.subr.bf16.mxu0 0
    %2412 = vmatpush1.bf16.xpose.msra.mxu0 0
    %2413 = vmatprep.subr.bf16.mxu0 0
    %2414 = vmatpush1.bf16.xpose.msra.mxu0 0
    %2415 = vmatprep.mubr.bf16.mxu0 0
    %2416 = vmatmul.mubr.bf16.gmra.mrb[0].mxu0 %v1936
    %v2417 = vpop.f32.mrb[0].mxu0
    %v2418 = vadd.f32 0.0, %v2417
    %v2419 = vpop.f32.mrb[0].mxu0
    %v2420 = vpop.f32.mrb[0].mxu0
    %v2421 = vadd.f32 0.0, %v2420
    %v2422 = vpop.f32.mrb[0].mxu0
    %2423 = vmatprep.mubr.bf16.mxu0 0
    %2424 = vmatmul.mubr.bf16.gmra.mrb[0].mxu0 %v1939
    %v2425 = vpop.f32.mrb[0].mxu0
    %v2426 = vadd.f32 0.0, %v2425
    %v2427 = vpop.f32.mrb[0].mxu0
    %v2428 = vpop.f32.mrb[0].mxu0
    %v2429 = vadd.f32 0.0, %v2428
    %v2430 = vpop.f32.mrb[0].mxu0
    %2431 = vmatprep.mubr.bf16.mxu0 0
    %2432 = vmatmul.mubr.bf16.gmra.mrb[0].mxu0 %v1942
    %v2433 = vpop.f32.mrb[0].mxu0
    %v2434 = vadd.f32 0.0, %v2433
    %v2435 = vpop.f32.mrb[0].mxu0
    %v2436 = vpop.f32.mrb[0].mxu0
    %v2437 = vpop.f32.mrb[0].mxu0
    %2438 = vdwg.mxu0
    %2440 = vrot.lane.b32.xlu0 %v1837, 96
    %v2441 = vpop.permute.xlu0 %2440
    %v2443 = vsel %vm1931, %v2441, 0
    %2445 = vmatprep.subr.bf16.mxu0 0
    %2446 = vmatpush1.bf16.xpose.msra.mxu0 %v2443
    %2447 = vmatprep.subr.bf16.mxu0 0
    %2448 = vmatpush1.bf16.xpose.msra.mxu0 0
    %2449 = vmatprep.subr.bf16.mxu0 0
    %2450 = vmatpush1.bf16.xpose.msra.mxu0 0
    %2451 = vmatprep.subr.bf16.mxu0 0
    %2452 = vmatpush1.bf16.xpose.msra.mxu0 0
    %2453 = vmatprep.subr.bf16.mxu0 0
    %2454 = vmatpush1.bf16.xpose.msra.mxu0 0
    %2455 = vmatprep.subr.bf16.mxu0 0
    %2456 = vmatpush1.bf16.xpose.msra.mxu0 0
    %2457 = vmatprep.subr.bf16.mxu0 0
    %2458 = vmatpush1.bf16.xpose.msra.mxu0 0
    %2459 = vmatprep.subr.bf16.mxu0 0
    %2460 = vmatpush1.bf16.xpose.msra.mxu0 0
    %2461 = vmatprep.subr.bf16.mxu0 0
    %2462 = vmatpush1.bf16.xpose.msra.mxu0 0
    %2463 = vmatprep.subr.bf16.mxu0 0
    %2464 = vmatpush1.bf16.xpose.msra.mxu0 0
    %2465 = vmatprep.subr.bf16.mxu0 0
    %2466 = vmatpush1.bf16.xpose.msra.mxu0 0
    %2467 = vmatprep.subr.bf16.mxu0 0
    %2468 = vmatpush1.bf16.xpose.msra.mxu0 0
    %2469 = vmatprep.subr.bf16.mxu0 0
    %2470 = vmatpush1.bf16.xpose.msra.mxu0 0
    %2471 = vmatprep.subr.bf16.mxu0 0
    %2472 = vmatpush1.bf16.xpose.msra.mxu0 0
    %2473 = vmatprep.subr.bf16.mxu0 0
    %2474 = vmatpush1.bf16.xpose.msra.mxu0 0
    %2475 = vmatprep.subr.bf16.mxu0 0
    %2476 = vmatpush1.bf16.xpose.msra.mxu0 0
    %2477 = vmatprep.mubr.bf16.mxu0 0
    %2478 = vmatmul.mubr.bf16.gmra.mrb[0].mxu0 %v1992
    %v2479 = vpop.f32.mrb[0].mxu0
    %v2480 = vadd.f32 0.0, %v2479
    %v2481 = vpop.f32.mrb[0].mxu0
    %v2482 = vpop.f32.mrb[0].mxu0
    %v2483 = vadd.f32 0.0, %v2482
    %v2484 = vpop.f32.mrb[0].mxu0
    %2485 = vmatprep.mubr.bf16.mxu0 0
    %2486 = vmatmul.mubr.bf16.gmra.mrb[0].mxu0 %v1995
    %v2487 = vpop.f32.mrb[0].mxu0
    %v2488 = vadd.f32 0.0, %v2487
    %v2489 = vpop.f32.mrb[0].mxu0
    %v2490 = vpop.f32.mrb[0].mxu0
    %v2491 = vadd.f32 0.0, %v2490
    %v2492 = vpop.f32.mrb[0].mxu0
    %2493 = vmatprep.mubr.bf16.mxu0 0
    %2494 = vmatmul.mubr.bf16.gmra.mrb[0].mxu0 %v1998
    %v2495 = vpop.f32.mrb[0].mxu0
    %v2496 = vadd.f32 0.0, %v2495
    %v2497 = vpop.f32.mrb[0].mxu0
    %v2498 = vpop.f32.mrb[0].mxu0
    %v2499 = vpop.f32.mrb[0].mxu0
    %2500 = vdwg.mxu0
    %2502 = vrot.lane.b32.xlu0 %v1838, 96
    %v2503 = vpop.permute.xlu0 %2502
    %v2505 = vsel %vm1931, %v2503, 0
    %2507 = vmatprep.subr.bf16.mxu0 0
    %2508 = vmatpush1.bf16.xpose.msra.mxu0 %v2505
    %2509 = vmatprep.subr.bf16.mxu0 0
    %2510 = vmatpush1.bf16.xpose.msra.mxu0 0
    %2511 = vmatprep.subr.bf16.mxu0 0
    %2512 = vmatpush1.bf16.xpose.msra.mxu0 0
    %2513 = vmatprep.subr.bf16.mxu0 0
    %2514 = vmatpush1.bf16.xpose.msra.mxu0 0
    %2515 = vmatprep.subr.bf16.mxu0 0
    %2516 = vmatpush1.bf16.xpose.msra.mxu0 0
    %2517 = vmatprep.subr.bf16.mxu0 0
    %2518 = vmatpush1.bf16.xpose.msra.mxu0 0
    %2519 = vmatprep.subr.bf16.mxu0 0
    %2520 = vmatpush1.bf16.xpose.msra.mxu0 0
    %2521 = vmatprep.subr.bf16.mxu0 0
    %2522 = vmatpush1.bf16.xpose.msra.mxu0 0
    %2523 = vmatprep.subr.bf16.mxu0 0
    %2524 = vmatpush1.bf16.xpose.msra.mxu0 0
    %2525 = vmatprep.subr.bf16.mxu0 0
    %2526 = vmatpush1.bf16.xpose.msra.mxu0 0
    %2527 = vmatprep.subr.bf16.mxu0 0
    %2528 = vmatpush1.bf16.xpose.msra.mxu0 0
    %2529 = vmatprep.subr.bf16.mxu0 0
    %2530 = vmatpush1.bf16.xpose.msra.mxu0 0
    %2531 = vmatprep.subr.bf16.mxu0 0
    %2532 = vmatpush1.bf16.xpose.msra.mxu0 0
    %2533 = vmatprep.subr.bf16.mxu0 0
    %2534 = vmatpush1.bf16.xpose.msra.mxu0 0
    %2535 = vmatprep.subr.bf16.mxu0 0
    %2536 = vmatpush1.bf16.xpose.msra.mxu0 0
    %2537 = vmatprep.subr.bf16.mxu0 0
    %2538 = vmatpush1.bf16.xpose.msra.mxu0 0
    %2539 = vmatprep.mubr.bf16.mxu0 0
    %2540 = vmatmul.mubr.bf16.gmra.mrb[0].mxu0 %v2048
    %v2541 = vpop.f32.mrb[0].mxu0
    %v2542 = vadd.f32 0.0, %v2541
    %v2543 = vpop.f32.mrb[0].mxu0
    %v2544 = vpop.f32.mrb[0].mxu0
    %v2545 = vadd.f32 0.0, %v2544
    %v2546 = vpop.f32.mrb[0].mxu0
    %2547 = vmatprep.mubr.bf16.mxu0 0
    %2548 = vmatmul.mubr.bf16.gmra.mrb[0].mxu0 %v2051
    %v2549 = vpop.f32.mrb[0].mxu0
    %v2550 = vadd.f32 0.0, %v2549
    %v2551 = vpop.f32.mrb[0].mxu0
    %v2552 = vpop.f32.mrb[0].mxu0
    %v2553 = vadd.f32 0.0, %v2552
    %v2554 = vpop.f32.mrb[0].mxu0
    %2555 = vmatprep.mubr.bf16.mxu0 0
    %2556 = vmatmul.mubr.bf16.gmra.mrb[0].mxu0 %v2054
    %v2557 = vpop.f32.mrb[0].mxu0
    %v2558 = vadd.f32 0.0, %v2557
    %v2559 = vpop.f32.mrb[0].mxu0
    %v2560 = vpop.f32.mrb[0].mxu0
    %v2561 = vpop.f32.mrb[0].mxu0
    %2562 = vdwg.mxu0
    %2564 = vrot.lane.b32.xlu0 %v1839, 96
    %v2565 = vpop.permute.xlu0 %2564
    %v2567 = vsel %vm1931, %v2565, 0
    %2569 = vmatprep.subr.bf16.mxu0 0
    %2570 = vmatpush1.bf16.xpose.msra.mxu0 %v2567
    %2571 = vmatprep.subr.bf16.mxu0 0
    %2572 = vmatpush1.bf16.xpose.msra.mxu0 0
    %2573 = vmatprep.subr.bf16.mxu0 0
    %2574 = vmatpush1.bf16.xpose.msra.mxu0 0
    %2575 = vmatprep.subr.bf16.mxu0 0
    %2576 = vmatpush1.bf16.xpose.msra.mxu0 0
    %2577 = vmatprep.subr.bf16.mxu0 0
    %2578 = vmatpush1.bf16.xpose.msra.mxu0 0
    %2579 = vmatprep.subr.bf16.mxu0 0
    %2580 = vmatpush1.bf16.xpose.msra.mxu0 0
    %2581 = vmatprep.subr.bf16.mxu0 0
    %2582 = vmatpush1.bf16.xpose.msra.mxu0 0
    %2583 = vmatprep.subr.bf16.mxu0 0
    %2584 = vmatpush1.bf16.xpose.msra.mxu0 0
    %2585 = vmatprep.subr.bf16.mxu0 0
    %2586 = vmatpush1.bf16.xpose.msra.mxu0 0
    %2587 = vmatprep.subr.bf16.mxu0 0
    %2588 = vmatpush1.bf16.xpose.msra.mxu0 0
    %2589 = vmatprep.subr.bf16.mxu0 0
    %2590 = vmatpush1.bf16.xpose.msra.mxu0 0
    %2591 = vmatprep.subr.bf16.mxu0 0
    %2592 = vmatpush1.bf16.xpose.msra.mxu0 0
    %2593 = vmatprep.subr.bf16.mxu0 0
    %2594 = vmatpush1.bf16.xpose.msra.mxu0 0
    %2595 = vmatprep.subr.bf16.mxu0 0
    %2596 = vmatpush1.bf16.xpose.msra.mxu0 0
    %2597 = vmatprep.subr.bf16.mxu0 0
    %2598 = vmatpush1.bf16.xpose.msra.mxu0 0
    %2599 = vmatprep.subr.bf16.mxu0 0
    %2600 = vmatpush1.bf16.xpose.msra.mxu0 0
    %2601 = vmatprep.mubr.bf16.mxu0 0
    %2602 = vmatmul.mubr.bf16.gmra.mrb[0].mxu0 %v2104
    %v2603 = vpop.f32.mrb[0].mxu0
    %v2604 = vadd.f32 0.0, %v2603
    %v2605 = vpop.f32.mrb[0].mxu0
    %v2606 = vpop.f32.mrb[0].mxu0
    %v2607 = vadd.f32 0.0, %v2606
    %v2608 = vpop.f32.mrb[0].mxu0
    %2609 = vmatprep.mubr.bf16.mxu0 0
    %2610 = vmatmul.mubr.bf16.gmra.mrb[0].mxu0 %v2107
    %v2611 = vpop.f32.mrb[0].mxu0
    %v2612 = vadd.f32 0.0, %v2611
    %v2613 = vpop.f32.mrb[0].mxu0
    %v2614 = vpop.f32.mrb[0].mxu0
    %v2615 = vadd.f32 0.0, %v2614
    %v2616 = vpop.f32.mrb[0].mxu0
    %2617 = vmatprep.mubr.bf16.mxu0 0
    %2618 = vmatmul.mubr.bf16.gmra.mrb[0].mxu0 %v2110
    %v2619 = vpop.f32.mrb[0].mxu0
    %v2620 = vadd.f32 0.0, %v2619
    %v2621 = vpop.f32.mrb[0].mxu0
    %v2622 = vpop.f32.mrb[0].mxu0
    %v2623 = vpop.f32.mrb[0].mxu0
    %2624 = vdwg.mxu0
    %2626 = vrot.lane.b32.xlu0 %v1840, 96
    %v2627 = vpop.permute.xlu0 %2626
    %v2629 = vsel %vm1931, %v2627, 0
    %2631 = vmatprep.subr.bf16.mxu0 0
    %2632 = vmatpush1.bf16.xpose.msra.mxu0 %v2629
    %2633 = vmatprep.subr.bf16.mxu0 0
    %2634 = vmatpush1.bf16.xpose.msra.mxu0 0
    %2635 = vmatprep.subr.bf16.mxu0 0
    %2636 = vmatpush1.bf16.xpose.msra.mxu0 0
    %2637 = vmatprep.subr.bf16.mxu0 0
    %2638 = vmatpush1.bf16.xpose.msra.mxu0 0
    %2639 = vmatprep.subr.bf16.mxu0 0
    %2640 = vmatpush1.bf16.xpose.msra.mxu0 0
    %2641 = vmatprep.subr.bf16.mxu0 0
    %2642 = vmatpush1.bf16.xpose.msra.mxu0 0
    %2643 = vmatprep.subr.bf16.mxu0 0
    %2644 = vmatpush1.bf16.xpose.msra.mxu0 0
    %2645 = vmatprep.subr.bf16.mxu0 0
    %2646 = vmatpush1.bf16.xpose.msra.mxu0 0
    %2647 = vmatprep.subr.bf16.mxu0 0
    %2648 = vmatpush1.bf16.xpose.msra.mxu0 0
    %2649 = vmatprep.subr.bf16.mxu0 0
    %2650 = vmatpush1.bf16.xpose.msra.mxu0 0
    %2651 = vmatprep.subr.bf16.mxu0 0
    %2652 = vmatpush1.bf16.xpose.msra.mxu0 0
    %2653 = vmatprep.subr.bf16.mxu0 0
    %2654 = vmatpush1.bf16.xpose.msra.mxu0 0
    %2655 = vmatprep.subr.bf16.mxu0 0
    %2656 = vmatpush1.bf16.xpose.msra.mxu0 0
    %2657 = vmatprep.subr.bf16.mxu0 0
    %2658 = vmatpush1.bf16.xpose.msra.mxu0 0
    %2659 = vmatprep.subr.bf16.mxu0 0
    %2660 = vmatpush1.bf16.xpose.msra.mxu0 0
    %2661 = vmatprep.subr.bf16.mxu0 0
    %2662 = vmatpush1.bf16.xpose.msra.mxu0 0
    %2663 = vmatprep.mubr.bf16.mxu0 0
    %2664 = vmatmul.mubr.bf16.gmra.mrb[0].mxu0 %v2160
    %v2665 = vpop.f32.mrb[0].mxu0
    %v2666 = vadd.f32 0.0, %v2665
    %v2667 = vpop.f32.mrb[0].mxu0
    %v2668 = vpop.f32.mrb[0].mxu0
    %v2669 = vadd.f32 0.0, %v2668
    %v2670 = vpop.f32.mrb[0].mxu0
    %2671 = vmatprep.mubr.bf16.mxu0 0
    %2672 = vmatmul.mubr.bf16.gmra.mrb[0].mxu0 %v2163
    %v2673 = vpop.f32.mrb[0].mxu0
    %v2674 = vadd.f32 0.0, %v2673
    %v2675 = vpop.f32.mrb[0].mxu0
    %v2676 = vpop.f32.mrb[0].mxu0
    %v2677 = vadd.f32 0.0, %v2676
    %v2678 = vpop.f32.mrb[0].mxu0
    %2679 = vmatprep.mubr.bf16.mxu0 0
    %2680 = vmatmul.mubr.bf16.gmra.mrb[0].mxu0 %v2166
    %v2681 = vpop.f32.mrb[0].mxu0
    %v2682 = vadd.f32 0.0, %v2681
    %v2683 = vpop.f32.mrb[0].mxu0
    %v2684 = vpop.f32.mrb[0].mxu0
    %v2685 = vpop.f32.mrb[0].mxu0
    %2686 = vdwg.mxu0
    %2688 = vrot.lane.b32.xlu0 %v1841, 96
    %v2689 = vpop.permute.xlu0 %2688
    %v2691 = vsel %vm1931, %v2689, 0
    %2693 = vmatprep.subr.bf16.mxu0 0
    %2694 = vmatpush1.bf16.xpose.msra.mxu0 %v2691
    %2695 = vmatprep.subr.bf16.mxu0 0
    %2696 = vmatpush1.bf16.xpose.msra.mxu0 0
    %2697 = vmatprep.subr.bf16.mxu0 0
    %2698 = vmatpush1.bf16.xpose.msra.mxu0 0
    %2699 = vmatprep.subr.bf16.mxu0 0
    %2700 = vmatpush1.bf16.xpose.msra.mxu0 0
    %2701 = vmatprep.subr.bf16.mxu0 0
    %2702 = vmatpush1.bf16.xpose.msra.mxu0 0
    %2703 = vmatprep.subr.bf16.mxu0 0
    %2704 = vmatpush1.bf16.xpose.msra.mxu0 0
    %2705 = vmatprep.subr.bf16.mxu0 0
    %2706 = vmatpush1.bf16.xpose.msra.mxu0 0
    %2707 = vmatprep.subr.bf16.mxu0 0
    %2708 = vmatpush1.bf16.xpose.msra.mxu0 0
    %2709 = vmatprep.subr.bf16.mxu0 0
    %2710 = vmatpush1.bf16.xpose.msra.mxu0 0
    %2711 = vmatprep.subr.bf16.mxu0 0
    %2712 = vmatpush1.bf16.xpose.msra.mxu0 0
    %2713 = vmatprep.subr.bf16.mxu0 0
    %2714 = vmatpush1.bf16.xpose.msra.mxu0 0
    %2715 = vmatprep.subr.bf16.mxu0 0
    %2716 = vmatpush1.bf16.xpose.msra.mxu0 0
    %2717 = vmatprep.subr.bf16.mxu0 0
    %2718 = vmatpush1.bf16.xpose.msra.mxu0 0
    %2719 = vmatprep.subr.bf16.mxu0 0
    %2720 = vmatpush1.bf16.xpose.msra.mxu0 0
    %2721 = vmatprep.subr.bf16.mxu0 0
    %2722 = vmatpush1.bf16.xpose.msra.mxu0 0
    %2723 = vmatprep.subr.bf16.mxu0 0
    %2724 = vmatpush1.bf16.xpose.msra.mxu0 0
    %2725 = vmatprep.mubr.bf16.mxu0 0
    %2726 = vmatmul.mubr.bf16.gmra.mrb[0].mxu0 %v2216
    %v2727 = vpop.f32.mrb[0].mxu0
    %v2728 = vadd.f32 0.0, %v2727
    %v2729 = vpop.f32.mrb[0].mxu0
    %v2730 = vpop.f32.mrb[0].mxu0
    %v2731 = vadd.f32 0.0, %v2730
    %v2732 = vpop.f32.mrb[0].mxu0
    %2733 = vmatprep.mubr.bf16.mxu0 0
    %2734 = vmatmul.mubr.bf16.gmra.mrb[0].mxu0 %v2219
    %v2735 = vpop.f32.mrb[0].mxu0
    %v2736 = vadd.f32 0.0, %v2735
    %v2737 = vpop.f32.mrb[0].mxu0
    %v2738 = vpop.f32.mrb[0].mxu0
    %v2739 = vadd.f32 0.0, %v2738
    %v2740 = vpop.f32.mrb[0].mxu0
    %2741 = vmatprep.mubr.bf16.mxu0 0
    %2742 = vmatmul.mubr.bf16.gmra.mrb[0].mxu0 %v2222
    %v2743 = vpop.f32.mrb[0].mxu0
    %v2744 = vadd.f32 0.0, %v2743
    %v2745 = vpop.f32.mrb[0].mxu0
    %v2746 = vpop.f32.mrb[0].mxu0
    %v2747 = vpop.f32.mrb[0].mxu0
    %2748 = vdwg.mxu0
    %2750 = vrot.lane.b32.xlu0 %v1842, 96
    %v2751 = vpop.permute.xlu0 %2750
    %v2753 = vsel %vm1931, %v2751, 0
    %2755 = vmatprep.subr.bf16.mxu0 0
    %2756 = vmatpush1.bf16.xpose.msra.mxu0 %v2753
    %2757 = vmatprep.subr.bf16.mxu0 0
    %2758 = vmatpush1.bf16.xpose.msra.mxu0 0
    %2759 = vmatprep.subr.bf16.mxu0 0
    %2760 = vmatpush1.bf16.xpose.msra.mxu0 0
    %2761 = vmatprep.subr.bf16.mxu0 0
    %2762 = vmatpush1.bf16.xpose.msra.mxu0 0
    %2763 = vmatprep.subr.bf16.mxu0 0
    %2764 = vmatpush1.bf16.xpose.msra.mxu0 0
    %2765 = vmatprep.subr.bf16.mxu0 0
    %2766 = vmatpush1.bf16.xpose.msra.mxu0 0
    %2767 = vmatprep.subr.bf16.mxu0 0
    %2768 = vmatpush1.bf16.xpose.msra.mxu0 0
    %2769 = vmatprep.subr.bf16.mxu0 0
    %2770 = vmatpush1.bf16.xpose.msra.mxu0 0
    %2771 = vmatprep.subr.bf16.mxu0 0
    %2772 = vmatpush1.bf16.xpose.msra.mxu0 0
    %2773 = vmatprep.subr.bf16.mxu0 0
    %2774 = vmatpush1.bf16.xpose.msra.mxu0 0
    %2775 = vmatprep.subr.bf16.mxu0 0
    %2776 = vmatpush1.bf16.xpose.msra.mxu0 0
    %2777 = vmatprep.subr.bf16.mxu0 0
    %2778 = vmatpush1.bf16.xpose.msra.mxu0 0
    %2779 = vmatprep.subr.bf16.mxu0 0
    %2780 = vmatpush1.bf16.xpose.msra.mxu0 0
    %2781 = vmatprep.subr.bf16.mxu0 0
    %2782 = vmatpush1.bf16.xpose.msra.mxu0 0
    %2783 = vmatprep.subr.bf16.mxu0 0
    %2784 = vmatpush1.bf16.xpose.msra.mxu0 0
    %2785 = vmatprep.subr.bf16.mxu0 0
    %2786 = vmatpush1.bf16.xpose.msra.mxu0 0
    %2787 = vmatprep.mubr.bf16.mxu0 0
    %2788 = vmatmul.mubr.bf16.gmra.mrb[0].mxu0 %v2272
    %v2789 = vpop.f32.mrb[0].mxu0
    %v2790 = vadd.f32 0.0, %v2789
    %v2791 = vpop.f32.mrb[0].mxu0
    %v2792 = vpop.f32.mrb[0].mxu0
    %v2793 = vadd.f32 0.0, %v2792
    %v2794 = vpop.f32.mrb[0].mxu0
    %2795 = vmatprep.mubr.bf16.mxu0 0
    %2796 = vmatmul.mubr.bf16.gmra.mrb[0].mxu0 %v2275
    %v2797 = vpop.f32.mrb[0].mxu0
    %v2798 = vadd.f32 0.0, %v2797
    %v2799 = vpop.f32.mrb[0].mxu0
    %v2800 = vpop.f32.mrb[0].mxu0
    %v2801 = vadd.f32 0.0, %v2800
    %v2802 = vpop.f32.mrb[0].mxu0
    %2803 = vmatprep.mubr.bf16.mxu0 0
    %2804 = vmatmul.mubr.bf16.gmra.mrb[0].mxu0 %v2278
    %v2805 = vpop.f32.mrb[0].mxu0
    %v2806 = vadd.f32 0.0, %v2805
    %v2807 = vpop.f32.mrb[0].mxu0
    %v2808 = vpop.f32.mrb[0].mxu0
    %v2809 = vpop.f32.mrb[0].mxu0
    %2810 = vdwg.mxu0
    %2812 = vrot.lane.b32.xlu0 %v1843, 96
    %v2813 = vpop.permute.xlu0 %2812
    %v2815 = vsel %vm1931, %v2813, 0
    %2817 = vmatprep.subr.bf16.mxu0 0
    %2818 = vmatpush1.bf16.xpose.msra.mxu0 %v2815
    %2819 = vmatprep.subr.bf16.mxu0 0
    %2820 = vmatpush1.bf16.xpose.msra.mxu0 0
    %2821 = vmatprep.subr.bf16.mxu0 0
    %2822 = vmatpush1.bf16.xpose.msra.mxu0 0
    %2823 = vmatprep.subr.bf16.mxu0 0
    %2824 = vmatpush1.bf16.xpose.msra.mxu0 0
    %2825 = vmatprep.subr.bf16.mxu0 0
    %2826 = vmatpush1.bf16.xpose.msra.mxu0 0
    %2827 = vmatprep.subr.bf16.mxu0 0
    %2828 = vmatpush1.bf16.xpose.msra.mxu0 0
    %2829 = vmatprep.subr.bf16.mxu0 0
    %2830 = vmatpush1.bf16.xpose.msra.mxu0 0
    %2831 = vmatprep.subr.bf16.mxu0 0
    %2832 = vmatpush1.bf16.xpose.msra.mxu0 0
    %2833 = vmatprep.subr.bf16.mxu0 0
    %2834 = vmatpush1.bf16.xpose.msra.mxu0 0
    %2835 = vmatprep.subr.bf16.mxu0 0
    %2836 = vmatpush1.bf16.xpose.msra.mxu0 0
    %2837 = vmatprep.subr.bf16.mxu0 0
    %2838 = vmatpush1.bf16.xpose.msra.mxu0 0
    %2839 = vmatprep.subr.bf16.mxu0 0
    %2840 = vmatpush1.bf16.xpose.msra.mxu0 0
    %2841 = vmatprep.subr.bf16.mxu0 0
    %2842 = vmatpush1.bf16.xpose.msra.mxu0 0
    %2843 = vmatprep.subr.bf16.mxu0 0
    %2844 = vmatpush1.bf16.xpose.msra.mxu0 0
    %2845 = vmatprep.subr.bf16.mxu0 0
    %2846 = vmatpush1.bf16.xpose.msra.mxu0 0
    %2847 = vmatprep.subr.bf16.mxu0 0
    %2848 = vmatpush1.bf16.xpose.msra.mxu0 0
    %2849 = vmatprep.mubr.bf16.mxu0 0
    %2850 = vmatmul.mubr.bf16.gmra.mrb[0].mxu0 %v2328
    %v2851 = vpop.f32.mrb[0].mxu0
    %v2852 = vadd.f32 0.0, %v2851
    %v2853 = vpop.f32.mrb[0].mxu0
    %v2854 = vpop.f32.mrb[0].mxu0
    %v2855 = vadd.f32 0.0, %v2854
    %v2856 = vpop.f32.mrb[0].mxu0
    %2857 = vmatprep.mubr.bf16.mxu0 0
    %2858 = vmatmul.mubr.bf16.gmra.mrb[0].mxu0 %v2331
    %v2859 = vpop.f32.mrb[0].mxu0
    %v2860 = vadd.f32 0.0, %v2859
    %v2861 = vpop.f32.mrb[0].mxu0
    %v2862 = vpop.f32.mrb[0].mxu0
    %v2863 = vadd.f32 0.0, %v2862
    %v2864 = vpop.f32.mrb[0].mxu0
    %2865 = vmatprep.mubr.bf16.mxu0 0
    %2866 = vmatmul.mubr.bf16.gmra.mrb[0].mxu0 %v2334
    %v2867 = vpop.f32.mrb[0].mxu0
    %v2868 = vadd.f32 0.0, %v2867
    %v2869 = vpop.f32.mrb[0].mxu0
    %v2870 = vpop.f32.mrb[0].mxu0
    %v2871 = vpop.f32.mrb[0].mxu0
    %2872 = vdwg.mxu0
    %v2873 = vpack.c.bf16 %v1982, %v1979
    %v2874 = vpack.c.bf16 %v2038, %v2035
    %v2875 = vpack.c.bf16 %v2094, %v2091
    %v2876 = vpack.c.bf16 %v2150, %v2147
    %v2877 = vpack.c.bf16 %v2206, %v2203
    %v2878 = vpack.c.bf16 %v2262, %v2259
    %v2879 = vpack.c.bf16 %v2318, %v2315
    %v2880 = vpack.c.bf16 %v2374, %v2371
    %v2881 = vpack.c.bf16 %v2421, %v2418
    %v2882 = vpack.c.bf16 %v2429, %v2426
    %v2883 = vpack.c.bf16 %v2434, %v2434
    %v2884 = vpack.c.bf16 %v2483, %v2480
    %v2885 = vpack.c.bf16 %v2491, %v2488
    %v2886 = vpack.c.bf16 %v2496, %v2496
    %v2887 = vpack.c.bf16 %v2545, %v2542
    %v2888 = vpack.c.bf16 %v2553, %v2550
    %v2889 = vpack.c.bf16 %v2558, %v2558
    %v2890 = vpack.c.bf16 %v2607, %v2604
    %v2891 = vpack.c.bf16 %v2615, %v2612
    %v2892 = vpack.c.bf16 %v2620, %v2620
    %v2893 = vpack.c.bf16 %v2669, %v2666
    %v2894 = vpack.c.bf16 %v2677, %v2674
    %v2895 = vpack.c.bf16 %v2682, %v2682
    %v2896 = vpack.c.bf16 %v2731, %v2728
    %v2897 = vpack.c.bf16 %v2739, %v2736
    %v2898 = vpack.c.bf16 %v2744, %v2744
    %v2899 = vpack.c.bf16 %v2793, %v2790
    %v2900 = vpack.c.bf16 %v2801, %v2798
    %v2901 = vpack.c.bf16 %v2806, %v2806
    %v2902 = vpack.c.bf16 %v2855, %v2852
    %v2903 = vpack.c.bf16 %v2863, %v2860
    %v2904 = vpack.c.bf16 %v2868, %v2868
    %vm2905 = vcmask 326656
    %v2907 = vsel %vm2905, %v2873, 0
    %vm2909 = vcmask 1043456
    %v2911 = vsel %vm2909, %v2883, 0
    %2913 = vmatprep.subr.bf16.mxu0 0
    %2914 = vmatpush1.bf16.msra.mxu0 %v2881
    %2915 = vmatprep.subr.bf16.mxu0 0
    %2916 = vmatpush1.bf16.msra.mxu0 %v2882
    %2917 = vmatprep.subr.bf16.mxu0 0
    %2918 = vmatpush1.bf16.msra.mxu0 %v2911
    %2919 = vmatprep.subr.bf16.mxu0 0
    %2920 = vmatpush1.bf16.msra.mxu0 0
    %2921 = vmatprep.subr.bf16.mxu0 0
    %2922 = vmatpush1.bf16.msra.mxu0 0
    %2923 = vmatprep.subr.bf16.mxu0 0
    %2924 = vmatpush1.bf16.msra.mxu0 0
    %2925 = vmatprep.subr.bf16.mxu0 0
    %2926 = vmatpush1.bf16.msra.mxu0 0
    %2927 = vmatprep.subr.bf16.mxu0 0
    %2928 = vmatpush1.bf16.msra.mxu0 0
    %2929 = vmatprep.subr.bf16.mxu0 0
    %2930 = vmatpush1.bf16.msra.mxu0 0
    %2931 = vmatprep.subr.bf16.mxu0 0
    %2932 = vmatpush1.bf16.msra.mxu0 0
    %2933 = vmatprep.subr.bf16.mxu0 0
    %2934 = vmatpush1.bf16.msra.mxu0 0
    %2935 = vmatprep.subr.bf16.mxu0 0
    %2936 = vmatpush1.bf16.msra.mxu0 0
    %2937 = vmatprep.subr.bf16.mxu0 0
    %2938 = vmatpush1.bf16.msra.mxu0 0
    %2939 = vmatprep.subr.bf16.mxu0 0
    %2940 = vmatpush1.bf16.msra.mxu0 0
    %2941 = vmatprep.subr.bf16.mxu0 0
    %2942 = vmatpush1.bf16.msra.mxu0 0
    %2943 = vmatprep.subr.bf16.mxu0 0
    %2944 = vmatpush1.bf16.msra.mxu0 0
    %2945 = vmatprep.mubr.bf16.mxu0 0
    %2946 = vmatmul.mubr.bf16.gmra.mrb[0].mxu0 %v2907
    %v2947 = vpop.f32.mrb[0].mxu0
    %v2948 = vadd.f32 0.0, %v2947
    %v2949 = vpop.f32.mrb[0].mxu0
    %v2950 = vpop.f32.mrb[0].mxu0
    %v2951 = vadd.f32 0.0, %v2950
    %v2952 = vpop.f32.mrb[0].mxu0
    %2953 = vdwg.mxu0
    %v2955 = vsel %vm2905, %v2874, 0
    %v2958 = vsel %vm2909, %v2886, 0
    %2960 = vmatprep.subr.bf16.mxu0 0
    %2961 = vmatpush1.bf16.msra.mxu0 %v2884
    %2962 = vmatprep.subr.bf16.mxu0 0
    %2963 = vmatpush1.bf16.msra.mxu0 %v2885
    %2964 = vmatprep.subr.bf16.mxu0 0
    %2965 = vmatpush1.bf16.msra.mxu0 %v2958
    %2966 = vmatprep.subr.bf16.mxu0 0
    %2967 = vmatpush1.bf16.msra.mxu0 0
    %2968 = vmatprep.subr.bf16.mxu0 0
    %2969 = vmatpush1.bf16.msra.mxu0 0
    %2970 = vmatprep.subr.bf16.mxu0 0
    %2971 = vmatpush1.bf16.msra.mxu0 0
    %2972 = vmatprep.subr.bf16.mxu0 0
    %2973 = vmatpush1.bf16.msra.mxu0 0
    %2974 = vmatprep.subr.bf16.mxu0 0
    %2975 = vmatpush1.bf16.msra.mxu0 0
    %2976 = vmatprep.subr.bf16.mxu0 0
    %2977 = vmatpush1.bf16.msra.mxu0 0
    %2978 = vmatprep.subr.bf16.mxu0 0
    %2979 = vmatpush1.bf16.msra.mxu0 0
    %2980 = vmatprep.subr.bf16.mxu0 0
    %2981 = vmatpush1.bf16.msra.mxu0 0
    %2982 = vmatprep.subr.bf16.mxu0 0
    %2983 = vmatpush1.bf16.msra.mxu0 0
    %2984 = vmatprep.subr.bf16.mxu0 0
    %2985 = vmatpush1.bf16.msra.mxu0 0
    %2986 = vmatprep.subr.bf16.mxu0 0
    %2987 = vmatpush1.bf16.msra.mxu0 0
    %2988 = vmatprep.subr.bf16.mxu0 0
    %2989 = vmatpush1.bf16.msra.mxu0 0
    %2990 = vmatprep.subr.bf16.mxu0 0
    %2991 = vmatpush1.bf16.msra.mxu0 0
    %2992 = vmatprep.mubr.bf16.mxu0 0
    %2993 = vmatmul.mubr.bf16.gmra.mrb[0].mxu0 %v2955
    %v2994 = vpop.f32.mrb[0].mxu0
    %v2995 = vadd.f32 0.0, %v2994
    %v2996 = vpop.f32.mrb[0].mxu0
    %v2997 = vpop.f32.mrb[0].mxu0
    %v2998 = vadd.f32 0.0, %v2997
    %v2999 = vpop.f32.mrb[0].mxu0
    %3000 = vdwg.mxu0
    %v3002 = vsel %vm2905, %v2875, 0
    %v3005 = vsel %vm2909, %v2889, 0
    %3007 = vmatprep.subr.bf16.mxu0 0
    %3008 = vmatpush1.bf16.msra.mxu0 %v2887
    %3009 = vmatprep.subr.bf16.mxu0 0
    %3010 = vmatpush1.bf16.msra.mxu0 %v2888
    %3011 = vmatprep.subr.bf16.mxu0 0
    %3012 = vmatpush1.bf16.msra.mxu0 %v3005
    %3013 = vmatprep.subr.bf16.mxu0 0
    %3014 = vmatpush1.bf16.msra.mxu0 0
    %3015 = vmatprep.subr.bf16.mxu0 0
    %3016 = vmatpush1.bf16.msra.mxu0 0
    %3017 = vmatprep.subr.bf16.mxu0 0
    %3018 = vmatpush1.bf16.msra.mxu0 0
    %3019 = vmatprep.subr.bf16.mxu0 0
    %3020 = vmatpush1.bf16.msra.mxu0 0
    %3021 = vmatprep.subr.bf16.mxu0 0
    %3022 = vmatpush1.bf16.msra.mxu0 0
    %3023 = vmatprep.subr.bf16.mxu0 0
    %3024 = vmatpush1.bf16.msra.mxu0 0
    %3025 = vmatprep.subr.bf16.mxu0 0
    %3026 = vmatpush1.bf16.msra.mxu0 0
    %3027 = vmatprep.subr.bf16.mxu0 0
    %3028 = vmatpush1.bf16.msra.mxu0 0
    %3029 = vmatprep.subr.bf16.mxu0 0
    %3030 = vmatpush1.bf16.msra.mxu0 0
    %3031 = vmatprep.subr.bf16.mxu0 0
    %3032 = vmatpush1.bf16.msra.mxu0 0
    %3033 = vmatprep.subr.bf16.mxu0 0
    %3034 = vmatpush1.bf16.msra.mxu0 0
    %3035 = vmatprep.subr.bf16.mxu0 0
    %3036 = vmatpush1.bf16.msra.mxu0 0
    %3037 = vmatprep.subr.bf16.mxu0 0
    %3038 = vmatpush1.bf16.msra.mxu0 0
    %3039 = vmatprep.mubr.bf16.mxu0 0
    %3040 = vmatmul.mubr.bf16.gmra.mrb[0].mxu0 %v3002
    %v3041 = vpop.f32.mrb[0].mxu0
    %v3042 = vadd.f32 0.0, %v3041
    %v3043 = vpop.f32.mrb[0].mxu0
    %v3044 = vpop.f32.mrb[0].mxu0
    %v3045 = vadd.f32 0.0, %v3044
    %v3046 = vpop.f32.mrb[0].mxu0
    %3047 = vdwg.mxu0
    %v3049 = vsel %vm2905, %v2876, 0
    %v3052 = vsel %vm2909, %v2892, 0
    %3054 = vmatprep.subr.bf16.mxu0 0
    %3055 = vmatpush1.bf16.msra.mxu0 %v2890
    %3056 = vmatprep.subr.bf16.mxu0 0
    %3057 = vmatpush1.bf16.msra.mxu0 %v2891
    %3058 = vmatprep.subr.bf16.mxu0 0
    %3059 = vmatpush1.bf16.msra.mxu0 %v3052
    %3060 = vmatprep.subr.bf16.mxu0 0
    %3061 = vmatpush1.bf16.msra.mxu0 0
    %3062 = vmatprep.subr.bf16.mxu0 0
    %3063 = vmatpush1.bf16.msra.mxu0 0
    %3064 = vmatprep.subr.bf16.mxu0 0
    %3065 = vmatpush1.bf16.msra.mxu0 0
    %3066 = vmatprep.subr.bf16.mxu0 0
    %3067 = vmatpush1.bf16.msra.mxu0 0
    %3068 = vmatprep.subr.bf16.mxu0 0
    %3069 = vmatpush1.bf16.msra.mxu0 0
    %3070 = vmatprep.subr.bf16.mxu0 0
    %3071 = vmatpush1.bf16.msra.mxu0 0
    %3072 = vmatprep.subr.bf16.mxu0 0
    %3073 = vmatpush1.bf16.msra.mxu0 0
    %3074 = vmatprep.subr.bf16.mxu0 0
    %3075 = vmatpush1.bf16.msra.mxu0 0
    %3076 = vmatprep.subr.bf16.mxu0 0
    %3077 = vmatpush1.bf16.msra.mxu0 0
    %3078 = vmatprep.subr.bf16.mxu0 0
    %3079 = vmatpush1.bf16.msra.mxu0 0
    %3080 = vmatprep.subr.bf16.mxu0 0
    %3081 = vmatpush1.bf16.msra.mxu0 0
    %3082 = vmatprep.subr.bf16.mxu0 0
    %3083 = vmatpush1.bf16.msra.mxu0 0
    %3084 = vmatprep.subr.bf16.mxu0 0
    %3085 = vmatpush1.bf16.msra.mxu0 0
    %3086 = vmatprep.mubr.bf16.mxu0 0
    %3087 = vmatmul.mubr.bf16.gmra.mrb[0].mxu0 %v3049
    %v3088 = vpop.f32.mrb[0].mxu0
    %v3089 = vadd.f32 0.0, %v3088
    %v3090 = vpop.f32.mrb[0].mxu0
    %v3091 = vpop.f32.mrb[0].mxu0
    %v3092 = vadd.f32 0.0, %v3091
    %v3093 = vpop.f32.mrb[0].mxu0
    %3094 = vdwg.mxu0
    %v3096 = vsel %vm2905, %v2877, 0
    %v3099 = vsel %vm2909, %v2895, 0
    %3101 = vmatprep.subr.bf16.mxu0 0
    %3102 = vmatpush1.bf16.msra.mxu0 %v2893
    %3103 = vmatprep.subr.bf16.mxu0 0
    %3104 = vmatpush1.bf16.msra.mxu0 %v2894
    %3105 = vmatprep.subr.bf16.mxu0 0
    %3106 = vmatpush1.bf16.msra.mxu0 %v3099
    %3107 = vmatprep.subr.bf16.mxu0 0
    %3108 = vmatpush1.bf16.msra.mxu0 0
    %3109 = vmatprep.subr.bf16.mxu0 0
    %3110 = vmatpush1.bf16.msra.mxu0 0
    %3111 = vmatprep.subr.bf16.mxu0 0
    %3112 = vmatpush1.bf16.msra.mxu0 0
    %3113 = vmatprep.subr.bf16.mxu0 0
    %3114 = vmatpush1.bf16.msra.mxu0 0
    %3115 = vmatprep.subr.bf16.mxu0 0
    %3116 = vmatpush1.bf16.msra.mxu0 0
    %3117 = vmatprep.subr.bf16.mxu0 0
    %3118 = vmatpush1.bf16.msra.mxu0 0
    %3119 = vmatprep.subr.bf16.mxu0 0
    %3120 = vmatpush1.bf16.msra.mxu0 0
    %3121 = vmatprep.subr.bf16.mxu0 0
    %3122 = vmatpush1.bf16.msra.mxu0 0
    %3123 = vmatprep.subr.bf16.mxu0 0
    %3124 = vmatpush1.bf16.msra.mxu0 0
    %3125 = vmatprep.subr.bf16.mxu0 0
    %3126 = vmatpush1.bf16.msra.mxu0 0
    %3127 = vmatprep.subr.bf16.mxu0 0
    %3128 = vmatpush1.bf16.msra.mxu0 0
    %3129 = vmatprep.subr.bf16.mxu0 0
    %3130 = vmatpush1.bf16.msra.mxu0 0
    %3131 = vmatprep.subr.bf16.mxu0 0
    %3132 = vmatpush1.bf16.msra.mxu0 0
    %3133 = vmatprep.mubr.bf16.mxu0 0
    %3134 = vmatmul.mubr.bf16.gmra.mrb[0].mxu0 %v3096
    %v3135 = vpop.f32.mrb[0].mxu0
    %v3136 = vadd.f32 0.0, %v3135
    %v3137 = vpop.f32.mrb[0].mxu0
    %v3138 = vpop.f32.mrb[0].mxu0
    %v3139 = vadd.f32 0.0, %v3138
    %v3140 = vpop.f32.mrb[0].mxu0
    %3141 = vdwg.mxu0
    %v3143 = vsel %vm2905, %v2878, 0
    %v3146 = vsel %vm2909, %v2898, 0
    %3148 = vmatprep.subr.bf16.mxu0 0
    %3149 = vmatpush1.bf16.msra.mxu0 %v2896
    %3150 = vmatprep.subr.bf16.mxu0 0
    %3151 = vmatpush1.bf16.msra.mxu0 %v2897
    %3152 = vmatprep.subr.bf16.mxu0 0
    %3153 = vmatpush1.bf16.msra.mxu0 %v3146
    %3154 = vmatprep.subr.bf16.mxu0 0
    %3155 = vmatpush1.bf16.msra.mxu0 0
    %3156 = vmatprep.subr.bf16.mxu0 0
    %3157 = vmatpush1.bf16.msra.mxu0 0
    %3158 = vmatprep.subr.bf16.mxu0 0
    %3159 = vmatpush1.bf16.msra.mxu0 0
    %3160 = vmatprep.subr.bf16.mxu0 0
    %3161 = vmatpush1.bf16.msra.mxu0 0
    %3162 = vmatprep.subr.bf16.mxu0 0
    %3163 = vmatpush1.bf16.msra.mxu0 0
    %3164 = vmatprep.subr.bf16.mxu0 0
    %3165 = vmatpush1.bf16.msra.mxu0 0
    %3166 = vmatprep.subr.bf16.mxu0 0
    %3167 = vmatpush1.bf16.msra.mxu0 0
    %3168 = vmatprep.subr.bf16.mxu0 0
    %3169 = vmatpush1.bf16.msra.mxu0 0
    %3170 = vmatprep.subr.bf16.mxu0 0
    %3171 = vmatpush1.bf16.msra.mxu0 0
    %3172 = vmatprep.subr.bf16.mxu0 0
    %3173 = vmatpush1.bf16.msra.mxu0 0
    %3174 = vmatprep.subr.bf16.mxu0 0
    %3175 = vmatpush1.bf16.msra.mxu0 0
    %3176 = vmatprep.subr.bf16.mxu0 0
    %3177 = vmatpush1.bf16.msra.mxu0 0
    %3178 = vmatprep.subr.bf16.mxu0 0
    %3179 = vmatpush1.bf16.msra.mxu0 0
    %3180 = vmatprep.mubr.bf16.mxu0 0
    %3181 = vmatmul.mubr.bf16.gmra.mrb[0].mxu0 %v3143
    %v3182 = vpop.f32.mrb[0].mxu0
    %v3183 = vadd.f32 0.0, %v3182
    %v3184 = vpop.f32.mrb[0].mxu0
    %v3185 = vpop.f32.mrb[0].mxu0
    %v3186 = vadd.f32 0.0, %v3185
    %v3187 = vpop.f32.mrb[0].mxu0
    %3188 = vdwg.mxu0
    %v3190 = vsel %vm2905, %v2879, 0
    %v3193 = vsel %vm2909, %v2901, 0
    %3195 = vmatprep.subr.bf16.mxu0 0
    %3196 = vmatpush1.bf16.msra.mxu0 %v2899
    %3197 = vmatprep.subr.bf16.mxu0 0
    %3198 = vmatpush1.bf16.msra.mxu0 %v2900
    %3199 = vmatprep.subr.bf16.mxu0 0
    %3200 = vmatpush1.bf16.msra.mxu0 %v3193
    %3201 = vmatprep.subr.bf16.mxu0 0
    %3202 = vmatpush1.bf16.msra.mxu0 0
    %3203 = vmatprep.subr.bf16.mxu0 0
    %3204 = vmatpush1.bf16.msra.mxu0 0
    %3205 = vmatprep.subr.bf16.mxu0 0
    %3206 = vmatpush1.bf16.msra.mxu0 0
    %3207 = vmatprep.subr.bf16.mxu0 0
    %3208 = vmatpush1.bf16.msra.mxu0 0
    %3209 = vmatprep.subr.bf16.mxu0 0
    %3210 = vmatpush1.bf16.msra.mxu0 0
    %3211 = vmatprep.subr.bf16.mxu0 0
    %3212 = vmatpush1.bf16.msra.mxu0 0
    %3213 = vmatprep.subr.bf16.mxu0 0
    %3214 = vmatpush1.bf16.msra.mxu0 0
    %3215 = vmatprep.subr.bf16.mxu0 0
    %3216 = vmatpush1.bf16.msra.mxu0 0
    %3217 = vmatprep.subr.bf16.mxu0 0
    %3218 = vmatpush1.bf16.msra.mxu0 0
    %3219 = vmatprep.subr.bf16.mxu0 0
    %3220 = vmatpush1.bf16.msra.mxu0 0
    %3221 = vmatprep.subr.bf16.mxu0 0
    %3222 = vmatpush1.bf16.msra.mxu0 0
    %3223 = vmatprep.subr.bf16.mxu0 0
    %3224 = vmatpush1.bf16.msra.mxu0 0
    %3225 = vmatprep.subr.bf16.mxu0 0
    %3226 = vmatpush1.bf16.msra.mxu0 0
    %3227 = vmatprep.mubr.bf16.mxu0 0
    %3228 = vmatmul.mubr.bf16.gmra.mrb[0].mxu0 %v3190
    %v3229 = vpop.f32.mrb[0].mxu0
    %v3230 = vadd.f32 0.0, %v3229
    %v3231 = vpop.f32.mrb[0].mxu0
    %v3232 = vpop.f32.mrb[0].mxu0
    %v3233 = vadd.f32 0.0, %v3232
    %v3234 = vpop.f32.mrb[0].mxu0
    %3235 = vdwg.mxu0
    %v3237 = vsel %vm2905, %v2880, 0
    %v3240 = vsel %vm2909, %v2904, 0
    %3242 = vmatprep.subr.bf16.mxu0 0
    %3243 = vmatpush1.bf16.msra.mxu0 %v2902
    %3244 = vmatprep.subr.bf16.mxu0 0
    %3245 = vmatpush1.bf16.msra.mxu0 %v2903
    %3246 = vmatprep.subr.bf16.mxu0 0
    %3247 = vmatpush1.bf16.msra.mxu0 %v3240
    %3248 = vmatprep.subr.bf16.mxu0 0
    %3249 = vmatpush1.bf16.msra.mxu0 0
    %3250 = vmatprep.subr.bf16.mxu0 0
    %3251 = vmatpush1.bf16.msra.mxu0 0
    %3252 = vmatprep.subr.bf16.mxu0 0
    %3253 = vmatpush1.bf16.msra.mxu0 0
    %3254 = vmatprep.subr.bf16.mxu0 0
    %3255 = vmatpush1.bf16.msra.mxu0 0
    %3256 = vmatprep.subr.bf16.mxu0 0
    %3257 = vmatpush1.bf16.msra.mxu0 0
    %3258 = vmatprep.subr.bf16.mxu0 0
    %3259 = vmatpush1.bf16.msra.mxu0 0
    %3260 = vmatprep.subr.bf16.mxu0 0
    %3261 = vmatpush1.bf16.msra.mxu0 0
    %3262 = vmatprep.subr.bf16.mxu0 0
    %3263 = vmatpush1.bf16.msra.mxu0 0
    %3264 = vmatprep.subr.bf16.mxu0 0
    %3265 = vmatpush1.bf16.msra.mxu0 0
    %3266 = vmatprep.subr.bf16.mxu0 0
    %3267 = vmatpush1.bf16.msra.mxu0 0
    %3268 = vmatprep.subr.bf16.mxu0 0
    %3269 = vmatpush1.bf16.msra.mxu0 0
    %3270 = vmatprep.subr.bf16.mxu0 0
    %3271 = vmatpush1.bf16.msra.mxu0 0
    %3272 = vmatprep.subr.bf16.mxu0 0
    %3273 = vmatpush1.bf16.msra.mxu0 0
    %3274 = vmatprep.mubr.bf16.mxu0 0
    %3275 = vmatmul.mubr.bf16.gmra.mrb[0].mxu0 %v3237
    %v3276 = vpop.f32.mrb[0].mxu0
    %v3277 = vadd.f32 0.0, %v3276
    %v3278 = vpop.f32.mrb[0].mxu0
    %v3279 = vpop.f32.mrb[0].mxu0
    %v3280 = vadd.f32 0.0, %v3279
    %v3281 = vpop.f32.mrb[0].mxu0
    %3282 = vdwg.mxu0
    %v3283 = vsel %vm1931, %v2948, -inf
    %3284 = vmax.xlane.f32.xlu0 %v3283
    %v3285 = vpop.xlane.xlu0 %3284
    %v3286 = vsel %vm1931, %v2951, -inf
    %3287 = vmax.xlane.f32.xlu0 %v3286
    %v3288 = vpop.xlane.xlu0 %3287
    %v3289 = vsel %vm1931, %v2995, -inf
    %3290 = vmax.xlane.f32.xlu0 %v3289
    %v3291 = vpop.xlane.xlu0 %3290
    %v3292 = vsel %vm1931, %v2998, -inf
    %3293 = vmax.xlane.f32.xlu0 %v3292
    %v3294 = vpop.xlane.xlu0 %3293
    %v3295 = vsel %vm1931, %v3042, -inf
    %3296 = vmax.xlane.f32.xlu0 %v3295
    %v3297 = vpop.xlane.xlu0 %3296
    %v3298 = vsel %vm1931, %v3045, -inf
    %3299 = vmax.xlane.f32.xlu0 %v3298
    %v3300 = vpop.xlane.xlu0 %3299
    %v3301 = vsel %vm1931, %v3089, -inf
    %3302 = vmax.xlane.f32.xlu0 %v3301
    %v3303 = vpop.xlane.xlu0 %3302
    %v3304 = vsel %vm1931, %v3092, -inf
    %3305 = vmax.xlane.f32.xlu0 %v3304
    %v3306 = vpop.xlane.xlu0 %3305
    %v3307 = vsel %vm1931, %v3136, -inf
    %3308 = vmax.xlane.f32.xlu0 %v3307
    %v3309 = vpop.xlane.xlu0 %3308
    %v3310 = vsel %vm1931, %v3139, -inf
    %3311 = vmax.xlane.f32.xlu0 %v3310
    %v3312 = vpop.xlane.xlu0 %3311
    %v3313 = vsel %vm1931, %v3183, -inf
    %3314 = vmax.xlane.f32.xlu0 %v3313
    %v3315 = vpop.xlane.xlu0 %3314
    %v3316 = vsel %vm1931, %v3186, -inf
    %3317 = vmax.xlane.f32.xlu0 %v3316
    %v3318 = vpop.xlane.xlu0 %3317
    %v3319 = vsel %vm1931, %v3230, -inf
    %3320 = vmax.xlane.f32.xlu0 %v3319
    %v3321 = vpop.xlane.xlu0 %3320
    %v3322 = vsel %vm1931, %v3233, -inf
    %3323 = vmax.xlane.f32.xlu0 %v3322
    %v3324 = vpop.xlane.xlu0 %3323
    %v3325 = vsel %vm1931, %v3277, -inf
    %3326 = vmax.xlane.f32.xlu0 %v3325
    %v3327 = vpop.xlane.xlu0 %3326
    %v3328 = vsel %vm1931, %v3280, -inf
    %3329 = vmax.xlane.f32.xlu0 %v3328
    %v3330 = vpop.xlane.xlu0 %3329
    %v3331 = vsub.f32 %v2948, %v3285
    %v3332 = vsub.f32 %v2951, %v3288
    %v3333 = vsub.f32 %v2995, %v3291
    %v3334 = vsub.f32 %v2998, %v3294
    %v3335 = vsub.f32 %v3042, %v3297
    %v3336 = vsub.f32 %v3045, %v3300
    %v3337 = vsub.f32 %v3089, %v3303
    %v3338 = vsub.f32 %v3092, %v3306
    %v3339 = vsub.f32 %v3136, %v3309
    %v3340 = vsub.f32 %v3139, %v3312
    %v3341 = vsub.f32 %v3183, %v3315
    %v3342 = vsub.f32 %v3186, %v3318
    %v3343 = vsub.f32 %v3230, %v3321
    %v3344 = vsub.f32 %v3233, %v3324
    %v3345 = vsub.f32 %v3277, %v3327
    %v3346 = vsub.f32 %v3280, %v3330
    %v3347 = vmul.f32 %v3331, 1.442695
    %v3348 = vpow.pop %v3347
    %v3349 = vmul.f32 %v3332, 1.442695
    %v3350 = vpow.pop %v3349
    %v3351 = vmul.f32 %v3333, 1.442695
    %v3352 = vpow.pop %v3351
    %v3353 = vmul.f32 %v3334, 1.442695
    %v3354 = vpow.pop %v3353
    %v3355 = vmul.f32 %v3335, 1.442695
    %v3356 = vpow.pop %v3355
    %v3357 = vmul.f32 %v3336, 1.442695
    %v3358 = vpow.pop %v3357
    %v3359 = vmul.f32 %v3337, 1.442695
    %v3360 = vpow.pop %v3359
    %v3361 = vmul.f32 %v3338, 1.442695
    %v3362 = vpow.pop %v3361
    %v3363 = vmul.f32 %v3339, 1.442695
    %v3364 = vpow.pop %v3363
    %v3365 = vmul.f32 %v3340, 1.442695
    %v3366 = vpow.pop %v3365
    %v3367 = vmul.f32 %v3341, 1.442695
    %v3368 = vpow.pop %v3367
    %v3369 = vmul.f32 %v3342, 1.442695
    %v3370 = vpow.pop %v3369
    %v3371 = vmul.f32 %v3343, 1.442695
    %v3372 = vpow.pop %v3371
    %v3373 = vmul.f32 %v3344, 1.442695
    %v3374 = vpow.pop %v3373
    %v3375 = vmul.f32 %v3345, 1.442695
    %v3376 = vpow.pop %v3375
    %v3377 = vmul.f32 %v3346, 1.442695
    %v3378 = vpow.pop %v3377
    %v3379 = vsel %vm1931, %v3348, 0.0
    %3380 = vadd.xlane.f32.xlu0 %v3379
    %v3381 = vpop.xlane.xlu0 %3380
    %v3382 = vsel %vm1931, %v3350, 0.0
    %3383 = vadd.xlane.f32.xlu0 %v3382
    %v3384 = vpop.xlane.xlu0 %3383
    %v3385 = vsel %vm1931, %v3352, 0.0
    %3386 = vadd.xlane.f32.xlu0 %v3385
    %v3387 = vpop.xlane.xlu0 %3386
    %v3388 = vsel %vm1931, %v3354, 0.0
    %3389 = vadd.xlane.f32.xlu0 %v3388
    %v3390 = vpop.xlane.xlu0 %3389
    %v3391 = vsel %vm1931, %v3356, 0.0
    %3392 = vadd.xlane.f32.xlu0 %v3391
    %v3393 = vpop.xlane.xlu0 %3392
    %v3394 = vsel %vm1931, %v3358, 0.0
    %3395 = vadd.xlane.f32.xlu0 %v3394
    %v3396 = vpop.xlane.xlu0 %3395
    %v3397 = vsel %vm1931, %v3360, 0.0
    %3398 = vadd.xlane.f32.xlu0 %v3397
    %v3399 = vpop.xlane.xlu0 %3398
    %v3400 = vsel %vm1931, %v3362, 0.0
    %3401 = vadd.xlane.f32.xlu0 %v3400
    %v3402 = vpop.xlane.xlu0 %3401
    %v3403 = vsel %vm1931, %v3364, 0.0
    %3404 = vadd.xlane.f32.xlu0 %v3403
    %v3405 = vpop.xlane.xlu0 %3404
    %v3406 = vsel %vm1931, %v3366, 0.0
    %3407 = vadd.xlane.f32.xlu0 %v3406
    %v3408 = vpop.xlane.xlu0 %3407
    %v3409 = vsel %vm1931, %v3368, 0.0
    %3410 = vadd.xlane.f32.xlu0 %v3409
    %v3411 = vpop.xlane.xlu0 %3410
    %v3412 = vsel %vm1931, %v3370, 0.0
    %3413 = vadd.xlane.f32.xlu0 %v3412
    %v3414 = vpop.xlane.xlu0 %3413
    %v3415 = vsel %vm1931, %v3372, 0.0
    %3416 = vadd.xlane.f32.xlu0 %v3415
    %v3417 = vpop.xlane.xlu0 %3416
    %v3418 = vsel %vm1931, %v3374, 0.0
    %3419 = vadd.xlane.f32.xlu0 %v3418
    %v3420 = vpop.xlane.xlu0 %3419
    %v3421 = vsel %vm1931, %v3376, 0.0
    %3422 = vadd.xlane.f32.xlu0 %v3421
    %v3423 = vpop.xlane.xlu0 %3422
    %v3424 = vsel %vm1931, %v3378, 0.0
    %3425 = vadd.xlane.f32.xlu0 %v3424
    %v3426 = vpop.xlane.xlu0 %3425
    %v3427 = vrcp.pop %v3381
    %v3428 = vrcp.pop %v3384
    %v3429 = vrcp.pop %v3387
    %v3430 = vrcp.pop %v3390
    %v3431 = vrcp.pop %v3393
    %v3432 = vrcp.pop %v3396
    %v3433 = vrcp.pop %v3399
    %v3434 = vrcp.pop %v3402
    %v3435 = vrcp.pop %v3405
    %v3436 = vrcp.pop %v3408
    %v3437 = vrcp.pop %v3411
    %v3438 = vrcp.pop %v3414
    %v3439 = vrcp.pop %v3417
    %v3440 = vrcp.pop %v3420
    %v3441 = vrcp.pop %v3423
    %v3442 = vrcp.pop %v3426
    %v3443 = vmul.f32 %v3348, %v3427
    %v3444 = vmul.f32 %v3350, %v3428
    %v3445 = vmul.f32 %v3352, %v3429
    %v3446 = vmul.f32 %v3354, %v3430
    %v3447 = vmul.f32 %v3356, %v3431
    %v3448 = vmul.f32 %v3358, %v3432
    %v3449 = vmul.f32 %v3360, %v3433
    %v3450 = vmul.f32 %v3362, %v3434
    %v3451 = vmul.f32 %v3364, %v3435
    %v3452 = vmul.f32 %v3366, %v3436
    %v3453 = vmul.f32 %v3368, %v3437
    %v3454 = vmul.f32 %v3370, %v3438
    %v3455 = vmul.f32 %v3372, %v3439
    %v3456 = vmul.f32 %v3374, %v3440
    %v3457 = vmul.f32 %v3376, %v3441
    %v3458 = vmul.f32 %v3378, %v3442
    %v3459 = vpack.c.bf16 %v3444, %v3443
    %v3460 = vpack.c.bf16 %v3446, %v3445
    %v3461 = vpack.c.bf16 %v3448, %v3447
    %v3462 = vpack.c.bf16 %v3450, %v3449
    %v3463 = vpack.c.bf16 %v3452, %v3451
    %v3464 = vpack.c.bf16 %v3454, %v3453
    %v3465 = vpack.c.bf16 %v3456, %v3455
    %v3466 = vpack.c.bf16 %v3458, %v3457
    %3467 = vrot.lane.b32.xlu0 %v1836, 64
    %v3468 = vpop.permute.xlu0 %3467
    %v3471 = vsel %vm1931, %v3459, 0
    %3473 = vmatprep.subr.bf16.mxu0 0
    %3474 = vmatpush1.bf16.msra.mxu0 %v3468
    %3475 = vmatprep.subr.bf16.mxu0 0
    %3476 = vmatpush1.bf16.msra.mxu0 0
    %3477 = vmatprep.subr.bf16.mxu0 0
    %3478 = vmatpush1.bf16.msra.mxu0 0
    %3479 = vmatprep.subr.bf16.mxu0 0
    %3480 = vmatpush1.bf16.msra.mxu0 0
    %3481 = vmatprep.subr.bf16.mxu0 0
    %3482 = vmatpush1.bf16.msra.mxu0 0
    %3483 = vmatprep.subr.bf16.mxu0 0
    %3484 = vmatpush1.bf16.msra.mxu0 0
    %3485 = vmatprep.subr.bf16.mxu0 0
    %3486 = vmatpush1.bf16.msra.mxu0 0
    %3487 = vmatprep.subr.bf16.mxu0 0
    %3488 = vmatpush1.bf16.msra.mxu0 0
    %3489 = vmatprep.subr.bf16.mxu0 0
    %3490 = vmatpush1.bf16.msra.mxu0 0
    %3491 = vmatprep.subr.bf16.mxu0 0
    %3492 = vmatpush1.bf16.msra.mxu0 0
    %3493 = vmatprep.subr.bf16.mxu0 0
    %3494 = vmatpush1.bf16.msra.mxu0 0
    %3495 = vmatprep.subr.bf16.mxu0 0
    %3496 = vmatpush1.bf16.msra.mxu0 0
    %3497 = vmatprep.subr.bf16.mxu0 0
    %3498 = vmatpush1.bf16.msra.mxu0 0
    %3499 = vmatprep.subr.bf16.mxu0 0
    %3500 = vmatpush1.bf16.msra.mxu0 0
    %3501 = vmatprep.subr.bf16.mxu0 0
    %3502 = vmatpush1.bf16.msra.mxu0 0
    %3503 = vmatprep.subr.bf16.mxu0 0
    %3504 = vmatpush1.bf16.msra.mxu0 0
    %3505 = vmatprep.mubr.bf16.mxu0 0
    %3506 = vmatmul.mubr.bf16.gmra.mrb[0].mxu0 %v3471
    %v3507 = vpop.f32.mrb[0].mxu0
    %v3508 = vadd.f32 0.0, %v3507
    %v3509 = vpop.f32.mrb[0].mxu0
    %v3510 = vpop.f32.mrb[0].mxu0
    %v3511 = vadd.f32 0.0, %v3510
    %v3512 = vpop.f32.mrb[0].mxu0
    %3513 = vdwg.mxu0
    %3514 = vrot.lane.b32.xlu0 %v1837, 64
    %v3515 = vpop.permute.xlu0 %3514
    %v3518 = vsel %vm1931, %v3460, 0
    %3520 = vmatprep.subr.bf16.mxu0 0
    %3521 = vmatpush1.bf16.msra.mxu0 %v3515
    %3522 = vmatprep.subr.bf16.mxu0 0
    %3523 = vmatpush1.bf16.msra.mxu0 0
    %3524 = vmatprep.subr.bf16.mxu0 0
    %3525 = vmatpush1.bf16.msra.mxu0 0
    %3526 = vmatprep.subr.bf16.mxu0 0
    %3527 = vmatpush1.bf16.msra.mxu0 0
    %3528 = vmatprep.subr.bf16.mxu0 0
    %3529 = vmatpush1.bf16.msra.mxu0 0
    %3530 = vmatprep.subr.bf16.mxu0 0
    %3531 = vmatpush1.bf16.msra.mxu0 0
    %3532 = vmatprep.subr.bf16.mxu0 0
    %3533 = vmatpush1.bf16.msra.mxu0 0
    %3534 = vmatprep.subr.bf16.mxu0 0
    %3535 = vmatpush1.bf16.msra.mxu0 0
    %3536 = vmatprep.subr.bf16.mxu0 0
    %3537 = vmatpush1.bf16.msra.mxu0 0
    %3538 = vmatprep.subr.bf16.mxu0 0
    %3539 = vmatpush1.bf16.msra.mxu0 0
    %3540 = vmatprep.subr.bf16.mxu0 0
    %3541 = vmatpush1.bf16.msra.mxu0 0
    %3542 = vmatprep.subr.bf16.mxu0 0
    %3543 = vmatpush1.bf16.msra.mxu0 0
    %3544 = vmatprep.subr.bf16.mxu0 0
    %3545 = vmatpush1.bf16.msra.mxu0 0
    %3546 = vmatprep.subr.bf16.mxu0 0
    %3547 = vmatpush1.bf16.msra.mxu0 0
    %3548 = vmatprep.subr.bf16.mxu0 0
    %3549 = vmatpush1.bf16.msra.mxu0 0
    %3550 = vmatprep.subr.bf16.mxu0 0
    %3551 = vmatpush1.bf16.msra.mxu0 0
    %3552 = vmatprep.mubr.bf16.mxu0 0
    %3553 = vmatmul.mubr.bf16.gmra.mrb[0].mxu0 %v3518
    %v3554 = vpop.f32.mrb[0].mxu0
    %v3555 = vadd.f32 0.0, %v3554
    %v3556 = vpop.f32.mrb[0].mxu0
    %v3557 = vpop.f32.mrb[0].mxu0
    %v3558 = vadd.f32 0.0, %v3557
    %v3559 = vpop.f32.mrb[0].mxu0
    %3560 = vdwg.mxu0
    %3561 = vrot.lane.b32.xlu0 %v1838, 64
    %v3562 = vpop.permute.xlu0 %3561
    %v3565 = vsel %vm1931, %v3461, 0
    %3567 = vmatprep.subr.bf16.mxu0 0
    %3568 = vmatpush1.bf16.msra.mxu0 %v3562
    %3569 = vmatprep.subr.bf16.mxu0 0
    %3570 = vmatpush1.bf16.msra.mxu0 0
    %3571 = vmatprep.subr.bf16.mxu0 0
    %3572 = vmatpush1.bf16.msra.mxu0 0
    %3573 = vmatprep.subr.bf16.mxu0 0
    %3574 = vmatpush1.bf16.msra.mxu0 0
    %3575 = vmatprep.subr.bf16.mxu0 0
    %3576 = vmatpush1.bf16.msra.mxu0 0
    %3577 = vmatprep.subr.bf16.mxu0 0
    %3578 = vmatpush1.bf16.msra.mxu0 0
    %3579 = vmatprep.subr.bf16.mxu0 0
    %3580 = vmatpush1.bf16.msra.mxu0 0
    %3581 = vmatprep.subr.bf16.mxu0 0
    %3582 = vmatpush1.bf16.msra.mxu0 0
    %3583 = vmatprep.subr.bf16.mxu0 0
    %3584 = vmatpush1.bf16.msra.mxu0 0
    %3585 = vmatprep.subr.bf16.mxu0 0
    %3586 = vmatpush1.bf16.msra.mxu0 0
    %3587 = vmatprep.subr.bf16.mxu0 0
    %3588 = vmatpush1.bf16.msra.mxu0 0
    %3589 = vmatprep.subr.bf16.mxu0 0
    %3590 = vmatpush1.bf16.msra.mxu0 0
    %3591 = vmatprep.subr.bf16.mxu0 0
    %3592 = vmatpush1.bf16.msra.mxu0 0
    %3593 = vmatprep.subr.bf16.mxu0 0
    %3594 = vmatpush1.bf16.msra.mxu0 0
    %3595 = vmatprep.subr.bf16.mxu0 0
    %3596 = vmatpush1.bf16.msra.mxu0 0
    %3597 = vmatprep.subr.bf16.mxu0 0
    %3598 = vmatpush1.bf16.msra.mxu0 0
    %3599 = vmatprep.mubr.bf16.mxu0 0
    %3600 = vmatmul.mubr.bf16.gmra.mrb[0].mxu0 %v3565
    %v3601 = vpop.f32.mrb[0].mxu0
    %v3602 = vadd.f32 0.0, %v3601
    %v3603 = vpop.f32.mrb[0].mxu0
    %v3604 = vpop.f32.mrb[0].mxu0
    %v3605 = vadd.f32 0.0, %v3604
    %v3606 = vpop.f32.mrb[0].mxu0
    %3607 = vdwg.mxu0
    %3608 = vrot.lane.b32.xlu0 %v1839, 64
    %v3609 = vpop.permute.xlu0 %3608
    %v3612 = vsel %vm1931, %v3462, 0
    %3614 = vmatprep.subr.bf16.mxu0 0
    %3615 = vmatpush1.bf16.msra.mxu0 %v3609
    %3616 = vmatprep.subr.bf16.mxu0 0
    %3617 = vmatpush1.bf16.msra.mxu0 0
    %3618 = vmatprep.subr.bf16.mxu0 0
    %3619 = vmatpush1.bf16.msra.mxu0 0
    %3620 = vmatprep.subr.bf16.mxu0 0
    %3621 = vmatpush1.bf16.msra.mxu0 0
    %3622 = vmatprep.subr.bf16.mxu0 0
    %3623 = vmatpush1.bf16.msra.mxu0 0
    %3624 = vmatprep.subr.bf16.mxu0 0
    %3625 = vmatpush1.bf16.msra.mxu0 0
    %3626 = vmatprep.subr.bf16.mxu0 0
    %3627 = vmatpush1.bf16.msra.mxu0 0
    %3628 = vmatprep.subr.bf16.mxu0 0
    %3629 = vmatpush1.bf16.msra.mxu0 0
    %3630 = vmatprep.subr.bf16.mxu0 0
    %3631 = vmatpush1.bf16.msra.mxu0 0
    %3632 = vmatprep.subr.bf16.mxu0 0
    %3633 = vmatpush1.bf16.msra.mxu0 0
    %3634 = vmatprep.subr.bf16.mxu0 0
    %3635 = vmatpush1.bf16.msra.mxu0 0
    %3636 = vmatprep.subr.bf16.mxu0 0
    %3637 = vmatpush1.bf16.msra.mxu0 0
    %3638 = vmatprep.subr.bf16.mxu0 0
    %3639 = vmatpush1.bf16.msra.mxu0 0
    %3640 = vmatprep.subr.bf16.mxu0 0
    %3641 = vmatpush1.bf16.msra.mxu0 0
    %3642 = vmatprep.subr.bf16.mxu0 0
    %3643 = vmatpush1.bf16.msra.mxu0 0
    %3644 = vmatprep.subr.bf16.mxu0 0
    %3645 = vmatpush1.bf16.msra.mxu0 0
    %3646 = vmatprep.mubr.bf16.mxu0 0
    %3647 = vmatmul.mubr.bf16.gmra.mrb[0].mxu0 %v3612
    %v3648 = vpop.f32.mrb[0].mxu0
    %v3649 = vadd.f32 0.0, %v3648
    %v3650 = vpop.f32.mrb[0].mxu0
    %v3651 = vpop.f32.mrb[0].mxu0
    %v3652 = vadd.f32 0.0, %v3651
    %v3653 = vpop.f32.mrb[0].mxu0
    %3654 = vdwg.mxu0
    %3655 = vrot.lane.b32.xlu0 %v1840, 64
    %v3656 = vpop.permute.xlu0 %3655
    %v3659 = vsel %vm1931, %v3463, 0
    %3661 = vmatprep.subr.bf16.mxu0 0
    %3662 = vmatpush1.bf16.msra.mxu0 %v3656
    %3663 = vmatprep.subr.bf16.mxu0 0
    %3664 = vmatpush1.bf16.msra.mxu0 0
    %3665 = vmatprep.subr.bf16.mxu0 0
    %3666 = vmatpush1.bf16.msra.mxu0 0
    %3667 = vmatprep.subr.bf16.mxu0 0
    %3668 = vmatpush1.bf16.msra.mxu0 0
    %3669 = vmatprep.subr.bf16.mxu0 0
    %3670 = vmatpush1.bf16.msra.mxu0 0
    %3671 = vmatprep.subr.bf16.mxu0 0
    %3672 = vmatpush1.bf16.msra.mxu0 0
    %3673 = vmatprep.subr.bf16.mxu0 0
    %3674 = vmatpush1.bf16.msra.mxu0 0
    %3675 = vmatprep.subr.bf16.mxu0 0
    %3676 = vmatpush1.bf16.msra.mxu0 0
    %3677 = vmatprep.subr.bf16.mxu0 0
    %3678 = vmatpush1.bf16.msra.mxu0 0
    %3679 = vmatprep.subr.bf16.mxu0 0
    %3680 = vmatpush1.bf16.msra.mxu0 0
    %3681 = vmatprep.subr.bf16.mxu0 0
    %3682 = vmatpush1.bf16.msra.mxu0 0
    %3683 = vmatprep.subr.bf16.mxu0 0
    %3684 = vmatpush1.bf16.msra.mxu0 0
    %3685 = vmatprep.subr.bf16.mxu0 0
    %3686 = vmatpush1.bf16.msra.mxu0 0
    %3687 = vmatprep.subr.bf16.mxu0 0
    %3688 = vmatpush1.bf16.msra.mxu0 0
    %3689 = vmatprep.subr.bf16.mxu0 0
    %3690 = vmatpush1.bf16.msra.mxu0 0
    %3691 = vmatprep.subr.bf16.mxu0 0
    %3692 = vmatpush1.bf16.msra.mxu0 0
    %3693 = vmatprep.mubr.bf16.mxu0 0
    %3694 = vmatmul.mubr.bf16.gmra.mrb[0].mxu0 %v3659
    %v3695 = vpop.f32.mrb[0].mxu0
    %v3696 = vadd.f32 0.0, %v3695
    %v3697 = vpop.f32.mrb[0].mxu0
    %v3698 = vpop.f32.mrb[0].mxu0
    %v3699 = vadd.f32 0.0, %v3698
    %v3700 = vpop.f32.mrb[0].mxu0
    %3701 = vdwg.mxu0
    %3702 = vrot.lane.b32.xlu0 %v1841, 64
    %v3703 = vpop.permute.xlu0 %3702
    %v3706 = vsel %vm1931, %v3464, 0
    %3708 = vmatprep.subr.bf16.mxu0 0
    %3709 = vmatpush1.bf16.msra.mxu0 %v3703
    %3710 = vmatprep.subr.bf16.mxu0 0
    %3711 = vmatpush1.bf16.msra.mxu0 0
    %3712 = vmatprep.subr.bf16.mxu0 0
    %3713 = vmatpush1.bf16.msra.mxu0 0
    %3714 = vmatprep.subr.bf16.mxu0 0
    %3715 = vmatpush1.bf16.msra.mxu0 0
    %3716 = vmatprep.subr.bf16.mxu0 0
    %3717 = vmatpush1.bf16.msra.mxu0 0
    %3718 = vmatprep.subr.bf16.mxu0 0
    %3719 = vmatpush1.bf16.msra.mxu0 0
    %3720 = vmatprep.subr.bf16.mxu0 0
    %3721 = vmatpush1.bf16.msra.mxu0 0
    %3722 = vmatprep.subr.bf16.mxu0 0
    %3723 = vmatpush1.bf16.msra.mxu0 0
    %3724 = vmatprep.subr.bf16.mxu0 0
    %3725 = vmatpush1.bf16.msra.mxu0 0
    %3726 = vmatprep.subr.bf16.mxu0 0
    %3727 = vmatpush1.bf16.msra.mxu0 0
    %3728 = vmatprep.subr.bf16.mxu0 0
    %3729 = vmatpush1.bf16.msra.mxu0 0
    %3730 = vmatprep.subr.bf16.mxu0 0
    %3731 = vmatpush1.bf16.msra.mxu0 0
    %3732 = vmatprep.subr.bf16.mxu0 0
    %3733 = vmatpush1.bf16.msra.mxu0 0
    %3734 = vmatprep.subr.bf16.mxu0 0
    %3735 = vmatpush1.bf16.msra.mxu0 0
    %3736 = vmatprep.subr.bf16.mxu0 0
    %3737 = vmatpush1.bf16.msra.mxu0 0
    %3738 = vmatprep.subr.bf16.mxu0 0
    %3739 = vmatpush1.bf16.msra.mxu0 0
    %3740 = vmatprep.mubr.bf16.mxu0 0
    %3741 = vmatmul.mubr.bf16.gmra.mrb[0].mxu0 %v3706
    %v3742 = vpop.f32.mrb[0].mxu0
    %v3743 = vadd.f32 0.0, %v3742
    %v3744 = vpop.f32.mrb[0].mxu0
    %v3745 = vpop.f32.mrb[0].mxu0
    %v3746 = vadd.f32 0.0, %v3745
    %v3747 = vpop.f32.mrb[0].mxu0
    %3748 = vdwg.mxu0
    %3749 = vrot.lane.b32.xlu0 %v1842, 64
    %v3750 = vpop.permute.xlu0 %3749
    %v3753 = vsel %vm1931, %v3465, 0
    %3755 = vmatprep.subr.bf16.mxu0 0
    %3756 = vmatpush1.bf16.msra.mxu0 %v3750
    %3757 = vmatprep.subr.bf16.mxu0 0
    %3758 = vmatpush1.bf16.msra.mxu0 0
    %3759 = vmatprep.subr.bf16.mxu0 0
    %3760 = vmatpush1.bf16.msra.mxu0 0
    %3761 = vmatprep.subr.bf16.mxu0 0
    %3762 = vmatpush1.bf16.msra.mxu0 0
    %3763 = vmatprep.subr.bf16.mxu0 0
    %3764 = vmatpush1.bf16.msra.mxu0 0
    %3765 = vmatprep.subr.bf16.mxu0 0
    %3766 = vmatpush1.bf16.msra.mxu0 0
    %3767 = vmatprep.subr.bf16.mxu0 0
    %3768 = vmatpush1.bf16.msra.mxu0 0
    %3769 = vmatprep.subr.bf16.mxu0 0
    %3770 = vmatpush1.bf16.msra.mxu0 0
    %3771 = vmatprep.subr.bf16.mxu0 0
    %3772 = vmatpush1.bf16.msra.mxu0 0
    %3773 = vmatprep.subr.bf16.mxu0 0
    %3774 = vmatpush1.bf16.msra.mxu0 0
    %3775 = vmatprep.subr.bf16.mxu0 0
    %3776 = vmatpush1.bf16.msra.mxu0 0
    %3777 = vmatprep.subr.bf16.mxu0 0
    %3778 = vmatpush1.bf16.msra.mxu0 0
    %3779 = vmatprep.subr.bf16.mxu0 0
    %3780 = vmatpush1.bf16.msra.mxu0 0
    %3781 = vmatprep.subr.bf16.mxu0 0
    %3782 = vmatpush1.bf16.msra.mxu0 0
    %3783 = vmatprep.subr.bf16.mxu0 0
    %3784 = vmatpush1.bf16.msra.mxu0 0
    %3785 = vmatprep.subr.bf16.mxu0 0
    %3786 = vmatpush1.bf16.msra.mxu0 0
    %3787 = vmatprep.mubr.bf16.mxu0 0
    %3788 = vmatmul.mubr.bf16.gmra.mrb[0].mxu0 %v3753
    %v3789 = vpop.f32.mrb[0].mxu0
    %v3790 = vadd.f32 0.0, %v3789
    %v3791 = vpop.f32.mrb[0].mxu0
    %v3792 = vpop.f32.mrb[0].mxu0
    %v3793 = vadd.f32 0.0, %v3792
    %v3794 = vpop.f32.mrb[0].mxu0
    %3795 = vdwg.mxu0
    %3796 = vrot.lane.b32.xlu0 %v1843, 64
    %v3797 = vpop.permute.xlu0 %3796
    %v3800 = vsel %vm1931, %v3466, 0
    %3802 = vmatprep.subr.bf16.mxu0 0
    %3803 = vmatpush1.bf16.msra.mxu0 %v3797
    %3804 = vmatprep.subr.bf16.mxu0 0
    %3805 = vmatpush1.bf16.msra.mxu0 0
    %3806 = vmatprep.subr.bf16.mxu0 0
    %3807 = vmatpush1.bf16.msra.mxu0 0
    %3808 = vmatprep.subr.bf16.mxu0 0
    %3809 = vmatpush1.bf16.msra.mxu0 0
    %3810 = vmatprep.subr.bf16.mxu0 0
    %3811 = vmatpush1.bf16.msra.mxu0 0
    %3812 = vmatprep.subr.bf16.mxu0 0
    %3813 = vmatpush1.bf16.msra.mxu0 0
    %3814 = vmatprep.subr.bf16.mxu0 0
    %3815 = vmatpush1.bf16.msra.mxu0 0
    %3816 = vmatprep.subr.bf16.mxu0 0
    %3817 = vmatpush1.bf16.msra.mxu0 0
    %3818 = vmatprep.subr.bf16.mxu0 0
    %3819 = vmatpush1.bf16.msra.mxu0 0
    %3820 = vmatprep.subr.bf16.mxu0 0
    %3821 = vmatpush1.bf16.msra.mxu0 0
    %3822 = vmatprep.subr.bf16.mxu0 0
    %3823 = vmatpush1.bf16.msra.mxu0 0
    %3824 = vmatprep.subr.bf16.mxu0 0
    %3825 = vmatpush1.bf16.msra.mxu0 0
    %3826 = vmatprep.subr.bf16.mxu0 0
    %3827 = vmatpush1.bf16.msra.mxu0 0
    %3828 = vmatprep.subr.bf16.mxu0 0
    %3829 = vmatpush1.bf16.msra.mxu0 0
    %3830 = vmatprep.subr.bf16.mxu0 0
    %3831 = vmatpush1.bf16.msra.mxu0 0
    %3832 = vmatprep.subr.bf16.mxu0 0
    %3833 = vmatpush1.bf16.msra.mxu0 0
    %3834 = vmatprep.mubr.bf16.mxu0 0
    %3835 = vmatmul.mubr.bf16.gmra.mrb[0].mxu0 %v3800
    %v3836 = vpop.f32.mrb[0].mxu0
    %v3837 = vadd.f32 0.0, %v3836
    %v3838 = vpop.f32.mrb[0].mxu0
    %v3839 = vpop.f32.mrb[0].mxu0
    %v3840 = vadd.f32 0.0, %v3839
    %v3841 = vpop.f32.mrb[0].mxu0
    %3842 = vdwg.mxu0
    %v3843 = vpack.c.bf16 %v3511, %v3508
    %v3844 = vpack.c.bf16 %v3558, %v3555
    %v3845 = vpack.c.bf16 %v3605, %v3602
    %v3846 = vpack.c.bf16 %v3652, %v3649
    %v3847 = vpack.c.bf16 %v3699, %v3696
    %v3848 = vpack.c.bf16 %v3746, %v3743
    %v3849 = vpack.c.bf16 %v3793, %v3790
    %v3850 = vpack.c.bf16 %v3840, %v3837
    %3851 = vst.msk [vmem:[#allocation4] sm:$0xff] %vm1931, %v3843
    %3852 = vst.msk [vmem:[#allocation4 + $0x8] sm:$0xff] %vm1931, %v3844
    %3853 = vst.msk [vmem:[#allocation4 + $0x10] sm:$0xff] %vm1931, %v3845
    %3854 = vst.msk [vmem:[#allocation4 + $0x18] sm:$0xff] %vm1931, %v3846
    %3855 = vst.msk [vmem:[#allocation4 + $0x20] sm:$0xff] %vm1931, %v3847
    %3856 = vst.msk [vmem:[#allocation4 + $0x28] sm:$0xff] %vm1931, %v3848
    %3857 = vst.msk [vmem:[#allocation4 + $0x30] sm:$0xff] %vm1931, %v3849
    %3858 = vst.msk [vmem:[#allocation4 + $0x38] sm:$0xff] %vm1931, %v3850
    %v3859 = vld [vmem:[#allocation2] sm:$0xff]
    %v3860 = vld [vmem:[#allocation2 + $0x8] sm:$0xff]
    %v3861 = vld [vmem:[#allocation2 + $0x10] sm:$0xff]
    %v3862 = vld [vmem:[#allocation2 + $0x18] sm:$0xff]
    %v3863 = vld [vmem:[#allocation2 + $0x20] sm:$0xff]
    %v3864 = vld [vmem:[#allocation2 + $0x28] sm:$0xff]
    %v3865 = vld [vmem:[#allocation2 + $0x30] sm:$0xff]
    %v3866 = vld [vmem:[#allocation2 + $0x38] sm:$0xff]
    %v3867 = vld [vmem:[#allocation3] sm:$0xff]
    %v3868 = vld [vmem:[#allocation3 + $0x8] sm:$0xff]
    %v3869 = vld [vmem:[#allocation3 + $0x10] sm:$0xff]
    %v3870 = vld [vmem:[#allocation3 + $0x18] sm:$0xff]
    %v3871 = vld [vmem:[#allocation3 + $0x20] sm:$0xff]
    %v3872 = vld [vmem:[#allocation3 + $0x28] sm:$0xff]
    %v3873 = vld [vmem:[#allocation3 + $0x30] sm:$0xff]
    %v3874 = vld [vmem:[#allocation3 + $0x38] sm:$0xff]
    %v3875 = vld [vmem:[#allocation3 + $0x40] sm:$0xff]
    %v3876 = vld [vmem:[#allocation3 + $0x48] sm:$0xff]
    %v3877 = vld [vmem:[#allocation3 + $0x50] sm:$0xff]
    %v3878 = vld [vmem:[#allocation3 + $0x58] sm:$0xff]
    %v3879 = vld [vmem:[#allocation3 + $0x60] sm:$0xff]
    %v3880 = vld [vmem:[#allocation3 + $0x68] sm:$0xff]
    %v3881 = vld [vmem:[#allocation3 + $0x70] sm:$0xff]
    %v3882 = vld [vmem:[#allocation3 + $0x78] sm:$0xff]
    %v3883 = vld [vmem:[#allocation3 + $0x80] sm:$0xff]
    %v3884 = vld [vmem:[#allocation3 + $0x88] sm:$0xff]
    %v3885 = vld [vmem:[#allocation3 + $0x90] sm:$0xff]
    %v3886 = vld [vmem:[#allocation3 + $0x98] sm:$0xff]
    %v3907 = vunpack.c.l.b16 %v3867
    %v3908 = vunpack.c.h.b16 %v3867
    %v3909 = vunpack.c.l.b16 %v3868
    %v3910 = vunpack.c.h.b16 %v3868
    %v3911 = vunpack.c.l.b16 %v3869
    %v3912 = vunpack.c.h.b16 %v3869
    %v3913 = vunpack.c.l.b16 %v3870
    %v3914 = vunpack.c.h.b16 %v3870
    %v3915 = vunpack.c.l.b16 %v3871
    %v3916 = vunpack.c.h.b16 %v3871
    %v3917 = vunpack.c.l.b16 %v3872
    %v3918 = vunpack.c.h.b16 %v3872
    %v3919 = vunpack.c.l.b16 %v3873
    %v3920 = vunpack.c.h.b16 %v3873
    %v3921 = vunpack.c.l.b16 %v3874
    %v3922 = vunpack.c.h.b16 %v3874
    %v3923 = vunpack.c.l.b16 %v3875
    %v3924 = vunpack.c.h.b16 %v3875
    %v3925 = vunpack.c.l.b16 %v3876
    %v3926 = vunpack.c.h.b16 %v3876
    %v3927 = vunpack.c.l.b16 %v3877
    %v3928 = vunpack.c.h.b16 %v3877
    %v3929 = vunpack.c.l.b16 %v3878
    %v3930 = vunpack.c.h.b16 %v3878
    %v3931 = vunpack.c.l.b16 %v3879
    %v3932 = vunpack.c.h.b16 %v3879
    %v3933 = vunpack.c.l.b16 %v3880
    %v3934 = vunpack.c.h.b16 %v3880
    %v3935 = vunpack.c.l.b16 %v3881
    %v3936 = vunpack.c.h.b16 %v3881
    %v3937 = vunpack.c.l.b16 %v3882
    %v3938 = vunpack.c.h.b16 %v3882
    %v3939 = vunpack.c.l.b16 %v3883
    %v3940 = vunpack.c.h.b16 %v3883
    %v3941 = vunpack.c.l.b16 %v3884
    %v3942 = vunpack.c.h.b16 %v3884
    %v3943 = vunpack.c.l.b16 %v3885
    %v3944 = vunpack.c.h.b16 %v3885
    %v3945 = vunpack.c.l.b16 %v3886
    %v3946 = vunpack.c.h.b16 %v3886
    %s3947 = scalar_lea.vmem %s11, 8
    %v3948 = vld [vmem:[%s3947] sm:$0xf]
    %v3949 = vld [vmem:[%s3947 + $0x4] sm:$0xf]
    %v3950 = vunpack.c.l.bf16 %v3948
    %v3951 = vunpack.c.l.bf16 %v3949
    %3953 = vrot.lane.b32.xlu0 %v3859, 112
    %v3954 = vpop.permute.xlu0 %3953
    %v3955 = vpack.c.b16 %v3908, %v3907
    %v3956 = vpack.c.b16 %v3910, %v3909
    %v3957 = vpack.c.b16 %v3911, %v3911
    %3958 = vrot.lane.b32.xlu0 %v3955, 112
    %v3959 = vpop.permute.xlu0 %3958
    %3960 = vrot.lane.b32.xlu0 %v3956, 112
    %v3961 = vpop.permute.xlu0 %3960
    %3962 = vrot.lane.b32.xlu0 %v3957, 112
    %v3963 = vpop.permute.xlu0 %3962
    %v3965 = vsel %vm1931, %v3954, 0
    %v3968 = vsel %vm1931, %v3959, 0
    %v3971 = vsel %vm1931, %v3961, 0
    %v3974 = vsel %vm1931, %v3963, 0
    %3976 = vmatprep.subr.bf16.mxu0 0
    %3977 = vmatpush1.bf16.xpose.msra.mxu0 %v3968
    %3978 = vmatprep.subr.bf16.mxu0 0
    %3979 = vmatpush1.bf16.xpose.msra.mxu0 %v3971
    %3980 = vmatprep.subr.bf16.mxu0 0
    %3981 = vmatpush1.bf16.xpose.msra.mxu0 %v3974
    %3982 = vmatprep.subr.bf16.mxu0 0
    %3983 = vmatpush1.bf16.xpose.msra.mxu0 0
    %3984 = vmatprep.subr.bf16.mxu0 0
    %3985 = vmatpush1.bf16.xpose.msra.mxu0 0
    %3986 = vmatprep.subr.bf16.mxu0 0
    %3987 = vmatpush1.bf16.xpose.msra.mxu0 0
    %3988 = vmatprep.subr.bf16.mxu0 0
    %3989 = vmatpush1.bf16.xpose.msra.mxu0 0
    %3990 = vmatprep.subr.bf16.mxu0 0
    %3991 = vmatpush1.bf16.xpose.msra.mxu0 0
    %3992 = vmatprep.subr.bf16.mxu0 0
    %3993 = vmatpush1.bf16.xpose.msra.mxu0 0
    %3994 = vmatprep.subr.bf16.mxu0 0
    %3995 = vmatpush1.bf16.xpose.msra.mxu0 0
    %3996 = vmatprep.subr.bf16.mxu0 0
    %3997 = vmatpush1.bf16.xpose.msra.mxu0 0
    %3998 = vmatprep.subr.bf16.mxu0 0
    %3999 = vmatpush1.bf16.xpose.msra.mxu0 0
    %4000 = vmatprep.subr.bf16.mxu0 0
    %4001 = vmatpush1.bf16.xpose.msra.mxu0 0
    %4002 = vmatprep.subr.bf16.mxu0 0
    %4003 = vmatpush1.bf16.xpose.msra.mxu0 0
    %4004 = vmatprep.subr.bf16.mxu0 0
    %4005 = vmatpush1.bf16.xpose.msra.mxu0 0
    %4006 = vmatprep.subr.bf16.mxu0 0
    %4007 = vmatpush1.bf16.xpose.msra.mxu0 0
    %4008 = vmatprep.mubr.bf16.mxu0 0
    %4009 = vmatmul.mubr.bf16.gmra.mrb[0].mxu0 %v3965
    %v4010 = vpop.f32.mrb[0].mxu0
    %v4011 = vadd.f32 %v3950, %v4010
    %v4012 = vpop.f32.mrb[0].mxu0
    %v4013 = vpop.f32.mrb[0].mxu0
    %v4014 = vadd.f32 %v3951, %v4013
    %v4015 = vpop.f32.mrb[0].mxu0
    %4016 = vdwg.mxu0
    %4018 = vrot.lane.b32.xlu0 %v3860, 112
    %v4019 = vpop.permute.xlu0 %4018
    %v4020 = vpack.c.b16 %v3913, %v3912
    %v4021 = vpack.c.b16 %v3915, %v3914
    %v4022 = vpack.c.b16 %v3916, %v3916
    %4023 = vrot.lane.b32.xlu0 %v4020, 112
    %v4024 = vpop.permute.xlu0 %4023
    %4025 = vrot.lane.b32.xlu0 %v4021, 112
    %v4026 = vpop.permute.xlu0 %4025
    %4027 = vrot.lane.b32.xlu0 %v4022, 112
    %v4028 = vpop.permute.xlu0 %4027
    %v4030 = vsel %vm1931, %v4019, 0
    %v4033 = vsel %vm1931, %v4024, 0
    %v4036 = vsel %vm1931, %v4026, 0
    %v4039 = vsel %vm1931, %v4028, 0
    %4041 = vmatprep.subr.bf16.mxu0 0
    %4042 = vmatpush1.bf16.xpose.msra.mxu0 %v4033
    %4043 = vmatprep.subr.bf16.mxu0 0
    %4044 = vmatpush1.bf16.xpose.msra.mxu0 %v4036
    %4045 = vmatprep.subr.bf16.mxu0 0
    %4046 = vmatpush1.bf16.xpose.msra.mxu0 %v4039
    %4047 = vmatprep.subr.bf16.mxu0 0
    %4048 = vmatpush1.bf16.xpose.msra.mxu0 0
    %4049 = vmatprep.subr.bf16.mxu0 0
    %4050 = vmatpush1.bf16.xpose.msra.mxu0 0
    %4051 = vmatprep.subr.bf16.mxu0 0
    %4052 = vmatpush1.bf16.xpose.msra.mxu0 0
    %4053 = vmatprep.subr.bf16.mxu0 0
    %4054 = vmatpush1.bf16.xpose.msra.mxu0 0
    %4055 = vmatprep.subr.bf16.mxu0 0
    %4056 = vmatpush1.bf16.xpose.msra.mxu0 0
    %4057 = vmatprep.subr.bf16.mxu0 0
    %4058 = vmatpush1.bf16.xpose.msra.mxu0 0
    %4059 = vmatprep.subr.bf16.mxu0 0
    %4060 = vmatpush1.bf16.xpose.msra.mxu0 0
    %4061 = vmatprep.subr.bf16.mxu0 0
    %4062 = vmatpush1.bf16.xpose.msra.mxu0 0
    %4063 = vmatprep.subr.bf16.mxu0 0
    %4064 = vmatpush1.bf16.xpose.msra.mxu0 0
    %4065 = vmatprep.subr.bf16.mxu0 0
    %4066 = vmatpush1.bf16.xpose.msra.mxu0 0
    %4067 = vmatprep.subr.bf16.mxu0 0
    %4068 = vmatpush1.bf16.xpose.msra.mxu0 0
    %4069 = vmatprep.subr.bf16.mxu0 0
    %4070 = vmatpush1.bf16.xpose.msra.mxu0 0
    %4071 = vmatprep.subr.bf16.mxu0 0
    %4072 = vmatpush1.bf16.xpose.msra.mxu0 0
    %4073 = vmatprep.mubr.bf16.mxu0 0
    %4074 = vmatmul.mubr.bf16.gmra.mrb[0].mxu0 %v4030
    %v4075 = vpop.f32.mrb[0].mxu0
    %v4076 = vadd.f32 %v3950, %v4075
    %v4077 = vpop.f32.mrb[0].mxu0
    %v4078 = vpop.f32.mrb[0].mxu0
    %v4079 = vadd.f32 %v3951, %v4078
    %v4080 = vpop.f32.mrb[0].mxu0
    %4081 = vdwg.mxu0
    %4083 = vrot.lane.b32.xlu0 %v3861, 112
    %v4084 = vpop.permute.xlu0 %4083
    %v4085 = vpack.c.b16 %v3918, %v3917
    %v4086 = vpack.c.b16 %v3920, %v3919
    %v4087 = vpack.c.b16 %v3921, %v3921
    %4088 = vrot.lane.b32.xlu0 %v4085, 112
    %v4089 = vpop.permute.xlu0 %4088
    %4090 = vrot.lane.b32.xlu0 %v4086, 112
    %v4091 = vpop.permute.xlu0 %4090
    %4092 = vrot.lane.b32.xlu0 %v4087, 112
    %v4093 = vpop.permute.xlu0 %4092
    %v4095 = vsel %vm1931, %v4084, 0
    %v4098 = vsel %vm1931, %v4089, 0
    %v4101 = vsel %vm1931, %v4091, 0
    %v4104 = vsel %vm1931, %v4093, 0
    %4106 = vmatprep.subr.bf16.mxu0 0
    %4107 = vmatpush1.bf16.xpose.msra.mxu0 %v4098
    %4108 = vmatprep.subr.bf16.mxu0 0
    %4109 = vmatpush1.bf16.xpose.msra.mxu0 %v4101
    %4110 = vmatprep.subr.bf16.mxu0 0
    %4111 = vmatpush1.bf16.xpose.msra.mxu0 %v4104
    %4112 = vmatprep.subr.bf16.mxu0 0
    %4113 = vmatpush1.bf16.xpose.msra.mxu0 0
    %4114 = vmatprep.subr.bf16.mxu0 0
    %4115 = vmatpush1.bf16.xpose.msra.mxu0 0
    %4116 = vmatprep.subr.bf16.mxu0 0
    %4117 = vmatpush1.bf16.xpose.msra.mxu0 0
    %4118 = vmatprep.subr.bf16.mxu0 0
    %4119 = vmatpush1.bf16.xpose.msra.mxu0 0
    %4120 = vmatprep.subr.bf16.mxu0 0
    %4121 = vmatpush1.bf16.xpose.msra.mxu0 0
    %4122 = vmatprep.subr.bf16.mxu0 0
    %4123 = vmatpush1.bf16.xpose.msra.mxu0 0
    %4124 = vmatprep.subr.bf16.mxu0 0
    %4125 = vmatpush1.bf16.xpose.msra.mxu0 0
    %4126 = vmatprep.subr.bf16.mxu0 0
    %4127 = vmatpush1.bf16.xpose.msra.mxu0 0
    %4128 = vmatprep.subr.bf16.mxu0 0
    %4129 = vmatpush1.bf16.xpose.msra.mxu0 0
    %4130 = vmatprep.subr.bf16.mxu0 0
    %4131 = vmatpush1.bf16.xpose.msra.mxu0 0
    %4132 = vmatprep.subr.bf16.mxu0 0
    %4133 = vmatpush1.bf16.xpose.msra.mxu0 0
    %4134 = vmatprep.subr.bf16.mxu0 0
    %4135 = vmatpush1.bf16.xpose.msra.mxu0 0
    %4136 = vmatprep.subr.bf16.mxu0 0
    %4137 = vmatpush1.bf16.xpose.msra.mxu0 0
    %4138 = vmatprep.mubr.bf16.mxu0 0
    %4139 = vmatmul.mubr.bf16.gmra.mrb[0].mxu0 %v4095
    %v4140 = vpop.f32.mrb[0].mxu0
    %v4141 = vadd.f32 %v3950, %v4140
    %v4142 = vpop.f32.mrb[0].mxu0
    %v4143 = vpop.f32.mrb[0].mxu0
    %v4144 = vadd.f32 %v3951, %v4143
    %v4145 = vpop.f32.mrb[0].mxu0
    %4146 = vdwg.mxu0
    %4148 = vrot.lane.b32.xlu0 %v3862, 112
    %v4149 = vpop.permute.xlu0 %4148
    %v4150 = vpack.c.b16 %v3923, %v3922
    %v4151 = vpack.c.b16 %v3925, %v3924
    %v4152 = vpack.c.b16 %v3926, %v3926
    %4153 = vrot.lane.b32.xlu0 %v4150, 112
    %v4154 = vpop.permute.xlu0 %4153
    %4155 = vrot.lane.b32.xlu0 %v4151, 112
    %v4156 = vpop.permute.xlu0 %4155
    %4157 = vrot.lane.b32.xlu0 %v4152, 112
    %v4158 = vpop.permute.xlu0 %4157
    %v4160 = vsel %vm1931, %v4149, 0
    %v4163 = vsel %vm1931, %v4154, 0
    %v4166 = vsel %vm1931, %v4156, 0
    %v4169 = vsel %vm1931, %v4158, 0
    %4171 = vmatprep.subr.bf16.mxu0 0
    %4172 = vmatpush1.bf16.xpose.msra.mxu0 %v4163
    %4173 = vmatprep.subr.bf16.mxu0 0
    %4174 = vmatpush1.bf16.xpose.msra.mxu0 %v4166
    %4175 = vmatprep.subr.bf16.mxu0 0
    %4176 = vmatpush1.bf16.xpose.msra.mxu0 %v4169
    %4177 = vmatprep.subr.bf16.mxu0 0
    %4178 = vmatpush1.bf16.xpose.msra.mxu0 0
    %4179 = vmatprep.subr.bf16.mxu0 0
    %4180 = vmatpush1.bf16.xpose.msra.mxu0 0
    %4181 = vmatprep.subr.bf16.mxu0 0
    %4182 = vmatpush1.bf16.xpose.msra.mxu0 0
    %4183 = vmatprep.subr.bf16.mxu0 0
    %4184 = vmatpush1.bf16.xpose.msra.mxu0 0
    %4185 = vmatprep.subr.bf16.mxu0 0
    %4186 = vmatpush1.bf16.xpose.msra.mxu0 0
    %4187 = vmatprep.subr.bf16.mxu0 0
    %4188 = vmatpush1.bf16.xpose.msra.mxu0 0
    %4189 = vmatprep.subr.bf16.mxu0 0
    %4190 = vmatpush1.bf16.xpose.msra.mxu0 0
    %4191 = vmatprep.subr.bf16.mxu0 0
    %4192 = vmatpush1.bf16.xpose.msra.mxu0 0
    %4193 = vmatprep.subr.bf16.mxu0 0
    %4194 = vmatpush1.bf16.xpose.msra.mxu0 0
    %4195 = vmatprep.subr.bf16.mxu0 0
    %4196 = vmatpush1.bf16.xpose.msra.mxu0 0
    %4197 = vmatprep.subr.bf16.mxu0 0
    %4198 = vmatpush1.bf16.xpose.msra.mxu0 0
    %4199 = vmatprep.subr.bf16.mxu0 0
    %4200 = vmatpush1.bf16.xpose.msra.mxu0 0
    %4201 = vmatprep.subr.bf16.mxu0 0
    %4202 = vmatpush1.bf16.xpose.msra.mxu0 0
    %4203 = vmatprep.mubr.bf16.mxu0 0
    %4204 = vmatmul.mubr.bf16.gmra.mrb[0].mxu0 %v4160
    %v4205 = vpop.f32.mrb[0].mxu0
    %v4206 = vadd.f32 %v3950, %v4205
    %v4207 = vpop.f32.mrb[0].mxu0
    %v4208 = vpop.f32.mrb[0].mxu0
    %v4209 = vadd.f32 %v3951, %v4208
    %v4210 = vpop.f32.mrb[0].mxu0
    %4211 = vdwg.mxu0
    %4213 = vrot.lane.b32.xlu0 %v3863, 112
    %v4214 = vpop.permute.xlu0 %4213
    %v4215 = vpack.c.b16 %v3928, %v3927
    %v4216 = vpack.c.b16 %v3930, %v3929
    %v4217 = vpack.c.b16 %v3931, %v3931
    %4218 = vrot.lane.b32.xlu0 %v4215, 112
    %v4219 = vpop.permute.xlu0 %4218
    %4220 = vrot.lane.b32.xlu0 %v4216, 112
    %v4221 = vpop.permute.xlu0 %4220
    %4222 = vrot.lane.b32.xlu0 %v4217, 112
    %v4223 = vpop.permute.xlu0 %4222
    %v4225 = vsel %vm1931, %v4214, 0
    %v4228 = vsel %vm1931, %v4219, 0
    %v4231 = vsel %vm1931, %v4221, 0
    %v4234 = vsel %vm1931, %v4223, 0
    %4236 = vmatprep.subr.bf16.mxu0 0
    %4237 = vmatpush1.bf16.xpose.msra.mxu0 %v4228
    %4238 = vmatprep.subr.bf16.mxu0 0
    %4239 = vmatpush1.bf16.xpose.msra.mxu0 %v4231
    %4240 = vmatprep.subr.bf16.mxu0 0
    %4241 = vmatpush1.bf16.xpose.msra.mxu0 %v4234
    %4242 = vmatprep.subr.bf16.mxu0 0
    %4243 = vmatpush1.bf16.xpose.msra.mxu0 0
    %4244 = vmatprep.subr.bf16.mxu0 0
    %4245 = vmatpush1.bf16.xpose.msra.mxu0 0
    %4246 = vmatprep.subr.bf16.mxu0 0
    %4247 = vmatpush1.bf16.xpose.msra.mxu0 0
    %4248 = vmatprep.subr.bf16.mxu0 0
    %4249 = vmatpush1.bf16.xpose.msra.mxu0 0
    %4250 = vmatprep.subr.bf16.mxu0 0
    %4251 = vmatpush1.bf16.xpose.msra.mxu0 0
    %4252 = vmatprep.subr.bf16.mxu0 0
    %4253 = vmatpush1.bf16.xpose.msra.mxu0 0
    %4254 = vmatprep.subr.bf16.mxu0 0
    %4255 = vmatpush1.bf16.xpose.msra.mxu0 0
    %4256 = vmatprep.subr.bf16.mxu0 0
    %4257 = vmatpush1.bf16.xpose.msra.mxu0 0
    %4258 = vmatprep.subr.bf16.mxu0 0
    %4259 = vmatpush1.bf16.xpose.msra.mxu0 0
    %4260 = vmatprep.subr.bf16.mxu0 0
    %4261 = vmatpush1.bf16.xpose.msra.mxu0 0
    %4262 = vmatprep.subr.bf16.mxu0 0
    %4263 = vmatpush1.bf16.xpose.msra.mxu0 0
    %4264 = vmatprep.subr.bf16.mxu0 0
    %4265 = vmatpush1.bf16.xpose.msra.mxu0 0
    %4266 = vmatprep.subr.bf16.mxu0 0
    %4267 = vmatpush1.bf16.xpose.msra.mxu0 0
    %4268 = vmatprep.mubr.bf16.mxu0 0
    %4269 = vmatmul.mubr.bf16.gmra.mrb[0].mxu0 %v4225
    %v4270 = vpop.f32.mrb[0].mxu0
    %v4271 = vadd.f32 %v3950, %v4270
    %v4272 = vpop.f32.mrb[0].mxu0
    %v4273 = vpop.f32.mrb[0].mxu0
    %v4274 = vadd.f32 %v3951, %v4273
    %v4275 = vpop.f32.mrb[0].mxu0
    %4276 = vdwg.mxu0
    %4278 = vrot.lane.b32.xlu0 %v3864, 112
    %v4279 = vpop.permute.xlu0 %4278
    %v4280 = vpack.c.b16 %v3933, %v3932
    %v4281 = vpack.c.b16 %v3935, %v3934
    %v4282 = vpack.c.b16 %v3936, %v3936
    %4283 = vrot.lane.b32.xlu0 %v4280, 112
    %v4284 = vpop.permute.xlu0 %4283
    %4285 = vrot.lane.b32.xlu0 %v4281, 112
    %v4286 = vpop.permute.xlu0 %4285
    %4287 = vrot.lane.b32.xlu0 %v4282, 112
    %v4288 = vpop.permute.xlu0 %4287
    %v4290 = vsel %vm1931, %v4279, 0
    %v4293 = vsel %vm1931, %v4284, 0
    %v4296 = vsel %vm1931, %v4286, 0
    %v4299 = vsel %vm1931, %v4288, 0
    %4301 = vmatprep.subr.bf16.mxu0 0
    %4302 = vmatpush1.bf16.xpose.msra.mxu0 %v4293
    %4303 = vmatprep.subr.bf16.mxu0 0
    %4304 = vmatpush1.bf16.xpose.msra.mxu0 %v4296
    %4305 = vmatprep.subr.bf16.mxu0 0
    %4306 = vmatpush1.bf16.xpose.msra.mxu0 %v4299
    %4307 = vmatprep.subr.bf16.mxu0 0
    %4308 = vmatpush1.bf16.xpose.msra.mxu0 0
    %4309 = vmatprep.subr.bf16.mxu0 0
    %4310 = vmatpush1.bf16.xpose.msra.mxu0 0
    %4311 = vmatprep.subr.bf16.mxu0 0
    %4312 = vmatpush1.bf16.xpose.msra.mxu0 0
    %4313 = vmatprep.subr.bf16.mxu0 0
    %4314 = vmatpush1.bf16.xpose.msra.mxu0 0
    %4315 = vmatprep.subr.bf16.mxu0 0
    %4316 = vmatpush1.bf16.xpose.msra.mxu0 0
    %4317 = vmatprep.subr.bf16.mxu0 0
    %4318 = vmatpush1.bf16.xpose.msra.mxu0 0
    %4319 = vmatprep.subr.bf16.mxu0 0
    %4320 = vmatpush1.bf16.xpose.msra.mxu0 0
    %4321 = vmatprep.subr.bf16.mxu0 0
    %4322 = vmatpush1.bf16.xpose.msra.mxu0 0
    %4323 = vmatprep.subr.bf16.mxu0 0
    %4324 = vmatpush1.bf16.xpose.msra.mxu0 0
    %4325 = vmatprep.subr.bf16.mxu0 0
    %4326 = vmatpush1.bf16.xpose.msra.mxu0 0
    %4327 = vmatprep.subr.bf16.mxu0 0
    %4328 = vmatpush1.bf16.xpose.msra.mxu0 0
    %4329 = vmatprep.subr.bf16.mxu0 0
    %4330 = vmatpush1.bf16.xpose.msra.mxu0 0
    %4331 = vmatprep.subr.bf16.mxu0 0
    %4332 = vmatpush1.bf16.xpose.msra.mxu0 0
    %4333 = vmatprep.mubr.bf16.mxu0 0
    %4334 = vmatmul.mubr.bf16.gmra.mrb[0].mxu0 %v4290
    %v4335 = vpop.f32.mrb[0].mxu0
    %v4336 = vadd.f32 %v3950, %v4335
    %v4337 = vpop.f32.mrb[0].mxu0
    %v4338 = vpop.f32.mrb[0].mxu0
    %v4339 = vadd.f32 %v3951, %v4338
    %v4340 = vpop.f32.mrb[0].mxu0
    %4341 = vdwg.mxu0
    %4343 = vrot.lane.b32.xlu0 %v3865, 112
    %v4344 = vpop.permute.xlu0 %4343
    %v4345 = vpack.c.b16 %v3938, %v3937
    %v4346 = vpack.c.b16 %v3940, %v3939
    %v4347 = vpack.c.b16 %v3941, %v3941
    %4348 = vrot.lane.b32.xlu0 %v4345, 112
    %v4349 = vpop.permute.xlu0 %4348
    %4350 = vrot.lane.b32.xlu0 %v4346, 112
    %v4351 = vpop.permute.xlu0 %4350
    %4352 = vrot.lane.b32.xlu0 %v4347, 112
    %v4353 = vpop.permute.xlu0 %4352
    %v4355 = vsel %vm1931, %v4344, 0
    %v4358 = vsel %vm1931, %v4349, 0
    %v4361 = vsel %vm1931, %v4351, 0
    %v4364 = vsel %vm1931, %v4353, 0
    %4366 = vmatprep.subr.bf16.mxu0 0
    %4367 = vmatpush1.bf16.xpose.msra.mxu0 %v4358
    %4368 = vmatprep.subr.bf16.mxu0 0
    %4369 = vmatpush1.bf16.xpose.msra.mxu0 %v4361
    %4370 = vmatprep.subr.bf16.mxu0 0
    %4371 = vmatpush1.bf16.xpose.msra.mxu0 %v4364
    %4372 = vmatprep.subr.bf16.mxu0 0
    %4373 = vmatpush1.bf16.xpose.msra.mxu0 0
    %4374 = vmatprep.subr.bf16.mxu0 0
    %4375 = vmatpush1.bf16.xpose.msra.mxu0 0
    %4376 = vmatprep.subr.bf16.mxu0 0
    %4377 = vmatpush1.bf16.xpose.msra.mxu0 0
    %4378 = vmatprep.subr.bf16.mxu0 0
    %4379 = vmatpush1.bf16.xpose.msra.mxu0 0
    %4380 = vmatprep.subr.bf16.mxu0 0
    %4381 = vmatpush1.bf16.xpose.msra.mxu0 0
    %4382 = vmatprep.subr.bf16.mxu0 0
    %4383 = vmatpush1.bf16.xpose.msra.mxu0 0
    %4384 = vmatprep.subr.bf16.mxu0 0
    %4385 = vmatpush1.bf16.xpose.msra.mxu0 0
    %4386 = vmatprep.subr.bf16.mxu0 0
    %4387 = vmatpush1.bf16.xpose.msra.mxu0 0
    %4388 = vmatprep.subr.bf16.mxu0 0
    %4389 = vmatpush1.bf16.xpose.msra.mxu0 0
    %4390 = vmatprep.subr.bf16.mxu0 0
    %4391 = vmatpush1.bf16.xpose.msra.mxu0 0
    %4392 = vmatprep.subr.bf16.mxu0 0
    %4393 = vmatpush1.bf16.xpose.msra.mxu0 0
    %4394 = vmatprep.subr.bf16.mxu0 0
    %4395 = vmatpush1.bf16.xpose.msra.mxu0 0
    %4396 = vmatprep.subr.bf16.mxu0 0
    %4397 = vmatpush1.bf16.xpose.msra.mxu0 0
    %4398 = vmatprep.mubr.bf16.mxu0 0
    %4399 = vmatmul.mubr.bf16.gmra.mrb[0].mxu0 %v4355
    %v4400 = vpop.f32.mrb[0].mxu0
    %v4401 = vadd.f32 %v3950, %v4400
    %v4402 = vpop.f32.mrb[0].mxu0
    %v4403 = vpop.f32.mrb[0].mxu0
    %v4404 = vadd.f32 %v3951, %v4403
    %v4405 = vpop.f32.mrb[0].mxu0
    %4406 = vdwg.mxu0
    %4408 = vrot.lane.b32.xlu0 %v3866, 112
    %v4409 = vpop.permute.xlu0 %4408
    %v4410 = vpack.c.b16 %v3943, %v3942
    %v4411 = vpack.c.b16 %v3945, %v3944
    %v4412 = vpack.c.b16 %v3946, %v3946
    %4413 = vrot.lane.b32.xlu0 %v4410, 112
    %v4414 = vpop.permute.xlu0 %4413
    %4415 = vrot.lane.b32.xlu0 %v4411, 112
    %v4416 = vpop.permute.xlu0 %4415
    %4417 = vrot.lane.b32.xlu0 %v4412, 112
    %v4418 = vpop.permute.xlu0 %4417
    %v4420 = vsel %vm1931, %v4409, 0
    %v4423 = vsel %vm1931, %v4414, 0
    %v4426 = vsel %vm1931, %v4416, 0
    %v4429 = vsel %vm1931, %v4418, 0
    %4431 = vmatprep.subr.bf16.mxu0 0
    %4432 = vmatpush1.bf16.xpose.msra.mxu0 %v4423
    %4433 = vmatprep.subr.bf16.mxu0 0
    %4434 = vmatpush1.bf16.xpose.msra.mxu0 %v4426
    %4435 = vmatprep.subr.bf16.mxu0 0
    %4436 = vmatpush1.bf16.xpose.msra.mxu0 %v4429
    %4437 = vmatprep.subr.bf16.mxu0 0
    %4438 = vmatpush1.bf16.xpose.msra.mxu0 0
    %4439 = vmatprep.subr.bf16.mxu0 0
    %4440 = vmatpush1.bf16.xpose.msra.mxu0 0
    %4441 = vmatprep.subr.bf16.mxu0 0
    %4442 = vmatpush1.bf16.xpose.msra.mxu0 0
    %4443 = vmatprep.subr.bf16.mxu0 0
    %4444 = vmatpush1.bf16.xpose.msra.mxu0 0
    %4445 = vmatprep.subr.bf16.mxu0 0
    %4446 = vmatpush1.bf16.xpose.msra.mxu0 0
    %4447 = vmatprep.subr.bf16.mxu0 0
    %4448 = vmatpush1.bf16.xpose.msra.mxu0 0
    %4449 = vmatprep.subr.bf16.mxu0 0
    %4450 = vmatpush1.bf16.xpose.msra.mxu0 0
    %4451 = vmatprep.subr.bf16.mxu0 0
    %4452 = vmatpush1.bf16.xpose.msra.mxu0 0
    %4453 = vmatprep.subr.bf16.mxu0 0
    %4454 = vmatpush1.bf16.xpose.msra.mxu0 0
    %4455 = vmatprep.subr.bf16.mxu0 0
    %4456 = vmatpush1.bf16.xpose.msra.mxu0 0
    %4457 = vmatprep.subr.bf16.mxu0 0
    %4458 = vmatpush1.bf16.xpose.msra.mxu0 0
    %4459 = vmatprep.subr.bf16.mxu0 0
    %4460 = vmatpush1.bf16.xpose.msra.mxu0 0
    %4461 = vmatprep.subr.bf16.mxu0 0
    %4462 = vmatpush1.bf16.xpose.msra.mxu0 0
    %4463 = vmatprep.mubr.bf16.mxu0 0
    %4464 = vmatmul.mubr.bf16.gmra.mrb[0].mxu0 %v4420
    %v4465 = vpop.f32.mrb[0].mxu0
    %v4466 = vadd.f32 %v3950, %v4465
    %v4467 = vpop.f32.mrb[0].mxu0
    %v4468 = vpop.f32.mrb[0].mxu0
    %v4469 = vadd.f32 %v3951, %v4468
    %v4470 = vpop.f32.mrb[0].mxu0
    %4471 = vdwg.mxu0
    %4472 = vrot.lane.b32.xlu0 %v3859, 80
    %v4473 = vpop.permute.xlu0 %4472
    %v4475 = vsel %vm1931, %v4473, 0
    %4477 = vmatprep.subr.bf16.mxu0 0
    %4478 = vmatpush1.bf16.xpose.msra.mxu0 %v4475
    %4479 = vmatprep.subr.bf16.mxu0 0
    %4480 = vmatpush1.bf16.xpose.msra.mxu0 0
    %4481 = vmatprep.subr.bf16.mxu0 0
    %4482 = vmatpush1.bf16.xpose.msra.mxu0 0
    %4483 = vmatprep.subr.bf16.mxu0 0
    %4484 = vmatpush1.bf16.xpose.msra.mxu0 0
    %4485 = vmatprep.subr.bf16.mxu0 0
    %4486 = vmatpush1.bf16.xpose.msra.mxu0 0
    %4487 = vmatprep.subr.bf16.mxu0 0
    %4488 = vmatpush1.bf16.xpose.msra.mxu0 0
    %4489 = vmatprep.subr.bf16.mxu0 0
    %4490 = vmatpush1.bf16.xpose.msra.mxu0 0
    %4491 = vmatprep.subr.bf16.mxu0 0
    %4492 = vmatpush1.bf16.xpose.msra.mxu0 0
    %4493 = vmatprep.subr.bf16.mxu0 0
    %4494 = vmatpush1.bf16.xpose.msra.mxu0 0
    %4495 = vmatprep.subr.bf16.mxu0 0
    %4496 = vmatpush1.bf16.xpose.msra.mxu0 0
    %4497 = vmatprep.subr.bf16.mxu0 0
    %4498 = vmatpush1.bf16.xpose.msra.mxu0 0
    %4499 = vmatprep.subr.bf16.mxu0 0
    %4500 = vmatpush1.bf16.xpose.msra.mxu0 0
    %4501 = vmatprep.subr.bf16.mxu0 0
    %4502 = vmatpush1.bf16.xpose.msra.mxu0 0
    %4503 = vmatprep.subr.bf16.mxu0 0
    %4504 = vmatpush1.bf16.xpose.msra.mxu0 0
    %4505 = vmatprep.subr.bf16.mxu0 0
    %4506 = vmatpush1.bf16.xpose.msra.mxu0 0
    %4507 = vmatprep.subr.bf16.mxu0 0
    %4508 = vmatpush1.bf16.xpose.msra.mxu0 0
    %4509 = vmatprep.mubr.bf16.mxu0 0
    %4510 = vmatmul.mubr.bf16.gmra.mrb[0].mxu0 %v3968
    %v4511 = vpop.f32.mrb[0].mxu0
    %v4512 = vadd.f32 0.0, %v4511
    %v4513 = vpop.f32.mrb[0].mxu0
    %v4514 = vpop.f32.mrb[0].mxu0
    %v4515 = vadd.f32 0.0, %v4514
    %v4516 = vpop.f32.mrb[0].mxu0
    %4517 = vmatprep.mubr.bf16.mxu0 0
    %4518 = vmatmul.mubr.bf16.gmra.mrb[0].mxu0 %v3971
    %v4519 = vpop.f32.mrb[0].mxu0
    %v4520 = vadd.f32 0.0, %v4519
    %v4521 = vpop.f32.mrb[0].mxu0
    %v4522 = vpop.f32.mrb[0].mxu0
    %v4523 = vadd.f32 0.0, %v4522
    %v4524 = vpop.f32.mrb[0].mxu0
    %4525 = vmatprep.mubr.bf16.mxu0 0
    %4526 = vmatmul.mubr.bf16.gmra.mrb[0].mxu0 %v3974
    %v4527 = vpop.f32.mrb[0].mxu0
    %v4528 = vadd.f32 0.0, %v4527
    %v4529 = vpop.f32.mrb[0].mxu0
    %v4530 = vpop.f32.mrb[0].mxu0
    %v4531 = vpop.f32.mrb[0].mxu0
    %4532 = vdwg.mxu0
    %4533 = vrot.lane.b32.xlu0 %v3860, 80
    %v4534 = vpop.permute.xlu0 %4533
    %v4536 = vsel %vm1931, %v4534, 0
    %4538 = vmatprep.subr.bf16.mxu0 0
    %4539 = vmatpush1.bf16.xpose.msra.mxu0 %v4536
    %4540 = vmatprep.subr.bf16.mxu0 0
    %4541 = vmatpush1.bf16.xpose.msra.mxu0 0
    %4542 = vmatprep.subr.bf16.mxu0 0
    %4543 = vmatpush1.bf16.xpose.msra.mxu0 0
    %4544 = vmatprep.subr.bf16.mxu0 0
    %4545 = vmatpush1.bf16.xpose.msra.mxu0 0
    %4546 = vmatprep.subr.bf16.mxu0 0
    %4547 = vmatpush1.bf16.xpose.msra.mxu0 0
    %4548 = vmatprep.subr.bf16.mxu0 0
    %4549 = vmatpush1.bf16.xpose.msra.mxu0 0
    %4550 = vmatprep.subr.bf16.mxu0 0
    %4551 = vmatpush1.bf16.xpose.msra.mxu0 0
    %4552 = vmatprep.subr.bf16.mxu0 0
    %4553 = vmatpush1.bf16.xpose.msra.mxu0 0
    %4554 = vmatprep.subr.bf16.mxu0 0
    %4555 = vmatpush1.bf16.xpose.msra.mxu0 0
    %4556 = vmatprep.subr.bf16.mxu0 0
    %4557 = vmatpush1.bf16.xpose.msra.mxu0 0
    %4558 = vmatprep.subr.bf16.mxu0 0
    %4559 = vmatpush1.bf16.xpose.msra.mxu0 0
    %4560 = vmatprep.subr.bf16.mxu0 0
    %4561 = vmatpush1.bf16.xpose.msra.mxu0 0
    %4562 = vmatprep.subr.bf16.mxu0 0
    %4563 = vmatpush1.bf16.xpose.msra.mxu0 0
    %4564 = vmatprep.subr.bf16.mxu0 0
    %4565 = vmatpush1.bf16.xpose.msra.mxu0 0
    %4566 = vmatprep.subr.bf16.mxu0 0
    %4567 = vmatpush1.bf16.xpose.msra.mxu0 0
    %4568 = vmatprep.subr.bf16.mxu0 0
    %4569 = vmatpush1.bf16.xpose.msra.mxu0 0
    %4570 = vmatprep.mubr.bf16.mxu0 0
    %4571 = vmatmul.mubr.bf16.gmra.mrb[0].mxu0 %v4033
    %v4572 = vpop.f32.mrb[0].mxu0
    %v4573 = vadd.f32 0.0, %v4572
    %v4574 = vpop.f32.mrb[0].mxu0
    %v4575 = vpop.f32.mrb[0].mxu0
    %v4576 = vadd.f32 0.0, %v4575
    %v4577 = vpop.f32.mrb[0].mxu0
    %4578 = vmatprep.mubr.bf16.mxu0 0
    %4579 = vmatmul.mubr.bf16.gmra.mrb[0].mxu0 %v4036
    %v4580 = vpop.f32.mrb[0].mxu0
    %v4581 = vadd.f32 0.0, %v4580
    %v4582 = vpop.f32.mrb[0].mxu0
    %v4583 = vpop.f32.mrb[0].mxu0
    %v4584 = vadd.f32 0.0, %v4583
    %v4585 = vpop.f32.mrb[0].mxu0
    %4586 = vmatprep.mubr.bf16.mxu0 0
    %4587 = vmatmul.mubr.bf16.gmra.mrb[0].mxu0 %v4039
    %v4588 = vpop.f32.mrb[0].mxu0
    %v4589 = vadd.f32 0.0, %v4588
    %v4590 = vpop.f32.mrb[0].mxu0
    %v4591 = vpop.f32.mrb[0].mxu0
    %v4592 = vpop.f32.mrb[0].mxu0
    %4593 = vdwg.mxu0
    %4594 = vrot.lane.b32.xlu0 %v3861, 80
    %v4595 = vpop.permute.xlu0 %4594
    %v4597 = vsel %vm1931, %v4595, 0
    %4599 = vmatprep.subr.bf16.mxu0 0
    %4600 = vmatpush1.bf16.xpose.msra.mxu0 %v4597
    %4601 = vmatprep.subr.bf16.mxu0 0
    %4602 = vmatpush1.bf16.xpose.msra.mxu0 0
    %4603 = vmatprep.subr.bf16.mxu0 0
    %4604 = vmatpush1.bf16.xpose.msra.mxu0 0
    %4605 = vmatprep.subr.bf16.mxu0 0
    %4606 = vmatpush1.bf16.xpose.msra.mxu0 0
    %4607 = vmatprep.subr.bf16.mxu0 0
    %4608 = vmatpush1.bf16.xpose.msra.mxu0 0
    %4609 = vmatprep.subr.bf16.mxu0 0
    %4610 = vmatpush1.bf16.xpose.msra.mxu0 0
    %4611 = vmatprep.subr.bf16.mxu0 0
    %4612 = vmatpush1.bf16.xpose.msra.mxu0 0
    %4613 = vmatprep.subr.bf16.mxu0 0
    %4614 = vmatpush1.bf16.xpose.msra.mxu0 0
    %4615 = vmatprep.subr.bf16.mxu0 0
    %4616 = vmatpush1.bf16.xpose.msra.mxu0 0
    %4617 = vmatprep.subr.bf16.mxu0 0
    %4618 = vmatpush1.bf16.xpose.msra.mxu0 0
    %4619 = vmatprep.subr.bf16.mxu0 0
    %4620 = vmatpush1.bf16.xpose.msra.mxu0 0
    %4621 = vmatprep.subr.bf16.mxu0 0
    %4622 = vmatpush1.bf16.xpose.msra.mxu0 0
    %4623 = vmatprep.subr.bf16.mxu0 0
    %4624 = vmatpush1.bf16.xpose.msra.mxu0 0
    %4625 = vmatprep.subr.bf16.mxu0 0
    %4626 = vmatpush1.bf16.xpose.msra.mxu0 0
    %4627 = vmatprep.subr.bf16.mxu0 0
    %4628 = vmatpush1.bf16.xpose.msra.mxu0 0
    %4629 = vmatprep.subr.bf16.mxu0 0
    %4630 = vmatpush1.bf16.xpose.msra.mxu0 0
    %4631 = vmatprep.mubr.bf16.mxu0 0
    %4632 = vmatmul.mubr.bf16.gmra.mrb[0].mxu0 %v4098
    %v4633 = vpop.f32.mrb[0].mxu0
    %v4634 = vadd.f32 0.0, %v4633
    %v4635 = vpop.f32.mrb[0].mxu0
    %v4636 = vpop.f32.mrb[0].mxu0
    %v4637 = vadd.f32 0.0, %v4636
    %v4638 = vpop.f32.mrb[0].mxu0
    %4639 = vmatprep.mubr.bf16.mxu0 0
    %4640 = vmatmul.mubr.bf16.gmra.mrb[0].mxu0 %v4101
    %v4641 = vpop.f32.mrb[0].mxu0
    %v4642 = vadd.f32 0.0, %v4641
    %v4643 = vpop.f32.mrb[0].mxu0
    %v4644 = vpop.f32.mrb[0].mxu0
    %v4645 = vadd.f32 0.0, %v4644
    %v4646 = vpop.f32.mrb[0].mxu0
    %4647 = vmatprep.mubr.bf16.mxu0 0
    %4648 = vmatmul.mubr.bf16.gmra.mrb[0].mxu0 %v4104
    %v4649 = vpop.f32.mrb[0].mxu0
    %v4650 = vadd.f32 0.0, %v4649
    %v4651 = vpop.f32.mrb[0].mxu0
    %v4652 = vpop.f32.mrb[0].mxu0
    %v4653 = vpop.f32.mrb[0].mxu0
    %4654 = vdwg.mxu0
    %4655 = vrot.lane.b32.xlu0 %v3862, 80
    %v4656 = vpop.permute.xlu0 %4655
    %v4658 = vsel %vm1931, %v4656, 0
    %4660 = vmatprep.subr.bf16.mxu0 0
    %4661 = vmatpush1.bf16.xpose.msra.mxu0 %v4658
    %4662 = vmatprep.subr.bf16.mxu0 0
    %4663 = vmatpush1.bf16.xpose.msra.mxu0 0
    %4664 = vmatprep.subr.bf16.mxu0 0
    %4665 = vmatpush1.bf16.xpose.msra.mxu0 0
    %4666 = vmatprep.subr.bf16.mxu0 0
    %4667 = vmatpush1.bf16.xpose.msra.mxu0 0
    %4668 = vmatprep.subr.bf16.mxu0 0
    %4669 = vmatpush1.bf16.xpose.msra.mxu0 0
    %4670 = vmatprep.subr.bf16.mxu0 0
    %4671 = vmatpush1.bf16.xpose.msra.mxu0 0
    %4672 = vmatprep.subr.bf16.mxu0 0
    %4673 = vmatpush1.bf16.xpose.msra.mxu0 0
    %4674 = vmatprep.subr.bf16.mxu0 0
    %4675 = vmatpush1.bf16.xpose.msra.mxu0 0
    %4676 = vmatprep.subr.bf16.mxu0 0
    %4677 = vmatpush1.bf16.xpose.msra.mxu0 0
    %4678 = vmatprep.subr.bf16.mxu0 0
    %4679 = vmatpush1.bf16.xpose.msra.mxu0 0
    %4680 = vmatprep.subr.bf16.mxu0 0
    %4681 = vmatpush1.bf16.xpose.msra.mxu0 0
    %4682 = vmatprep.subr.bf16.mxu0 0
    %4683 = vmatpush1.bf16.xpose.msra.mxu0 0
    %4684 = vmatprep.subr.bf16.mxu0 0
    %4685 = vmatpush1.bf16.xpose.msra.mxu0 0
    %4686 = vmatprep.subr.bf16.mxu0 0
    %4687 = vmatpush1.bf16.xpose.msra.mxu0 0
    %4688 = vmatprep.subr.bf16.mxu0 0
    %4689 = vmatpush1.bf16.xpose.msra.mxu0 0
    %4690 = vmatprep.subr.bf16.mxu0 0
    %4691 = vmatpush1.bf16.xpose.msra.mxu0 0
    %4692 = vmatprep.mubr.bf16.mxu0 0
    %4693 = vmatmul.mubr.bf16.gmra.mrb[0].mxu0 %v4163
    %v4694 = vpop.f32.mrb[0].mxu0
    %v4695 = vadd.f32 0.0, %v4694
    %v4696 = vpop.f32.mrb[0].mxu0
    %v4697 = vpop.f32.mrb[0].mxu0
    %v4698 = vadd.f32 0.0, %v4697
    %v4699 = vpop.f32.mrb[0].mxu0
    %4700 = vmatprep.mubr.bf16.mxu0 0
    %4701 = vmatmul.mubr.bf16.gmra.mrb[0].mxu0 %v4166
    %v4702 = vpop.f32.mrb[0].mxu0
    %v4703 = vadd.f32 0.0, %v4702
    %v4704 = vpop.f32.mrb[0].mxu0
    %v4705 = vpop.f32.mrb[0].mxu0
    %v4706 = vadd.f32 0.0, %v4705
    %v4707 = vpop.f32.mrb[0].mxu0
    %4708 = vmatprep.mubr.bf16.mxu0 0
    %4709 = vmatmul.mubr.bf16.gmra.mrb[0].mxu0 %v4169
    %v4710 = vpop.f32.mrb[0].mxu0
    %v4711 = vadd.f32 0.0, %v4710
    %v4712 = vpop.f32.mrb[0].mxu0
    %v4713 = vpop.f32.mrb[0].mxu0
    %v4714 = vpop.f32.mrb[0].mxu0
    %4715 = vdwg.mxu0
    %4716 = vrot.lane.b32.xlu0 %v3863, 80
    %v4717 = vpop.permute.xlu0 %4716
    %v4719 = vsel %vm1931, %v4717, 0
    %4721 = vmatprep.subr.bf16.mxu0 0
    %4722 = vmatpush1.bf16.xpose.msra.mxu0 %v4719
    %4723 = vmatprep.subr.bf16.mxu0 0
    %4724 = vmatpush1.bf16.xpose.msra.mxu0 0
    %4725 = vmatprep.subr.bf16.mxu0 0
    %4726 = vmatpush1.bf16.xpose.msra.mxu0 0
    %4727 = vmatprep.subr.bf16.mxu0 0
    %4728 = vmatpush1.bf16.xpose.msra.mxu0 0
    %4729 = vmatprep.subr.bf16.mxu0 0
    %4730 = vmatpush1.bf16.xpose.msra.mxu0 0
    %4731 = vmatprep.subr.bf16.mxu0 0
    %4732 = vmatpush1.bf16.xpose.msra.mxu0 0
    %4733 = vmatprep.subr.bf16.mxu0 0
    %4734 = vmatpush1.bf16.xpose.msra.mxu0 0
    %4735 = vmatprep.subr.bf16.mxu0 0
    %4736 = vmatpush1.bf16.xpose.msra.mxu0 0
    %4737 = vmatprep.subr.bf16.mxu0 0
    %4738 = vmatpush1.bf16.xpose.msra.mxu0 0
    %4739 = vmatprep.subr.bf16.mxu0 0
    %4740 = vmatpush1.bf16.xpose.msra.mxu0 0
    %4741 = vmatprep.subr.bf16.mxu0 0
    %4742 = vmatpush1.bf16.xpose.msra.mxu0 0
    %4743 = vmatprep.subr.bf16.mxu0 0
    %4744 = vmatpush1.bf16.xpose.msra.mxu0 0
    %4745 = vmatprep.subr.bf16.mxu0 0
    %4746 = vmatpush1.bf16.xpose.msra.mxu0 0
    %4747 = vmatprep.subr.bf16.mxu0 0
    %4748 = vmatpush1.bf16.xpose.msra.mxu0 0
    %4749 = vmatprep.subr.bf16.mxu0 0
    %4750 = vmatpush1.bf16.xpose.msra.mxu0 0
    %4751 = vmatprep.subr.bf16.mxu0 0
    %4752 = vmatpush1.bf16.xpose.msra.mxu0 0
    %4753 = vmatprep.mubr.bf16.mxu0 0
    %4754 = vmatmul.mubr.bf16.gmra.mrb[0].mxu0 %v4228
    %v4755 = vpop.f32.mrb[0].mxu0
    %v4756 = vadd.f32 0.0, %v4755
    %v4757 = vpop.f32.mrb[0].mxu0
    %v4758 = vpop.f32.mrb[0].mxu0
    %v4759 = vadd.f32 0.0, %v4758
    %v4760 = vpop.f32.mrb[0].mxu0
    %4761 = vmatprep.mubr.bf16.mxu0 0
    %4762 = vmatmul.mubr.bf16.gmra.mrb[0].mxu0 %v4231
    %v4763 = vpop.f32.mrb[0].mxu0
    %v4764 = vadd.f32 0.0, %v4763
    %v4765 = vpop.f32.mrb[0].mxu0
    %v4766 = vpop.f32.mrb[0].mxu0
    %v4767 = vadd.f32 0.0, %v4766
    %v4768 = vpop.f32.mrb[0].mxu0
    %4769 = vmatprep.mubr.bf16.mxu0 0
    %4770 = vmatmul.mubr.bf16.gmra.mrb[0].mxu0 %v4234
    %v4771 = vpop.f32.mrb[0].mxu0
    %v4772 = vadd.f32 0.0, %v4771
    %v4773 = vpop.f32.mrb[0].mxu0
    %v4774 = vpop.f32.mrb[0].mxu0
    %v4775 = vpop.f32.mrb[0].mxu0
    %4776 = vdwg.mxu0
    %4777 = vrot.lane.b32.xlu0 %v3864, 80
    %v4778 = vpop.permute.xlu0 %4777
    %v4780 = vsel %vm1931, %v4778, 0
    %4782 = vmatprep.subr.bf16.mxu0 0
    %4783 = vmatpush1.bf16.xpose.msra.mxu0 %v4780
    %4784 = vmatprep.subr.bf16.mxu0 0
    %4785 = vmatpush1.bf16.xpose.msra.mxu0 0
    %4786 = vmatprep.subr.bf16.mxu0 0
    %4787 = vmatpush1.bf16.xpose.msra.mxu0 0
    %4788 = vmatprep.subr.bf16.mxu0 0
    %4789 = vmatpush1.bf16.xpose.msra.mxu0 0
    %4790 = vmatprep.subr.bf16.mxu0 0
    %4791 = vmatpush1.bf16.xpose.msra.mxu0 0
    %4792 = vmatprep.subr.bf16.mxu0 0
    %4793 = vmatpush1.bf16.xpose.msra.mxu0 0
    %4794 = vmatprep.subr.bf16.mxu0 0
    %4795 = vmatpush1.bf16.xpose.msra.mxu0 0
    %4796 = vmatprep.subr.bf16.mxu0 0
    %4797 = vmatpush1.bf16.xpose.msra.mxu0 0
    %4798 = vmatprep.subr.bf16.mxu0 0
    %4799 = vmatpush1.bf16.xpose.msra.mxu0 0
    %4800 = vmatprep.subr.bf16.mxu0 0
    %4801 = vmatpush1.bf16.xpose.msra.mxu0 0
    %4802 = vmatprep.subr.bf16.mxu0 0
    %4803 = vmatpush1.bf16.xpose.msra.mxu0 0
    %4804 = vmatprep.subr.bf16.mxu0 0
    %4805 = vmatpush1.bf16.xpose.msra.mxu0 0
    %4806 = vmatprep.subr.bf16.mxu0 0
    %4807 = vmatpush1.bf16.xpose.msra.mxu0 0
    %4808 = vmatprep.subr.bf16.mxu0 0
    %4809 = vmatpush1.bf16.xpose.msra.mxu0 0
    %4810 = vmatprep.subr.bf16.mxu0 0
    %4811 = vmatpush1.bf16.xpose.msra.mxu0 0
    %4812 = vmatprep.subr.bf16.mxu0 0
    %4813 = vmatpush1.bf16.xpose.msra.mxu0 0
    %4814 = vmatprep.mubr.bf16.mxu0 0
    %4815 = vmatmul.mubr.bf16.gmra.mrb[0].mxu0 %v4293
    %v4816 = vpop.f32.mrb[0].mxu0
    %v4817 = vadd.f32 0.0, %v4816
    %v4818 = vpop.f32.mrb[0].mxu0
    %v4819 = vpop.f32.mrb[0].mxu0
    %v4820 = vadd.f32 0.0, %v4819
    %v4821 = vpop.f32.mrb[0].mxu0
    %4822 = vmatprep.mubr.bf16.mxu0 0
    %4823 = vmatmul.mubr.bf16.gmra.mrb[0].mxu0 %v4296
    %v4824 = vpop.f32.mrb[0].mxu0
    %v4825 = vadd.f32 0.0, %v4824
    %v4826 = vpop.f32.mrb[0].mxu0
    %v4827 = vpop.f32.mrb[0].mxu0
    %v4828 = vadd.f32 0.0, %v4827
    %v4829 = vpop.f32.mrb[0].mxu0
    %4830 = vmatprep.mubr.bf16.mxu0 0
    %4831 = vmatmul.mubr.bf16.gmra.mrb[0].mxu0 %v4299
    %v4832 = vpop.f32.mrb[0].mxu0
    %v4833 = vadd.f32 0.0, %v4832
    %v4834 = vpop.f32.mrb[0].mxu0
    %v4835 = vpop.f32.mrb[0].mxu0
    %v4836 = vpop.f32.mrb[0].mxu0
    %4837 = vdwg.mxu0
    %4838 = vrot.lane.b32.xlu0 %v3865, 80
    %v4839 = vpop.permute.xlu0 %4838
    %v4841 = vsel %vm1931, %v4839, 0
    %4843 = vmatprep.subr.bf16.mxu0 0
    %4844 = vmatpush1.bf16.xpose.msra.mxu0 %v4841
    %4845 = vmatprep.subr.bf16.mxu0 0
    %4846 = vmatpush1.bf16.xpose.msra.mxu0 0
    %4847 = vmatprep.subr.bf16.mxu0 0
    %4848 = vmatpush1.bf16.xpose.msra.mxu0 0
    %4849 = vmatprep.subr.bf16.mxu0 0
    %4850 = vmatpush1.bf16.xpose.msra.mxu0 0
    %4851 = vmatprep.subr.bf16.mxu0 0
    %4852 = vmatpush1.bf16.xpose.msra.mxu0 0
    %4853 = vmatprep.subr.bf16.mxu0 0
    %4854 = vmatpush1.bf16.xpose.msra.mxu0 0
    %4855 = vmatprep.subr.bf16.mxu0 0
    %4856 = vmatpush1.bf16.xpose.msra.mxu0 0
    %4857 = vmatprep.subr.bf16.mxu0 0
    %4858 = vmatpush1.bf16.xpose.msra.mxu0 0
    %4859 = vmatprep.subr.bf16.mxu0 0
    %4860 = vmatpush1.bf16.xpose.msra.mxu0 0
    %4861 = vmatprep.subr.bf16.mxu0 0
    %4862 = vmatpush1.bf16.xpose.msra.mxu0 0
    %4863 = vmatprep.subr.bf16.mxu0 0
    %4864 = vmatpush1.bf16.xpose.msra.mxu0 0
    %4865 = vmatprep.subr.bf16.mxu0 0
    %4866 = vmatpush1.bf16.xpose.msra.mxu0 0
    %4867 = vmatprep.subr.bf16.mxu0 0
    %4868 = vmatpush1.bf16.xpose.msra.mxu0 0
    %4869 = vmatprep.subr.bf16.mxu0 0
    %4870 = vmatpush1.bf16.xpose.msra.mxu0 0
    %4871 = vmatprep.subr.bf16.mxu0 0
    %4872 = vmatpush1.bf16.xpose.msra.mxu0 0
    %4873 = vmatprep.subr.bf16.mxu0 0
    %4874 = vmatpush1.bf16.xpose.msra.mxu0 0
    %4875 = vmatprep.mubr.bf16.mxu0 0
    %4876 = vmatmul.mubr.bf16.gmra.mrb[0].mxu0 %v4358
    %v4877 = vpop.f32.mrb[0].mxu0
    %v4878 = vadd.f32 0.0, %v4877
    %v4879 = vpop.f32.mrb[0].mxu0
    %v4880 = vpop.f32.mrb[0].mxu0
    %v4881 = vadd.f32 0.0, %v4880
    %v4882 = vpop.f32.mrb[0].mxu0
    %4883 = vmatprep.mubr.bf16.mxu0 0
    %4884 = vmatmul.mubr.bf16.gmra.mrb[0].mxu0 %v4361
    %v4885 = vpop.f32.mrb[0].mxu0
    %v4886 = vadd.f32 0.0, %v4885
    %v4887 = vpop.f32.mrb[0].mxu0
    %v4888 = vpop.f32.mrb[0].mxu0
    %v4889 = vadd.f32 0.0, %v4888
    %v4890 = vpop.f32.mrb[0].mxu0
    %4891 = vmatprep.mubr.bf16.mxu0 0
    %4892 = vmatmul.mubr.bf16.gmra.mrb[0].mxu0 %v4364
    %v4893 = vpop.f32.mrb[0].mxu0
    %v4894 = vadd.f32 0.0, %v4893
    %v4895 = vpop.f32.mrb[0].mxu0
    %v4896 = vpop.f32.mrb[0].mxu0
    %v4897 = vpop.f32.mrb[0].mxu0
    %4898 = vdwg.mxu0
    %4899 = vrot.lane.b32.xlu0 %v3866, 80
    %v4900 = vpop.permute.xlu0 %4899
    %v4902 = vsel %vm1931, %v4900, 0
    %4904 = vmatprep.subr.bf16.mxu0 0
    %4905 = vmatpush1.bf16.xpose.msra.mxu0 %v4902
    %4906 = vmatprep.subr.bf16.mxu0 0
    %4907 = vmatpush1.bf16.xpose.msra.mxu0 0
    %4908 = vmatprep.subr.bf16.mxu0 0
    %4909 = vmatpush1.bf16.xpose.msra.mxu0 0
    %4910 = vmatprep.subr.bf16.mxu0 0
    %4911 = vmatpush1.bf16.xpose.msra.mxu0 0
    %4912 = vmatprep.subr.bf16.mxu0 0
    %4913 = vmatpush1.bf16.xpose.msra.mxu0 0
    %4914 = vmatprep.subr.bf16.mxu0 0
    %4915 = vmatpush1.bf16.xpose.msra.mxu0 0
    %4916 = vmatprep.subr.bf16.mxu0 0
    %4917 = vmatpush1.bf16.xpose.msra.mxu0 0
    %4918 = vmatprep.subr.bf16.mxu0 0
    %4919 = vmatpush1.bf16.xpose.msra.mxu0 0
    %4920 = vmatprep.subr.bf16.mxu0 0
    %4921 = vmatpush1.bf16.xpose.msra.mxu0 0
    %4922 = vmatprep.subr.bf16.mxu0 0
    %4923 = vmatpush1.bf16.xpose.msra.mxu0 0
    %4924 = vmatprep.subr.bf16.mxu0 0
    %4925 = vmatpush1.bf16.xpose.msra.mxu0 0
    %4926 = vmatprep.subr.bf16.mxu0 0
    %4927 = vmatpush1.bf16.xpose.msra.mxu0 0
    %4928 = vmatprep.subr.bf16.mxu0 0
    %4929 = vmatpush1.bf16.xpose.msra.mxu0 0
    %4930 = vmatprep.subr.bf16.mxu0 0
    %4931 = vmatpush1.bf16.xpose.msra.mxu0 0
    %4932 = vmatprep.subr.bf16.mxu0 0
    %4933 = vmatpush1.bf16.xpose.msra.mxu0 0
    %4934 = vmatprep.subr.bf16.mxu0 0
    %4935 = vmatpush1.bf16.xpose.msra.mxu0 0
    %4936 = vmatprep.mubr.bf16.mxu0 0
    %4937 = vmatmul.mubr.bf16.gmra.mrb[0].mxu0 %v4423
    %v4938 = vpop.f32.mrb[0].mxu0
    %v4939 = vadd.f32 0.0, %v4938
    %v4940 = vpop.f32.mrb[0].mxu0
    %v4941 = vpop.f32.mrb[0].mxu0
    %v4942 = vadd.f32 0.0, %v4941
    %v4943 = vpop.f32.mrb[0].mxu0
    %4944 = vmatprep.mubr.bf16.mxu0 0
    %4945 = vmatmul.mubr.bf16.gmra.mrb[0].mxu0 %v4426
    %v4946 = vpop.f32.mrb[0].mxu0
    %v4947 = vadd.f32 0.0, %v4946
    %v4948 = vpop.f32.mrb[0].mxu0
    %v4949 = vpop.f32.mrb[0].mxu0
    %v4950 = vadd.f32 0.0, %v4949
    %v4951 = vpop.f32.mrb[0].mxu0
    %4952 = vmatprep.mubr.bf16.mxu0 0
    %4953 = vmatmul.mubr.bf16.gmra.mrb[0].mxu0 %v4429
    %v4954 = vpop.f32.mrb[0].mxu0
    %v4955 = vadd.f32 0.0, %v4954
    %v4956 = vpop.f32.mrb[0].mxu0
    %v4957 = vpop.f32.mrb[0].mxu0
    %v4958 = vpop.f32.mrb[0].mxu0
    %4959 = vdwg.mxu0
    %v4960 = vpack.c.bf16 %v4014, %v4011
    %v4961 = vpack.c.bf16 %v4079, %v4076
    %v4962 = vpack.c.bf16 %v4144, %v4141
    %v4963 = vpack.c.bf16 %v4209, %v4206
    %v4964 = vpack.c.bf16 %v4274, %v4271
    %v4965 = vpack.c.bf16 %v4339, %v4336
    %v4966 = vpack.c.bf16 %v4404, %v4401
    %v4967 = vpack.c.bf16 %v4469, %v4466
    %v4968 = vpack.c.bf16 %v4515, %v4512
    %v4969 = vpack.c.bf16 %v4523, %v4520
    %v4970 = vpack.c.bf16 %v4528, %v4528
    %v4971 = vpack.c.bf16 %v4576, %v4573
    %v4972 = vpack.c.bf16 %v4584, %v4581
    %v4973 = vpack.c.bf16 %v4589, %v4589
    %v4974 = vpack.c.bf16 %v4637, %v4634
    %v4975 = vpack.c.bf16 %v4645, %v4642
    %v4976 = vpack.c.bf16 %v4650, %v4650
    %v4977 = vpack.c.bf16 %v4698, %v4695
    %v4978 = vpack.c.bf16 %v4706, %v4703
    %v4979 = vpack.c.bf16 %v4711, %v4711
    %v4980 = vpack.c.bf16 %v4759, %v4756
    %v4981 = vpack.c.bf16 %v4767, %v4764
    %v4982 = vpack.c.bf16 %v4772, %v4772
    %v4983 = vpack.c.bf16 %v4820, %v4817
    %v4984 = vpack.c.bf16 %v4828, %v4825
    %v4985 = vpack.c.bf16 %v4833, %v4833
    %v4986 = vpack.c.bf16 %v4881, %v4878
    %v4987 = vpack.c.bf16 %v4889, %v4886
    %v4988 = vpack.c.bf16 %v4894, %v4894
    %v4989 = vpack.c.bf16 %v4942, %v4939
    %v4990 = vpack.c.bf16 %v4950, %v4947
    %v4991 = vpack.c.bf16 %v4955, %v4955
    %v4993 = vsel %vm2905, %v4960, 0
    %v4996 = vsel %vm2909, %v4970, 0
    %4998 = vmatprep.subr.bf16.mxu0 0
    %4999 = vmatpush1.bf16.msra.mxu0 %v4968
    %5000 = vmatprep.subr.bf16.mxu0 0
    %5001 = vmatpush1.bf16.msra.mxu0 %v4969
    %5002 = vmatprep.subr.bf16.mxu0 0
    %5003 = vmatpush1.bf16.msra.mxu0 %v4996
    %5004 = vmatprep.subr.bf16.mxu0 0
    %5005 = vmatpush1.bf16.msra.mxu0 0
    %5006 = vmatprep.subr.bf16.mxu0 0
    %5007 = vmatpush1.bf16.msra.mxu0 0
    %5008 = vmatprep.subr.bf16.mxu0 0
    %5009 = vmatpush1.bf16.msra.mxu0 0
    %5010 = vmatprep.subr.bf16.mxu0 0
    %5011 = vmatpush1.bf16.msra.mxu0 0
    %5012 = vmatprep.subr.bf16.mxu0 0
    %5013 = vmatpush1.bf16.msra.mxu0 0
    %5014 = vmatprep.subr.bf16.mxu0 0
    %5015 = vmatpush1.bf16.msra.mxu0 0
    %5016 = vmatprep.subr.bf16.mxu0 0
    %5017 = vmatpush1.bf16.msra.mxu0 0
    %5018 = vmatprep.subr.bf16.mxu0 0
    %5019 = vmatpush1.bf16.msra.mxu0 0
    %5020 = vmatprep.subr.bf16.mxu0 0
    %5021 = vmatpush1.bf16.msra.mxu0 0
    %5022 = vmatprep.subr.bf16.mxu0 0
    %5023 = vmatpush1.bf16.msra.mxu0 0
    %5024 = vmatprep.subr.bf16.mxu0 0
    %5025 = vmatpush1.bf16.msra.mxu0 0
    %5026 = vmatprep.subr.bf16.mxu0 0
    %5027 = vmatpush1.bf16.msra.mxu0 0
    %5028 = vmatprep.subr.bf16.mxu0 0
    %5029 = vmatpush1.bf16.msra.mxu0 0
    %5030 = vmatprep.mubr.bf16.mxu0 0
    %5031 = vmatmul.mubr.bf16.gmra.mrb[0].mxu0 %v4993
    %v5032 = vpop.f32.mrb[0].mxu0
    %v5033 = vadd.f32 0.0, %v5032
    %v5034 = vpop.f32.mrb[0].mxu0
    %v5035 = vpop.f32.mrb[0].mxu0
    %v5036 = vadd.f32 0.0, %v5035
    %v5037 = vpop.f32.mrb[0].mxu0
    %5038 = vdwg.mxu0
    %v5040 = vsel %vm2905, %v4961, 0
    %v5043 = vsel %vm2909, %v4973, 0
    %5045 = vmatprep.subr.bf16.mxu0 0
    %5046 = vmatpush1.bf16.msra.mxu0 %v4971
    %5047 = vmatprep.subr.bf16.mxu0 0
    %5048 = vmatpush1.bf16.msra.mxu0 %v4972
    %5049 = vmatprep.subr.bf16.mxu0 0
    %5050 = vmatpush1.bf16.msra.mxu0 %v5043
    %5051 = vmatprep.subr.bf16.mxu0 0
    %5052 = vmatpush1.bf16.msra.mxu0 0
    %5053 = vmatprep.subr.bf16.mxu0 0
    %5054 = vmatpush1.bf16.msra.mxu0 0
    %5055 = vmatprep.subr.bf16.mxu0 0
    %5056 = vmatpush1.bf16.msra.mxu0 0
    %5057 = vmatprep.subr.bf16.mxu0 0
    %5058 = vmatpush1.bf16.msra.mxu0 0
    %5059 = vmatprep.subr.bf16.mxu0 0
    %5060 = vmatpush1.bf16.msra.mxu0 0
    %5061 = vmatprep.subr.bf16.mxu0 0
    %5062 = vmatpush1.bf16.msra.mxu0 0
    %5063 = vmatprep.subr.bf16.mxu0 0
    %5064 = vmatpush1.bf16.msra.mxu0 0
    %5065 = vmatprep.subr.bf16.mxu0 0
    %5066 = vmatpush1.bf16.msra.mxu0 0
    %5067 = vmatprep.subr.bf16.mxu0 0
    %5068 = vmatpush1.bf16.msra.mxu0 0
    %5069 = vmatprep.subr.bf16.mxu0 0
    %5070 = vmatpush1.bf16.msra.mxu0 0
    %5071 = vmatprep.subr.bf16.mxu0 0
    %5072 = vmatpush1.bf16.msra.mxu0 0
    %5073 = vmatprep.subr.bf16.mxu0 0
    %5074 = vmatpush1.bf16.msra.mxu0 0
    %5075 = vmatprep.subr.bf16.mxu0 0
    %5076 = vmatpush1.bf16.msra.mxu0 0
    %5077 = vmatprep.mubr.bf16.mxu0 0
    %5078 = vmatmul.mubr.bf16.gmra.mrb[0].mxu0 %v5040
    %v5079 = vpop.f32.mrb[0].mxu0
    %v5080 = vadd.f32 0.0, %v5079
    %v5081 = vpop.f32.mrb[0].mxu0
    %v5082 = vpop.f32.mrb[0].mxu0
    %v5083 = vadd.f32 0.0, %v5082
    %v5084 = vpop.f32.mrb[0].mxu0
    %5085 = vdwg.mxu0
    %v5087 = vsel %vm2905, %v4962, 0
    %v5090 = vsel %vm2909, %v4976, 0
    %5092 = vmatprep.subr.bf16.mxu0 0
    %5093 = vmatpush1.bf16.msra.mxu0 %v4974
    %5094 = vmatprep.subr.bf16.mxu0 0
    %5095 = vmatpush1.bf16.msra.mxu0 %v4975
    %5096 = vmatprep.subr.bf16.mxu0 0
    %5097 = vmatpush1.bf16.msra.mxu0 %v5090
    %5098 = vmatprep.subr.bf16.mxu0 0
    %5099 = vmatpush1.bf16.msra.mxu0 0
    %5100 = vmatprep.subr.bf16.mxu0 0
    %5101 = vmatpush1.bf16.msra.mxu0 0
    %5102 = vmatprep.subr.bf16.mxu0 0
    %5103 = vmatpush1.bf16.msra.mxu0 0
    %5104 = vmatprep.subr.bf16.mxu0 0
    %5105 = vmatpush1.bf16.msra.mxu0 0
    %5106 = vmatprep.subr.bf16.mxu0 0
    %5107 = vmatpush1.bf16.msra.mxu0 0
    %5108 = vmatprep.subr.bf16.mxu0 0
    %5109 = vmatpush1.bf16.msra.mxu0 0
    %5110 = vmatprep.subr.bf16.mxu0 0
    %5111 = vmatpush1.bf16.msra.mxu0 0
    %5112 = vmatprep.subr.bf16.mxu0 0
    %5113 = vmatpush1.bf16.msra.mxu0 0
    %5114 = vmatprep.subr.bf16.mxu0 0
    %5115 = vmatpush1.bf16.msra.mxu0 0
    %5116 = vmatprep.subr.bf16.mxu0 0
    %5117 = vmatpush1.bf16.msra.mxu0 0
    %5118 = vmatprep.subr.bf16.mxu0 0
    %5119 = vmatpush1.bf16.msra.mxu0 0
    %5120 = vmatprep.subr.bf16.mxu0 0
    %5121 = vmatpush1.bf16.msra.mxu0 0
    %5122 = vmatprep.subr.bf16.mxu0 0
    %5123 = vmatpush1.bf16.msra.mxu0 0
    %5124 = vmatprep.mubr.bf16.mxu0 0
    %5125 = vmatmul.mubr.bf16.gmra.mrb[0].mxu0 %v5087
    %v5126 = vpop.f32.mrb[0].mxu0
    %v5127 = vadd.f32 0.0, %v5126
    %v5128 = vpop.f32.mrb[0].mxu0
    %v5129 = vpop.f32.mrb[0].mxu0
    %v5130 = vadd.f32 0.0, %v5129
    %v5131 = vpop.f32.mrb[0].mxu0
    %5132 = vdwg.mxu0
    %v5134 = vsel %vm2905, %v4963, 0
    %v5137 = vsel %vm2909, %v4979, 0
    %5139 = vmatprep.subr.bf16.mxu0 0
    %5140 = vmatpush1.bf16.msra.mxu0 %v4977
    %5141 = vmatprep.subr.bf16.mxu0 0
    %5142 = vmatpush1.bf16.msra.mxu0 %v4978
    %5143 = vmatprep.subr.bf16.mxu0 0
    %5144 = vmatpush1.bf16.msra.mxu0 %v5137
    %5145 = vmatprep.subr.bf16.mxu0 0
    %5146 = vmatpush1.bf16.msra.mxu0 0
    %5147 = vmatprep.subr.bf16.mxu0 0
    %5148 = vmatpush1.bf16.msra.mxu0 0
    %5149 = vmatprep.subr.bf16.mxu0 0
    %5150 = vmatpush1.bf16.msra.mxu0 0
    %5151 = vmatprep.subr.bf16.mxu0 0
    %5152 = vmatpush1.bf16.msra.mxu0 0
    %5153 = vmatprep.subr.bf16.mxu0 0
    %5154 = vmatpush1.bf16.msra.mxu0 0
    %5155 = vmatprep.subr.bf16.mxu0 0
    %5156 = vmatpush1.bf16.msra.mxu0 0
    %5157 = vmatprep.subr.bf16.mxu0 0
    %5158 = vmatpush1.bf16.msra.mxu0 0
    %5159 = vmatprep.subr.bf16.mxu0 0
    %5160 = vmatpush1.bf16.msra.mxu0 0
    %5161 = vmatprep.subr.bf16.mxu0 0
    %5162 = vmatpush1.bf16.msra.mxu0 0
    %5163 = vmatprep.subr.bf16.mxu0 0
    %5164 = vmatpush1.bf16.msra.mxu0 0
    %5165 = vmatprep.subr.bf16.mxu0 0
    %5166 = vmatpush1.bf16.msra.mxu0 0
    %5167 = vmatprep.subr.bf16.mxu0 0
    %5168 = vmatpush1.bf16.msra.mxu0 0
    %5169 = vmatprep.subr.bf16.mxu0 0
    %5170 = vmatpush1.bf16.msra.mxu0 0
    %5171 = vmatprep.mubr.bf16.mxu0 0
    %5172 = vmatmul.mubr.bf16.gmra.mrb[0].mxu0 %v5134
    %v5173 = vpop.f32.mrb[0].mxu0
    %v5174 = vadd.f32 0.0, %v5173
    %v5175 = vpop.f32.mrb[0].mxu0
    %v5176 = vpop.f32.mrb[0].mxu0
    %v5177 = vadd.f32 0.0, %v5176
    %v5178 = vpop.f32.mrb[0].mxu0
    %5179 = vdwg.mxu0
    %v5181 = vsel %vm2905, %v4964, 0
    %v5184 = vsel %vm2909, %v4982, 0
    %5186 = vmatprep.subr.bf16.mxu0 0
    %5187 = vmatpush1.bf16.msra.mxu0 %v4980
    %5188 = vmatprep.subr.bf16.mxu0 0
    %5189 = vmatpush1.bf16.msra.mxu0 %v4981
    %5190 = vmatprep.subr.bf16.mxu0 0
    %5191 = vmatpush1.bf16.msra.mxu0 %v5184
    %5192 = vmatprep.subr.bf16.mxu0 0
    %5193 = vmatpush1.bf16.msra.mxu0 0
    %5194 = vmatprep.subr.bf16.mxu0 0
    %5195 = vmatpush1.bf16.msra.mxu0 0
    %5196 = vmatprep.subr.bf16.mxu0 0
    %5197 = vmatpush1.bf16.msra.mxu0 0
    %5198 = vmatprep.subr.bf16.mxu0 0
    %5199 = vmatpush1.bf16.msra.mxu0 0
    %5200 = vmatprep.subr.bf16.mxu0 0
    %5201 = vmatpush1.bf16.msra.mxu0 0
    %5202 = vmatprep.subr.bf16.mxu0 0
    %5203 = vmatpush1.bf16.msra.mxu0 0
    %5204 = vmatprep.subr.bf16.mxu0 0
    %5205 = vmatpush1.bf16.msra.mxu0 0
    %5206 = vmatprep.subr.bf16.mxu0 0
    %5207 = vmatpush1.bf16.msra.mxu0 0
    %5208 = vmatprep.subr.bf16.mxu0 0
    %5209 = vmatpush1.bf16.msra.mxu0 0
    %5210 = vmatprep.subr.bf16.mxu0 0
    %5211 = vmatpush1.bf16.msra.mxu0 0
    %5212 = vmatprep.subr.bf16.mxu0 0
    %5213 = vmatpush1.bf16.msra.mxu0 0
    %5214 = vmatprep.subr.bf16.mxu0 0
    %5215 = vmatpush1.bf16.msra.mxu0 0
    %5216 = vmatprep.subr.bf16.mxu0 0
    %5217 = vmatpush1.bf16.msra.mxu0 0
    %5218 = vmatprep.mubr.bf16.mxu0 0
    %5219 = vmatmul.mubr.bf16.gmra.mrb[0].mxu0 %v5181
    %v5220 = vpop.f32.mrb[0].mxu0
    %v5221 = vadd.f32 0.0, %v5220
    %v5222 = vpop.f32.mrb[0].mxu0
    %v5223 = vpop.f32.mrb[0].mxu0
    %v5224 = vadd.f32 0.0, %v5223
    %v5225 = vpop.f32.mrb[0].mxu0
    %5226 = vdwg.mxu0
    %v5228 = vsel %vm2905, %v4965, 0
    %v5231 = vsel %vm2909, %v4985, 0
    %5233 = vmatprep.subr.bf16.mxu0 0
    %5234 = vmatpush1.bf16.msra.mxu0 %v4983
    %5235 = vmatprep.subr.bf16.mxu0 0
    %5236 = vmatpush1.bf16.msra.mxu0 %v4984
    %5237 = vmatprep.subr.bf16.mxu0 0
    %5238 = vmatpush1.bf16.msra.mxu0 %v5231
    %5239 = vmatprep.subr.bf16.mxu0 0
    %5240 = vmatpush1.bf16.msra.mxu0 0
    %5241 = vmatprep.subr.bf16.mxu0 0
    %5242 = vmatpush1.bf16.msra.mxu0 0
    %5243 = vmatprep.subr.bf16.mxu0 0
    %5244 = vmatpush1.bf16.msra.mxu0 0
    %5245 = vmatprep.subr.bf16.mxu0 0
    %5246 = vmatpush1.bf16.msra.mxu0 0
    %5247 = vmatprep.subr.bf16.mxu0 0
    %5248 = vmatpush1.bf16.msra.mxu0 0
    %5249 = vmatprep.subr.bf16.mxu0 0
    %5250 = vmatpush1.bf16.msra.mxu0 0
    %5251 = vmatprep.subr.bf16.mxu0 0
    %5252 = vmatpush1.bf16.msra.mxu0 0
    %5253 = vmatprep.subr.bf16.mxu0 0
    %5254 = vmatpush1.bf16.msra.mxu0 0
    %5255 = vmatprep.subr.bf16.mxu0 0
    %5256 = vmatpush1.bf16.msra.mxu0 0
    %5257 = vmatprep.subr.bf16.mxu0 0
    %5258 = vmatpush1.bf16.msra.mxu0 0
    %5259 = vmatprep.subr.bf16.mxu0 0
    %5260 = vmatpush1.bf16.msra.mxu0 0
    %5261 = vmatprep.subr.bf16.mxu0 0
    %5262 = vmatpush1.bf16.msra.mxu0 0
    %5263 = vmatprep.subr.bf16.mxu0 0
    %5264 = vmatpush1.bf16.msra.mxu0 0
    %5265 = vmatprep.mubr.bf16.mxu0 0
    %5266 = vmatmul.mubr.bf16.gmra.mrb[0].mxu0 %v5228
    %v5267 = vpop.f32.mrb[0].mxu0
    %v5268 = vadd.f32 0.0, %v5267
    %v5269 = vpop.f32.mrb[0].mxu0
    %v5270 = vpop.f32.mrb[0].mxu0
    %v5271 = vadd.f32 0.0, %v5270
    %v5272 = vpop.f32.mrb[0].mxu0
    %5273 = vdwg.mxu0
    %v5275 = vsel %vm2905, %v4966, 0
    %v5278 = vsel %vm2909, %v4988, 0
    %5280 = vmatprep.subr.bf16.mxu0 0
    %5281 = vmatpush1.bf16.msra.mxu0 %v4986
    %5282 = vmatprep.subr.bf16.mxu0 0
    %5283 = vmatpush1.bf16.msra.mxu0 %v4987
    %5284 = vmatprep.subr.bf16.mxu0 0
    %5285 = vmatpush1.bf16.msra.mxu0 %v5278
    %5286 = vmatprep.subr.bf16.mxu0 0
    %5287 = vmatpush1.bf16.msra.mxu0 0
    %5288 = vmatprep.subr.bf16.mxu0 0
    %5289 = vmatpush1.bf16.msra.mxu0 0
    %5290 = vmatprep.subr.bf16.mxu0 0
    %5291 = vmatpush1.bf16.msra.mxu0 0
    %5292 = vmatprep.subr.bf16.mxu0 0
    %5293 = vmatpush1.bf16.msra.mxu0 0
    %5294 = vmatprep.subr.bf16.mxu0 0
    %5295 = vmatpush1.bf16.msra.mxu0 0
    %5296 = vmatprep.subr.bf16.mxu0 0
    %5297 = vmatpush1.bf16.msra.mxu0 0
    %5298 = vmatprep.subr.bf16.mxu0 0
    %5299 = vmatpush1.bf16.msra.mxu0 0
    %5300 = vmatprep.subr.bf16.mxu0 0
    %5301 = vmatpush1.bf16.msra.mxu0 0
    %5302 = vmatprep.subr.bf16.mxu0 0
    %5303 = vmatpush1.bf16.msra.mxu0 0
    %5304 = vmatprep.subr.bf16.mxu0 0
    %5305 = vmatpush1.bf16.msra.mxu0 0
    %5306 = vmatprep.subr.bf16.mxu0 0
    %5307 = vmatpush1.bf16.msra.mxu0 0
    %5308 = vmatprep.subr.bf16.mxu0 0
    %5309 = vmatpush1.bf16.msra.mxu0 0
    %5310 = vmatprep.subr.bf16.mxu0 0
    %5311 = vmatpush1.bf16.msra.mxu0 0
    %5312 = vmatprep.mubr.bf16.mxu0 0
    %5313 = vmatmul.mubr.bf16.gmra.mrb[0].mxu0 %v5275
    %v5314 = vpop.f32.mrb[0].mxu0
    %v5315 = vadd.f32 0.0, %v5314
    %v5316 = vpop.f32.mrb[0].mxu0
    %v5317 = vpop.f32.mrb[0].mxu0
    %v5318 = vadd.f32 0.0, %v5317
    %v5319 = vpop.f32.mrb[0].mxu0
    %5320 = vdwg.mxu0
    %v5322 = vsel %vm2905, %v4967, 0
    %v5325 = vsel %vm2909, %v4991, 0
    %5327 = vmatprep.subr.bf16.mxu0 0
    %5328 = vmatpush1.bf16.msra.mxu0 %v4989
    %5329 = vmatprep.subr.bf16.mxu0 0
    %5330 = vmatpush1.bf16.msra.mxu0 %v4990
    %5331 = vmatprep.subr.bf16.mxu0 0
    %5332 = vmatpush1.bf16.msra.mxu0 %v5325
    %5333 = vmatprep.subr.bf16.mxu0 0
    %5334 = vmatpush1.bf16.msra.mxu0 0
    %5335 = vmatprep.subr.bf16.mxu0 0
    %5336 = vmatpush1.bf16.msra.mxu0 0
    %5337 = vmatprep.subr.bf16.mxu0 0
    %5338 = vmatpush1.bf16.msra.mxu0 0
    %5339 = vmatprep.subr.bf16.mxu0 0
    %5340 = vmatpush1.bf16.msra.mxu0 0
    %5341 = vmatprep.subr.bf16.mxu0 0
    %5342 = vmatpush1.bf16.msra.mxu0 0
    %5343 = vmatprep.subr.bf16.mxu0 0
    %5344 = vmatpush1.bf16.msra.mxu0 0
    %5345 = vmatprep.subr.bf16.mxu0 0
    %5346 = vmatpush1.bf16.msra.mxu0 0
    %5347 = vmatprep.subr.bf16.mxu0 0
    %5348 = vmatpush1.bf16.msra.mxu0 0
    %5349 = vmatprep.subr.bf16.mxu0 0
    %5350 = vmatpush1.bf16.msra.mxu0 0
    %5351 = vmatprep.subr.bf16.mxu0 0
    %5352 = vmatpush1.bf16.msra.mxu0 0
    %5353 = vmatprep.subr.bf16.mxu0 0
    %5354 = vmatpush1.bf16.msra.mxu0 0
    %5355 = vmatprep.subr.bf16.mxu0 0
    %5356 = vmatpush1.bf16.msra.mxu0 0
    %5357 = vmatprep.subr.bf16.mxu0 0
    %5358 = vmatpush1.bf16.msra.mxu0 0
    %5359 = vmatprep.mubr.bf16.mxu0 0
    %5360 = vmatmul.mubr.bf16.gmra.mrb[0].mxu0 %v5322
    %v5361 = vpop.f32.mrb[0].mxu0
    %v5362 = vadd.f32 0.0, %v5361
    %v5363 = vpop.f32.mrb[0].mxu0
    %v5364 = vpop.f32.mrb[0].mxu0
    %v5365 = vadd.f32 0.0, %v5364
    %v5366 = vpop.f32.mrb[0].mxu0
    %5367 = vdwg.mxu0
    %v5368 = vsel %vm1931, %v5033, -inf
    %5369 = vmax.xlane.f32.xlu0 %v5368
    %v5370 = vpop.xlane.xlu0 %5369
    %v5371 = vsel %vm1931, %v5036, -inf
    %5372 = vmax.xlane.f32.xlu0 %v5371
    %v5373 = vpop.xlane.xlu0 %5372
    %v5374 = vsel %vm1931, %v5080, -inf
    %5375 = vmax.xlane.f32.xlu0 %v5374
    %v5376 = vpop.xlane.xlu0 %5375
    %v5377 = vsel %vm1931, %v5083, -inf
    %5378 = vmax.xlane.f32.xlu0 %v5377
    %v5379 = vpop.xlane.xlu0 %5378
    %v5380 = vsel %vm1931, %v5127, -inf
    %5381 = vmax.xlane.f32.xlu0 %v5380
    %v5382 = vpop.xlane.xlu0 %5381
    %v5383 = vsel %vm1931, %v5130, -inf
    %5384 = vmax.xlane.f32.xlu0 %v5383
    %v5385 = vpop.xlane.xlu0 %5384
    %v5386 = vsel %vm1931, %v5174, -inf
    %5387 = vmax.xlane.f32.xlu0 %v5386
    %v5388 = vpop.xlane.xlu0 %5387
    %v5389 = vsel %vm1931, %v5177, -inf
    %5390 = vmax.xlane.f32.xlu0 %v5389
    %v5391 = vpop.xlane.xlu0 %5390
    %v5392 = vsel %vm1931, %v5221, -inf
    %5393 = vmax.xlane.f32.xlu0 %v5392
    %v5394 = vpop.xlane.xlu0 %5393
    %v5395 = vsel %vm1931, %v5224, -inf
    %5396 = vmax.xlane.f32.xlu0 %v5395
    %v5397 = vpop.xlane.xlu0 %5396
    %v5398 = vsel %vm1931, %v5268, -inf
    %5399 = vmax.xlane.f32.xlu0 %v5398
    %v5400 = vpop.xlane.xlu0 %5399
    %v5401 = vsel %vm1931, %v5271, -inf
    %5402 = vmax.xlane.f32.xlu0 %v5401
    %v5403 = vpop.xlane.xlu0 %5402
    %v5404 = vsel %vm1931, %v5315, -inf
    %5405 = vmax.xlane.f32.xlu0 %v5404
    %v5406 = vpop.xlane.xlu0 %5405
    %v5407 = vsel %vm1931, %v5318, -inf
    %5408 = vmax.xlane.f32.xlu0 %v5407
    %v5409 = vpop.xlane.xlu0 %5408
    %v5410 = vsel %vm1931, %v5362, -inf
    %5411 = vmax.xlane.f32.xlu0 %v5410
    %v5412 = vpop.xlane.xlu0 %5411
    %v5413 = vsel %vm1931, %v5365, -inf
    %5414 = vmax.xlane.f32.xlu0 %v5413
    %v5415 = vpop.xlane.xlu0 %5414
    %v5416 = vsub.f32 %v5033, %v5370
    %v5417 = vsub.f32 %v5036, %v5373
    %v5418 = vsub.f32 %v5080, %v5376
    %v5419 = vsub.f32 %v5083, %v5379
    %v5420 = vsub.f32 %v5127, %v5382
    %v5421 = vsub.f32 %v5130, %v5385
    %v5422 = vsub.f32 %v5174, %v5388
    %v5423 = vsub.f32 %v5177, %v5391
    %v5424 = vsub.f32 %v5221, %v5394
    %v5425 = vsub.f32 %v5224, %v5397
    %v5426 = vsub.f32 %v5268, %v5400
    %v5427 = vsub.f32 %v5271, %v5403
    %v5428 = vsub.f32 %v5315, %v5406
    %v5429 = vsub.f32 %v5318, %v5409
    %v5430 = vsub.f32 %v5362, %v5412
    %v5431 = vsub.f32 %v5365, %v5415
    %v5432 = vmul.f32 %v5416, 1.442695
    %v5433 = vpow.pop %v5432
    %v5434 = vmul.f32 %v5417, 1.442695
    %v5435 = vpow.pop %v5434
    %v5436 = vmul.f32 %v5418, 1.442695
    %v5437 = vpow.pop %v5436
    %v5438 = vmul.f32 %v5419, 1.442695
    %v5439 = vpow.pop %v5438
    %v5440 = vmul.f32 %v5420, 1.442695
    %v5441 = vpow.pop %v5440
    %v5442 = vmul.f32 %v5421, 1.442695
    %v5443 = vpow.pop %v5442
    %v5444 = vmul.f32 %v5422, 1.442695
    %v5445 = vpow.pop %v5444
    %v5446 = vmul.f32 %v5423, 1.442695
    %v5447 = vpow.pop %v5446
    %v5448 = vmul.f32 %v5424, 1.442695
    %v5449 = vpow.pop %v5448
    %v5450 = vmul.f32 %v5425, 1.442695
    %v5451 = vpow.pop %v5450
    %v5452 = vmul.f32 %v5426, 1.442695
    %v5453 = vpow.pop %v5452
    %v5454 = vmul.f32 %v5427, 1.442695
    %v5455 = vpow.pop %v5454
    %v5456 = vmul.f32 %v5428, 1.442695
    %v5457 = vpow.pop %v5456
    %v5458 = vmul.f32 %v5429, 1.442695
    %v5459 = vpow.pop %v5458
    %v5460 = vmul.f32 %v5430, 1.442695
    %v5461 = vpow.pop %v5460
    %v5462 = vmul.f32 %v5431, 1.442695
    %v5463 = vpow.pop %v5462
    %v5464 = vsel %vm1931, %v5433, 0.0
    %5465 = vadd.xlane.f32.xlu0 %v5464
    %v5466 = vpop.xlane.xlu0 %5465
    %v5467 = vsel %vm1931, %v5435, 0.0
    %5468 = vadd.xlane.f32.xlu0 %v5467
    %v5469 = vpop.xlane.xlu0 %5468
    %v5470 = vsel %vm1931, %v5437, 0.0
    %5471 = vadd.xlane.f32.xlu0 %v5470
    %v5472 = vpop.xlane.xlu0 %5471
    %v5473 = vsel %vm1931, %v5439, 0.0
    %5474 = vadd.xlane.f32.xlu0 %v5473
    %v5475 = vpop.xlane.xlu0 %5474
    %v5476 = vsel %vm1931, %v5441, 0.0
    %5477 = vadd.xlane.f32.xlu0 %v5476
    %v5478 = vpop.xlane.xlu0 %5477
    %v5479 = vsel %vm1931, %v5443, 0.0
    %5480 = vadd.xlane.f32.xlu0 %v5479
    %v5481 = vpop.xlane.xlu0 %5480
    %v5482 = vsel %vm1931, %v5445, 0.0
    %5483 = vadd.xlane.f32.xlu0 %v5482
    %v5484 = vpop.xlane.xlu0 %5483
    %v5485 = vsel %vm1931, %v5447, 0.0
    %5486 = vadd.xlane.f32.xlu0 %v5485
    %v5487 = vpop.xlane.xlu0 %5486
    %v5488 = vsel %vm1931, %v5449, 0.0
    %5489 = vadd.xlane.f32.xlu0 %v5488
    %v5490 = vpop.xlane.xlu0 %5489
    %v5491 = vsel %vm1931, %v5451, 0.0
    %5492 = vadd.xlane.f32.xlu0 %v5491
    %v5493 = vpop.xlane.xlu0 %5492
    %v5494 = vsel %vm1931, %v5453, 0.0
    %5495 = vadd.xlane.f32.xlu0 %v5494
    %v5496 = vpop.xlane.xlu0 %5495
    %v5497 = vsel %vm1931, %v5455, 0.0
    %5498 = vadd.xlane.f32.xlu0 %v5497
    %v5499 = vpop.xlane.xlu0 %5498
    %v5500 = vsel %vm1931, %v5457, 0.0
    %5501 = vadd.xlane.f32.xlu0 %v5500
    %v5502 = vpop.xlane.xlu0 %5501
    %v5503 = vsel %vm1931, %v5459, 0.0
    %5504 = vadd.xlane.f32.xlu0 %v5503
    %v5505 = vpop.xlane.xlu0 %5504
    %v5506 = vsel %vm1931, %v5461, 0.0
    %5507 = vadd.xlane.f32.xlu0 %v5506
    %v5508 = vpop.xlane.xlu0 %5507
    %v5509 = vsel %vm1931, %v5463, 0.0
    %5510 = vadd.xlane.f32.xlu0 %v5509
    %v5511 = vpop.xlane.xlu0 %5510
    %v5512 = vrcp.pop %v5466
    %v5513 = vrcp.pop %v5469
    %v5514 = vrcp.pop %v5472
    %v5515 = vrcp.pop %v5475
    %v5516 = vrcp.pop %v5478
    %v5517 = vrcp.pop %v5481
    %v5518 = vrcp.pop %v5484
    %v5519 = vrcp.pop %v5487
    %v5520 = vrcp.pop %v5490
    %v5521 = vrcp.pop %v5493
    %v5522 = vrcp.pop %v5496
    %v5523 = vrcp.pop %v5499
    %v5524 = vrcp.pop %v5502
    %v5525 = vrcp.pop %v5505
    %v5526 = vrcp.pop %v5508
    %v5527 = vrcp.pop %v5511
    %v5528 = vmul.f32 %v5433, %v5512
    %v5529 = vmul.f32 %v5435, %v5513
    %v5530 = vmul.f32 %v5437, %v5514
    %v5531 = vmul.f32 %v5439, %v5515
    %v5532 = vmul.f32 %v5441, %v5516
    %v5533 = vmul.f32 %v5443, %v5517
    %v5534 = vmul.f32 %v5445, %v5518
    %v5535 = vmul.f32 %v5447, %v5519
    %v5536 = vmul.f32 %v5449, %v5520
    %v5537 = vmul.f32 %v5451, %v5521
    %v5538 = vmul.f32 %v5453, %v5522
    %v5539 = vmul.f32 %v5455, %v5523
    %v5540 = vmul.f32 %v5457, %v5524
    %v5541 = vmul.f32 %v5459, %v5525
    %v5542 = vmul.f32 %v5461, %v5526
    %v5543 = vmul.f32 %v5463, %v5527
    %v5544 = vpack.c.bf16 %v5529, %v5528
    %v5545 = vpack.c.bf16 %v5531, %v5530
    %v5546 = vpack.c.bf16 %v5533, %v5532
    %v5547 = vpack.c.bf16 %v5535, %v5534
    %v5548 = vpack.c.bf16 %v5537, %v5536
    %v5549 = vpack.c.bf16 %v5539, %v5538
    %v5550 = vpack.c.bf16 %v5541, %v5540
    %v5551 = vpack.c.bf16 %v5543, %v5542
    %5552 = vrot.lane.b32.xlu0 %v3859, 48
    %v5553 = vpop.permute.xlu0 %5552
    %v5556 = vsel %vm1931, %v5544, 0
    %5558 = vmatprep.subr.bf16.mxu0 0
    %5559 = vmatpush1.bf16.msra.mxu0 %v5553
    %5560 = vmatprep.subr.bf16.mxu0 0
    %5561 = vmatpush1.bf16.msra.mxu0 0
    %5562 = vmatprep.subr.bf16.mxu0 0
    %5563 = vmatpush1.bf16.msra.mxu0 0
    %5564 = vmatprep.subr.bf16.mxu0 0
    %5565 = vmatpush1.bf16.msra.mxu0 0
    %5566 = vmatprep.subr.bf16.mxu0 0
    %5567 = vmatpush1.bf16.msra.mxu0 0
    %5568 = vmatprep.subr.bf16.mxu0 0
    %5569 = vmatpush1.bf16.msra.mxu0 0
    %5570 = vmatprep.subr.bf16.mxu0 0
    %5571 = vmatpush1.bf16.msra.mxu0 0
    %5572 = vmatprep.subr.bf16.mxu0 0
    %5573 = vmatpush1.bf16.msra.mxu0 0
    %5574 = vmatprep.subr.bf16.mxu0 0
    %5575 = vmatpush1.bf16.msra.mxu0 0
    %5576 = vmatprep.subr.bf16.mxu0 0
    %5577 = vmatpush1.bf16.msra.mxu0 0
    %5578 = vmatprep.subr.bf16.mxu0 0
    %5579 = vmatpush1.bf16.msra.mxu0 0
    %5580 = vmatprep.subr.bf16.mxu0 0
    %5581 = vmatpush1.bf16.msra.mxu0 0
    %5582 = vmatprep.subr.bf16.mxu0 0
    %5583 = vmatpush1.bf16.msra.mxu0 0
    %5584 = vmatprep.subr.bf16.mxu0 0
    %5585 = vmatpush1.bf16.msra.mxu0 0
    %5586 = vmatprep.subr.bf16.mxu0 0
    %5587 = vmatpush1.bf16.msra.mxu0 0
    %5588 = vmatprep.subr.bf16.mxu0 0
    %5589 = vmatpush1.bf16.msra.mxu0 0
    %5590 = vmatprep.mubr.bf16.mxu0 0
    %5591 = vmatmul.mubr.bf16.gmra.mrb[0].mxu0 %v5556
    %v5592 = vpop.f32.mrb[0].mxu0
    %v5593 = vadd.f32 0.0, %v5592
    %v5594 = vpop.f32.mrb[0].mxu0
    %v5595 = vpop.f32.mrb[0].mxu0
    %v5596 = vadd.f32 0.0, %v5595
    %v5597 = vpop.f32.mrb[0].mxu0
    %5598 = vdwg.mxu0
    %5599 = vrot.lane.b32.xlu0 %v3860, 48
    %v5600 = vpop.permute.xlu0 %5599
    %v5603 = vsel %vm1931, %v5545, 0
    %5605 = vmatprep.subr.bf16.mxu0 0
    %5606 = vmatpush1.bf16.msra.mxu0 %v5600
    %5607 = vmatprep.subr.bf16.mxu0 0
    %5608 = vmatpush1.bf16.msra.mxu0 0
    %5609 = vmatprep.subr.bf16.mxu0 0
    %5610 = vmatpush1.bf16.msra.mxu0 0
    %5611 = vmatprep.subr.bf16.mxu0 0
    %5612 = vmatpush1.bf16.msra.mxu0 0
    %5613 = vmatprep.subr.bf16.mxu0 0
    %5614 = vmatpush1.bf16.msra.mxu0 0
    %5615 = vmatprep.subr.bf16.mxu0 0
    %5616 = vmatpush1.bf16.msra.mxu0 0
    %5617 = vmatprep.subr.bf16.mxu0 0
    %5618 = vmatpush1.bf16.msra.mxu0 0
    %5619 = vmatprep.subr.bf16.mxu0 0
    %5620 = vmatpush1.bf16.msra.mxu0 0
    %5621 = vmatprep.subr.bf16.mxu0 0
    %5622 = vmatpush1.bf16.msra.mxu0 0
    %5623 = vmatprep.subr.bf16.mxu0 0
    %5624 = vmatpush1.bf16.msra.mxu0 0
    %5625 = vmatprep.subr.bf16.mxu0 0
    %5626 = vmatpush1.bf16.msra.mxu0 0
    %5627 = vmatprep.subr.bf16.mxu0 0
    %5628 = vmatpush1.bf16.msra.mxu0 0
    %5629 = vmatprep.subr.bf16.mxu0 0
    %5630 = vmatpush1.bf16.msra.mxu0 0
    %5631 = vmatprep.subr.bf16.mxu0 0
    %5632 = vmatpush1.bf16.msra.mxu0 0
    %5633 = vmatprep.subr.bf16.mxu0 0
    %5634 = vmatpush1.bf16.msra.mxu0 0
    %5635 = vmatprep.subr.bf16.mxu0 0
    %5636 = vmatpush1.bf16.msra.mxu0 0
    %5637 = vmatprep.mubr.bf16.mxu0 0
    %5638 = vmatmul.mubr.bf16.gmra.mrb[0].mxu0 %v5603
    %v5639 = vpop.f32.mrb[0].mxu0
    %v5640 = vadd.f32 0.0, %v5639
    %v5641 = vpop.f32.mrb[0].mxu0
    %v5642 = vpop.f32.mrb[0].mxu0
    %v5643 = vadd.f32 0.0, %v5642
    %v5644 = vpop.f32.mrb[0].mxu0
    %5645 = vdwg.mxu0
    %5646 = vrot.lane.b32.xlu0 %v3861, 48
    %v5647 = vpop.permute.xlu0 %5646
    %v5650 = vsel %vm1931, %v5546, 0
    %5652 = vmatprep.subr.bf16.mxu0 0
    %5653 = vmatpush1.bf16.msra.mxu0 %v5647
    %5654 = vmatprep.subr.bf16.mxu0 0
    %5655 = vmatpush1.bf16.msra.mxu0 0
    %5656 = vmatprep.subr.bf16.mxu0 0
    %5657 = vmatpush1.bf16.msra.mxu0 0
    %5658 = vmatprep.subr.bf16.mxu0 0
    %5659 = vmatpush1.bf16.msra.mxu0 0
    %5660 = vmatprep.subr.bf16.mxu0 0
    %5661 = vmatpush1.bf16.msra.mxu0 0
    %5662 = vmatprep.subr.bf16.mxu0 0
    %5663 = vmatpush1.bf16.msra.mxu0 0
    %5664 = vmatprep.subr.bf16.mxu0 0
    %5665 = vmatpush1.bf16.msra.mxu0 0
    %5666 = vmatprep.subr.bf16.mxu0 0
    %5667 = vmatpush1.bf16.msra.mxu0 0
    %5668 = vmatprep.subr.bf16.mxu0 0
    %5669 = vmatpush1.bf16.msra.mxu0 0
    %5670 = vmatprep.subr.bf16.mxu0 0
    %5671 = vmatpush1.bf16.msra.mxu0 0
    %5672 = vmatprep.subr.bf16.mxu0 0
    %5673 = vmatpush1.bf16.msra.mxu0 0
    %5674 = vmatprep.subr.bf16.mxu0 0
    %5675 = vmatpush1.bf16.msra.mxu0 0
    %5676 = vmatprep.subr.bf16.mxu0 0
    %5677 = vmatpush1.bf16.msra.mxu0 0
    %5678 = vmatprep.subr.bf16.mxu0 0
    %5679 = vmatpush1.bf16.msra.mxu0 0
    %5680 = vmatprep.subr.bf16.mxu0 0
    %5681 = vmatpush1.bf16.msra.mxu0 0
    %5682 = vmatprep.subr.bf16.mxu0 0
    %5683 = vmatpush1.bf16.msra.mxu0 0
    %5684 = vmatprep.mubr.bf16.mxu0 0
    %5685 = vmatmul.mubr.bf16.gmra.mrb[0].mxu0 %v5650
    %v5686 = vpop.f32.mrb[0].mxu0
    %v5687 = vadd.f32 0.0, %v5686
    %v5688 = vpop.f32.mrb[0].mxu0
    %v5689 = vpop.f32.mrb[0].mxu0
    %v5690 = vadd.f32 0.0, %v5689
    %v5691 = vpop.f32.mrb[0].mxu0
    %5692 = vdwg.mxu0
    %5693 = vrot.lane.b32.xlu0 %v3862, 48
    %v5694 = vpop.permute.xlu0 %5693
    %v5697 = vsel %vm1931, %v5547, 0
    %5699 = vmatprep.subr.bf16.mxu0 0
    %5700 = vmatpush1.bf16.msra.mxu0 %v5694
    %5701 = vmatprep.subr.bf16.mxu0 0
    %5702 = vmatpush1.bf16.msra.mxu0 0
    %5703 = vmatprep.subr.bf16.mxu0 0
    %5704 = vmatpush1.bf16.msra.mxu0 0
    %5705 = vmatprep.subr.bf16.mxu0 0
    %5706 = vmatpush1.bf16.msra.mxu0 0
    %5707 = vmatprep.subr.bf16.mxu0 0
    %5708 = vmatpush1.bf16.msra.mxu0 0
    %5709 = vmatprep.subr.bf16.mxu0 0
    %5710 = vmatpush1.bf16.msra.mxu0 0
    %5711 = vmatprep.subr.bf16.mxu0 0
    %5712 = vmatpush1.bf16.msra.mxu0 0
    %5713 = vmatprep.subr.bf16.mxu0 0
    %5714 = vmatpush1.bf16.msra.mxu0 0
    %5715 = vmatprep.subr.bf16.mxu0 0
    %5716 = vmatpush1.bf16.msra.mxu0 0
    %5717 = vmatprep.subr.bf16.mxu0 0
    %5718 = vmatpush1.bf16.msra.mxu0 0
    %5719 = vmatprep.subr.bf16.mxu0 0
    %5720 = vmatpush1.bf16.msra.mxu0 0
    %5721 = vmatprep.subr.bf16.mxu0 0
    %5722 = vmatpush1.bf16.msra.mxu0 0
    %5723 = vmatprep.subr.bf16.mxu0 0
    %5724 = vmatpush1.bf16.msra.mxu0 0
    %5725 = vmatprep.subr.bf16.mxu0 0
    %5726 = vmatpush1.bf16.msra.mxu0 0
    %5727 = vmatprep.subr.bf16.mxu0 0
    %5728 = vmatpush1.bf16.msra.mxu0 0
    %5729 = vmatprep.subr.bf16.mxu0 0
    %5730 = vmatpush1.bf16.msra.mxu0 0
    %5731 = vmatprep.mubr.bf16.mxu0 0
    %5732 = vmatmul.mubr.bf16.gmra.mrb[0].mxu0 %v5697
    %v5733 = vpop.f32.mrb[0].mxu0
    %v5734 = vadd.f32 0.0, %v5733
    %v5735 = vpop.f32.mrb[0].mxu0
    %v5736 = vpop.f32.mrb[0].mxu0
    %v5737 = vadd.f32 0.0, %v5736
    %v5738 = vpop.f32.mrb[0].mxu0
    %5739 = vdwg.mxu0
    %5740 = vrot.lane.b32.xlu0 %v3863, 48
    %v5741 = vpop.permute.xlu0 %5740
    %v5744 = vsel %vm1931, %v5548, 0
    %5746 = vmatprep.subr.bf16.mxu0 0
    %5747 = vmatpush1.bf16.msra.mxu0 %v5741
    %5748 = vmatprep.subr.bf16.mxu0 0
    %5749 = vmatpush1.bf16.msra.mxu0 0
    %5750 = vmatprep.subr.bf16.mxu0 0
    %5751 = vmatpush1.bf16.msra.mxu0 0
    %5752 = vmatprep.subr.bf16.mxu0 0
    %5753 = vmatpush1.bf16.msra.mxu0 0
    %5754 = vmatprep.subr.bf16.mxu0 0
    %5755 = vmatpush1.bf16.msra.mxu0 0
    %5756 = vmatprep.subr.bf16.mxu0 0
    %5757 = vmatpush1.bf16.msra.mxu0 0
    %5758 = vmatprep.subr.bf16.mxu0 0
    %5759 = vmatpush1.bf16.msra.mxu0 0
    %5760 = vmatprep.subr.bf16.mxu0 0
    %5761 = vmatpush1.bf16.msra.mxu0 0
    %5762 = vmatprep.subr.bf16.mxu0 0
    %5763 = vmatpush1.bf16.msra.mxu0 0
    %5764 = vmatprep.subr.bf16.mxu0 0
    %5765 = vmatpush1.bf16.msra.mxu0 0
    %5766 = vmatprep.subr.bf16.mxu0 0
    %5767 = vmatpush1.bf16.msra.mxu0 0
    %5768 = vmatprep.subr.bf16.mxu0 0
    %5769 = vmatpush1.bf16.msra.mxu0 0
    %5770 = vmatprep.subr.bf16.mxu0 0
    %5771 = vmatpush1.bf16.msra.mxu0 0
    %5772 = vmatprep.subr.bf16.mxu0 0
    %5773 = vmatpush1.bf16.msra.mxu0 0
    %5774 = vmatprep.subr.bf16.mxu0 0
    %5775 = vmatpush1.bf16.msra.mxu0 0
    %5776 = vmatprep.subr.bf16.mxu0 0
    %5777 = vmatpush1.bf16.msra.mxu0 0
    %5778 = vmatprep.mubr.bf16.mxu0 0
    %5779 = vmatmul.mubr.bf16.gmra.mrb[0].mxu0 %v5744
    %v5780 = vpop.f32.mrb[0].mxu0
    %v5781 = vadd.f32 0.0, %v5780
    %v5782 = vpop.f32.mrb[0].mxu0
    %v5783 = vpop.f32.mrb[0].mxu0
    %v5784 = vadd.f32 0.0, %v5783
    %v5785 = vpop.f32.mrb[0].mxu0
    %5786 = vdwg.mxu0
    %5787 = vrot.lane.b32.xlu0 %v3864, 48
    %v5788 = vpop.permute.xlu0 %5787
    %v5791 = vsel %vm1931, %v5549, 0
    %5793 = vmatprep.subr.bf16.mxu0 0
    %5794 = vmatpush1.bf16.msra.mxu0 %v5788
    %5795 = vmatprep.subr.bf16.mxu0 0
    %5796 = vmatpush1.bf16.msra.mxu0 0
    %5797 = vmatprep.subr.bf16.mxu0 0
    %5798 = vmatpush1.bf16.msra.mxu0 0
    %5799 = vmatprep.subr.bf16.mxu0 0
    %5800 = vmatpush1.bf16.msra.mxu0 0
    %5801 = vmatprep.subr.bf16.mxu0 0
    %5802 = vmatpush1.bf16.msra.mxu0 0
    %5803 = vmatprep.subr.bf16.mxu0 0
    %5804 = vmatpush1.bf16.msra.mxu0 0
    %5805 = vmatprep.subr.bf16.mxu0 0
    %5806 = vmatpush1.bf16.msra.mxu0 0
    %5807 = vmatprep.subr.bf16.mxu0 0
    %5808 = vmatpush1.bf16.msra.mxu0 0
    %5809 = vmatprep.subr.bf16.mxu0 0
    %5810 = vmatpush1.bf16.msra.mxu0 0
    %5811 = vmatprep.subr.bf16.mxu0 0
    %5812 = vmatpush1.bf16.msra.mxu0 0
    %5813 = vmatprep.subr.bf16.mxu0 0
    %5814 = vmatpush1.bf16.msra.mxu0 0
    %5815 = vmatprep.subr.bf16.mxu0 0
    %5816 = vmatpush1.bf16.msra.mxu0 0
    %5817 = vmatprep.subr.bf16.mxu0 0
    %5818 = vmatpush1.bf16.msra.mxu0 0
    %5819 = vmatprep.subr.bf16.mxu0 0
    %5820 = vmatpush1.bf16.msra.mxu0 0
    %5821 = vmatprep.subr.bf16.mxu0 0
    %5822 = vmatpush1.bf16.msra.mxu0 0
    %5823 = vmatprep.subr.bf16.mxu0 0
    %5824 = vmatpush1.bf16.msra.mxu0 0
    %5825 = vmatprep.mubr.bf16.mxu0 0
    %5826 = vmatmul.mubr.bf16.gmra.mrb[0].mxu0 %v5791
    %v5827 = vpop.f32.mrb[0].mxu0
    %v5828 = vadd.f32 0.0, %v5827
    %v5829 = vpop.f32.mrb[0].mxu0
    %v5830 = vpop.f32.mrb[0].mxu0
    %v5831 = vadd.f32 0.0, %v5830
    %v5832 = vpop.f32.mrb[0].mxu0
    %5833 = vdwg.mxu0
    %5834 = vrot.lane.b32.xlu0 %v3865, 48
    %v5835 = vpop.permute.xlu0 %5834
    %v5838 = vsel %vm1931, %v5550, 0
    %5840 = vmatprep.subr.bf16.mxu0 0
    %5841 = vmatpush1.bf16.msra.mxu0 %v5835
    %5842 = vmatprep.subr.bf16.mxu0 0
    %5843 = vmatpush1.bf16.msra.mxu0 0
    %5844 = vmatprep.subr.bf16.mxu0 0
    %5845 = vmatpush1.bf16.msra.mxu0 0
    %5846 = vmatprep.subr.bf16.mxu0 0
    %5847 = vmatpush1.bf16.msra.mxu0 0
    %5848 = vmatprep.subr.bf16.mxu0 0
    %5849 = vmatpush1.bf16.msra.mxu0 0
    %5850 = vmatprep.subr.bf16.mxu0 0
    %5851 = vmatpush1.bf16.msra.mxu0 0
    %5852 = vmatprep.subr.bf16.mxu0 0
    %5853 = vmatpush1.bf16.msra.mxu0 0
    %5854 = vmatprep.subr.bf16.mxu0 0
    %5855 = vmatpush1.bf16.msra.mxu0 0
    %5856 = vmatprep.subr.bf16.mxu0 0
    %5857 = vmatpush1.bf16.msra.mxu0 0
    %5858 = vmatprep.subr.bf16.mxu0 0
    %5859 = vmatpush1.bf16.msra.mxu0 0
    %5860 = vmatprep.subr.bf16.mxu0 0
    %5861 = vmatpush1.bf16.msra.mxu0 0
    %5862 = vmatprep.subr.bf16.mxu0 0
    %5863 = vmatpush1.bf16.msra.mxu0 0
    %5864 = vmatprep.subr.bf16.mxu0 0
    %5865 = vmatpush1.bf16.msra.mxu0 0
    %5866 = vmatprep.subr.bf16.mxu0 0
    %5867 = vmatpush1.bf16.msra.mxu0 0
    %5868 = vmatprep.subr.bf16.mxu0 0
    %5869 = vmatpush1.bf16.msra.mxu0 0
    %5870 = vmatprep.subr.bf16.mxu0 0
    %5871 = vmatpush1.bf16.msra.mxu0 0
    %5872 = vmatprep.mubr.bf16.mxu0 0
    %5873 = vmatmul.mubr.bf16.gmra.mrb[0].mxu0 %v5838
    %v5874 = vpop.f32.mrb[0].mxu0
    %v5875 = vadd.f32 0.0, %v5874
    %v5876 = vpop.f32.mrb[0].mxu0
    %v5877 = vpop.f32.mrb[0].mxu0
    %v5878 = vadd.f32 0.0, %v5877
    %v5879 = vpop.f32.mrb[0].mxu0
    %5880 = vdwg.mxu0
    %5881 = vrot.lane.b32.xlu0 %v3866, 48
    %v5882 = vpop.permute.xlu0 %5881
    %v5885 = vsel %vm1931, %v5551, 0
    %5887 = vmatprep.subr.bf16.mxu0 0
    %5888 = vmatpush1.bf16.msra.mxu0 %v5882
    %5889 = vmatprep.subr.bf16.mxu0 0
    %5890 = vmatpush1.bf16.msra.mxu0 0
    %5891 = vmatprep.subr.bf16.mxu0 0
    %5892 = vmatpush1.bf16.msra.mxu0 0
    %5893 = vmatprep.subr.bf16.mxu0 0
    %5894 = vmatpush1.bf16.msra.mxu0 0
    %5895 = vmatprep.subr.bf16.mxu0 0
    %5896 = vmatpush1.bf16.msra.mxu0 0
    %5897 = vmatprep.subr.bf16.mxu0 0
    %5898 = vmatpush1.bf16.msra.mxu0 0
    %5899 = vmatprep.subr.bf16.mxu0 0
    %5900 = vmatpush1.bf16.msra.mxu0 0
    %5901 = vmatprep.subr.bf16.mxu0 0
    %5902 = vmatpush1.bf16.msra.mxu0 0
    %5903 = vmatprep.subr.bf16.mxu0 0
    %5904 = vmatpush1.bf16.msra.mxu0 0
    %5905 = vmatprep.subr.bf16.mxu0 0
    %5906 = vmatpush1.bf16.msra.mxu0 0
    %5907 = vmatprep.subr.bf16.mxu0 0
    %5908 = vmatpush1.bf16.msra.mxu0 0
    %5909 = vmatprep.subr.bf16.mxu0 0
    %5910 = vmatpush1.bf16.msra.mxu0 0
    %5911 = vmatprep.subr.bf16.mxu0 0
    %5912 = vmatpush1.bf16.msra.mxu0 0
    %5913 = vmatprep.subr.bf16.mxu0 0
    %5914 = vmatpush1.bf16.msra.mxu0 0
    %5915 = vmatprep.subr.bf16.mxu0 0
    %5916 = vmatpush1.bf16.msra.mxu0 0
    %5917 = vmatprep.subr.bf16.mxu0 0
    %5918 = vmatpush1.bf16.msra.mxu0 0
    %5919 = vmatprep.mubr.bf16.mxu0 0
    %5920 = vmatmul.mubr.bf16.gmra.mrb[0].mxu0 %v5885
    %v5921 = vpop.f32.mrb[0].mxu0
    %v5922 = vadd.f32 0.0, %v5921
    %v5923 = vpop.f32.mrb[0].mxu0
    %v5924 = vpop.f32.mrb[0].mxu0
    %v5925 = vadd.f32 0.0, %v5924
    %v5926 = vpop.f32.mrb[0].mxu0
    %5927 = vdwg.mxu0
    %v5928 = vpack.c.bf16 %v5596, %v5593
    %v5929 = vpack.c.bf16 %v5643, %v5640
    %v5930 = vpack.c.bf16 %v5690, %v5687
    %v5931 = vpack.c.bf16 %v5737, %v5734
    %v5932 = vpack.c.bf16 %v5784, %v5781
    %v5933 = vpack.c.bf16 %v5831, %v5828
    %v5934 = vpack.c.bf16 %v5878, %v5875
    %v5935 = vpack.c.bf16 %v5925, %v5922
    %5944 = vrot.lane.b32.xlu0 %v5928, 16
    %v5945 = vpop.permute.xlu0 %5944
    %5946 = vrot.lane.b32.xlu0 %v5929, 16
    %v5947 = vpop.permute.xlu0 %5946
    %5948 = vrot.lane.b32.xlu0 %v5930, 16
    %v5949 = vpop.permute.xlu0 %5948
    %5950 = vrot.lane.b32.xlu0 %v5931, 16
    %v5951 = vpop.permute.xlu0 %5950
    %5952 = vrot.lane.b32.xlu0 %v5932, 16
    %v5953 = vpop.permute.xlu0 %5952
    %5954 = vrot.lane.b32.xlu0 %v5933, 16
    %v5955 = vpop.permute.xlu0 %5954
    %5956 = vrot.lane.b32.xlu0 %v5934, 16
    %v5957 = vpop.permute.xlu0 %5956
    %5958 = vrot.lane.b32.xlu0 %v5935, 16
    %v5959 = vpop.permute.xlu0 %5958
    %vm5968 = vcmask 261248
    %5969 = vst.msk [vmem:[#allocation4] sm:$0xff] %vm5968, %v5945
    %5970 = vst.msk [vmem:[#allocation4 + $0x8] sm:$0xff] %vm5968, %v5947
    %5971 = vst.msk [vmem:[#allocation4 + $0x10] sm:$0xff] %vm5968, %v5949
    %5972 = vst.msk [vmem:[#allocation4 + $0x18] sm:$0xff] %vm5968, %v5951
    %5973 = vst.msk [vmem:[#allocation4 + $0x20] sm:$0xff] %vm5968, %v5953
    %5974 = vst.msk [vmem:[#allocation4 + $0x28] sm:$0xff] %vm5968, %v5955
    %5975 = vst.msk [vmem:[#allocation4 + $0x30] sm:$0xff] %vm5968, %v5957
    %5976 = vst.msk [vmem:[#allocation4 + $0x38] sm:$0xff] %vm5968, %v5959
    %v5977 = vld [vmem:[#allocation4] sm:$0xff]
    %v5978 = vld [vmem:[#allocation4 + $0x8] sm:$0xff]
    %v5979 = vld [vmem:[#allocation4 + $0x10] sm:$0xff]
    %v5980 = vld [vmem:[#allocation4 + $0x18] sm:$0xff]
    %v5981 = vld [vmem:[#allocation4 + $0x20] sm:$0xff]
    %v5982 = vld [vmem:[#allocation4 + $0x28] sm:$0xff]
    %v5983 = vld [vmem:[#allocation4 + $0x30] sm:$0xff]
    %v5984 = vld [vmem:[#allocation4 + $0x38] sm:$0xff]
    %v5985 = vld [vmem:[%s9] sm:$0xf]
    %v5986 = vld [vmem:[%s9 + $0x4] sm:$0xf]
    %v5987 = vld [vmem:[%s9 + $0x8] sm:$0xf]
    %v5988 = vld [vmem:[%s9 + $0xc] sm:$0xf]
    %v5989 = vld [vmem:[%s10] sm:$0x1]
    %v5991 = vlaneseq
    %v5992 = vshrl.u32 %v5991, 7
    %v5993 = vsub.s32 0, %v5992
    %v5994 = vrot.slane %v5989, %v5993
    %v6000 = vunpack.c.l.b16 %v5985
    %v6001 = vunpack.c.l.b16 %v5986
    %v6002 = vunpack.c.l.b16 %v5987
    %v6003 = vunpack.c.l.b16 %v5988
    %v6004 = vpack.c.b16 %v6001, %v6000
    %v6005 = vpack.c.b16 %v6003, %v6002
    %v6009 = vsel %vm197, %v5977, 0
    %v6012 = vsel %vm197, %v5978, 0
    %v6015 = vsel %vm197, %v5979, 0
    %v6018 = vsel %vm197, %v5980, 0
    %v6021 = vsel %vm197, %v5981, 0
    %v6024 = vsel %vm197, %v5982, 0
    %v6027 = vsel %vm197, %v5983, 0
    %v6030 = vsel %vm197, %v5984, 0
    %6032 = vmatprep.subr.bf16.mxu0 0
    %6033 = vmatpush1.bf16.msra.mxu0 %v6004
    %6034 = vmatprep.subr.bf16.mxu0 0
    %6035 = vmatpush1.bf16.msra.mxu0 %v6005
    %6036 = vmatprep.subr.bf16.mxu0 0
    %6037 = vmatpush1.bf16.msra.mxu0 0
    %6038 = vmatprep.subr.bf16.mxu0 0
    %6039 = vmatpush1.bf16.msra.mxu0 0
    %6040 = vmatprep.subr.bf16.mxu0 0
    %6041 = vmatpush1.bf16.msra.mxu0 0
    %6042 = vmatprep.subr.bf16.mxu0 0
    %6043 = vmatpush1.bf16.msra.mxu0 0
    %6044 = vmatprep.subr.bf16.mxu0 0
    %6045 = vmatpush1.bf16.msra.mxu0 0
    %6046 = vmatprep.subr.bf16.mxu0 0
    %6047 = vmatpush1.bf16.msra.mxu0 0
    %6048 = vmatprep.subr.bf16.mxu0 0
    %6049 = vmatpush1.bf16.msra.mxu0 0
    %6050 = vmatprep.subr.bf16.mxu0 0
    %6051 = vmatpush1.bf16.msra.mxu0 0
    %6052 = vmatprep.subr.bf16.mxu0 0
    %6053 = vmatpush1.bf16.msra.mxu0 0
    %6054 = vmatprep.subr.bf16.mxu0 0
    %6055 = vmatpush1.bf16.msra.mxu0 0
    %6056 = vmatprep.subr.bf16.mxu0 0
    %6057 = vmatpush1.bf16.msra.mxu0 0
    %6058 = vmatprep.subr.bf16.mxu0 0
    %6059 = vmatpush1.bf16.msra.mxu0 0
    %6060 = vmatprep.subr.bf16.mxu0 0
    %6061 = vmatpush1.bf16.msra.mxu0 0
    %6062 = vmatprep.subr.bf16.mxu0 0
    %6063 = vmatpush1.bf16.msra.mxu0 0
    %6064 = vmatprep.mubr.bf16.mxu0 0
    %6065 = vmatmul.mubr.bf16.gmra.mrb[0].mxu0 %v6009
    %v6066 = vpop.f32.mrb[0].mxu0
    %v6067 = vadd.f32 %v5994, %v6066
    %v6068 = vpop.f32.mrb[0].mxu0
    %v6069 = vpop.f32.mrb[0].mxu0
    %v6070 = vadd.f32 %v5994, %v6069
    %v6071 = vpop.f32.mrb[0].mxu0
    %6072 = vmatprep.mubr.bf16.mxu0 0
    %6073 = vmatmul.mubr.bf16.gmra.mrb[0].mxu0 %v6012
    %v6074 = vpop.f32.mrb[0].mxu0
    %v6075 = vadd.f32 %v5994, %v6074
    %v6076 = vpop.f32.mrb[0].mxu0
    %v6077 = vpop.f32.mrb[0].mxu0
    %v6078 = vadd.f32 %v5994, %v6077
    %v6079 = vpop.f32.mrb[0].mxu0
    %6080 = vmatprep.mubr.bf16.mxu0 0
    %6081 = vmatmul.mubr.bf16.gmra.mrb[0].mxu0 %v6015
    %v6082 = vpop.f32.mrb[0].mxu0
    %v6083 = vadd.f32 %v5994, %v6082
    %v6084 = vpop.f32.mrb[0].mxu0
    %v6085 = vpop.f32.mrb[0].mxu0
    %v6086 = vadd.f32 %v5994, %v6085
    %v6087 = vpop.f32.mrb[0].mxu0
    %6088 = vmatprep.mubr.bf16.mxu0 0
    %6089 = vmatmul.mubr.bf16.gmra.mrb[0].mxu0 %v6018
    %v6090 = vpop.f32.mrb[0].mxu0
    %v6091 = vadd.f32 %v5994, %v6090
    %v6092 = vpop.f32.mrb[0].mxu0
    %v6093 = vpop.f32.mrb[0].mxu0
    %v6094 = vadd.f32 %v5994, %v6093
    %v6095 = vpop.f32.mrb[0].mxu0
    %6096 = vmatprep.mubr.bf16.mxu0 0
    %6097 = vmatmul.mubr.bf16.gmra.mrb[0].mxu0 %v6021
    %v6098 = vpop.f32.mrb[0].mxu0
    %v6099 = vadd.f32 %v5994, %v6098
    %v6100 = vpop.f32.mrb[0].mxu0
    %v6101 = vpop.f32.mrb[0].mxu0
    %v6102 = vadd.f32 %v5994, %v6101
    %v6103 = vpop.f32.mrb[0].mxu0
    %6104 = vmatprep.mubr.bf16.mxu0 0
    %6105 = vmatmul.mubr.bf16.gmra.mrb[0].mxu0 %v6024
    %v6106 = vpop.f32.mrb[0].mxu0
    %v6107 = vadd.f32 %v5994, %v6106
    %v6108 = vpop.f32.mrb[0].mxu0
    %v6109 = vpop.f32.mrb[0].mxu0
    %v6110 = vadd.f32 %v5994, %v6109
    %v6111 = vpop.f32.mrb[0].mxu0
    %6112 = vmatprep.mubr.bf16.mxu0 0
    %6113 = vmatmul.mubr.bf16.gmra.mrb[0].mxu0 %v6027
    %v6114 = vpop.f32.mrb[0].mxu0
    %v6115 = vadd.f32 %v5994, %v6114
    %v6116 = vpop.f32.mrb[0].mxu0
    %v6117 = vpop.f32.mrb[0].mxu0
    %v6118 = vadd.f32 %v5994, %v6117
    %v6119 = vpop.f32.mrb[0].mxu0
    %6120 = vmatprep.mubr.bf16.mxu0 0
    %6121 = vmatmul.mubr.bf16.gmra.mrb[0].mxu0 %v6030
    %v6122 = vpop.f32.mrb[0].mxu0
    %v6123 = vadd.f32 %v5994, %v6122
    %v6124 = vpop.f32.mrb[0].mxu0
    %v6125 = vpop.f32.mrb[0].mxu0
    %v6126 = vadd.f32 %v5994, %v6125
    %v6127 = vpop.f32.mrb[0].mxu0
    %6128 = vdwg.mxu0
    %v6129 = vpack.c.bf16 %v6070, %v6067
    %v6130 = vpack.c.bf16 %v6078, %v6075
    %v6131 = vpack.c.bf16 %v6086, %v6083
    %v6132 = vpack.c.bf16 %v6094, %v6091
    %v6133 = vpack.c.bf16 %v6102, %v6099
    %v6134 = vpack.c.bf16 %v6110, %v6107
    %v6135 = vpack.c.bf16 %v6118, %v6115
    %v6136 = vpack.c.bf16 %v6126, %v6123
    %v6145 = vunpack.c.l.b16 %v6129
    %v6146 = vunpack.c.h.b16 %v6129
    %v6147 = vunpack.c.l.b16 %v6130
    %v6148 = vunpack.c.h.b16 %v6130
    %v6149 = vunpack.c.l.b16 %v6131
    %v6150 = vunpack.c.h.b16 %v6131
    %v6151 = vunpack.c.l.b16 %v6132
    %v6152 = vunpack.c.h.b16 %v6132
    %v6153 = vunpack.c.l.b16 %v6133
    %v6154 = vunpack.c.h.b16 %v6133
    %v6155 = vunpack.c.l.b16 %v6134
    %v6156 = vunpack.c.h.b16 %v6134
    %v6157 = vunpack.c.l.b16 %v6135
    %v6158 = vunpack.c.h.b16 %v6135
    %v6159 = vunpack.c.l.b16 %v6136
    %v6160 = vunpack.c.h.b16 %v6136
    %v6161 = vpack.c.b16 %v6145, %v6145
    %v6162 = vpack.c.b16 %v6146, %v6146
    %v6163 = vpack.c.b16 %v6147, %v6147
    %v6164 = vpack.c.b16 %v6148, %v6148
    %v6165 = vpack.c.b16 %v6149, %v6149
    %v6166 = vpack.c.b16 %v6150, %v6150
    %v6167 = vpack.c.b16 %v6151, %v6151
    %v6168 = vpack.c.b16 %v6152, %v6152
    %v6169 = vpack.c.b16 %v6153, %v6153
    %v6170 = vpack.c.b16 %v6154, %v6154
    %v6171 = vpack.c.b16 %v6155, %v6155
    %v6172 = vpack.c.b16 %v6156, %v6156
    %v6173 = vpack.c.b16 %v6157, %v6157
    %v6174 = vpack.c.b16 %v6158, %v6158
    %v6175 = vpack.c.b16 %v6159, %v6159
    %v6176 = vpack.c.b16 %v6160, %v6160
    %vm6193 = vcmask 257024
    %6194 = vst.msk [vmem:[#allocation5] sm:$0xf] %vm6193, %v6161
    %6195 = vst.msk [vmem:[#allocation5 + $0x4] sm:$0xf] %vm6193, %v6162
    %6196 = vst.msk [vmem:[#allocation5 + $0x8] sm:$0xf] %vm6193, %v6163
    %6197 = vst.msk [vmem:[#allocation5 + $0xc] sm:$0xf] %vm6193, %v6164
    %6198 = vst.msk [vmem:[#allocation5 + $0x10] sm:$0xf] %vm6193, %v6165
    %6199 = vst.msk [vmem:[#allocation5 + $0x14] sm:$0xf] %vm6193, %v6166
    %6200 = vst.msk [vmem:[#allocation5 + $0x18] sm:$0xf] %vm6193, %v6167
    %6201 = vst.msk [vmem:[#allocation5 + $0x1c] sm:$0xf] %vm6193, %v6168
    %6202 = vst.msk [vmem:[#allocation5 + $0x20] sm:$0xf] %vm6193, %v6169
    %6203 = vst.msk [vmem:[#allocation5 + $0x24] sm:$0xf] %vm6193, %v6170
    %6204 = vst.msk [vmem:[#allocation5 + $0x28] sm:$0xf] %vm6193, %v6171
    %6205 = vst.msk [vmem:[#allocation5 + $0x2c] sm:$0xf] %vm6193, %v6172
    %6206 = vst.msk [vmem:[#allocation5 + $0x30] sm:$0xf] %vm6193, %v6173
    %6207 = vst.msk [vmem:[#allocation5 + $0x34] sm:$0xf] %vm6193, %v6174
    %6208 = vst.msk [vmem:[#allocation5 + $0x38] sm:$0xf] %vm6193, %v6175
    %6209 = vst.msk [vmem:[#allocation5 + $0x3c] sm:$0xf] %vm6193, %v6176
    // Predicated region
    $region50: #{tpu_custom_call.1} parent=1 // pred_check
      _
    $region51: #{tpu_custom_call.1} parent=1 // pred_check_branch
      %6211 = sbr.rel (0) target = $region53
    $region52: #{tpu_custom_call.1} parent=1 // pred_region
      %s6213 = ssub.s32 1024, 1024
      %6214 = vsyncadd [#allocation6], %s6213
      %s6215 = sshll.u32 [#allocation5], 4
      %s6216 = int_to_ptr.vmem [resolvable:$true] %s6215
      %6221 = dma.vmem_to_hbm [thread:$0]  %s6216, 1024, %s12, [#allocation6], 64, 64, 4
    $region53: #{tpu_custom_call.1} parent=1 // pred_fallthru
      _
    // Predicated region
    $region54: #{tpu_custom_call.1} parent=1 // pred_check
      _
    $region55: #{tpu_custom_call.1} parent=1 // pred_check_branch
      %6223 = sbr.rel (0) target = $region57
    $region56: #{tpu_custom_call.1} parent=1 // pred_region
      %6224 = dma.done [#allocation6], 1024
    $region57: #{tpu_custom_call.1} parent=1 // pred_fallthru
      _
    %6225 = vsyncpa [#allocation6], 1

</llo_original>
